<compile_context>
chip_gen: v6e
topology: v6e:2x2x1
jax: 0.10.0
libtpu: 0.0.40
codegen_flags: <defaults>
</compile_context>

<pallas_src>
import functools
import math

import jax
import jax.numpy as jnp
from jax import lax
from jax.experimental import pallas as pl
from jax.experimental.pallas import tpu as pltpu


# ----------------------------- in-kernel helpers -----------------------------

def _layernorm(h, g, b, eps=1e-6):
    mu = jnp.mean(h, axis=-1, keepdims=True)
    var = jnp.mean(jnp.square(h - mu), axis=-1, keepdims=True)
    return (h - mu) * lax.rsqrt(var + eps) * g + b


# ------------------------------- fused kernel --------------------------------

def _encoder_kernel(x_ref, pe_ref, ew_ref, attab_ref, w1_ref, b1_ref, w2_ref,
                    vecd_ref, h1w_ref, h1b_ref, h2w_ref, h2b_ref,
                    h3w_ref, h3b_ref, o_ref, attn_scr,
                    *, n_head, n_layers, seqs, seq_len):
    f32, bf16 = jnp.float32, jnp.bfloat16
    S = seq_len

    def vd(i):                                   # (1, D) row of the vector slab
        return vecd_ref[i:i + 1, :]

    # ---- sensor embedding + positional encoding + (dropout=id) + LayerNorm ----
    h = jnp.dot(x_ref[...], ew_ref[...], preferred_element_type=f32)   # (M, D)
    h = h + vd(0) + pe_ref[...]
    h = _layernorm(h, vd(1), vd(2))

    # ---- encoder layers (static unroll; n_layers is small) ----
    for l in range(n_layers):
        base = 3 + 5 * l

        # ---- multi-head self-attention (post-LN residual block) ----
        resid = h
        h_b = h.astype(bf16)                     # single f32->bf16 cast per layer
        # Per-head composed projections on all M = TB*S rows at once:
        #   qa[hd] = h @ (Wq_hd/sqrt(d_k) @ Wk_hd^T)  -> scores = qa . h^T
        #   vb[hd] = h @ (Wv_hd @ Wo[hd rows, :])     -> attn  += P . vb
        qa = [jnp.dot(h_b, attab_ref[l * 2 * n_head + hd],
                      preferred_element_type=f32).astype(bf16)
              for hd in range(n_head)]
        vb = [jnp.dot(h_b, attab_ref[l * 2 * n_head + n_head + hd],
                      preferred_element_type=f32).astype(bf16)
              for hd in range(n_head)]
        for s in range(seqs):                    # attention is per-sequence
            lo = s * S                           # sublane-aligned slice (S = 8)
            k_s = h_b[lo:lo + S, :]
            acc = None
            for hd in range(n_head):
                # contract on dim 1 of both operands: no K^T relayout
                sc = lax.dot_general(qa[hd][lo:lo + S, :], k_s,
                                     (((1,), (1,)), ((), ())),
                                     preferred_element_type=f32)     # (S, S)
                sc = sc - jnp.max(sc, axis=-1, keepdims=True)
                p = jnp.exp(sc)
                p = p * pl.reciprocal(jnp.sum(p, axis=-1, keepdims=True),
                                      approx=True)
                o_s = jnp.dot(p.astype(bf16), vb[hd][lo:lo + S, :],
                              preferred_element_type=f32)            # (S, D)
                acc = o_s if hd == 0 else acc + o_s
            attn_scr[lo:lo + S, :] = acc
        h = _layernorm(attn_scr[...] + resid, vd(base + 0), vd(base + 1))

        # ---- position-wise feed-forward (post-LN residual block) ----
        resid = h
        t = jnp.dot(h.astype(bf16), w1_ref[l],
                    preferred_element_type=f32) + b1_ref[l]
        t = jnp.maximum(t, 0.0)                  # ReLU
        t = jnp.dot(t.astype(bf16), w2_ref[l],
                    preferred_element_type=f32) + vd(base + 2)
        h = _layernorm(t + resid, vd(base + 3), vd(base + 4))

    # ---- linear_block head: Linear -> SiLU -> Linear -> SiLU -> Linear ----
    t = jnp.dot(h.astype(bf16), h1w_ref[...],
                preferred_element_type=f32) + h1b_ref[...]
    t = t * jax.nn.sigmoid(t)
    t = jnp.dot(t.astype(bf16), h2w_ref[...],
                preferred_element_type=f32) + h2b_ref[...]
    t = t * jax.nn.sigmoid(t)
    out = jnp.dot(t.astype(bf16), h3w_ref[...],
                  preferred_element_type=f32) + h3b_ref[...]          # (M, out_pad)
    o_ref[...] = out.astype(o_ref.dtype)


# ------------------------------ parameter setup -------------------------------

def sinusoidal_pe(n_position, d_hid):
    position = jnp.arange(n_position, dtype=jnp.float32)[:, None]
    div_term = jnp.exp(jnp.arange(0, d_hid, 2, dtype=jnp.float32)
                       * (-math.log(10000.0) / d_hid))
    pe = jnp.zeros((n_position, d_hid), jnp.float32)
    pe = pe.at[:, 0::2].set(jnp.sin(position * div_term))
    pe = pe.at[:, 1::2].set(jnp.cos(position * div_term))
    return pe


def init_params(key, *, input_dim, d_model, d_embedding, output_dim,
                n_layers, n_head, d_inner, n_position):
    std = 0.02
    keys = iter(jax.random.split(key, 64))

    def w(shape):
        return std * jax.random.normal(next(keys), shape, jnp.float32)

    params = {
        "pe": sinusoidal_pe(n_position, d_model),
        "emb_w": w((input_dim, d_model)),
        "emb_b": jnp.zeros((1, d_model), jnp.float32),
        "enc_ln_g": jnp.ones((1, d_model), jnp.float32),
        "enc_ln_b": jnp.zeros((1, d_model), jnp.float32),
        "layers": [],
        "h1_w": w((d_model, 2 * d_embedding)),
        "h1_b": jnp.zeros((1, 2 * d_embedding), jnp.float32),
        "h2_w": w((2 * d_embedding, d_embedding)),
        "h2_b": jnp.zeros((1, d_embedding), jnp.float32),
        "h3_w": w((d_embedding, output_dim)),
        "h3_b": jnp.zeros((1, output_dim), jnp.float32),
    }
    for _ in range(n_layers):
        params["layers"].append({
            "wq": w((d_model, d_model)),
            "wk": w((d_model, d_model)),
            "wv": w((d_model, d_model)),
            "wo": w((d_model, d_model)),
            "attn_g": jnp.ones((1, d_model), jnp.float32),
            "attn_b": jnp.zeros((1, d_model), jnp.float32),
            "w1": w((d_model, d_inner)),
            "b1": jnp.zeros((1, d_inner), jnp.float32),
            "w2": w((d_inner, d_model)),
            "b2": jnp.zeros((1, d_model), jnp.float32),
            "ffn_g": jnp.ones((1, d_model), jnp.float32),
            "ffn_b": jnp.zeros((1, d_model), jnp.float32),
        })
    return params


# --------------------------------- forward ------------------------------------

def transformer_encoder_forward(params, src, *, n_head, num_programs=None):
    B, S, Din = src.shape
    d_model = params["emb_w"].shape[1]
    lyrs = params["layers"]
    n_layers = len(lyrs)
    output_dim = params["h3_w"].shape[1]
    out_pad = ((output_dim + 127) // 128) * 128        # lane-dense output store
    din_pad = ((Din + 127) // 128) * 128               # lane-dense input load
    bf16 = jnp.bfloat16

    # Grid: 2 programs keep both v7x TensorCores busy; the extra step on
    # single-TC v5e/v6e costs only ~0.35us.  Pass num_programs=1 to collapse.
    NP = num_programs if num_programs is not None else (2 if B >= 2 else 1)
    TB = -(-B // NP)                                    # sequences per program
    B_pad = NP * TB
    M = TB * S                                          # rows per program

    # Input: pad batch + feature dim, pre-cast to bf16, flatten to (B*S, Din)
    # so all position-wise matmuls see M = TB*S rows.
    x = src
    if (B_pad, din_pad) != (B, Din):
        x = jnp.pad(x, ((0, B_pad - B), (0, 0), (0, din_pad - Din)))
    x = x.astype(bf16).reshape(B_pad * S, din_pad)

    pe = jnp.tile(params["pe"][:S], (TB, 1))            # (M, D), same per program

    emb_w = jnp.pad(params["emb_w"],
                    ((0, din_pad - Din), (0, 0))).astype(bf16)

    # Per-head composed attention matrices (kills in-kernel head slicing & K^T):
    #   A_h = (Wq_h / sqrt(d_k)) @ Wk_h^T   (D, D)
    #   B_h = Wv_h @ Wo[h rows, :]          (D, D)
    d_k = d_model // n_head
    scale = 1.0 / math.sqrt(d_k)
    blocks = []
    for l in lyrs:
        a_h = [(l["wq"][:, h * d_k:(h + 1) * d_k] * scale)
               @ l["wk"][:, h * d_k:(h + 1) * d_k].T for h in range(n_head)]
        b_h = [l["wv"][:, h * d_k:(h + 1) * d_k]
               @ l["wo"][h * d_k:(h + 1) * d_k, :] for h in range(n_head)]
        blocks.append(jnp.stack(a_h + b_h))             # (2H, D, D)
    attab = jnp.concatenate(blocks, axis=0).astype(bf16)   # (L*2H, D, D)

    w1s = jnp.stack([l["w1"] for l in lyrs]).astype(bf16)  # (L, D, Dh)
    b1s = jnp.stack([l["b1"] for l in lyrs])                # (L, 1, Dh)
    w2s = jnp.stack([l["w2"] for l in lyrs]).astype(bf16)  # (L, Dh, D)

    # All width-d_model gains/biases in one slab (fewer refs / DMA descriptors).
    rows = [params["emb_b"], params["enc_ln_g"], params["enc_ln_b"]]
    for l in lyrs:
        rows += [l["attn_g"], l["attn_b"], l["b2"], l["ffn_g"], l["ffn_b"]]
    vecd = jnp.concatenate(rows, axis=0)                 # (3 + 5L, D)

    h3w = jnp.pad(params["h3_w"],
                  ((0, 0), (0, out_pad - output_dim))).astype(bf16)
    h3b = jnp.pad(params["h3_b"], ((0, 0), (0, out_pad - output_dim)))

    args = [x, pe, emb_w, attab, w1s, b1s, w2s, vecd,
            params["h1_w"].astype(bf16), params["h1_b"],
            params["h2_w"].astype(bf16), params["h2_b"],
            h3w, h3b]

    x_spec = pl.BlockSpec((M, din_pad), lambda p: (p, 0))
    out_spec = pl.BlockSpec((M, out_pad), lambda p: (p, 0))
    # Weights: full-array blocks with a constant block index -> resident in
    # VMEM across the whole grid (no re-fetch).
    w_specs = [pl.BlockSpec(a.shape, (lambda p, _nd=a.ndim: (0,) * _nd))
               for a in args[1:]]

    out = pl.pallas_call(
        functools.partial(_encoder_kernel, n_head=n_head, n_layers=n_layers,
                          seqs=TB, seq_len=S),
        out_shape=jax.ShapeDtypeStruct((B_pad * S, out_pad), jnp.float32),
        grid=(NP,),
        in_specs=[x_spec] + w_specs,
        out_specs=out_spec,
        scratch_shapes=[pltpu.VMEM((M, d_model), jnp.float32)],
        compiler_params=pltpu.CompilerParams(
            dimension_semantics=("parallel",)),
    )(*args)
    return out[:B * S, :output_dim].reshape(B, S, output_dim)


# ----------------------------------- main --------------------------------------

if __name__ == "__main__":
    # module defaults
    INPUT_DIM = 72
    OUTPUT_DIM = 24 * 3
    D_MODEL = 64
    D_EMBEDDING = 64
    N_LAYERS = 3
    N_HEAD = 4
    D_INNER = 4 * D_MODEL        # TODO(synk): assumed (not given in the source)
    N_POSITION = 200

    # small example input (B=4 -> 2 sequences per program on a 2-program grid)
    B, S = 4, 8
    key = jax.random.PRNGKey(0)
    k_x, k_p = jax.random.split(key)
    src_seq = jax.random.normal(k_x, (B, S, INPUT_DIM), jnp.float32)

    params = init_params(k_p, input_dim=INPUT_DIM, d_model=D_MODEL,
                         d_embedding=D_EMBEDDING, output_dim=OUTPUT_DIM,
                         n_layers=N_LAYERS, n_head=N_HEAD,
                         d_inner=D_INNER, n_position=N_POSITION)

    fwd = jax.jit(functools.partial(transformer_encoder_forward, n_head=N_HEAD))
    out = jax.block_until_ready(fwd(params, src_seq))

    assert out.shape == (B, S, OUTPUT_DIM), out.shape
    assert bool(jnp.all(jnp.isfinite(out)))
    print("KERNEL_OK")
</pallas_src>

<mosaic_0001>
module attributes {stable_mosaic.version = 11 : i64} {
  func.func @_encoder_kernel(%arg0: i32, %arg1: memref<16x128xbf16, #tpu.memory_space<vmem>>, %arg2: memref<16x64xf32, #tpu.memory_space<vmem>>, %arg3: memref<128x64xbf16, #tpu.memory_space<vmem>>, %arg4: memref<24x64x64xbf16, #tpu.memory_space<vmem>>, %arg5: memref<3x64x256xbf16, #tpu.memory_space<vmem>>, %arg6: memref<3x1x256xf32, #tpu.memory_space<vmem>>, %arg7: memref<3x256x64xbf16, #tpu.memory_space<vmem>>, %arg8: memref<18x64xf32, #tpu.memory_space<vmem>>, %arg9: memref<64x128xbf16, #tpu.memory_space<vmem>>, %arg10: memref<1x128xf32, #tpu.memory_space<vmem>>, %arg11: memref<128x64xbf16, #tpu.memory_space<vmem>>, %arg12: memref<1x64xf32, #tpu.memory_space<vmem>>, %arg13: memref<64x128xbf16, #tpu.memory_space<vmem>>, %arg14: memref<1x128xf32, #tpu.memory_space<vmem>>, %arg15: memref<16x128xf32, #tpu.memory_space<vmem>>, %arg16: memref<16x64xf32, #tpu.memory_space<vmem>>) attributes {dimension_semantics = [#tpu.dimension_semantics<parallel>], iteration_bounds = array<i64: 2>, scalar_prefetch = 0 : i64, scratch_operands = 1 : i64, tpu.core_type = #tpu.core_type<tc>, window_params = [{transform_indices = @transform_0, window_bounds = array<i64: 16, 128>}, {pipeline_mode = #tpu.pipeline_mode<synchronous>, transform_indices = @transform_1, window_bounds = array<i64: 16, 64>}, {pipeline_mode = #tpu.pipeline_mode<synchronous>, transform_indices = @transform_2, window_bounds = array<i64: 128, 64>}, {pipeline_mode = #tpu.pipeline_mode<synchronous>, transform_indices = @transform_3, window_bounds = array<i64: 24, 64, 64>}, {pipeline_mode = #tpu.pipeline_mode<synchronous>, transform_indices = @transform_4, window_bounds = array<i64: 3, 64, 256>}, {pipeline_mode = #tpu.pipeline_mode<synchronous>, transform_indices = @transform_5, window_bounds = array<i64: 3, 1, 256>}, {pipeline_mode = #tpu.pipeline_mode<synchronous>, transform_indices = @transform_6, window_bounds = array<i64: 3, 256, 64>}, {pipeline_mode = #tpu.pipeline_mode<synchronous>, transform_indices = @transform_7, window_bounds = array<i64: 18, 64>}, {pipeline_mode = #tpu.pipeline_mode<synchronous>, transform_indices = @transform_8, window_bounds = array<i64: 64, 128>}, {pipeline_mode = #tpu.pipeline_mode<synchronous>, transform_indices = @transform_9, window_bounds = array<i64: 1, 128>}, {pipeline_mode = #tpu.pipeline_mode<synchronous>, transform_indices = @transform_10, window_bounds = array<i64: 128, 64>}, {pipeline_mode = #tpu.pipeline_mode<synchronous>, transform_indices = @transform_11, window_bounds = array<i64: 1, 64>}, {pipeline_mode = #tpu.pipeline_mode<synchronous>, transform_indices = @transform_12, window_bounds = array<i64: 64, 128>}, {pipeline_mode = #tpu.pipeline_mode<synchronous>, transform_indices = @transform_13, window_bounds = array<i64: 1, 128>}, {transform_indices = @transform_14, window_bounds = array<i64: 16, 128>}]} {
    %c0 = arith.constant 0 : index
    %c0_0 = arith.constant 0 : index
    %0 = vector.load %arg1[%c0, %c0_0] : memref<16x128xbf16, #tpu.memory_space<vmem>>, vector<16x128xbf16>
    %c0_1 = arith.constant 0 : index
    %c0_2 = arith.constant 0 : index
    %1 = vector.load %arg3[%c0_1, %c0_2] : memref<128x64xbf16, #tpu.memory_space<vmem>>, vector<128x64xbf16>
    %cst = arith.constant dense<0.000000e+00> : vector<16x64xf32>
    %2 = tpu.matmul %0, %1, %cst {dimension_numbers = #tpu.dot_dimension_numbers<[1], [0], [0], [1], [0, 0, 1, 1], [], []>} : vector<16x128xbf16>, vector<128x64xbf16>, vector<16x64xf32> -> vector<16x64xf32>
    %c0_3 = arith.constant 0 : index
    %c0_4 = arith.constant 0 : index
    %3 = vector.load %arg8[%c0_3, %c0_4] : memref<18x64xf32, #tpu.memory_space<vmem>>, vector<1x64xf32>
    %4 = vector.broadcast %3 : vector<1x64xf32> to vector<16x64xf32>
    %5 = arith.addf %2, %4 : vector<16x64xf32>
    %c0_5 = arith.constant 0 : index
    %c0_6 = arith.constant 0 : index
    %6 = vector.load %arg2[%c0_5, %c0_6] : memref<16x64xf32, #tpu.memory_space<vmem>>, vector<16x64xf32>
    %7 = arith.addf %5, %6 : vector<16x64xf32>
    %c1 = arith.constant 1 : index
    %c0_7 = arith.constant 0 : index
    %8 = vector.load %arg8[%c1, %c0_7] : memref<18x64xf32, #tpu.memory_space<vmem>>, vector<1x64xf32>
    %c2 = arith.constant 2 : index
    %c0_8 = arith.constant 0 : index
    %9 = vector.load %arg8[%c2, %c0_8] : memref<18x64xf32, #tpu.memory_space<vmem>>, vector<1x64xf32>
    %cst_9 = arith.constant dense<0.000000e+00> : vector<16xf32>
    %10 = vector.multi_reduction <add>, %7, %cst_9 [1] : vector<16x64xf32> to vector<16xf32>
    %11 = vector.shape_cast %10 : vector<16xf32> to vector<16x1xf32>
    %cst_10 = arith.constant 6.400000e+01 : f32
    %12 = vector.broadcast %cst_10 : f32 to vector<16x1xf32>
    %13 = arith.divf %11, %12 : vector<16x1xf32>
    %14 = vector.broadcast %13 : vector<16x1xf32> to vector<16x64xf32>
    %15 = arith.subf %7, %14 : vector<16x64xf32>
    %16 = arith.mulf %15, %15 : vector<16x64xf32>
    %cst_11 = arith.constant dense<0.000000e+00> : vector<16xf32>
    %17 = vector.multi_reduction <add>, %16, %cst_11 [1] : vector<16x64xf32> to vector<16xf32>
    %18 = vector.shape_cast %17 : vector<16xf32> to vector<16x1xf32>
    %cst_12 = arith.constant 6.400000e+01 : f32
    %19 = vector.broadcast %cst_12 : f32 to vector<16x1xf32>
    %20 = arith.divf %18, %19 : vector<16x1xf32>
    %21 = vector.broadcast %13 : vector<16x1xf32> to vector<16x64xf32>
    %22 = arith.subf %7, %21 : vector<16x64xf32>
    %cst_13 = arith.constant 9.99999997E-7 : f32
    %23 = vector.broadcast %cst_13 : f32 to vector<16x1xf32>
    %24 = arith.addf %20, %23 : vector<16x1xf32>
    %25 = math.rsqrt %24 : vector<16x1xf32>
    %26 = vector.broadcast %25 : vector<16x1xf32> to vector<16x64xf32>
    %27 = arith.mulf %22, %26 : vector<16x64xf32>
    %28 = vector.broadcast %8 : vector<1x64xf32> to vector<16x64xf32>
    %29 = arith.mulf %27, %28 : vector<16x64xf32>
    %30 = vector.broadcast %9 : vector<1x64xf32> to vector<16x64xf32>
    %31 = arith.addf %29, %30 : vector<16x64xf32>
    %32 = arith.truncf %31 : vector<16x64xf32> to vector<16x64xbf16>
    %c0_14 = arith.constant 0 : index
    %c0_15 = arith.constant 0 : index
    %c0_16 = arith.constant 0 : index
    %33 = vector.load %arg4[%c0_14, %c0_15, %c0_16] : memref<24x64x64xbf16, #tpu.memory_space<vmem>>, vector<1x64x64xbf16>
    %34 = vector.shape_cast %33 : vector<1x64x64xbf16> to vector<64x64xbf16>
    %cst_17 = arith.constant dense<0.000000e+00> : vector<16x64xf32>
    %35 = tpu.matmul %32, %34, %cst_17 {dimension_numbers = #tpu.dot_dimension_numbers<[1], [0], [0], [1], [0, 0, 1, 1], [], []>} : vector<16x64xbf16>, vector<64x64xbf16>, vector<16x64xf32> -> vector<16x64xf32>
    %36 = arith.truncf %35 : vector<16x64xf32> to vector<16x64xbf16>
    %c1_18 = arith.constant 1 : index
    %c0_19 = arith.constant 0 : index
    %c0_20 = arith.constant 0 : index
    %37 = vector.load %arg4[%c1_18, %c0_19, %c0_20] : memref<24x64x64xbf16, #tpu.memory_space<vmem>>, vector<1x64x64xbf16>
    %38 = vector.shape_cast %37 : vector<1x64x64xbf16> to vector<64x64xbf16>
    %cst_21 = arith.constant dense<0.000000e+00> : vector<16x64xf32>
    %39 = tpu.matmul %32, %38, %cst_21 {dimension_numbers = #tpu.dot_dimension_numbers<[1], [0], [0], [1], [0, 0, 1, 1], [], []>} : vector<16x64xbf16>, vector<64x64xbf16>, vector<16x64xf32> -> vector<16x64xf32>
    %40 = arith.truncf %39 : vector<16x64xf32> to vector<16x64xbf16>
    %c2_22 = arith.constant 2 : index
    %c0_23 = arith.constant 0 : index
    %c0_24 = arith.constant 0 : index
    %41 = vector.load %arg4[%c2_22, %c0_23, %c0_24] : memref<24x64x64xbf16, #tpu.memory_space<vmem>>, vector<1x64x64xbf16>
    %42 = vector.shape_cast %41 : vector<1x64x64xbf16> to vector<64x64xbf16>
    %cst_25 = arith.constant dense<0.000000e+00> : vector<16x64xf32>
    %43 = tpu.matmul %32, %42, %cst_25 {dimension_numbers = #tpu.dot_dimension_numbers<[1], [0], [0], [1], [0, 0, 1, 1], [], []>} : vector<16x64xbf16>, vector<64x64xbf16>, vector<16x64xf32> -> vector<16x64xf32>
    %44 = arith.truncf %43 : vector<16x64xf32> to vector<16x64xbf16>
    %c3 = arith.constant 3 : index
    %c0_26 = arith.constant 0 : index
    %c0_27 = arith.constant 0 : index
    %45 = vector.load %arg4[%c3, %c0_26, %c0_27] : memref<24x64x64xbf16, #tpu.memory_space<vmem>>, vector<1x64x64xbf16>
    %46 = vector.shape_cast %45 : vector<1x64x64xbf16> to vector<64x64xbf16>
    %cst_28 = arith.constant dense<0.000000e+00> : vector<16x64xf32>
    %47 = tpu.matmul %32, %46, %cst_28 {dimension_numbers = #tpu.dot_dimension_numbers<[1], [0], [0], [1], [0, 0, 1, 1], [], []>} : vector<16x64xbf16>, vector<64x64xbf16>, vector<16x64xf32> -> vector<16x64xf32>
    %48 = arith.truncf %47 : vector<16x64xf32> to vector<16x64xbf16>
    %c4 = arith.constant 4 : index
    %c0_29 = arith.constant 0 : index
    %c0_30 = arith.constant 0 : index
    %49 = vector.load %arg4[%c4, %c0_29, %c0_30] : memref<24x64x64xbf16, #tpu.memory_space<vmem>>, vector<1x64x64xbf16>
    %50 = vector.shape_cast %49 : vector<1x64x64xbf16> to vector<64x64xbf16>
    %cst_31 = arith.constant dense<0.000000e+00> : vector<16x64xf32>
    %51 = tpu.matmul %32, %50, %cst_31 {dimension_numbers = #tpu.dot_dimension_numbers<[1], [0], [0], [1], [0, 0, 1, 1], [], []>} : vector<16x64xbf16>, vector<64x64xbf16>, vector<16x64xf32> -> vector<16x64xf32>
    %52 = arith.truncf %51 : vector<16x64xf32> to vector<16x64xbf16>
    %c5 = arith.constant 5 : index
    %c0_32 = arith.constant 0 : index
    %c0_33 = arith.constant 0 : index
    %53 = vector.load %arg4[%c5, %c0_32, %c0_33] : memref<24x64x64xbf16, #tpu.memory_space<vmem>>, vector<1x64x64xbf16>
    %54 = vector.shape_cast %53 : vector<1x64x64xbf16> to vector<64x64xbf16>
    %cst_34 = arith.constant dense<0.000000e+00> : vector<16x64xf32>
    %55 = tpu.matmul %32, %54, %cst_34 {dimension_numbers = #tpu.dot_dimension_numbers<[1], [0], [0], [1], [0, 0, 1, 1], [], []>} : vector<16x64xbf16>, vector<64x64xbf16>, vector<16x64xf32> -> vector<16x64xf32>
    %56 = arith.truncf %55 : vector<16x64xf32> to vector<16x64xbf16>
    %c6 = arith.constant 6 : index
    %c0_35 = arith.constant 0 : index
    %c0_36 = arith.constant 0 : index
    %57 = vector.load %arg4[%c6, %c0_35, %c0_36] : memref<24x64x64xbf16, #tpu.memory_space<vmem>>, vector<1x64x64xbf16>
    %58 = vector.shape_cast %57 : vector<1x64x64xbf16> to vector<64x64xbf16>
    %cst_37 = arith.constant dense<0.000000e+00> : vector<16x64xf32>
    %59 = tpu.matmul %32, %58, %cst_37 {dimension_numbers = #tpu.dot_dimension_numbers<[1], [0], [0], [1], [0, 0, 1, 1], [], []>} : vector<16x64xbf16>, vector<64x64xbf16>, vector<16x64xf32> -> vector<16x64xf32>
    %60 = arith.truncf %59 : vector<16x64xf32> to vector<16x64xbf16>
    %c7 = arith.constant 7 : index
    %c0_38 = arith.constant 0 : index
    %c0_39 = arith.constant 0 : index
    %61 = vector.load %arg4[%c7, %c0_38, %c0_39] : memref<24x64x64xbf16, #tpu.memory_space<vmem>>, vector<1x64x64xbf16>
    %62 = vector.shape_cast %61 : vector<1x64x64xbf16> to vector<64x64xbf16>
    %cst_40 = arith.constant dense<0.000000e+00> : vector<16x64xf32>
    %63 = tpu.matmul %32, %62, %cst_40 {dimension_numbers = #tpu.dot_dimension_numbers<[1], [0], [0], [1], [0, 0, 1, 1], [], []>} : vector<16x64xbf16>, vector<64x64xbf16>, vector<16x64xf32> -> vector<16x64xf32>
    %64 = arith.truncf %63 : vector<16x64xf32> to vector<16x64xbf16>
    %65 = vector.extract_strided_slice %32 {offsets = [0, 0], sizes = [8, 64], strides = [1, 1]} : vector<16x64xbf16> to vector<8x64xbf16>
    %66 = vector.extract_strided_slice %36 {offsets = [0, 0], sizes = [8, 64], strides = [1, 1]} : vector<16x64xbf16> to vector<8x64xbf16>
    %cst_41 = arith.constant dense<0.000000e+00> : vector<8x8xf32>
    %67 = tpu.matmul %66, %65, %cst_41 {dimension_numbers = #tpu.dot_dimension_numbers<[1], [1], [0], [0], [0, 0, 1, 0], [], []>} : vector<8x64xbf16>, vector<8x64xbf16>, vector<8x8xf32> -> vector<8x8xf32>
    %cst_42 = arith.constant dense<0xFF800000> : vector<8xf32>
    %68 = vector.multi_reduction <maximumf>, %67, %cst_42 [1] : vector<8x8xf32> to vector<8xf32>
    %69 = vector.shape_cast %68 : vector<8xf32> to vector<8x1xf32>
    %70 = vector.broadcast %69 : vector<8x1xf32> to vector<8x8xf32>
    %71 = arith.subf %67, %70 : vector<8x8xf32>
    %72 = math.exp %71 : vector<8x8xf32>
    %cst_43 = arith.constant dense<0.000000e+00> : vector<8xf32>
    %73 = vector.multi_reduction <add>, %72, %cst_43 [1] : vector<8x8xf32> to vector<8xf32>
    %74 = vector.shape_cast %73 : vector<8xf32> to vector<8x1xf32>
    %75 = tpu.reciprocal %74 {approx = true} : vector<8x1xf32> -> vector<8x1xf32>
    %76 = vector.broadcast %75 : vector<8x1xf32> to vector<8x8xf32>
    %77 = arith.mulf %72, %76 : vector<8x8xf32>
    %78 = arith.truncf %77 : vector<8x8xf32> to vector<8x8xbf16>
    %79 = vector.extract_strided_slice %52 {offsets = [0, 0], sizes = [8, 64], strides = [1, 1]} : vector<16x64xbf16> to vector<8x64xbf16>
    %cst_44 = arith.constant dense<0.000000e+00> : vector<8x64xf32>
    %80 = tpu.matmul %78, %79, %cst_44 {dimension_numbers = #tpu.dot_dimension_numbers<[1], [0], [0], [1], [0, 0, 1, 1], [], []>} : vector<8x8xbf16>, vector<8x64xbf16>, vector<8x64xf32> -> vector<8x64xf32>
    %81 = vector.extract_strided_slice %40 {offsets = [0, 0], sizes = [8, 64], strides = [1, 1]} : vector<16x64xbf16> to vector<8x64xbf16>
    %cst_45 = arith.constant dense<0.000000e+00> : vector<8x8xf32>
    %82 = tpu.matmul %81, %65, %cst_45 {dimension_numbers = #tpu.dot_dimension_numbers<[1], [1], [0], [0], [0, 0, 1, 0], [], []>} : vector<8x64xbf16>, vector<8x64xbf16>, vector<8x8xf32> -> vector<8x8xf32>
    %cst_46 = arith.constant dense<0xFF800000> : vector<8xf32>
    %83 = vector.multi_reduction <maximumf>, %82, %cst_46 [1] : vector<8x8xf32> to vector<8xf32>
    %84 = vector.shape_cast %83 : vector<8xf32> to vector<8x1xf32>
    %85 = vector.broadcast %84 : vector<8x1xf32> to vector<8x8xf32>
    %86 = arith.subf %82, %85 : vector<8x8xf32>
    %87 = math.exp %86 : vector<8x8xf32>
    %cst_47 = arith.constant dense<0.000000e+00> : vector<8xf32>
    %88 = vector.multi_reduction <add>, %87, %cst_47 [1] : vector<8x8xf32> to vector<8xf32>
    %89 = vector.shape_cast %88 : vector<8xf32> to vector<8x1xf32>
    %90 = tpu.reciprocal %89 {approx = true} : vector<8x1xf32> -> vector<8x1xf32>
    %91 = vector.broadcast %90 : vector<8x1xf32> to vector<8x8xf32>
    %92 = arith.mulf %87, %91 : vector<8x8xf32>
    %93 = arith.truncf %92 : vector<8x8xf32> to vector<8x8xbf16>
    %94 = vector.extract_strided_slice %56 {offsets = [0, 0], sizes = [8, 64], strides = [1, 1]} : vector<16x64xbf16> to vector<8x64xbf16>
    %cst_48 = arith.constant dense<0.000000e+00> : vector<8x64xf32>
    %95 = tpu.matmul %93, %94, %cst_48 {dimension_numbers = #tpu.dot_dimension_numbers<[1], [0], [0], [1], [0, 0, 1, 1], [], []>} : vector<8x8xbf16>, vector<8x64xbf16>, vector<8x64xf32> -> vector<8x64xf32>
    %96 = arith.addf %80, %95 : vector<8x64xf32>
    %97 = vector.extract_strided_slice %44 {offsets = [0, 0], sizes = [8, 64], strides = [1, 1]} : vector<16x64xbf16> to vector<8x64xbf16>
    %cst_49 = arith.constant dense<0.000000e+00> : vector<8x8xf32>
    %98 = tpu.matmul %97, %65, %cst_49 {dimension_numbers = #tpu.dot_dimension_numbers<[1], [1], [0], [0], [0, 0, 1, 0], [], []>} : vector<8x64xbf16>, vector<8x64xbf16>, vector<8x8xf32> -> vector<8x8xf32>
    %cst_50 = arith.constant dense<0xFF800000> : vector<8xf32>
    %99 = vector.multi_reduction <maximumf>, %98, %cst_50 [1] : vector<8x8xf32> to vector<8xf32>
    %100 = vector.shape_cast %99 : vector<8xf32> to vector<8x1xf32>
    %101 = vector.broadcast %100 : vector<8x1xf32> to vector<8x8xf32>
    %102 = arith.subf %98, %101 : vector<8x8xf32>
    %103 = math.exp %102 : vector<8x8xf32>
    %cst_51 = arith.constant dense<0.000000e+00> : vector<8xf32>
    %104 = vector.multi_reduction <add>, %103, %cst_51 [1] : vector<8x8xf32> to vector<8xf32>
    %105 = vector.shape_cast %104 : vector<8xf32> to vector<8x1xf32>
    %106 = tpu.reciprocal %105 {approx = true} : vector<8x1xf32> -> vector<8x1xf32>
    %107 = vector.broadcast %106 : vector<8x1xf32> to vector<8x8xf32>
    %108 = arith.mulf %103, %107 : vector<8x8xf32>
    %109 = arith.truncf %108 : vector<8x8xf32> to vector<8x8xbf16>
    %110 = vector.extract_strided_slice %60 {offsets = [0, 0], sizes = [8, 64], strides = [1, 1]} : vector<16x64xbf16> to vector<8x64xbf16>
    %cst_52 = arith.constant dense<0.000000e+00> : vector<8x64xf32>
    %111 = tpu.matmul %109, %110, %cst_52 {dimension_numbers = #tpu.dot_dimension_numbers<[1], [0], [0], [1], [0, 0, 1, 1], [], []>} : vector<8x8xbf16>, vector<8x64xbf16>, vector<8x64xf32> -> vector<8x64xf32>
    %112 = arith.addf %96, %111 : vector<8x64xf32>
    %113 = vector.extract_strided_slice %48 {offsets = [0, 0], sizes = [8, 64], strides = [1, 1]} : vector<16x64xbf16> to vector<8x64xbf16>
    %cst_53 = arith.constant dense<0.000000e+00> : vector<8x8xf32>
    %114 = tpu.matmul %113, %65, %cst_53 {dimension_numbers = #tpu.dot_dimension_numbers<[1], [1], [0], [0], [0, 0, 1, 0], [], []>} : vector<8x64xbf16>, vector<8x64xbf16>, vector<8x8xf32> -> vector<8x8xf32>
    %cst_54 = arith.constant dense<0xFF800000> : vector<8xf32>
    %115 = vector.multi_reduction <maximumf>, %114, %cst_54 [1] : vector<8x8xf32> to vector<8xf32>
    %116 = vector.shape_cast %115 : vector<8xf32> to vector<8x1xf32>
    %117 = vector.broadcast %116 : vector<8x1xf32> to vector<8x8xf32>
    %118 = arith.subf %114, %117 : vector<8x8xf32>
    %119 = math.exp %118 : vector<8x8xf32>
    %cst_55 = arith.constant dense<0.000000e+00> : vector<8xf32>
    %120 = vector.multi_reduction <add>, %119, %cst_55 [1] : vector<8x8xf32> to vector<8xf32>
    %121 = vector.shape_cast %120 : vector<8xf32> to vector<8x1xf32>
    %122 = tpu.reciprocal %121 {approx = true} : vector<8x1xf32> -> vector<8x1xf32>
    %123 = vector.broadcast %122 : vector<8x1xf32> to vector<8x8xf32>
    %124 = arith.mulf %119, %123 : vector<8x8xf32>
    %125 = arith.truncf %124 : vector<8x8xf32> to vector<8x8xbf16>
    %126 = vector.extract_strided_slice %64 {offsets = [0, 0], sizes = [8, 64], strides = [1, 1]} : vector<16x64xbf16> to vector<8x64xbf16>
    %cst_56 = arith.constant dense<0.000000e+00> : vector<8x64xf32>
    %127 = tpu.matmul %125, %126, %cst_56 {dimension_numbers = #tpu.dot_dimension_numbers<[1], [0], [0], [1], [0, 0, 1, 1], [], []>} : vector<8x8xbf16>, vector<8x64xbf16>, vector<8x64xf32> -> vector<8x64xf32>
    %128 = arith.addf %112, %127 : vector<8x64xf32>
    %c0_57 = arith.constant 0 : index
    %c0_58 = arith.constant 0 : index
    %129 = vector.load %arg16[%c0_57, %c0_58] : memref<16x64xf32, #tpu.memory_space<vmem>>, vector<8x64xf32>
    tpu.vector_store %arg16[%c0_57, %c0_58], %128 {strides = array<i32>} : memref<16x64xf32, #tpu.memory_space<vmem>>, vector<8x64xf32>,
    %130 = vector.extract_strided_slice %32 {offsets = [8, 0], sizes = [8, 64], strides = [1, 1]} : vector<16x64xbf16> to vector<8x64xbf16>
    %131 = vector.extract_strided_slice %36 {offsets = [8, 0], sizes = [8, 64], strides = [1, 1]} : vector<16x64xbf16> to vector<8x64xbf16>
    %cst_59 = arith.constant dense<0.000000e+00> : vector<8x8xf32>
    %132 = tpu.matmul %131, %130, %cst_59 {dimension_numbers = #tpu.dot_dimension_numbers<[1], [1], [0], [0], [0, 0, 1, 0], [], []>} : vector<8x64xbf16>, vector<8x64xbf16>, vector<8x8xf32> -> vector<8x8xf32>
    %cst_60 = arith.constant dense<0xFF800000> : vector<8xf32>
    %133 = vector.multi_reduction <maximumf>, %132, %cst_60 [1] : vector<8x8xf32> to vector<8xf32>
    %134 = vector.shape_cast %133 : vector<8xf32> to vector<8x1xf32>
    %135 = vector.broadcast %134 : vector<8x1xf32> to vector<8x8xf32>
    %136 = arith.subf %132, %135 : vector<8x8xf32>
    %137 = math.exp %136 : vector<8x8xf32>
    %cst_61 = arith.constant dense<0.000000e+00> : vector<8xf32>
    %138 = vector.multi_reduction <add>, %137, %cst_61 [1] : vector<8x8xf32> to vector<8xf32>
    %139 = vector.shape_cast %138 : vector<8xf32> to vector<8x1xf32>
    %140 = tpu.reciprocal %139 {approx = true} : vector<8x1xf32> -> vector<8x1xf32>
    %141 = vector.broadcast %140 : vector<8x1xf32> to vector<8x8xf32>
    %142 = arith.mulf %137, %141 : vector<8x8xf32>
    %143 = arith.truncf %142 : vector<8x8xf32> to vector<8x8xbf16>
    %144 = vector.extract_strided_slice %52 {offsets = [8, 0], sizes = [8, 64], strides = [1, 1]} : vector<16x64xbf16> to vector<8x64xbf16>
    %cst_62 = arith.constant dense<0.000000e+00> : vector<8x64xf32>
    %145 = tpu.matmul %143, %144, %cst_62 {dimension_numbers = #tpu.dot_dimension_numbers<[1], [0], [0], [1], [0, 0, 1, 1], [], []>} : vector<8x8xbf16>, vector<8x64xbf16>, vector<8x64xf32> -> vector<8x64xf32>
    %146 = vector.extract_strided_slice %40 {offsets = [8, 0], sizes = [8, 64], strides = [1, 1]} : vector<16x64xbf16> to vector<8x64xbf16>
    %cst_63 = arith.constant dense<0.000000e+00> : vector<8x8xf32>
    %147 = tpu.matmul %146, %130, %cst_63 {dimension_numbers = #tpu.dot_dimension_numbers<[1], [1], [0], [0], [0, 0, 1, 0], [], []>} : vector<8x64xbf16>, vector<8x64xbf16>, vector<8x8xf32> -> vector<8x8xf32>
    %cst_64 = arith.constant dense<0xFF800000> : vector<8xf32>
    %148 = vector.multi_reduction <maximumf>, %147, %cst_64 [1] : vector<8x8xf32> to vector<8xf32>
    %149 = vector.shape_cast %148 : vector<8xf32> to vector<8x1xf32>
    %150 = vector.broadcast %149 : vector<8x1xf32> to vector<8x8xf32>
    %151 = arith.subf %147, %150 : vector<8x8xf32>
    %152 = math.exp %151 : vector<8x8xf32>
    %cst_65 = arith.constant dense<0.000000e+00> : vector<8xf32>
    %153 = vector.multi_reduction <add>, %152, %cst_65 [1] : vector<8x8xf32> to vector<8xf32>
    %154 = vector.shape_cast %153 : vector<8xf32> to vector<8x1xf32>
    %155 = tpu.reciprocal %154 {approx = true} : vector<8x1xf32> -> vector<8x1xf32>
    %156 = vector.broadcast %155 : vector<8x1xf32> to vector<8x8xf32>
    %157 = arith.mulf %152, %156 : vector<8x8xf32>
    %158 = arith.truncf %157 : vector<8x8xf32> to vector<8x8xbf16>
    %159 = vector.extract_strided_slice %56 {offsets = [8, 0], sizes = [8, 64], strides = [1, 1]} : vector<16x64xbf16> to vector<8x64xbf16>
    %cst_66 = arith.constant dense<0.000000e+00> : vector<8x64xf32>
    %160 = tpu.matmul %158, %159, %cst_66 {dimension_numbers = #tpu.dot_dimension_numbers<[1], [0], [0], [1], [0, 0, 1, 1], [], []>} : vector<8x8xbf16>, vector<8x64xbf16>, vector<8x64xf32> -> vector<8x64xf32>
    %161 = arith.addf %145, %160 : vector<8x64xf32>
    %162 = vector.extract_strided_slice %44 {offsets = [8, 0], sizes = [8, 64], strides = [1, 1]} : vector<16x64xbf16> to vector<8x64xbf16>
    %cst_67 = arith.constant dense<0.000000e+00> : vector<8x8xf32>
    %163 = tpu.matmul %162, %130, %cst_67 {dimension_numbers = #tpu.dot_dimension_numbers<[1], [1], [0], [0], [0, 0, 1, 0], [], []>} : vector<8x64xbf16>, vector<8x64xbf16>, vector<8x8xf32> -> vector<8x8xf32>
    %cst_68 = arith.constant dense<0xFF800000> : vector<8xf32>
    %164 = vector.multi_reduction <maximumf>, %163, %cst_68 [1] : vector<8x8xf32> to vector<8xf32>
    %165 = vector.shape_cast %164 : vector<8xf32> to vector<8x1xf32>
    %166 = vector.broadcast %165 : vector<8x1xf32> to vector<8x8xf32>
    %167 = arith.subf %163, %166 : vector<8x8xf32>
    %168 = math.exp %167 : vector<8x8xf32>
    %cst_69 = arith.constant dense<0.000000e+00> : vector<8xf32>
    %169 = vector.multi_reduction <add>, %168, %cst_69 [1] : vector<8x8xf32> to vector<8xf32>
    %170 = vector.shape_cast %169 : vector<8xf32> to vector<8x1xf32>
    %171 = tpu.reciprocal %170 {approx = true} : vector<8x1xf32> -> vector<8x1xf32>
    %172 = vector.broadcast %171 : vector<8x1xf32> to vector<8x8xf32>
    %173 = arith.mulf %168, %172 : vector<8x8xf32>
    %174 = arith.truncf %173 : vector<8x8xf32> to vector<8x8xbf16>
    %175 = vector.extract_strided_slice %60 {offsets = [8, 0], sizes = [8, 64], strides = [1, 1]} : vector<16x64xbf16> to vector<8x64xbf16>
    %cst_70 = arith.constant dense<0.000000e+00> : vector<8x64xf32>
    %176 = tpu.matmul %174, %175, %cst_70 {dimension_numbers = #tpu.dot_dimension_numbers<[1], [0], [0], [1], [0, 0, 1, 1], [], []>} : vector<8x8xbf16>, vector<8x64xbf16>, vector<8x64xf32> -> vector<8x64xf32>
    %177 = arith.addf %161, %176 : vector<8x64xf32>
    %178 = vector.extract_strided_slice %48 {offsets = [8, 0], sizes = [8, 64], strides = [1, 1]} : vector<16x64xbf16> to vector<8x64xbf16>
    %cst_71 = arith.constant dense<0.000000e+00> : vector<8x8xf32>
    %179 = tpu.matmul %178, %130, %cst_71 {dimension_numbers = #tpu.dot_dimension_numbers<[1], [1], [0], [0], [0, 0, 1, 0], [], []>} : vector<8x64xbf16>, vector<8x64xbf16>, vector<8x8xf32> -> vector<8x8xf32>
    %cst_72 = arith.constant dense<0xFF800000> : vector<8xf32>
    %180 = vector.multi_reduction <maximumf>, %179, %cst_72 [1] : vector<8x8xf32> to vector<8xf32>
    %181 = vector.shape_cast %180 : vector<8xf32> to vector<8x1xf32>
    %182 = vector.broadcast %181 : vector<8x1xf32> to vector<8x8xf32>
    %183 = arith.subf %179, %182 : vector<8x8xf32>
    %184 = math.exp %183 : vector<8x8xf32>
    %cst_73 = arith.constant dense<0.000000e+00> : vector<8xf32>
    %185 = vector.multi_reduction <add>, %184, %cst_73 [1] : vector<8x8xf32> to vector<8xf32>
    %186 = vector.shape_cast %185 : vector<8xf32> to vector<8x1xf32>
    %187 = tpu.reciprocal %186 {approx = true} : vector<8x1xf32> -> vector<8x1xf32>
    %188 = vector.broadcast %187 : vector<8x1xf32> to vector<8x8xf32>
    %189 = arith.mulf %184, %188 : vector<8x8xf32>
    %190 = arith.truncf %189 : vector<8x8xf32> to vector<8x8xbf16>
    %191 = vector.extract_strided_slice %64 {offsets = [8, 0], sizes = [8, 64], strides = [1, 1]} : vector<16x64xbf16> to vector<8x64xbf16>
    %cst_74 = arith.constant dense<0.000000e+00> : vector<8x64xf32>
    %192 = tpu.matmul %190, %191, %cst_74 {dimension_numbers = #tpu.dot_dimension_numbers<[1], [0], [0], [1], [0, 0, 1, 1], [], []>} : vector<8x8xbf16>, vector<8x64xbf16>, vector<8x64xf32> -> vector<8x64xf32>
    %193 = arith.addf %177, %192 : vector<8x64xf32>
    %c8 = arith.constant 8 : index
    %c0_75 = arith.constant 0 : index
    %194 = vector.load %arg16[%c8, %c0_75] : memref<16x64xf32, #tpu.memory_space<vmem>>, vector<8x64xf32>
    tpu.vector_store %arg16[%c8, %c0_75], %193 {strides = array<i32>} : memref<16x64xf32, #tpu.memory_space<vmem>>, vector<8x64xf32>,
    %c0_76 = arith.constant 0 : index
    %c0_77 = arith.constant 0 : index
    %195 = vector.load %arg16[%c0_76, %c0_77] : memref<16x64xf32, #tpu.memory_space<vmem>>, vector<16x64xf32>
    %196 = arith.addf %195, %31 : vector<16x64xf32>
    %c3_78 = arith.constant 3 : index
    %c0_79 = arith.constant 0 : index
    %197 = vector.load %arg8[%c3_78, %c0_79] : memref<18x64xf32, #tpu.memory_space<vmem>>, vector<1x64xf32>
    %c4_80 = arith.constant 4 : index
    %c0_81 = arith.constant 0 : index
    %198 = vector.load %arg8[%c4_80, %c0_81] : memref<18x64xf32, #tpu.memory_space<vmem>>, vector<1x64xf32>
    %cst_82 = arith.constant dense<0.000000e+00> : vector<16xf32>
    %199 = vector.multi_reduction <add>, %196, %cst_82 [1] : vector<16x64xf32> to vector<16xf32>
    %200 = vector.shape_cast %199 : vector<16xf32> to vector<16x1xf32>
    %cst_83 = arith.constant 6.400000e+01 : f32
    %201 = vector.broadcast %cst_83 : f32 to vector<16x1xf32>
    %202 = arith.divf %200, %201 : vector<16x1xf32>
    %203 = vector.broadcast %202 : vector<16x1xf32> to vector<16x64xf32>
    %204 = arith.subf %196, %203 : vector<16x64xf32>
    %205 = arith.mulf %204, %204 : vector<16x64xf32>
    %cst_84 = arith.constant dense<0.000000e+00> : vector<16xf32>
    %206 = vector.multi_reduction <add>, %205, %cst_84 [1] : vector<16x64xf32> to vector<16xf32>
    %207 = vector.shape_cast %206 : vector<16xf32> to vector<16x1xf32>
    %cst_85 = arith.constant 6.400000e+01 : f32
    %208 = vector.broadcast %cst_85 : f32 to vector<16x1xf32>
    %209 = arith.divf %207, %208 : vector<16x1xf32>
    %210 = vector.broadcast %202 : vector<16x1xf32> to vector<16x64xf32>
    %211 = arith.subf %196, %210 : vector<16x64xf32>
    %cst_86 = arith.constant 9.99999997E-7 : f32
    %212 = vector.broadcast %cst_86 : f32 to vector<16x1xf32>
    %213 = arith.addf %209, %212 : vector<16x1xf32>
    %214 = math.rsqrt %213 : vector<16x1xf32>
    %215 = vector.broadcast %214 : vector<16x1xf32> to vector<16x64xf32>
    %216 = arith.mulf %211, %215 : vector<16x64xf32>
    %217 = vector.broadcast %197 : vector<1x64xf32> to vector<16x64xf32>
    %218 = arith.mulf %216, %217 : vector<16x64xf32>
    %219 = vector.broadcast %198 : vector<1x64xf32> to vector<16x64xf32>
    %220 = arith.addf %218, %219 : vector<16x64xf32>
    %221 = arith.truncf %220 : vector<16x64xf32> to vector<16x64xbf16>
    %c0_87 = arith.constant 0 : index
    %c0_88 = arith.constant 0 : index
    %c0_89 = arith.constant 0 : index
    %222 = vector.load %arg5[%c0_87, %c0_88, %c0_89] : memref<3x64x256xbf16, #tpu.memory_space<vmem>>, vector<1x64x256xbf16>
    %223 = vector.shape_cast %222 : vector<1x64x256xbf16> to vector<64x256xbf16>
    %cst_90 = arith.constant dense<0.000000e+00> : vector<16x256xf32>
    %224 = tpu.matmul %221, %223, %cst_90 {dimension_numbers = #tpu.dot_dimension_numbers<[1], [0], [0], [1], [0, 0, 1, 1], [], []>} : vector<16x64xbf16>, vector<64x256xbf16>, vector<16x256xf32> -> vector<16x256xf32>
    %c0_91 = arith.constant 0 : index
    %c0_92 = arith.constant 0 : index
    %c0_93 = arith.constant 0 : index
    %225 = vector.load %arg6[%c0_91, %c0_92, %c0_93] : memref<3x1x256xf32, #tpu.memory_space<vmem>>, vector<1x1x256xf32>
    %226 = vector.shape_cast %225 : vector<1x1x256xf32> to vector<1x256xf32>
    %227 = vector.broadcast %226 : vector<1x256xf32> to vector<16x256xf32>
    %228 = arith.addf %224, %227 : vector<16x256xf32>
    %cst_94 = arith.constant 0.000000e+00 : f32
    %229 = vector.broadcast %cst_94 : f32 to vector<16x256xf32>
    %230 = arith.maximumf %228, %229 : vector<16x256xf32>
    %231 = arith.truncf %230 : vector<16x256xf32> to vector<16x256xbf16>
    %c0_95 = arith.constant 0 : index
    %c0_96 = arith.constant 0 : index
    %c0_97 = arith.constant 0 : index
    %232 = vector.load %arg7[%c0_95, %c0_96, %c0_97] : memref<3x256x64xbf16, #tpu.memory_space<vmem>>, vector<1x256x64xbf16>
    %233 = vector.shape_cast %232 : vector<1x256x64xbf16> to vector<256x64xbf16>
    %cst_98 = arith.constant dense<0.000000e+00> : vector<16x64xf32>
    %234 = tpu.matmul %231, %233, %cst_98 {dimension_numbers = #tpu.dot_dimension_numbers<[1], [0], [0], [1], [0, 0, 1, 1], [], []>} : vector<16x256xbf16>, vector<256x64xbf16>, vector<16x64xf32> -> vector<16x64xf32>
    %c5_99 = arith.constant 5 : index
    %c0_100 = arith.constant 0 : index
    %235 = vector.load %arg8[%c5_99, %c0_100] : memref<18x64xf32, #tpu.memory_space<vmem>>, vector<1x64xf32>
    %236 = vector.broadcast %235 : vector<1x64xf32> to vector<16x64xf32>
    %237 = arith.addf %234, %236 : vector<16x64xf32>
    %238 = arith.addf %237, %220 : vector<16x64xf32>
    %c6_101 = arith.constant 6 : index
    %c0_102 = arith.constant 0 : index
    %239 = vector.load %arg8[%c6_101, %c0_102] : memref<18x64xf32, #tpu.memory_space<vmem>>, vector<1x64xf32>
    %c7_103 = arith.constant 7 : index
    %c0_104 = arith.constant 0 : index
    %240 = vector.load %arg8[%c7_103, %c0_104] : memref<18x64xf32, #tpu.memory_space<vmem>>, vector<1x64xf32>
    %cst_105 = arith.constant dense<0.000000e+00> : vector<16xf32>
    %241 = vector.multi_reduction <add>, %238, %cst_105 [1] : vector<16x64xf32> to vector<16xf32>
    %242 = vector.shape_cast %241 : vector<16xf32> to vector<16x1xf32>
    %cst_106 = arith.constant 6.400000e+01 : f32
    %243 = vector.broadcast %cst_106 : f32 to vector<16x1xf32>
    %244 = arith.divf %242, %243 : vector<16x1xf32>
    %245 = vector.broadcast %244 : vector<16x1xf32> to vector<16x64xf32>
    %246 = arith.subf %238, %245 : vector<16x64xf32>
    %247 = arith.mulf %246, %246 : vector<16x64xf32>
    %cst_107 = arith.constant dense<0.000000e+00> : vector<16xf32>
    %248 = vector.multi_reduction <add>, %247, %cst_107 [1] : vector<16x64xf32> to vector<16xf32>
    %249 = vector.shape_cast %248 : vector<16xf32> to vector<16x1xf32>
    %cst_108 = arith.constant 6.400000e+01 : f32
    %250 = vector.broadcast %cst_108 : f32 to vector<16x1xf32>
    %251 = arith.divf %249, %250 : vector<16x1xf32>
    %252 = vector.broadcast %244 : vector<16x1xf32> to vector<16x64xf32>
    %253 = arith.subf %238, %252 : vector<16x64xf32>
    %cst_109 = arith.constant 9.99999997E-7 : f32
    %254 = vector.broadcast %cst_109 : f32 to vector<16x1xf32>
    %255 = arith.addf %251, %254 : vector<16x1xf32>
    %256 = math.rsqrt %255 : vector<16x1xf32>
    %257 = vector.broadcast %256 : vector<16x1xf32> to vector<16x64xf32>
    %258 = arith.mulf %253, %257 : vector<16x64xf32>
    %259 = vector.broadcast %239 : vector<1x64xf32> to vector<16x64xf32>
    %260 = arith.mulf %258, %259 : vector<16x64xf32>
    %261 = vector.broadcast %240 : vector<1x64xf32> to vector<16x64xf32>
    %262 = arith.addf %260, %261 : vector<16x64xf32>
    %263 = arith.truncf %262 : vector<16x64xf32> to vector<16x64xbf16>
    %c8_110 = arith.constant 8 : index
    %c0_111 = arith.constant 0 : index
    %c0_112 = arith.constant 0 : index
    %264 = vector.load %arg4[%c8_110, %c0_111, %c0_112] : memref<24x64x64xbf16, #tpu.memory_space<vmem>>, vector<1x64x64xbf16>
    %265 = vector.shape_cast %264 : vector<1x64x64xbf16> to vector<64x64xbf16>
    %cst_113 = arith.constant dense<0.000000e+00> : vector<16x64xf32>
    %266 = tpu.matmul %263, %265, %cst_113 {dimension_numbers = #tpu.dot_dimension_numbers<[1], [0], [0], [1], [0, 0, 1, 1], [], []>} : vector<16x64xbf16>, vector<64x64xbf16>, vector<16x64xf32> -> vector<16x64xf32>
    %267 = arith.truncf %266 : vector<16x64xf32> to vector<16x64xbf16>
    %c9 = arith.constant 9 : index
    %c0_114 = arith.constant 0 : index
    %c0_115 = arith.constant 0 : index
    %268 = vector.load %arg4[%c9, %c0_114, %c0_115] : memref<24x64x64xbf16, #tpu.memory_space<vmem>>, vector<1x64x64xbf16>
    %269 = vector.shape_cast %268 : vector<1x64x64xbf16> to vector<64x64xbf16>
    %cst_116 = arith.constant dense<0.000000e+00> : vector<16x64xf32>
    %270 = tpu.matmul %263, %269, %cst_116 {dimension_numbers = #tpu.dot_dimension_numbers<[1], [0], [0], [1], [0, 0, 1, 1], [], []>} : vector<16x64xbf16>, vector<64x64xbf16>, vector<16x64xf32> -> vector<16x64xf32>
    %271 = arith.truncf %270 : vector<16x64xf32> to vector<16x64xbf16>
    %c10 = arith.constant 10 : index
    %c0_117 = arith.constant 0 : index
    %c0_118 = arith.constant 0 : index
    %272 = vector.load %arg4[%c10, %c0_117, %c0_118] : memref<24x64x64xbf16, #tpu.memory_space<vmem>>, vector<1x64x64xbf16>
    %273 = vector.shape_cast %272 : vector<1x64x64xbf16> to vector<64x64xbf16>
    %cst_119 = arith.constant dense<0.000000e+00> : vector<16x64xf32>
    %274 = tpu.matmul %263, %273, %cst_119 {dimension_numbers = #tpu.dot_dimension_numbers<[1], [0], [0], [1], [0, 0, 1, 1], [], []>} : vector<16x64xbf16>, vector<64x64xbf16>, vector<16x64xf32> -> vector<16x64xf32>
    %275 = arith.truncf %274 : vector<16x64xf32> to vector<16x64xbf16>
    %c11 = arith.constant 11 : index
    %c0_120 = arith.constant 0 : index
    %c0_121 = arith.constant 0 : index
    %276 = vector.load %arg4[%c11, %c0_120, %c0_121] : memref<24x64x64xbf16, #tpu.memory_space<vmem>>, vector<1x64x64xbf16>
    %277 = vector.shape_cast %276 : vector<1x64x64xbf16> to vector<64x64xbf16>
    %cst_122 = arith.constant dense<0.000000e+00> : vector<16x64xf32>
    %278 = tpu.matmul %263, %277, %cst_122 {dimension_numbers = #tpu.dot_dimension_numbers<[1], [0], [0], [1], [0, 0, 1, 1], [], []>} : vector<16x64xbf16>, vector<64x64xbf16>, vector<16x64xf32> -> vector<16x64xf32>
    %279 = arith.truncf %278 : vector<16x64xf32> to vector<16x64xbf16>
    %c12 = arith.constant 12 : index
    %c0_123 = arith.constant 0 : index
    %c0_124 = arith.constant 0 : index
    %280 = vector.load %arg4[%c12, %c0_123, %c0_124] : memref<24x64x64xbf16, #tpu.memory_space<vmem>>, vector<1x64x64xbf16>
    %281 = vector.shape_cast %280 : vector<1x64x64xbf16> to vector<64x64xbf16>
    %cst_125 = arith.constant dense<0.000000e+00> : vector<16x64xf32>
    %282 = tpu.matmul %263, %281, %cst_125 {dimension_numbers = #tpu.dot_dimension_numbers<[1], [0], [0], [1], [0, 0, 1, 1], [], []>} : vector<16x64xbf16>, vector<64x64xbf16>, vector<16x64xf32> -> vector<16x64xf32>
    %283 = arith.truncf %282 : vector<16x64xf32> to vector<16x64xbf16>
    %c13 = arith.constant 13 : index
    %c0_126 = arith.constant 0 : index
    %c0_127 = arith.constant 0 : index
    %284 = vector.load %arg4[%c13, %c0_126, %c0_127] : memref<24x64x64xbf16, #tpu.memory_space<vmem>>, vector<1x64x64xbf16>
    %285 = vector.shape_cast %284 : vector<1x64x64xbf16> to vector<64x64xbf16>
    %cst_128 = arith.constant dense<0.000000e+00> : vector<16x64xf32>
    %286 = tpu.matmul %263, %285, %cst_128 {dimension_numbers = #tpu.dot_dimension_numbers<[1], [0], [0], [1], [0, 0, 1, 1], [], []>} : vector<16x64xbf16>, vector<64x64xbf16>, vector<16x64xf32> -> vector<16x64xf32>
    %287 = arith.truncf %286 : vector<16x64xf32> to vector<16x64xbf16>
    %c14 = arith.constant 14 : index
    %c0_129 = arith.constant 0 : index
    %c0_130 = arith.constant 0 : index
    %288 = vector.load %arg4[%c14, %c0_129, %c0_130] : memref<24x64x64xbf16, #tpu.memory_space<vmem>>, vector<1x64x64xbf16>
    %289 = vector.shape_cast %288 : vector<1x64x64xbf16> to vector<64x64xbf16>
    %cst_131 = arith.constant dense<0.000000e+00> : vector<16x64xf32>
    %290 = tpu.matmul %263, %289, %cst_131 {dimension_numbers = #tpu.dot_dimension_numbers<[1], [0], [0], [1], [0, 0, 1, 1], [], []>} : vector<16x64xbf16>, vector<64x64xbf16>, vector<16x64xf32> -> vector<16x64xf32>
    %291 = arith.truncf %290 : vector<16x64xf32> to vector<16x64xbf16>
    %c15 = arith.constant 15 : index
    %c0_132 = arith.constant 0 : index
    %c0_133 = arith.constant 0 : index
    %292 = vector.load %arg4[%c15, %c0_132, %c0_133] : memref<24x64x64xbf16, #tpu.memory_space<vmem>>, vector<1x64x64xbf16>
    %293 = vector.shape_cast %292 : vector<1x64x64xbf16> to vector<64x64xbf16>
    %cst_134 = arith.constant dense<0.000000e+00> : vector<16x64xf32>
    %294 = tpu.matmul %263, %293, %cst_134 {dimension_numbers = #tpu.dot_dimension_numbers<[1], [0], [0], [1], [0, 0, 1, 1], [], []>} : vector<16x64xbf16>, vector<64x64xbf16>, vector<16x64xf32> -> vector<16x64xf32>
    %295 = arith.truncf %294 : vector<16x64xf32> to vector<16x64xbf16>
    %296 = vector.extract_strided_slice %263 {offsets = [0, 0], sizes = [8, 64], strides = [1, 1]} : vector<16x64xbf16> to vector<8x64xbf16>
    %297 = vector.extract_strided_slice %267 {offsets = [0, 0], sizes = [8, 64], strides = [1, 1]} : vector<16x64xbf16> to vector<8x64xbf16>
    %cst_135 = arith.constant dense<0.000000e+00> : vector<8x8xf32>
    %298 = tpu.matmul %297, %296, %cst_135 {dimension_numbers = #tpu.dot_dimension_numbers<[1], [1], [0], [0], [0, 0, 1, 0], [], []>} : vector<8x64xbf16>, vector<8x64xbf16>, vector<8x8xf32> -> vector<8x8xf32>
    %cst_136 = arith.constant dense<0xFF800000> : vector<8xf32>
    %299 = vector.multi_reduction <maximumf>, %298, %cst_136 [1] : vector<8x8xf32> to vector<8xf32>
    %300 = vector.shape_cast %299 : vector<8xf32> to vector<8x1xf32>
    %301 = vector.broadcast %300 : vector<8x1xf32> to vector<8x8xf32>
    %302 = arith.subf %298, %301 : vector<8x8xf32>
    %303 = math.exp %302 : vector<8x8xf32>
    %cst_137 = arith.constant dense<0.000000e+00> : vector<8xf32>
    %304 = vector.multi_reduction <add>, %303, %cst_137 [1] : vector<8x8xf32> to vector<8xf32>
    %305 = vector.shape_cast %304 : vector<8xf32> to vector<8x1xf32>
    %306 = tpu.reciprocal %305 {approx = true} : vector<8x1xf32> -> vector<8x1xf32>
    %307 = vector.broadcast %306 : vector<8x1xf32> to vector<8x8xf32>
    %308 = arith.mulf %303, %307 : vector<8x8xf32>
    %309 = arith.truncf %308 : vector<8x8xf32> to vector<8x8xbf16>
    %310 = vector.extract_strided_slice %283 {offsets = [0, 0], sizes = [8, 64], strides = [1, 1]} : vector<16x64xbf16> to vector<8x64xbf16>
    %cst_138 = arith.constant dense<0.000000e+00> : vector<8x64xf32>
    %311 = tpu.matmul %309, %310, %cst_138 {dimension_numbers = #tpu.dot_dimension_numbers<[1], [0], [0], [1], [0, 0, 1, 1], [], []>} : vector<8x8xbf16>, vector<8x64xbf16>, vector<8x64xf32> -> vector<8x64xf32>
    %312 = vector.extract_strided_slice %271 {offsets = [0, 0], sizes = [8, 64], strides = [1, 1]} : vector<16x64xbf16> to vector<8x64xbf16>
    %cst_139 = arith.constant dense<0.000000e+00> : vector<8x8xf32>
    %313 = tpu.matmul %312, %296, %cst_139 {dimension_numbers = #tpu.dot_dimension_numbers<[1], [1], [0], [0], [0, 0, 1, 0], [], []>} : vector<8x64xbf16>, vector<8x64xbf16>, vector<8x8xf32> -> vector<8x8xf32>
    %cst_140 = arith.constant dense<0xFF800000> : vector<8xf32>
    %314 = vector.multi_reduction <maximumf>, %313, %cst_140 [1] : vector<8x8xf32> to vector<8xf32>
    %315 = vector.shape_cast %314 : vector<8xf32> to vector<8x1xf32>
    %316 = vector.broadcast %315 : vector<8x1xf32> to vector<8x8xf32>
    %317 = arith.subf %313, %316 : vector<8x8xf32>
    %318 = math.exp %317 : vector<8x8xf32>
    %cst_141 = arith.constant dense<0.000000e+00> : vector<8xf32>
    %319 = vector.multi_reduction <add>, %318, %cst_141 [1] : vector<8x8xf32> to vector<8xf32>
    %320 = vector.shape_cast %319 : vector<8xf32> to vector<8x1xf32>
    %321 = tpu.reciprocal %320 {approx = true} : vector<8x1xf32> -> vector<8x1xf32>
    %322 = vector.broadcast %321 : vector<8x1xf32> to vector<8x8xf32>
    %323 = arith.mulf %318, %322 : vector<8x8xf32>
    %324 = arith.truncf %323 : vector<8x8xf32> to vector<8x8xbf16>
    %325 = vector.extract_strided_slice %287 {offsets = [0, 0], sizes = [8, 64], strides = [1, 1]} : vector<16x64xbf16> to vector<8x64xbf16>
    %cst_142 = arith.constant dense<0.000000e+00> : vector<8x64xf32>
    %326 = tpu.matmul %324, %325, %cst_142 {dimension_numbers = #tpu.dot_dimension_numbers<[1], [0], [0], [1], [0, 0, 1, 1], [], []>} : vector<8x8xbf16>, vector<8x64xbf16>, vector<8x64xf32> -> vector<8x64xf32>
    %327 = arith.addf %311, %326 : vector<8x64xf32>
    %328 = vector.extract_strided_slice %275 {offsets = [0, 0], sizes = [8, 64], strides = [1, 1]} : vector<16x64xbf16> to vector<8x64xbf16>
    %cst_143 = arith.constant dense<0.000000e+00> : vector<8x8xf32>
    %329 = tpu.matmul %328, %296, %cst_143 {dimension_numbers = #tpu.dot_dimension_numbers<[1], [1], [0], [0], [0, 0, 1, 0], [], []>} : vector<8x64xbf16>, vector<8x64xbf16>, vector<8x8xf32> -> vector<8x8xf32>
    %cst_144 = arith.constant dense<0xFF800000> : vector<8xf32>
    %330 = vector.multi_reduction <maximumf>, %329, %cst_144 [1] : vector<8x8xf32> to vector<8xf32>
    %331 = vector.shape_cast %330 : vector<8xf32> to vector<8x1xf32>
    %332 = vector.broadcast %331 : vector<8x1xf32> to vector<8x8xf32>
    %333 = arith.subf %329, %332 : vector<8x8xf32>
    %334 = math.exp %333 : vector<8x8xf32>
    %cst_145 = arith.constant dense<0.000000e+00> : vector<8xf32>
    %335 = vector.multi_reduction <add>, %334, %cst_145 [1] : vector<8x8xf32> to vector<8xf32>
    %336 = vector.shape_cast %335 : vector<8xf32> to vector<8x1xf32>
    %337 = tpu.reciprocal %336 {approx = true} : vector<8x1xf32> -> vector<8x1xf32>
    %338 = vector.broadcast %337 : vector<8x1xf32> to vector<8x8xf32>
    %339 = arith.mulf %334, %338 : vector<8x8xf32>
    %340 = arith.truncf %339 : vector<8x8xf32> to vector<8x8xbf16>
    %341 = vector.extract_strided_slice %291 {offsets = [0, 0], sizes = [8, 64], strides = [1, 1]} : vector<16x64xbf16> to vector<8x64xbf16>
    %cst_146 = arith.constant dense<0.000000e+00> : vector<8x64xf32>
    %342 = tpu.matmul %340, %341, %cst_146 {dimension_numbers = #tpu.dot_dimension_numbers<[1], [0], [0], [1], [0, 0, 1, 1], [], []>} : vector<8x8xbf16>, vector<8x64xbf16>, vector<8x64xf32> -> vector<8x64xf32>
    %343 = arith.addf %327, %342 : vector<8x64xf32>
    %344 = vector.extract_strided_slice %279 {offsets = [0, 0], sizes = [8, 64], strides = [1, 1]} : vector<16x64xbf16> to vector<8x64xbf16>
    %cst_147 = arith.constant dense<0.000000e+00> : vector<8x8xf32>
    %345 = tpu.matmul %344, %296, %cst_147 {dimension_numbers = #tpu.dot_dimension_numbers<[1], [1], [0], [0], [0, 0, 1, 0], [], []>} : vector<8x64xbf16>, vector<8x64xbf16>, vector<8x8xf32> -> vector<8x8xf32>
    %cst_148 = arith.constant dense<0xFF800000> : vector<8xf32>
    %346 = vector.multi_reduction <maximumf>, %345, %cst_148 [1] : vector<8x8xf32> to vector<8xf32>
    %347 = vector.shape_cast %346 : vector<8xf32> to vector<8x1xf32>
    %348 = vector.broadcast %347 : vector<8x1xf32> to vector<8x8xf32>
    %349 = arith.subf %345, %348 : vector<8x8xf32>
    %350 = math.exp %349 : vector<8x8xf32>
    %cst_149 = arith.constant dense<0.000000e+00> : vector<8xf32>
    %351 = vector.multi_reduction <add>, %350, %cst_149 [1] : vector<8x8xf32> to vector<8xf32>
    %352 = vector.shape_cast %351 : vector<8xf32> to vector<8x1xf32>
    %353 = tpu.reciprocal %352 {approx = true} : vector<8x1xf32> -> vector<8x1xf32>
    %354 = vector.broadcast %353 : vector<8x1xf32> to vector<8x8xf32>
    %355 = arith.mulf %350, %354 : vector<8x8xf32>
    %356 = arith.truncf %355 : vector<8x8xf32> to vector<8x8xbf16>
    %357 = vector.extract_strided_slice %295 {offsets = [0, 0], sizes = [8, 64], strides = [1, 1]} : vector<16x64xbf16> to vector<8x64xbf16>
    %cst_150 = arith.constant dense<0.000000e+00> : vector<8x64xf32>
    %358 = tpu.matmul %356, %357, %cst_150 {dimension_numbers = #tpu.dot_dimension_numbers<[1], [0], [0], [1], [0, 0, 1, 1], [], []>} : vector<8x8xbf16>, vector<8x64xbf16>, vector<8x64xf32> -> vector<8x64xf32>
    %359 = arith.addf %343, %358 : vector<8x64xf32>
    %c0_151 = arith.constant 0 : index
    %c0_152 = arith.constant 0 : index
    %360 = vector.load %arg16[%c0_151, %c0_152] : memref<16x64xf32, #tpu.memory_space<vmem>>, vector<8x64xf32>
    tpu.vector_store %arg16[%c0_151, %c0_152], %359 {strides = array<i32>} : memref<16x64xf32, #tpu.memory_space<vmem>>, vector<8x64xf32>,
    %361 = vector.extract_strided_slice %263 {offsets = [8, 0], sizes = [8, 64], strides = [1, 1]} : vector<16x64xbf16> to vector<8x64xbf16>
    %362 = vector.extract_strided_slice %267 {offsets = [8, 0], sizes = [8, 64], strides = [1, 1]} : vector<16x64xbf16> to vector<8x64xbf16>
    %cst_153 = arith.constant dense<0.000000e+00> : vector<8x8xf32>
    %363 = tpu.matmul %362, %361, %cst_153 {dimension_numbers = #tpu.dot_dimension_numbers<[1], [1], [0], [0], [0, 0, 1, 0], [], []>} : vector<8x64xbf16>, vector<8x64xbf16>, vector<8x8xf32> -> vector<8x8xf32>
    %cst_154 = arith.constant dense<0xFF800000> : vector<8xf32>
    %364 = vector.multi_reduction <maximumf>, %363, %cst_154 [1] : vector<8x8xf32> to vector<8xf32>
    %365 = vector.shape_cast %364 : vector<8xf32> to vector<8x1xf32>
    %366 = vector.broadcast %365 : vector<8x1xf32> to vector<8x8xf32>
    %367 = arith.subf %363, %366 : vector<8x8xf32>
    %368 = math.exp %367 : vector<8x8xf32>
    %cst_155 = arith.constant dense<0.000000e+00> : vector<8xf32>
    %369 = vector.multi_reduction <add>, %368, %cst_155 [1] : vector<8x8xf32> to vector<8xf32>
    %370 = vector.shape_cast %369 : vector<8xf32> to vector<8x1xf32>
    %371 = tpu.reciprocal %370 {approx = true} : vector<8x1xf32> -> vector<8x1xf32>
    %372 = vector.broadcast %371 : vector<8x1xf32> to vector<8x8xf32>
    %373 = arith.mulf %368, %372 : vector<8x8xf32>
    %374 = arith.truncf %373 : vector<8x8xf32> to vector<8x8xbf16>
    %375 = vector.extract_strided_slice %283 {offsets = [8, 0], sizes = [8, 64], strides = [1, 1]} : vector<16x64xbf16> to vector<8x64xbf16>
    %cst_156 = arith.constant dense<0.000000e+00> : vector<8x64xf32>
    %376 = tpu.matmul %374, %375, %cst_156 {dimension_numbers = #tpu.dot_dimension_numbers<[1], [0], [0], [1], [0, 0, 1, 1], [], []>} : vector<8x8xbf16>, vector<8x64xbf16>, vector<8x64xf32> -> vector<8x64xf32>
    %377 = vector.extract_strided_slice %271 {offsets = [8, 0], sizes = [8, 64], strides = [1, 1]} : vector<16x64xbf16> to vector<8x64xbf16>
    %cst_157 = arith.constant dense<0.000000e+00> : vector<8x8xf32>
    %378 = tpu.matmul %377, %361, %cst_157 {dimension_numbers = #tpu.dot_dimension_numbers<[1], [1], [0], [0], [0, 0, 1, 0], [], []>} : vector<8x64xbf16>, vector<8x64xbf16>, vector<8x8xf32> -> vector<8x8xf32>
    %cst_158 = arith.constant dense<0xFF800000> : vector<8xf32>
    %379 = vector.multi_reduction <maximumf>, %378, %cst_158 [1] : vector<8x8xf32> to vector<8xf32>
    %380 = vector.shape_cast %379 : vector<8xf32> to vector<8x1xf32>
    %381 = vector.broadcast %380 : vector<8x1xf32> to vector<8x8xf32>
    %382 = arith.subf %378, %381 : vector<8x8xf32>
    %383 = math.exp %382 : vector<8x8xf32>
    %cst_159 = arith.constant dense<0.000000e+00> : vector<8xf32>
    %384 = vector.multi_reduction <add>, %383, %cst_159 [1] : vector<8x8xf32> to vector<8xf32>
    %385 = vector.shape_cast %384 : vector<8xf32> to vector<8x1xf32>
    %386 = tpu.reciprocal %385 {approx = true} : vector<8x1xf32> -> vector<8x1xf32>
    %387 = vector.broadcast %386 : vector<8x1xf32> to vector<8x8xf32>
    %388 = arith.mulf %383, %387 : vector<8x8xf32>
    %389 = arith.truncf %388 : vector<8x8xf32> to vector<8x8xbf16>
    %390 = vector.extract_strided_slice %287 {offsets = [8, 0], sizes = [8, 64], strides = [1, 1]} : vector<16x64xbf16> to vector<8x64xbf16>
    %cst_160 = arith.constant dense<0.000000e+00> : vector<8x64xf32>
    %391 = tpu.matmul %389, %390, %cst_160 {dimension_numbers = #tpu.dot_dimension_numbers<[1], [0], [0], [1], [0, 0, 1, 1], [], []>} : vector<8x8xbf16>, vector<8x64xbf16>, vector<8x64xf32> -> vector<8x64xf32>
    %392 = arith.addf %376, %391 : vector<8x64xf32>
    %393 = vector.extract_strided_slice %275 {offsets = [8, 0], sizes = [8, 64], strides = [1, 1]} : vector<16x64xbf16> to vector<8x64xbf16>
    %cst_161 = arith.constant dense<0.000000e+00> : vector<8x8xf32>
    %394 = tpu.matmul %393, %361, %cst_161 {dimension_numbers = #tpu.dot_dimension_numbers<[1], [1], [0], [0], [0, 0, 1, 0], [], []>} : vector<8x64xbf16>, vector<8x64xbf16>, vector<8x8xf32> -> vector<8x8xf32>
    %cst_162 = arith.constant dense<0xFF800000> : vector<8xf32>
    %395 = vector.multi_reduction <maximumf>, %394, %cst_162 [1] : vector<8x8xf32> to vector<8xf32>
    %396 = vector.shape_cast %395 : vector<8xf32> to vector<8x1xf32>
    %397 = vector.broadcast %396 : vector<8x1xf32> to vector<8x8xf32>
    %398 = arith.subf %394, %397 : vector<8x8xf32>
    %399 = math.exp %398 : vector<8x8xf32>
    %cst_163 = arith.constant dense<0.000000e+00> : vector<8xf32>
    %400 = vector.multi_reduction <add>, %399, %cst_163 [1] : vector<8x8xf32> to vector<8xf32>
    %401 = vector.shape_cast %400 : vector<8xf32> to vector<8x1xf32>
    %402 = tpu.reciprocal %401 {approx = true} : vector<8x1xf32> -> vector<8x1xf32>
    %403 = vector.broadcast %402 : vector<8x1xf32> to vector<8x8xf32>
    %404 = arith.mulf %399, %403 : vector<8x8xf32>
    %405 = arith.truncf %404 : vector<8x8xf32> to vector<8x8xbf16>
    %406 = vector.extract_strided_slice %291 {offsets = [8, 0], sizes = [8, 64], strides = [1, 1]} : vector<16x64xbf16> to vector<8x64xbf16>
    %cst_164 = arith.constant dense<0.000000e+00> : vector<8x64xf32>
    %407 = tpu.matmul %405, %406, %cst_164 {dimension_numbers = #tpu.dot_dimension_numbers<[1], [0], [0], [1], [0, 0, 1, 1], [], []>} : vector<8x8xbf16>, vector<8x64xbf16>, vector<8x64xf32> -> vector<8x64xf32>
    %408 = arith.addf %392, %407 : vector<8x64xf32>
    %409 = vector.extract_strided_slice %279 {offsets = [8, 0], sizes = [8, 64], strides = [1, 1]} : vector<16x64xbf16> to vector<8x64xbf16>
    %cst_165 = arith.constant dense<0.000000e+00> : vector<8x8xf32>
    %410 = tpu.matmul %409, %361, %cst_165 {dimension_numbers = #tpu.dot_dimension_numbers<[1], [1], [0], [0], [0, 0, 1, 0], [], []>} : vector<8x64xbf16>, vector<8x64xbf16>, vector<8x8xf32> -> vector<8x8xf32>
    %cst_166 = arith.constant dense<0xFF800000> : vector<8xf32>
    %411 = vector.multi_reduction <maximumf>, %410, %cst_166 [1] : vector<8x8xf32> to vector<8xf32>
    %412 = vector.shape_cast %411 : vector<8xf32> to vector<8x1xf32>
    %413 = vector.broadcast %412 : vector<8x1xf32> to vector<8x8xf32>
    %414 = arith.subf %410, %413 : vector<8x8xf32>
    %415 = math.exp %414 : vector<8x8xf32>
    %cst_167 = arith.constant dense<0.000000e+00> : vector<8xf32>
    %416 = vector.multi_reduction <add>, %415, %cst_167 [1] : vector<8x8xf32> to vector<8xf32>
    %417 = vector.shape_cast %416 : vector<8xf32> to vector<8x1xf32>
    %418 = tpu.reciprocal %417 {approx = true} : vector<8x1xf32> -> vector<8x1xf32>
    %419 = vector.broadcast %418 : vector<8x1xf32> to vector<8x8xf32>
    %420 = arith.mulf %415, %419 : vector<8x8xf32>
    %421 = arith.truncf %420 : vector<8x8xf32> to vector<8x8xbf16>
    %422 = vector.extract_strided_slice %295 {offsets = [8, 0], sizes = [8, 64], strides = [1, 1]} : vector<16x64xbf16> to vector<8x64xbf16>
    %cst_168 = arith.constant dense<0.000000e+00> : vector<8x64xf32>
    %423 = tpu.matmul %421, %422, %cst_168 {dimension_numbers = #tpu.dot_dimension_numbers<[1], [0], [0], [1], [0, 0, 1, 1], [], []>} : vector<8x8xbf16>, vector<8x64xbf16>, vector<8x64xf32> -> vector<8x64xf32>
    %424 = arith.addf %408, %423 : vector<8x64xf32>
    %c8_169 = arith.constant 8 : index
    %c0_170 = arith.constant 0 : index
    %425 = vector.load %arg16[%c8_169, %c0_170] : memref<16x64xf32, #tpu.memory_space<vmem>>, vector<8x64xf32>
    tpu.vector_store %arg16[%c8_169, %c0_170], %424 {strides = array<i32>} : memref<16x64xf32, #tpu.memory_space<vmem>>, vector<8x64xf32>,
    %c0_171 = arith.constant 0 : index
    %c0_172 = arith.constant 0 : index
    %426 = vector.load %arg16[%c0_171, %c0_172] : memref<16x64xf32, #tpu.memory_space<vmem>>, vector<16x64xf32>
    %427 = arith.addf %426, %262 : vector<16x64xf32>
    %c8_173 = arith.constant 8 : index
    %c0_174 = arith.constant 0 : index
    %428 = vector.load %arg8[%c8_173, %c0_174] : memref<18x64xf32, #tpu.memory_space<vmem>>, vector<1x64xf32>
    %c9_175 = arith.constant 9 : index
    %c0_176 = arith.constant 0 : index
    %429 = vector.load %arg8[%c9_175, %c0_176] : memref<18x64xf32, #tpu.memory_space<vmem>>, vector<1x64xf32>
    %cst_177 = arith.constant dense<0.000000e+00> : vector<16xf32>
    %430 = vector.multi_reduction <add>, %427, %cst_177 [1] : vector<16x64xf32> to vector<16xf32>
    %431 = vector.shape_cast %430 : vector<16xf32> to vector<16x1xf32>
    %cst_178 = arith.constant 6.400000e+01 : f32
    %432 = vector.broadcast %cst_178 : f32 to vector<16x1xf32>
    %433 = arith.divf %431, %432 : vector<16x1xf32>
    %434 = vector.broadcast %433 : vector<16x1xf32> to vector<16x64xf32>
    %435 = arith.subf %427, %434 : vector<16x64xf32>
    %436 = arith.mulf %435, %435 : vector<16x64xf32>
    %cst_179 = arith.constant dense<0.000000e+00> : vector<16xf32>
    %437 = vector.multi_reduction <add>, %436, %cst_179 [1] : vector<16x64xf32> to vector<16xf32>
    %438 = vector.shape_cast %437 : vector<16xf32> to vector<16x1xf32>
    %cst_180 = arith.constant 6.400000e+01 : f32
    %439 = vector.broadcast %cst_180 : f32 to vector<16x1xf32>
    %440 = arith.divf %438, %439 : vector<16x1xf32>
    %441 = vector.broadcast %433 : vector<16x1xf32> to vector<16x64xf32>
    %442 = arith.subf %427, %441 : vector<16x64xf32>
    %cst_181 = arith.constant 9.99999997E-7 : f32
    %443 = vector.broadcast %cst_181 : f32 to vector<16x1xf32>
    %444 = arith.addf %440, %443 : vector<16x1xf32>
    %445 = math.rsqrt %444 : vector<16x1xf32>
    %446 = vector.broadcast %445 : vector<16x1xf32> to vector<16x64xf32>
    %447 = arith.mulf %442, %446 : vector<16x64xf32>
    %448 = vector.broadcast %428 : vector<1x64xf32> to vector<16x64xf32>
    %449 = arith.mulf %447, %448 : vector<16x64xf32>
    %450 = vector.broadcast %429 : vector<1x64xf32> to vector<16x64xf32>
    %451 = arith.addf %449, %450 : vector<16x64xf32>
    %452 = arith.truncf %451 : vector<16x64xf32> to vector<16x64xbf16>
    %c1_182 = arith.constant 1 : index
    %c0_183 = arith.constant 0 : index
    %c0_184 = arith.constant 0 : index
    %453 = vector.load %arg5[%c1_182, %c0_183, %c0_184] : memref<3x64x256xbf16, #tpu.memory_space<vmem>>, vector<1x64x256xbf16>
    %454 = vector.shape_cast %453 : vector<1x64x256xbf16> to vector<64x256xbf16>
    %cst_185 = arith.constant dense<0.000000e+00> : vector<16x256xf32>
    %455 = tpu.matmul %452, %454, %cst_185 {dimension_numbers = #tpu.dot_dimension_numbers<[1], [0], [0], [1], [0, 0, 1, 1], [], []>} : vector<16x64xbf16>, vector<64x256xbf16>, vector<16x256xf32> -> vector<16x256xf32>
    %c1_186 = arith.constant 1 : index
    %c0_187 = arith.constant 0 : index
    %c0_188 = arith.constant 0 : index
    %456 = vector.load %arg6[%c1_186, %c0_187, %c0_188] : memref<3x1x256xf32, #tpu.memory_space<vmem>>, vector<1x1x256xf32>
    %457 = vector.shape_cast %456 : vector<1x1x256xf32> to vector<1x256xf32>
    %458 = vector.broadcast %457 : vector<1x256xf32> to vector<16x256xf32>
    %459 = arith.addf %455, %458 : vector<16x256xf32>
    %cst_189 = arith.constant 0.000000e+00 : f32
    %460 = vector.broadcast %cst_189 : f32 to vector<16x256xf32>
    %461 = arith.maximumf %459, %460 : vector<16x256xf32>
    %462 = arith.truncf %461 : vector<16x256xf32> to vector<16x256xbf16>
    %c1_190 = arith.constant 1 : index
    %c0_191 = arith.constant 0 : index
    %c0_192 = arith.constant 0 : index
    %463 = vector.load %arg7[%c1_190, %c0_191, %c0_192] : memref<3x256x64xbf16, #tpu.memory_space<vmem>>, vector<1x256x64xbf16>
    %464 = vector.shape_cast %463 : vector<1x256x64xbf16> to vector<256x64xbf16>
    %cst_193 = arith.constant dense<0.000000e+00> : vector<16x64xf32>
    %465 = tpu.matmul %462, %464, %cst_193 {dimension_numbers = #tpu.dot_dimension_numbers<[1], [0], [0], [1], [0, 0, 1, 1], [], []>} : vector<16x256xbf16>, vector<256x64xbf16>, vector<16x64xf32> -> vector<16x64xf32>
    %c10_194 = arith.constant 10 : index
    %c0_195 = arith.constant 0 : index
    %466 = vector.load %arg8[%c10_194, %c0_195] : memref<18x64xf32, #tpu.memory_space<vmem>>, vector<1x64xf32>
    %467 = vector.broadcast %466 : vector<1x64xf32> to vector<16x64xf32>
    %468 = arith.addf %465, %467 : vector<16x64xf32>
    %469 = arith.addf %468, %451 : vector<16x64xf32>
    %c11_196 = arith.constant 11 : index
    %c0_197 = arith.constant 0 : index
    %470 = vector.load %arg8[%c11_196, %c0_197] : memref<18x64xf32, #tpu.memory_space<vmem>>, vector<1x64xf32>
    %c12_198 = arith.constant 12 : index
    %c0_199 = arith.constant 0 : index
    %471 = vector.load %arg8[%c12_198, %c0_199] : memref<18x64xf32, #tpu.memory_space<vmem>>, vector<1x64xf32>
    %cst_200 = arith.constant dense<0.000000e+00> : vector<16xf32>
    %472 = vector.multi_reduction <add>, %469, %cst_200 [1] : vector<16x64xf32> to vector<16xf32>
    %473 = vector.shape_cast %472 : vector<16xf32> to vector<16x1xf32>
    %cst_201 = arith.constant 6.400000e+01 : f32
    %474 = vector.broadcast %cst_201 : f32 to vector<16x1xf32>
    %475 = arith.divf %473, %474 : vector<16x1xf32>
    %476 = vector.broadcast %475 : vector<16x1xf32> to vector<16x64xf32>
    %477 = arith.subf %469, %476 : vector<16x64xf32>
    %478 = arith.mulf %477, %477 : vector<16x64xf32>
    %cst_202 = arith.constant dense<0.000000e+00> : vector<16xf32>
    %479 = vector.multi_reduction <add>, %478, %cst_202 [1] : vector<16x64xf32> to vector<16xf32>
    %480 = vector.shape_cast %479 : vector<16xf32> to vector<16x1xf32>
    %cst_203 = arith.constant 6.400000e+01 : f32
    %481 = vector.broadcast %cst_203 : f32 to vector<16x1xf32>
    %482 = arith.divf %480, %481 : vector<16x1xf32>
    %483 = vector.broadcast %475 : vector<16x1xf32> to vector<16x64xf32>
    %484 = arith.subf %469, %483 : vector<16x64xf32>
    %cst_204 = arith.constant 9.99999997E-7 : f32
    %485 = vector.broadcast %cst_204 : f32 to vector<16x1xf32>
    %486 = arith.addf %482, %485 : vector<16x1xf32>
    %487 = math.rsqrt %486 : vector<16x1xf32>
    %488 = vector.broadcast %487 : vector<16x1xf32> to vector<16x64xf32>
    %489 = arith.mulf %484, %488 : vector<16x64xf32>
    %490 = vector.broadcast %470 : vector<1x64xf32> to vector<16x64xf32>
    %491 = arith.mulf %489, %490 : vector<16x64xf32>
    %492 = vector.broadcast %471 : vector<1x64xf32> to vector<16x64xf32>
    %493 = arith.addf %491, %492 : vector<16x64xf32>
    %494 = arith.truncf %493 : vector<16x64xf32> to vector<16x64xbf16>
    %c16 = arith.constant 16 : index
    %c0_205 = arith.constant 0 : index
    %c0_206 = arith.constant 0 : index
    %495 = vector.load %arg4[%c16, %c0_205, %c0_206] : memref<24x64x64xbf16, #tpu.memory_space<vmem>>, vector<1x64x64xbf16>
    %496 = vector.shape_cast %495 : vector<1x64x64xbf16> to vector<64x64xbf16>
    %cst_207 = arith.constant dense<0.000000e+00> : vector<16x64xf32>
    %497 = tpu.matmul %494, %496, %cst_207 {dimension_numbers = #tpu.dot_dimension_numbers<[1], [0], [0], [1], [0, 0, 1, 1], [], []>} : vector<16x64xbf16>, vector<64x64xbf16>, vector<16x64xf32> -> vector<16x64xf32>
    %498 = arith.truncf %497 : vector<16x64xf32> to vector<16x64xbf16>
    %c17 = arith.constant 17 : index
    %c0_208 = arith.constant 0 : index
    %c0_209 = arith.constant 0 : index
    %499 = vector.load %arg4[%c17, %c0_208, %c0_209] : memref<24x64x64xbf16, #tpu.memory_space<vmem>>, vector<1x64x64xbf16>
    %500 = vector.shape_cast %499 : vector<1x64x64xbf16> to vector<64x64xbf16>
    %cst_210 = arith.constant dense<0.000000e+00> : vector<16x64xf32>
    %501 = tpu.matmul %494, %500, %cst_210 {dimension_numbers = #tpu.dot_dimension_numbers<[1], [0], [0], [1], [0, 0, 1, 1], [], []>} : vector<16x64xbf16>, vector<64x64xbf16>, vector<16x64xf32> -> vector<16x64xf32>
    %502 = arith.truncf %501 : vector<16x64xf32> to vector<16x64xbf16>
    %c18 = arith.constant 18 : index
    %c0_211 = arith.constant 0 : index
    %c0_212 = arith.constant 0 : index
    %503 = vector.load %arg4[%c18, %c0_211, %c0_212] : memref<24x64x64xbf16, #tpu.memory_space<vmem>>, vector<1x64x64xbf16>
    %504 = vector.shape_cast %503 : vector<1x64x64xbf16> to vector<64x64xbf16>
    %cst_213 = arith.constant dense<0.000000e+00> : vector<16x64xf32>
    %505 = tpu.matmul %494, %504, %cst_213 {dimension_numbers = #tpu.dot_dimension_numbers<[1], [0], [0], [1], [0, 0, 1, 1], [], []>} : vector<16x64xbf16>, vector<64x64xbf16>, vector<16x64xf32> -> vector<16x64xf32>
    %506 = arith.truncf %505 : vector<16x64xf32> to vector<16x64xbf16>
    %c19 = arith.constant 19 : index
    %c0_214 = arith.constant 0 : index
    %c0_215 = arith.constant 0 : index
    %507 = vector.load %arg4[%c19, %c0_214, %c0_215] : memref<24x64x64xbf16, #tpu.memory_space<vmem>>, vector<1x64x64xbf16>
    %508 = vector.shape_cast %507 : vector<1x64x64xbf16> to vector<64x64xbf16>
    %cst_216 = arith.constant dense<0.000000e+00> : vector<16x64xf32>
    %509 = tpu.matmul %494, %508, %cst_216 {dimension_numbers = #tpu.dot_dimension_numbers<[1], [0], [0], [1], [0, 0, 1, 1], [], []>} : vector<16x64xbf16>, vector<64x64xbf16>, vector<16x64xf32> -> vector<16x64xf32>
    %510 = arith.truncf %509 : vector<16x64xf32> to vector<16x64xbf16>
    %c20 = arith.constant 20 : index
    %c0_217 = arith.constant 0 : index
    %c0_218 = arith.constant 0 : index
    %511 = vector.load %arg4[%c20, %c0_217, %c0_218] : memref<24x64x64xbf16, #tpu.memory_space<vmem>>, vector<1x64x64xbf16>
    %512 = vector.shape_cast %511 : vector<1x64x64xbf16> to vector<64x64xbf16>
    %cst_219 = arith.constant dense<0.000000e+00> : vector<16x64xf32>
    %513 = tpu.matmul %494, %512, %cst_219 {dimension_numbers = #tpu.dot_dimension_numbers<[1], [0], [0], [1], [0, 0, 1, 1], [], []>} : vector<16x64xbf16>, vector<64x64xbf16>, vector<16x64xf32> -> vector<16x64xf32>
    %514 = arith.truncf %513 : vector<16x64xf32> to vector<16x64xbf16>
    %c21 = arith.constant 21 : index
    %c0_220 = arith.constant 0 : index
    %c0_221 = arith.constant 0 : index
    %515 = vector.load %arg4[%c21, %c0_220, %c0_221] : memref<24x64x64xbf16, #tpu.memory_space<vmem>>, vector<1x64x64xbf16>
    %516 = vector.shape_cast %515 : vector<1x64x64xbf16> to vector<64x64xbf16>
    %cst_222 = arith.constant dense<0.000000e+00> : vector<16x64xf32>
    %517 = tpu.matmul %494, %516, %cst_222 {dimension_numbers = #tpu.dot_dimension_numbers<[1], [0], [0], [1], [0, 0, 1, 1], [], []>} : vector<16x64xbf16>, vector<64x64xbf16>, vector<16x64xf32> -> vector<16x64xf32>
    %518 = arith.truncf %517 : vector<16x64xf32> to vector<16x64xbf16>
    %c22 = arith.constant 22 : index
    %c0_223 = arith.constant 0 : index
    %c0_224 = arith.constant 0 : index
    %519 = vector.load %arg4[%c22, %c0_223, %c0_224] : memref<24x64x64xbf16, #tpu.memory_space<vmem>>, vector<1x64x64xbf16>
    %520 = vector.shape_cast %519 : vector<1x64x64xbf16> to vector<64x64xbf16>
    %cst_225 = arith.constant dense<0.000000e+00> : vector<16x64xf32>
    %521 = tpu.matmul %494, %520, %cst_225 {dimension_numbers = #tpu.dot_dimension_numbers<[1], [0], [0], [1], [0, 0, 1, 1], [], []>} : vector<16x64xbf16>, vector<64x64xbf16>, vector<16x64xf32> -> vector<16x64xf32>
    %522 = arith.truncf %521 : vector<16x64xf32> to vector<16x64xbf16>
    %c23 = arith.constant 23 : index
    %c0_226 = arith.constant 0 : index
    %c0_227 = arith.constant 0 : index
    %523 = vector.load %arg4[%c23, %c0_226, %c0_227] : memref<24x64x64xbf16, #tpu.memory_space<vmem>>, vector<1x64x64xbf16>
    %524 = vector.shape_cast %523 : vector<1x64x64xbf16> to vector<64x64xbf16>
    %cst_228 = arith.constant dense<0.000000e+00> : vector<16x64xf32>
    %525 = tpu.matmul %494, %524, %cst_228 {dimension_numbers = #tpu.dot_dimension_numbers<[1], [0], [0], [1], [0, 0, 1, 1], [], []>} : vector<16x64xbf16>, vector<64x64xbf16>, vector<16x64xf32> -> vector<16x64xf32>
    %526 = arith.truncf %525 : vector<16x64xf32> to vector<16x64xbf16>
    %527 = vector.extract_strided_slice %494 {offsets = [0, 0], sizes = [8, 64], strides = [1, 1]} : vector<16x64xbf16> to vector<8x64xbf16>
    %528 = vector.extract_strided_slice %498 {offsets = [0, 0], sizes = [8, 64], strides = [1, 1]} : vector<16x64xbf16> to vector<8x64xbf16>
    %cst_229 = arith.constant dense<0.000000e+00> : vector<8x8xf32>
    %529 = tpu.matmul %528, %527, %cst_229 {dimension_numbers = #tpu.dot_dimension_numbers<[1], [1], [0], [0], [0, 0, 1, 0], [], []>} : vector<8x64xbf16>, vector<8x64xbf16>, vector<8x8xf32> -> vector<8x8xf32>
    %cst_230 = arith.constant dense<0xFF800000> : vector<8xf32>
    %530 = vector.multi_reduction <maximumf>, %529, %cst_230 [1] : vector<8x8xf32> to vector<8xf32>
    %531 = vector.shape_cast %530 : vector<8xf32> to vector<8x1xf32>
    %532 = vector.broadcast %531 : vector<8x1xf32> to vector<8x8xf32>
    %533 = arith.subf %529, %532 : vector<8x8xf32>
    %534 = math.exp %533 : vector<8x8xf32>
    %cst_231 = arith.constant dense<0.000000e+00> : vector<8xf32>
    %535 = vector.multi_reduction <add>, %534, %cst_231 [1] : vector<8x8xf32> to vector<8xf32>
    %536 = vector.shape_cast %535 : vector<8xf32> to vector<8x1xf32>
    %537 = tpu.reciprocal %536 {approx = true} : vector<8x1xf32> -> vector<8x1xf32>
    %538 = vector.broadcast %537 : vector<8x1xf32> to vector<8x8xf32>
    %539 = arith.mulf %534, %538 : vector<8x8xf32>
    %540 = arith.truncf %539 : vector<8x8xf32> to vector<8x8xbf16>
    %541 = vector.extract_strided_slice %514 {offsets = [0, 0], sizes = [8, 64], strides = [1, 1]} : vector<16x64xbf16> to vector<8x64xbf16>
    %cst_232 = arith.constant dense<0.000000e+00> : vector<8x64xf32>
    %542 = tpu.matmul %540, %541, %cst_232 {dimension_numbers = #tpu.dot_dimension_numbers<[1], [0], [0], [1], [0, 0, 1, 1], [], []>} : vector<8x8xbf16>, vector<8x64xbf16>, vector<8x64xf32> -> vector<8x64xf32>
    %543 = vector.extract_strided_slice %502 {offsets = [0, 0], sizes = [8, 64], strides = [1, 1]} : vector<16x64xbf16> to vector<8x64xbf16>
    %cst_233 = arith.constant dense<0.000000e+00> : vector<8x8xf32>
    %544 = tpu.matmul %543, %527, %cst_233 {dimension_numbers = #tpu.dot_dimension_numbers<[1], [1], [0], [0], [0, 0, 1, 0], [], []>} : vector<8x64xbf16>, vector<8x64xbf16>, vector<8x8xf32> -> vector<8x8xf32>
    %cst_234 = arith.constant dense<0xFF800000> : vector<8xf32>
    %545 = vector.multi_reduction <maximumf>, %544, %cst_234 [1] : vector<8x8xf32> to vector<8xf32>
    %546 = vector.shape_cast %545 : vector<8xf32> to vector<8x1xf32>
    %547 = vector.broadcast %546 : vector<8x1xf32> to vector<8x8xf32>
    %548 = arith.subf %544, %547 : vector<8x8xf32>
    %549 = math.exp %548 : vector<8x8xf32>
    %cst_235 = arith.constant dense<0.000000e+00> : vector<8xf32>
    %550 = vector.multi_reduction <add>, %549, %cst_235 [1] : vector<8x8xf32> to vector<8xf32>
    %551 = vector.shape_cast %550 : vector<8xf32> to vector<8x1xf32>
    %552 = tpu.reciprocal %551 {approx = true} : vector<8x1xf32> -> vector<8x1xf32>
    %553 = vector.broadcast %552 : vector<8x1xf32> to vector<8x8xf32>
    %554 = arith.mulf %549, %553 : vector<8x8xf32>
    %555 = arith.truncf %554 : vector<8x8xf32> to vector<8x8xbf16>
    %556 = vector.extract_strided_slice %518 {offsets = [0, 0], sizes = [8, 64], strides = [1, 1]} : vector<16x64xbf16> to vector<8x64xbf16>
    %cst_236 = arith.constant dense<0.000000e+00> : vector<8x64xf32>
    %557 = tpu.matmul %555, %556, %cst_236 {dimension_numbers = #tpu.dot_dimension_numbers<[1], [0], [0], [1], [0, 0, 1, 1], [], []>} : vector<8x8xbf16>, vector<8x64xbf16>, vector<8x64xf32> -> vector<8x64xf32>
    %558 = arith.addf %542, %557 : vector<8x64xf32>
    %559 = vector.extract_strided_slice %506 {offsets = [0, 0], sizes = [8, 64], strides = [1, 1]} : vector<16x64xbf16> to vector<8x64xbf16>
    %cst_237 = arith.constant dense<0.000000e+00> : vector<8x8xf32>
    %560 = tpu.matmul %559, %527, %cst_237 {dimension_numbers = #tpu.dot_dimension_numbers<[1], [1], [0], [0], [0, 0, 1, 0], [], []>} : vector<8x64xbf16>, vector<8x64xbf16>, vector<8x8xf32> -> vector<8x8xf32>
    %cst_238 = arith.constant dense<0xFF800000> : vector<8xf32>
    %561 = vector.multi_reduction <maximumf>, %560, %cst_238 [1] : vector<8x8xf32> to vector<8xf32>
    %562 = vector.shape_cast %561 : vector<8xf32> to vector<8x1xf32>
    %563 = vector.broadcast %562 : vector<8x1xf32> to vector<8x8xf32>
    %564 = arith.subf %560, %563 : vector<8x8xf32>
    %565 = math.exp %564 : vector<8x8xf32>
    %cst_239 = arith.constant dense<0.000000e+00> : vector<8xf32>
    %566 = vector.multi_reduction <add>, %565, %cst_239 [1] : vector<8x8xf32> to vector<8xf32>
    %567 = vector.shape_cast %566 : vector<8xf32> to vector<8x1xf32>
    %568 = tpu.reciprocal %567 {approx = true} : vector<8x1xf32> -> vector<8x1xf32>
    %569 = vector.broadcast %568 : vector<8x1xf32> to vector<8x8xf32>
    %570 = arith.mulf %565, %569 : vector<8x8xf32>
    %571 = arith.truncf %570 : vector<8x8xf32> to vector<8x8xbf16>
    %572 = vector.extract_strided_slice %522 {offsets = [0, 0], sizes = [8, 64], strides = [1, 1]} : vector<16x64xbf16> to vector<8x64xbf16>
    %cst_240 = arith.constant dense<0.000000e+00> : vector<8x64xf32>
    %573 = tpu.matmul %571, %572, %cst_240 {dimension_numbers = #tpu.dot_dimension_numbers<[1], [0], [0], [1], [0, 0, 1, 1], [], []>} : vector<8x8xbf16>, vector<8x64xbf16>, vector<8x64xf32> -> vector<8x64xf32>
    %574 = arith.addf %558, %573 : vector<8x64xf32>
    %575 = vector.extract_strided_slice %510 {offsets = [0, 0], sizes = [8, 64], strides = [1, 1]} : vector<16x64xbf16> to vector<8x64xbf16>
    %cst_241 = arith.constant dense<0.000000e+00> : vector<8x8xf32>
    %576 = tpu.matmul %575, %527, %cst_241 {dimension_numbers = #tpu.dot_dimension_numbers<[1], [1], [0], [0], [0, 0, 1, 0], [], []>} : vector<8x64xbf16>, vector<8x64xbf16>, vector<8x8xf32> -> vector<8x8xf32>
    %cst_242 = arith.constant dense<0xFF800000> : vector<8xf32>
    %577 = vector.multi_reduction <maximumf>, %576, %cst_242 [1] : vector<8x8xf32> to vector<8xf32>
    %578 = vector.shape_cast %577 : vector<8xf32> to vector<8x1xf32>
    %579 = vector.broadcast %578 : vector<8x1xf32> to vector<8x8xf32>
    %580 = arith.subf %576, %579 : vector<8x8xf32>
    %581 = math.exp %580 : vector<8x8xf32>
    %cst_243 = arith.constant dense<0.000000e+00> : vector<8xf32>
    %582 = vector.multi_reduction <add>, %581, %cst_243 [1] : vector<8x8xf32> to vector<8xf32>
    %583 = vector.shape_cast %582 : vector<8xf32> to vector<8x1xf32>
    %584 = tpu.reciprocal %583 {approx = true} : vector<8x1xf32> -> vector<8x1xf32>
    %585 = vector.broadcast %584 : vector<8x1xf32> to vector<8x8xf32>
    %586 = arith.mulf %581, %585 : vector<8x8xf32>
    %587 = arith.truncf %586 : vector<8x8xf32> to vector<8x8xbf16>
    %588 = vector.extract_strided_slice %526 {offsets = [0, 0], sizes = [8, 64], strides = [1, 1]} : vector<16x64xbf16> to vector<8x64xbf16>
    %cst_244 = arith.constant dense<0.000000e+00> : vector<8x64xf32>
    %589 = tpu.matmul %587, %588, %cst_244 {dimension_numbers = #tpu.dot_dimension_numbers<[1], [0], [0], [1], [0, 0, 1, 1], [], []>} : vector<8x8xbf16>, vector<8x64xbf16>, vector<8x64xf32> -> vector<8x64xf32>
    %590 = arith.addf %574, %589 : vector<8x64xf32>
    %c0_245 = arith.constant 0 : index
    %c0_246 = arith.constant 0 : index
    %591 = vector.load %arg16[%c0_245, %c0_246] : memref<16x64xf32, #tpu.memory_space<vmem>>, vector<8x64xf32>
    tpu.vector_store %arg16[%c0_245, %c0_246], %590 {strides = array<i32>} : memref<16x64xf32, #tpu.memory_space<vmem>>, vector<8x64xf32>,
    %592 = vector.extract_strided_slice %494 {offsets = [8, 0], sizes = [8, 64], strides = [1, 1]} : vector<16x64xbf16> to vector<8x64xbf16>
    %593 = vector.extract_strided_slice %498 {offsets = [8, 0], sizes = [8, 64], strides = [1, 1]} : vector<16x64xbf16> to vector<8x64xbf16>
    %cst_247 = arith.constant dense<0.000000e+00> : vector<8x8xf32>
    %594 = tpu.matmul %593, %592, %cst_247 {dimension_numbers = #tpu.dot_dimension_numbers<[1], [1], [0], [0], [0, 0, 1, 0], [], []>} : vector<8x64xbf16>, vector<8x64xbf16>, vector<8x8xf32> -> vector<8x8xf32>
    %cst_248 = arith.constant dense<0xFF800000> : vector<8xf32>
    %595 = vector.multi_reduction <maximumf>, %594, %cst_248 [1] : vector<8x8xf32> to vector<8xf32>
    %596 = vector.shape_cast %595 : vector<8xf32> to vector<8x1xf32>
    %597 = vector.broadcast %596 : vector<8x1xf32> to vector<8x8xf32>
    %598 = arith.subf %594, %597 : vector<8x8xf32>
    %599 = math.exp %598 : vector<8x8xf32>
    %cst_249 = arith.constant dense<0.000000e+00> : vector<8xf32>
    %600 = vector.multi_reduction <add>, %599, %cst_249 [1] : vector<8x8xf32> to vector<8xf32>
    %601 = vector.shape_cast %600 : vector<8xf32> to vector<8x1xf32>
    %602 = tpu.reciprocal %601 {approx = true} : vector<8x1xf32> -> vector<8x1xf32>
    %603 = vector.broadcast %602 : vector<8x1xf32> to vector<8x8xf32>
    %604 = arith.mulf %599, %603 : vector<8x8xf32>
    %605 = arith.truncf %604 : vector<8x8xf32> to vector<8x8xbf16>
    %606 = vector.extract_strided_slice %514 {offsets = [8, 0], sizes = [8, 64], strides = [1, 1]} : vector<16x64xbf16> to vector<8x64xbf16>
    %cst_250 = arith.constant dense<0.000000e+00> : vector<8x64xf32>
    %607 = tpu.matmul %605, %606, %cst_250 {dimension_numbers = #tpu.dot_dimension_numbers<[1], [0], [0], [1], [0, 0, 1, 1], [], []>} : vector<8x8xbf16>, vector<8x64xbf16>, vector<8x64xf32> -> vector<8x64xf32>
    %608 = vector.extract_strided_slice %502 {offsets = [8, 0], sizes = [8, 64], strides = [1, 1]} : vector<16x64xbf16> to vector<8x64xbf16>
    %cst_251 = arith.constant dense<0.000000e+00> : vector<8x8xf32>
    %609 = tpu.matmul %608, %592, %cst_251 {dimension_numbers = #tpu.dot_dimension_numbers<[1], [1], [0], [0], [0, 0, 1, 0], [], []>} : vector<8x64xbf16>, vector<8x64xbf16>, vector<8x8xf32> -> vector<8x8xf32>
    %cst_252 = arith.constant dense<0xFF800000> : vector<8xf32>
    %610 = vector.multi_reduction <maximumf>, %609, %cst_252 [1] : vector<8x8xf32> to vector<8xf32>
    %611 = vector.shape_cast %610 : vector<8xf32> to vector<8x1xf32>
    %612 = vector.broadcast %611 : vector<8x1xf32> to vector<8x8xf32>
    %613 = arith.subf %609, %612 : vector<8x8xf32>
    %614 = math.exp %613 : vector<8x8xf32>
    %cst_253 = arith.constant dense<0.000000e+00> : vector<8xf32>
    %615 = vector.multi_reduction <add>, %614, %cst_253 [1] : vector<8x8xf32> to vector<8xf32>
    %616 = vector.shape_cast %615 : vector<8xf32> to vector<8x1xf32>
    %617 = tpu.reciprocal %616 {approx = true} : vector<8x1xf32> -> vector<8x1xf32>
    %618 = vector.broadcast %617 : vector<8x1xf32> to vector<8x8xf32>
    %619 = arith.mulf %614, %618 : vector<8x8xf32>
    %620 = arith.truncf %619 : vector<8x8xf32> to vector<8x8xbf16>
    %621 = vector.extract_strided_slice %518 {offsets = [8, 0], sizes = [8, 64], strides = [1, 1]} : vector<16x64xbf16> to vector<8x64xbf16>
    %cst_254 = arith.constant dense<0.000000e+00> : vector<8x64xf32>
    %622 = tpu.matmul %620, %621, %cst_254 {dimension_numbers = #tpu.dot_dimension_numbers<[1], [0], [0], [1], [0, 0, 1, 1], [], []>} : vector<8x8xbf16>, vector<8x64xbf16>, vector<8x64xf32> -> vector<8x64xf32>
    %623 = arith.addf %607, %622 : vector<8x64xf32>
    %624 = vector.extract_strided_slice %506 {offsets = [8, 0], sizes = [8, 64], strides = [1, 1]} : vector<16x64xbf16> to vector<8x64xbf16>
    %cst_255 = arith.constant dense<0.000000e+00> : vector<8x8xf32>
    %625 = tpu.matmul %624, %592, %cst_255 {dimension_numbers = #tpu.dot_dimension_numbers<[1], [1], [0], [0], [0, 0, 1, 0], [], []>} : vector<8x64xbf16>, vector<8x64xbf16>, vector<8x8xf32> -> vector<8x8xf32>
    %cst_256 = arith.constant dense<0xFF800000> : vector<8xf32>
    %626 = vector.multi_reduction <maximumf>, %625, %cst_256 [1] : vector<8x8xf32> to vector<8xf32>
    %627 = vector.shape_cast %626 : vector<8xf32> to vector<8x1xf32>
    %628 = vector.broadcast %627 : vector<8x1xf32> to vector<8x8xf32>
    %629 = arith.subf %625, %628 : vector<8x8xf32>
    %630 = math.exp %629 : vector<8x8xf32>
    %cst_257 = arith.constant dense<0.000000e+00> : vector<8xf32>
    %631 = vector.multi_reduction <add>, %630, %cst_257 [1] : vector<8x8xf32> to vector<8xf32>
    %632 = vector.shape_cast %631 : vector<8xf32> to vector<8x1xf32>
    %633 = tpu.reciprocal %632 {approx = true} : vector<8x1xf32> -> vector<8x1xf32>
    %634 = vector.broadcast %633 : vector<8x1xf32> to vector<8x8xf32>
    %635 = arith.mulf %630, %634 : vector<8x8xf32>
    %636 = arith.truncf %635 : vector<8x8xf32> to vector<8x8xbf16>
    %637 = vector.extract_strided_slice %522 {offsets = [8, 0], sizes = [8, 64], strides = [1, 1]} : vector<16x64xbf16> to vector<8x64xbf16>
    %cst_258 = arith.constant dense<0.000000e+00> : vector<8x64xf32>
    %638 = tpu.matmul %636, %637, %cst_258 {dimension_numbers = #tpu.dot_dimension_numbers<[1], [0], [0], [1], [0, 0, 1, 1], [], []>} : vector<8x8xbf16>, vector<8x64xbf16>, vector<8x64xf32> -> vector<8x64xf32>
    %639 = arith.addf %623, %638 : vector<8x64xf32>
    %640 = vector.extract_strided_slice %510 {offsets = [8, 0], sizes = [8, 64], strides = [1, 1]} : vector<16x64xbf16> to vector<8x64xbf16>
    %cst_259 = arith.constant dense<0.000000e+00> : vector<8x8xf32>
    %641 = tpu.matmul %640, %592, %cst_259 {dimension_numbers = #tpu.dot_dimension_numbers<[1], [1], [0], [0], [0, 0, 1, 0], [], []>} : vector<8x64xbf16>, vector<8x64xbf16>, vector<8x8xf32> -> vector<8x8xf32>
    %cst_260 = arith.constant dense<0xFF800000> : vector<8xf32>
    %642 = vector.multi_reduction <maximumf>, %641, %cst_260 [1] : vector<8x8xf32> to vector<8xf32>
    %643 = vector.shape_cast %642 : vector<8xf32> to vector<8x1xf32>
    %644 = vector.broadcast %643 : vector<8x1xf32> to vector<8x8xf32>
    %645 = arith.subf %641, %644 : vector<8x8xf32>
    %646 = math.exp %645 : vector<8x8xf32>
    %cst_261 = arith.constant dense<0.000000e+00> : vector<8xf32>
    %647 = vector.multi_reduction <add>, %646, %cst_261 [1] : vector<8x8xf32> to vector<8xf32>
    %648 = vector.shape_cast %647 : vector<8xf32> to vector<8x1xf32>
    %649 = tpu.reciprocal %648 {approx = true} : vector<8x1xf32> -> vector<8x1xf32>
    %650 = vector.broadcast %649 : vector<8x1xf32> to vector<8x8xf32>
    %651 = arith.mulf %646, %650 : vector<8x8xf32>
    %652 = arith.truncf %651 : vector<8x8xf32> to vector<8x8xbf16>
    %653 = vector.extract_strided_slice %526 {offsets = [8, 0], sizes = [8, 64], strides = [1, 1]} : vector<16x64xbf16> to vector<8x64xbf16>
    %cst_262 = arith.constant dense<0.000000e+00> : vector<8x64xf32>
    %654 = tpu.matmul %652, %653, %cst_262 {dimension_numbers = #tpu.dot_dimension_numbers<[1], [0], [0], [1], [0, 0, 1, 1], [], []>} : vector<8x8xbf16>, vector<8x64xbf16>, vector<8x64xf32> -> vector<8x64xf32>
    %655 = arith.addf %639, %654 : vector<8x64xf32>
    %c8_263 = arith.constant 8 : index
    %c0_264 = arith.constant 0 : index
    %656 = vector.load %arg16[%c8_263, %c0_264] : memref<16x64xf32, #tpu.memory_space<vmem>>, vector<8x64xf32>
    tpu.vector_store %arg16[%c8_263, %c0_264], %655 {strides = array<i32>} : memref<16x64xf32, #tpu.memory_space<vmem>>, vector<8x64xf32>,
    %c0_265 = arith.constant 0 : index
    %c0_266 = arith.constant 0 : index
    %657 = vector.load %arg16[%c0_265, %c0_266] : memref<16x64xf32, #tpu.memory_space<vmem>>, vector<16x64xf32>
    %658 = arith.addf %657, %493 : vector<16x64xf32>
    %c13_267 = arith.constant 13 : index
    %c0_268 = arith.constant 0 : index
    %659 = vector.load %arg8[%c13_267, %c0_268] : memref<18x64xf32, #tpu.memory_space<vmem>>, vector<1x64xf32>
    %c14_269 = arith.constant 14 : index
    %c0_270 = arith.constant 0 : index
    %660 = vector.load %arg8[%c14_269, %c0_270] : memref<18x64xf32, #tpu.memory_space<vmem>>, vector<1x64xf32>
    %cst_271 = arith.constant dense<0.000000e+00> : vector<16xf32>
    %661 = vector.multi_reduction <add>, %658, %cst_271 [1] : vector<16x64xf32> to vector<16xf32>
    %662 = vector.shape_cast %661 : vector<16xf32> to vector<16x1xf32>
    %cst_272 = arith.constant 6.400000e+01 : f32
    %663 = vector.broadcast %cst_272 : f32 to vector<16x1xf32>
    %664 = arith.divf %662, %663 : vector<16x1xf32>
    %665 = vector.broadcast %664 : vector<16x1xf32> to vector<16x64xf32>
    %666 = arith.subf %658, %665 : vector<16x64xf32>
    %667 = arith.mulf %666, %666 : vector<16x64xf32>
    %cst_273 = arith.constant dense<0.000000e+00> : vector<16xf32>
    %668 = vector.multi_reduction <add>, %667, %cst_273 [1] : vector<16x64xf32> to vector<16xf32>
    %669 = vector.shape_cast %668 : vector<16xf32> to vector<16x1xf32>
    %cst_274 = arith.constant 6.400000e+01 : f32
    %670 = vector.broadcast %cst_274 : f32 to vector<16x1xf32>
    %671 = arith.divf %669, %670 : vector<16x1xf32>
    %672 = vector.broadcast %664 : vector<16x1xf32> to vector<16x64xf32>
    %673 = arith.subf %658, %672 : vector<16x64xf32>
    %cst_275 = arith.constant 9.99999997E-7 : f32
    %674 = vector.broadcast %cst_275 : f32 to vector<16x1xf32>
    %675 = arith.addf %671, %674 : vector<16x1xf32>
    %676 = math.rsqrt %675 : vector<16x1xf32>
    %677 = vector.broadcast %676 : vector<16x1xf32> to vector<16x64xf32>
    %678 = arith.mulf %673, %677 : vector<16x64xf32>
    %679 = vector.broadcast %659 : vector<1x64xf32> to vector<16x64xf32>
    %680 = arith.mulf %678, %679 : vector<16x64xf32>
    %681 = vector.broadcast %660 : vector<1x64xf32> to vector<16x64xf32>
    %682 = arith.addf %680, %681 : vector<16x64xf32>
    %683 = arith.truncf %682 : vector<16x64xf32> to vector<16x64xbf16>
    %c2_276 = arith.constant 2 : index
    %c0_277 = arith.constant 0 : index
    %c0_278 = arith.constant 0 : index
    %684 = vector.load %arg5[%c2_276, %c0_277, %c0_278] : memref<3x64x256xbf16, #tpu.memory_space<vmem>>, vector<1x64x256xbf16>
    %685 = vector.shape_cast %684 : vector<1x64x256xbf16> to vector<64x256xbf16>
    %cst_279 = arith.constant dense<0.000000e+00> : vector<16x256xf32>
    %686 = tpu.matmul %683, %685, %cst_279 {dimension_numbers = #tpu.dot_dimension_numbers<[1], [0], [0], [1], [0, 0, 1, 1], [], []>} : vector<16x64xbf16>, vector<64x256xbf16>, vector<16x256xf32> -> vector<16x256xf32>
    %c2_280 = arith.constant 2 : index
    %c0_281 = arith.constant 0 : index
    %c0_282 = arith.constant 0 : index
    %687 = vector.load %arg6[%c2_280, %c0_281, %c0_282] : memref<3x1x256xf32, #tpu.memory_space<vmem>>, vector<1x1x256xf32>
    %688 = vector.shape_cast %687 : vector<1x1x256xf32> to vector<1x256xf32>
    %689 = vector.broadcast %688 : vector<1x256xf32> to vector<16x256xf32>
    %690 = arith.addf %686, %689 : vector<16x256xf32>
    %cst_283 = arith.constant 0.000000e+00 : f32
    %691 = vector.broadcast %cst_283 : f32 to vector<16x256xf32>
    %692 = arith.maximumf %690, %691 : vector<16x256xf32>
    %693 = arith.truncf %692 : vector<16x256xf32> to vector<16x256xbf16>
    %c2_284 = arith.constant 2 : index
    %c0_285 = arith.constant 0 : index
    %c0_286 = arith.constant 0 : index
    %694 = vector.load %arg7[%c2_284, %c0_285, %c0_286] : memref<3x256x64xbf16, #tpu.memory_space<vmem>>, vector<1x256x64xbf16>
    %695 = vector.shape_cast %694 : vector<1x256x64xbf16> to vector<256x64xbf16>
    %cst_287 = arith.constant dense<0.000000e+00> : vector<16x64xf32>
    %696 = tpu.matmul %693, %695, %cst_287 {dimension_numbers = #tpu.dot_dimension_numbers<[1], [0], [0], [1], [0, 0, 1, 1], [], []>} : vector<16x256xbf16>, vector<256x64xbf16>, vector<16x64xf32> -> vector<16x64xf32>
    %c15_288 = arith.constant 15 : index
    %c0_289 = arith.constant 0 : index
    %697 = vector.load %arg8[%c15_288, %c0_289] : memref<18x64xf32, #tpu.memory_space<vmem>>, vector<1x64xf32>
    %698 = vector.broadcast %697 : vector<1x64xf32> to vector<16x64xf32>
    %699 = arith.addf %696, %698 : vector<16x64xf32>
    %700 = arith.addf %699, %682 : vector<16x64xf32>
    %c16_290 = arith.constant 16 : index
    %c0_291 = arith.constant 0 : index
    %701 = vector.load %arg8[%c16_290, %c0_291] : memref<18x64xf32, #tpu.memory_space<vmem>>, vector<1x64xf32>
    %c17_292 = arith.constant 17 : index
    %c0_293 = arith.constant 0 : index
    %702 = vector.load %arg8[%c17_292, %c0_293] : memref<18x64xf32, #tpu.memory_space<vmem>>, vector<1x64xf32>
    %cst_294 = arith.constant dense<0.000000e+00> : vector<16xf32>
    %703 = vector.multi_reduction <add>, %700, %cst_294 [1] : vector<16x64xf32> to vector<16xf32>
    %704 = vector.shape_cast %703 : vector<16xf32> to vector<16x1xf32>
    %cst_295 = arith.constant 6.400000e+01 : f32
    %705 = vector.broadcast %cst_295 : f32 to vector<16x1xf32>
    %706 = arith.divf %704, %705 : vector<16x1xf32>
    %707 = vector.broadcast %706 : vector<16x1xf32> to vector<16x64xf32>
    %708 = arith.subf %700, %707 : vector<16x64xf32>
    %709 = arith.mulf %708, %708 : vector<16x64xf32>
    %cst_296 = arith.constant dense<0.000000e+00> : vector<16xf32>
    %710 = vector.multi_reduction <add>, %709, %cst_296 [1] : vector<16x64xf32> to vector<16xf32>
    %711 = vector.shape_cast %710 : vector<16xf32> to vector<16x1xf32>
    %cst_297 = arith.constant 6.400000e+01 : f32
    %712 = vector.broadcast %cst_297 : f32 to vector<16x1xf32>
    %713 = arith.divf %711, %712 : vector<16x1xf32>
    %714 = vector.broadcast %706 : vector<16x1xf32> to vector<16x64xf32>
    %715 = arith.subf %700, %714 : vector<16x64xf32>
    %cst_298 = arith.constant 9.99999997E-7 : f32
    %716 = vector.broadcast %cst_298 : f32 to vector<16x1xf32>
    %717 = arith.addf %713, %716 : vector<16x1xf32>
    %718 = math.rsqrt %717 : vector<16x1xf32>
    %719 = vector.broadcast %718 : vector<16x1xf32> to vector<16x64xf32>
    %720 = arith.mulf %715, %719 : vector<16x64xf32>
    %721 = vector.broadcast %701 : vector<1x64xf32> to vector<16x64xf32>
    %722 = arith.mulf %720, %721 : vector<16x64xf32>
    %723 = vector.broadcast %702 : vector<1x64xf32> to vector<16x64xf32>
    %724 = arith.addf %722, %723 : vector<16x64xf32>
    %725 = arith.truncf %724 : vector<16x64xf32> to vector<16x64xbf16>
    %c0_299 = arith.constant 0 : index
    %c0_300 = arith.constant 0 : index
    %726 = vector.load %arg9[%c0_299, %c0_300] : memref<64x128xbf16, #tpu.memory_space<vmem>>, vector<64x128xbf16>
    %cst_301 = arith.constant dense<0.000000e+00> : vector<16x128xf32>
    %727 = tpu.matmul %725, %726, %cst_301 {dimension_numbers = #tpu.dot_dimension_numbers<[1], [0], [0], [1], [0, 0, 1, 1], [], []>} : vector<16x64xbf16>, vector<64x128xbf16>, vector<16x128xf32> -> vector<16x128xf32>
    %c0_302 = arith.constant 0 : index
    %c0_303 = arith.constant 0 : index
    %728 = vector.load %arg10[%c0_302, %c0_303] : memref<1x128xf32, #tpu.memory_space<vmem>>, vector<1x128xf32>
    %729 = vector.broadcast %728 : vector<1x128xf32> to vector<16x128xf32>
    %730 = arith.addf %727, %729 : vector<16x128xf32>
    %731 = arith.negf %730 : vector<16x128xf32>
    %732 = math.exp %731 : vector<16x128xf32>
    %cst_304 = arith.constant 1.000000e+00 : f32
    %733 = vector.broadcast %cst_304 : f32 to vector<16x128xf32>
    %734 = arith.addf %733, %732 : vector<16x128xf32>
    %735 = arith.divf %733, %734 : vector<16x128xf32>
    %736 = arith.mulf %730, %735 : vector<16x128xf32>
    %737 = arith.truncf %736 : vector<16x128xf32> to vector<16x128xbf16>
    %c0_305 = arith.constant 0 : index
    %c0_306 = arith.constant 0 : index
    %738 = vector.load %arg11[%c0_305, %c0_306] : memref<128x64xbf16, #tpu.memory_space<vmem>>, vector<128x64xbf16>
    %cst_307 = arith.constant dense<0.000000e+00> : vector<16x64xf32>
    %739 = tpu.matmul %737, %738, %cst_307 {dimension_numbers = #tpu.dot_dimension_numbers<[1], [0], [0], [1], [0, 0, 1, 1], [], []>} : vector<16x128xbf16>, vector<128x64xbf16>, vector<16x64xf32> -> vector<16x64xf32>
    %c0_308 = arith.constant 0 : index
    %c0_309 = arith.constant 0 : index
    %740 = vector.load %arg12[%c0_308, %c0_309] : memref<1x64xf32, #tpu.memory_space<vmem>>, vector<1x64xf32>
    %741 = vector.broadcast %740 : vector<1x64xf32> to vector<16x64xf32>
    %742 = arith.addf %739, %741 : vector<16x64xf32>
    %743 = arith.negf %742 : vector<16x64xf32>
    %744 = math.exp %743 : vector<16x64xf32>
    %cst_310 = arith.constant 1.000000e+00 : f32
    %745 = vector.broadcast %cst_310 : f32 to vector<16x64xf32>
    %746 = arith.addf %745, %744 : vector<16x64xf32>
    %747 = arith.divf %745, %746 : vector<16x64xf32>
    %748 = arith.mulf %742, %747 : vector<16x64xf32>
    %749 = arith.truncf %748 : vector<16x64xf32> to vector<16x64xbf16>
    %c0_311 = arith.constant 0 : index
    %c0_312 = arith.constant 0 : index
    %750 = vector.load %arg13[%c0_311, %c0_312] : memref<64x128xbf16, #tpu.memory_space<vmem>>, vector<64x128xbf16>
    %cst_313 = arith.constant dense<0.000000e+00> : vector<16x128xf32>
    %751 = tpu.matmul %749, %750, %cst_313 {dimension_numbers = #tpu.dot_dimension_numbers<[1], [0], [0], [1], [0, 0, 1, 1], [], []>} : vector<16x64xbf16>, vector<64x128xbf16>, vector<16x128xf32> -> vector<16x128xf32>
    %c0_314 = arith.constant 0 : index
    %c0_315 = arith.constant 0 : index
    %752 = vector.load %arg14[%c0_314, %c0_315] : memref<1x128xf32, #tpu.memory_space<vmem>>, vector<1x128xf32>
    %753 = vector.broadcast %752 : vector<1x128xf32> to vector<16x128xf32>
    %754 = arith.addf %751, %753 : vector<16x128xf32>
    %c0_316 = arith.constant 0 : index
    %c0_317 = arith.constant 0 : index
    %755 = vector.load %arg15[%c0_316, %c0_317] : memref<16x128xf32, #tpu.memory_space<vmem>>, vector<16x128xf32>
    tpu.vector_store %arg15[%c0_316, %c0_317], %754 {strides = array<i32>} : memref<16x128xf32, #tpu.memory_space<vmem>>, vector<16x128xf32>,
    return
  }
  func.func @transform_0(%arg0: i32) -> (i32, i32) {
    %c0_i32 = arith.constant 0 : i32
    %c0_i32_0 = arith.constant 0 : i32
    return %arg0, %c0_i32 : i32, i32
  }
  func.func @transform_1(%arg0: i32) -> (i32, i32) {
    %c0_i32 = arith.constant 0 : i32
    %c0_i32_0 = arith.constant 0 : i32
    %c0_i32_1 = arith.constant 0 : i32
    return %c0_i32, %c0_i32_0 : i32, i32
  }
  func.func @transform_2(%arg0: i32) -> (i32, i32) {
    %c0_i32 = arith.constant 0 : i32
    %c0_i32_0 = arith.constant 0 : i32
    %c0_i32_1 = arith.constant 0 : i32
    return %c0_i32, %c0_i32_0 : i32, i32
  }
  func.func @transform_3(%arg0: i32) -> (i32, i32, i32) {
    %c0_i32 = arith.constant 0 : i32
    %c0_i32_0 = arith.constant 0 : i32
    %c0_i32_1 = arith.constant 0 : i32
    %c0_i32_2 = arith.constant 0 : i32
    return %c0_i32, %c0_i32_0, %c0_i32_1 : i32, i32, i32
  }
  func.func @transform_4(%arg0: i32) -> (i32, i32, i32) {
    %c0_i32 = arith.constant 0 : i32
    %c0_i32_0 = arith.constant 0 : i32
    %c0_i32_1 = arith.constant 0 : i32
    %c0_i32_2 = arith.constant 0 : i32
    return %c0_i32, %c0_i32_0, %c0_i32_1 : i32, i32, i32
  }
  func.func @transform_5(%arg0: i32) -> (i32, i32, i32) {
    %c0_i32 = arith.constant 0 : i32
    %c0_i32_0 = arith.constant 0 : i32
    %c0_i32_1 = arith.constant 0 : i32
    %c0_i32_2 = arith.constant 0 : i32
    return %c0_i32, %c0_i32_0, %c0_i32_1 : i32, i32, i32
  }
  func.func @transform_6(%arg0: i32) -> (i32, i32, i32) {
    %c0_i32 = arith.constant 0 : i32
    %c0_i32_0 = arith.constant 0 : i32
    %c0_i32_1 = arith.constant 0 : i32
    %c0_i32_2 = arith.constant 0 : i32
    return %c0_i32, %c0_i32_0, %c0_i32_1 : i32, i32, i32
  }
  func.func @transform_7(%arg0: i32) -> (i32, i32) {
    %c0_i32 = arith.constant 0 : i32
    %c0_i32_0 = arith.constant 0 : i32
    %c0_i32_1 = arith.constant 0 : i32
    return %c0_i32, %c0_i32_0 : i32, i32
  }
  func.func @transform_8(%arg0: i32) -> (i32, i32) {
    %c0_i32 = arith.constant 0 : i32
    %c0_i32_0 = arith.constant 0 : i32
    %c0_i32_1 = arith.constant 0 : i32
    return %c0_i32, %c0_i32_0 : i32, i32
  }
  func.func @transform_9(%arg0: i32) -> (i32, i32) {
    %c0_i32 = arith.constant 0 : i32
    %c0_i32_0 = arith.constant 0 : i32
    %c0_i32_1 = arith.constant 0 : i32
    return %c0_i32, %c0_i32_0 : i32, i32
  }
  func.func @transform_10(%arg0: i32) -> (i32, i32) {
    %c0_i32 = arith.constant 0 : i32
    %c0_i32_0 = arith.constant 0 : i32
    %c0_i32_1 = arith.constant 0 : i32
    return %c0_i32, %c0_i32_0 : i32, i32
  }
  func.func @transform_11(%arg0: i32) -> (i32, i32) {
    %c0_i32 = arith.constant 0 : i32
    %c0_i32_0 = arith.constant 0 : i32
    %c0_i32_1 = arith.constant 0 : i32
    return %c0_i32, %c0_i32_0 : i32, i32
  }
  func.func @transform_12(%arg0: i32) -> (i32, i32) {
    %c0_i32 = arith.constant 0 : i32
    %c0_i32_0 = arith.constant 0 : i32
    %c0_i32_1 = arith.constant 0 : i32
    return %c0_i32, %c0_i32_0 : i32, i32
  }
  func.func @transform_13(%arg0: i32) -> (i32, i32) {
    %c0_i32 = arith.constant 0 : i32
    %c0_i32_0 = arith.constant 0 : i32
    %c0_i32_1 = arith.constant 0 : i32
    return %c0_i32, %c0_i32_0 : i32, i32
  }
  func.func @transform_14(%arg0: i32) -> (i32, i32) {
    %c0_i32 = arith.constant 0 : i32
    %c0_i32_0 = arith.constant 0 : i32
    return %arg0, %c0_i32 : i32, i32
  }
}

</mosaic_0001>

<llo_original>
// kernel: transformer_encoder_forward.1
$region0: #{transformer_encoder_forward.1}
  #allocation0 [shape = 'u32[]', space=smem, size = 0x4, offset = 0x4, fixed_abs, tag = 'smem constant byte address 0x4 - core index']
  #allocation1 [shape = 'u32[144,128]{1,0:T(1,128)}', space=vmem, size = 0x12000, scoped, tag = 'internal scratch']
  #allocation2 [shape = 'f32[16,64]{1,0:T(8,128)}', space=vmem, size = 0x2000, scoped, tag = 'scratch operand']
  %s0 = inlined_call_operand.vmem [shape: bf16[32,128], index: 0, kind: input, shape index: {}]
  %s1 = inlined_call_operand.vmem [shape: f32[16,64], index: 1, kind: input, shape index: {}]
  %s2 = inlined_call_operand.vmem [shape: bf16[128,64], index: 2, kind: input, shape index: {}]
  %s3 = inlined_call_operand.vmem [shape: bf16[24,64,64], index: 3, kind: input, shape index: {}]
  %s4 = inlined_call_operand.vmem [shape: bf16[3,64,256], index: 4, kind: input, shape index: {}]
  %s5 = inlined_call_operand.vmem [shape: f32[3,1,256], index: 5, kind: input, shape index: {}]
  %s6 = inlined_call_operand.vmem [shape: bf16[3,256,64], index: 6, kind: input, shape index: {}]
  %s7 = inlined_call_operand.vmem [shape: f32[18,64], index: 7, kind: input, shape index: {}]
  %s8 = inlined_call_operand.vmem [shape: bf16[64,128], index: 8, kind: input, shape index: {}]
  %s9 = inlined_call_operand.vmem [shape: f32[1,128], index: 9, kind: input, shape index: {}]
  %s10 = inlined_call_operand.vmem [shape: bf16[128,64], index: 10, kind: input, shape index: {}]
  %s11 = inlined_call_operand.vmem [shape: f32[1,64], index: 11, kind: input, shape index: {}]
  %s12 = inlined_call_operand.vmem [shape: bf16[64,128], index: 12, kind: input, shape index: {}]
  %s13 = inlined_call_operand.vmem [shape: f32[1,128], index: 13, kind: input, shape index: {}]
  %s14 = inlined_call_operand.vmem [shape: f32[32,128], index: 14, kind: output, shape index: {}]
  %s15 = sld [smem:[#allocation0]]
  $region89: #{transformer_encoder_forward.1} parent=0
    _
  %s17 = ssub.s32 1, %s15
  %s18 = scalar_select 0, %s17, %s15
  loop: start=0, step=1, limit=4
  $region2: #{transformer_encoder_forward.1} parent=0 // loop_pre_header
    _
  $region3: #{transformer_encoder_forward.1} parent=0 // loop_header
    %s20 = sphi 0, %s24
    %p21 = scmp.ge.s32.totalorder %s20, 4
    %s30 = sphi 0, %s32
    %s33 = sphi 0, %s30
    %s34 = sphi 0, %s33
    %s50 = sphi 0, %s34
    %s54 = sphi 0, %s54
    %s56 = sphi 0, %s54
    %s57 = sphi 0, %s56
    %s71 = sphi 0, %s57
    %s75 = sphi 0, %s75
    %s77 = sphi 0, %s75
    %s78 = sphi 0, %s77
    %s92 = sphi 0, %s78
    %s96 = sphi 0, %s96
    %s98 = sphi 0, %s96
    %s99 = sphi 0, %s98
    %s113 = sphi 0, %s99
    %s117 = sphi 0, %s117
    %s119 = sphi 0, %s117
    %s120 = sphi 0, %s119
    %s134 = sphi 0, %s120
    %s138 = sphi 0, %s138
    %s140 = sphi 0, %s138
    %s141 = sphi 0, %s140
    %s155 = sphi 0, %s141
    %s159 = sphi 0, %s159
    %s161 = sphi 0, %s159
    %s162 = sphi 0, %s161
    %s176 = sphi 0, %s162
    %s180 = sphi 0, %s180
    %s182 = sphi 0, %s180
    %s183 = sphi 0, %s182
    %s197 = sphi 0, %s183
    %s201 = sphi 0, %s201
    %s203 = sphi 0, %s201
    %s204 = sphi 0, %s203
    %s218 = sphi 0, %s204
    %s222 = sphi 0, %s222
    %s224 = sphi 0, %s222
    %s225 = sphi 0, %s224
    %s239 = sphi 0, %s225
    %s243 = sphi 0, %s243
    %s245 = sphi 0, %s243
    %s246 = sphi 0, %s245
    %s260 = sphi 0, %s246
    %s264 = sphi 0, %s264
    %s266 = sphi 0, %s264
    %s267 = sphi 0, %s266
    %s281 = sphi 0, %s267
    %s285 = sphi 0, %s285
    %s287 = sphi 0, %s285
    %s288 = sphi 0, %s287
    %s302 = sphi 0, %s288
    %s306 = sphi 0, %s306
    %s308 = sphi 0, %s306
    %s309 = sphi 0, %s308
    %s323 = sphi 0, %s309
    %s329 = sphi 0, %s331
    %s332 = sphi 0, %s329
    %s333 = sphi 0, %s332
    %s349 = sphi 0, %s333
  $region4: #{transformer_encoder_forward.1} parent=0 // loop_header_branch
    %23 = sbr.rel (%p21) target = $region8
  $region5: #{transformer_encoder_forward.1} parent=0 // loop_body
    %s25 = ssub.s32 %s20, 1
    %s26 = ssub.s32 %s20, 2
    %s27 = sadd.s32 %s20, 1
    %s28 = ssub.s32 %s20, %s27
    %p29 = scmp.eq.s32.totalorder %s28, 0
    %s31 = sadd.s32 %s30, 1
    %s32 = scalar_select %p29, %s30, %s31
    %p35 = pneg %p29
    %p36 = scmp.eq.s32.totalorder %s20, 1
    %p37 = por %p35, %p36
    %p38 = scmp.ne.s32.totalorder %s30, %s33
    %p39 = scmp.eq.s32.totalorder %s20, 0
    %p40 = por %p38, %p39
    %p41 = scmp.ne.s32.totalorder %s30, %s33
    %p42 = scmp.eq.s32.totalorder %s25, 1
    %p43 = por %p41, %p42
    %p44 = scmp.ne.s32.totalorder %s33, %s34
    %p45 = scmp.eq.s32.totalorder %s25, 0
    %p46 = por %p44, %p45
    %p47 = scmp.ne.s32.totalorder %s33, %s34
    %p48 = scmp.eq.s32.totalorder %s26, 1
    %p49 = por %p47, %p48
    %p51 = scmp.ne.s32.totalorder %s34, %s50
    %p52 = scmp.eq.s32.totalorder %s26, 0
    %p53 = por %p51, %p52
    %s55 = sadd.s32 %s54, 1
    %p58 = scmp.eq.s32.totalorder %s20, 1
    %p59 = scmp.ne.s32.totalorder %s54, %s56
    %p60 = scmp.eq.s32.totalorder %s20, 0
    %p61 = por %p59, %p60
    %p62 = scmp.ne.s32.totalorder %s54, %s56
    %p63 = scmp.eq.s32.totalorder %s25, 1
    %p64 = por %p62, %p63
    %p65 = scmp.ne.s32.totalorder %s56, %s57
    %p66 = scmp.eq.s32.totalorder %s25, 0
    %p67 = por %p65, %p66
    %p68 = scmp.ne.s32.totalorder %s56, %s57
    %p69 = scmp.eq.s32.totalorder %s26, 1
    %p70 = por %p68, %p69
    %p72 = scmp.ne.s32.totalorder %s57, %s71
    %p73 = scmp.eq.s32.totalorder %s26, 0
    %p74 = por %p72, %p73
    %s76 = sadd.s32 %s75, 1
    %p79 = scmp.eq.s32.totalorder %s20, 1
    %p80 = scmp.ne.s32.totalorder %s75, %s77
    %p81 = scmp.eq.s32.totalorder %s20, 0
    %p82 = por %p80, %p81
    %p83 = scmp.ne.s32.totalorder %s75, %s77
    %p84 = scmp.eq.s32.totalorder %s25, 1
    %p85 = por %p83, %p84
    %p86 = scmp.ne.s32.totalorder %s77, %s78
    %p87 = scmp.eq.s32.totalorder %s25, 0
    %p88 = por %p86, %p87
    %p89 = scmp.ne.s32.totalorder %s77, %s78
    %p90 = scmp.eq.s32.totalorder %s26, 1
    %p91 = por %p89, %p90
    %p93 = scmp.ne.s32.totalorder %s78, %s92
    %p94 = scmp.eq.s32.totalorder %s26, 0
    %p95 = por %p93, %p94
    %s97 = sadd.s32 %s96, 1
    %p100 = scmp.eq.s32.totalorder %s20, 1
    %p101 = scmp.ne.s32.totalorder %s96, %s98
    %p102 = scmp.eq.s32.totalorder %s20, 0
    %p103 = por %p101, %p102
    %p104 = scmp.ne.s32.totalorder %s96, %s98
    %p105 = scmp.eq.s32.totalorder %s25, 1
    %p106 = por %p104, %p105
    %p107 = scmp.ne.s32.totalorder %s98, %s99
    %p108 = scmp.eq.s32.totalorder %s25, 0
    %p109 = por %p107, %p108
    %p110 = scmp.ne.s32.totalorder %s98, %s99
    %p111 = scmp.eq.s32.totalorder %s26, 1
    %p112 = por %p110, %p111
    %p114 = scmp.ne.s32.totalorder %s99, %s113
    %p115 = scmp.eq.s32.totalorder %s26, 0
    %p116 = por %p114, %p115
    %s118 = sadd.s32 %s117, 1
    %p121 = scmp.eq.s32.totalorder %s20, 1
    %p122 = scmp.ne.s32.totalorder %s117, %s119
    %p123 = scmp.eq.s32.totalorder %s20, 0
    %p124 = por %p122, %p123
    %p125 = scmp.ne.s32.totalorder %s117, %s119
    %p126 = scmp.eq.s32.totalorder %s25, 1
    %p127 = por %p125, %p126
    %p128 = scmp.ne.s32.totalorder %s119, %s120
    %p129 = scmp.eq.s32.totalorder %s25, 0
    %p130 = por %p128, %p129
    %p131 = scmp.ne.s32.totalorder %s119, %s120
    %p132 = scmp.eq.s32.totalorder %s26, 1
    %p133 = por %p131, %p132
    %p135 = scmp.ne.s32.totalorder %s120, %s134
    %p136 = scmp.eq.s32.totalorder %s26, 0
    %p137 = por %p135, %p136
    %s139 = sadd.s32 %s138, 1
    %p142 = scmp.eq.s32.totalorder %s20, 1
    %p143 = scmp.ne.s32.totalorder %s138, %s140
    %p144 = scmp.eq.s32.totalorder %s20, 0
    %p145 = por %p143, %p144
    %p146 = scmp.ne.s32.totalorder %s138, %s140
    %p147 = scmp.eq.s32.totalorder %s25, 1
    %p148 = por %p146, %p147
    %p149 = scmp.ne.s32.totalorder %s140, %s141
    %p150 = scmp.eq.s32.totalorder %s25, 0
    %p151 = por %p149, %p150
    %p152 = scmp.ne.s32.totalorder %s140, %s141
    %p153 = scmp.eq.s32.totalorder %s26, 1
    %p154 = por %p152, %p153
    %p156 = scmp.ne.s32.totalorder %s141, %s155
    %p157 = scmp.eq.s32.totalorder %s26, 0
    %p158 = por %p156, %p157
    %s160 = sadd.s32 %s159, 1
    %p163 = scmp.eq.s32.totalorder %s20, 1
    %p164 = scmp.ne.s32.totalorder %s159, %s161
    %p165 = scmp.eq.s32.totalorder %s20, 0
    %p166 = por %p164, %p165
    %p167 = scmp.ne.s32.totalorder %s159, %s161
    %p168 = scmp.eq.s32.totalorder %s25, 1
    %p169 = por %p167, %p168
    %p170 = scmp.ne.s32.totalorder %s161, %s162
    %p171 = scmp.eq.s32.totalorder %s25, 0
    %p172 = por %p170, %p171
    %p173 = scmp.ne.s32.totalorder %s161, %s162
    %p174 = scmp.eq.s32.totalorder %s26, 1
    %p175 = por %p173, %p174
    %p177 = scmp.ne.s32.totalorder %s162, %s176
    %p178 = scmp.eq.s32.totalorder %s26, 0
    %p179 = por %p177, %p178
    %s181 = sadd.s32 %s180, 1
    %p184 = scmp.eq.s32.totalorder %s20, 1
    %p185 = scmp.ne.s32.totalorder %s180, %s182
    %p186 = scmp.eq.s32.totalorder %s20, 0
    %p187 = por %p185, %p186
    %p188 = scmp.ne.s32.totalorder %s180, %s182
    %p189 = scmp.eq.s32.totalorder %s25, 1
    %p190 = por %p188, %p189
    %p191 = scmp.ne.s32.totalorder %s182, %s183
    %p192 = scmp.eq.s32.totalorder %s25, 0
    %p193 = por %p191, %p192
    %p194 = scmp.ne.s32.totalorder %s182, %s183
    %p195 = scmp.eq.s32.totalorder %s26, 1
    %p196 = por %p194, %p195
    %p198 = scmp.ne.s32.totalorder %s183, %s197
    %p199 = scmp.eq.s32.totalorder %s26, 0
    %p200 = por %p198, %p199
    %s202 = sadd.s32 %s201, 1
    %p205 = scmp.eq.s32.totalorder %s20, 1
    %p206 = scmp.ne.s32.totalorder %s201, %s203
    %p207 = scmp.eq.s32.totalorder %s20, 0
    %p208 = por %p206, %p207
    %p209 = scmp.ne.s32.totalorder %s201, %s203
    %p210 = scmp.eq.s32.totalorder %s25, 1
    %p211 = por %p209, %p210
    %p212 = scmp.ne.s32.totalorder %s203, %s204
    %p213 = scmp.eq.s32.totalorder %s25, 0
    %p214 = por %p212, %p213
    %p215 = scmp.ne.s32.totalorder %s203, %s204
    %p216 = scmp.eq.s32.totalorder %s26, 1
    %p217 = por %p215, %p216
    %p219 = scmp.ne.s32.totalorder %s204, %s218
    %p220 = scmp.eq.s32.totalorder %s26, 0
    %p221 = por %p219, %p220
    %s223 = sadd.s32 %s222, 1
    %p226 = scmp.eq.s32.totalorder %s20, 1
    %p227 = scmp.ne.s32.totalorder %s222, %s224
    %p228 = scmp.eq.s32.totalorder %s20, 0
    %p229 = por %p227, %p228
    %p230 = scmp.ne.s32.totalorder %s222, %s224
    %p231 = scmp.eq.s32.totalorder %s25, 1
    %p232 = por %p230, %p231
    %p233 = scmp.ne.s32.totalorder %s224, %s225
    %p234 = scmp.eq.s32.totalorder %s25, 0
    %p235 = por %p233, %p234
    %p236 = scmp.ne.s32.totalorder %s224, %s225
    %p237 = scmp.eq.s32.totalorder %s26, 1
    %p238 = por %p236, %p237
    %p240 = scmp.ne.s32.totalorder %s225, %s239
    %p241 = scmp.eq.s32.totalorder %s26, 0
    %p242 = por %p240, %p241
    %s244 = sadd.s32 %s243, 1
    %p247 = scmp.eq.s32.totalorder %s20, 1
    %p248 = scmp.ne.s32.totalorder %s243, %s245
    %p249 = scmp.eq.s32.totalorder %s20, 0
    %p250 = por %p248, %p249
    %p251 = scmp.ne.s32.totalorder %s243, %s245
    %p252 = scmp.eq.s32.totalorder %s25, 1
    %p253 = por %p251, %p252
    %p254 = scmp.ne.s32.totalorder %s245, %s246
    %p255 = scmp.eq.s32.totalorder %s25, 0
    %p256 = por %p254, %p255
    %p257 = scmp.ne.s32.totalorder %s245, %s246
    %p258 = scmp.eq.s32.totalorder %s26, 1
    %p259 = por %p257, %p258
    %p261 = scmp.ne.s32.totalorder %s246, %s260
    %p262 = scmp.eq.s32.totalorder %s26, 0
    %p263 = por %p261, %p262
    %s265 = sadd.s32 %s264, 1
    %p268 = scmp.eq.s32.totalorder %s20, 1
    %p269 = scmp.ne.s32.totalorder %s264, %s266
    %p270 = scmp.eq.s32.totalorder %s20, 0
    %p271 = por %p269, %p270
    %p272 = scmp.ne.s32.totalorder %s264, %s266
    %p273 = scmp.eq.s32.totalorder %s25, 1
    %p274 = por %p272, %p273
    %p275 = scmp.ne.s32.totalorder %s266, %s267
    %p276 = scmp.eq.s32.totalorder %s25, 0
    %p277 = por %p275, %p276
    %p278 = scmp.ne.s32.totalorder %s266, %s267
    %p279 = scmp.eq.s32.totalorder %s26, 1
    %p280 = por %p278, %p279
    %p282 = scmp.ne.s32.totalorder %s267, %s281
    %p283 = scmp.eq.s32.totalorder %s26, 0
    %p284 = por %p282, %p283
    %s286 = sadd.s32 %s285, 1
    %p289 = scmp.eq.s32.totalorder %s20, 1
    %p290 = scmp.ne.s32.totalorder %s285, %s287
    %p291 = scmp.eq.s32.totalorder %s20, 0
    %p292 = por %p290, %p291
    %p293 = scmp.ne.s32.totalorder %s285, %s287
    %p294 = scmp.eq.s32.totalorder %s25, 1
    %p295 = por %p293, %p294
    %p296 = scmp.ne.s32.totalorder %s287, %s288
    %p297 = scmp.eq.s32.totalorder %s25, 0
    %p298 = por %p296, %p297
    %p299 = scmp.ne.s32.totalorder %s287, %s288
    %p300 = scmp.eq.s32.totalorder %s26, 1
    %p301 = por %p299, %p300
    %p303 = scmp.ne.s32.totalorder %s288, %s302
    %p304 = scmp.eq.s32.totalorder %s26, 0
    %p305 = por %p303, %p304
    %s307 = sadd.s32 %s306, 1
    %p310 = scmp.eq.s32.totalorder %s20, 1
    %p311 = scmp.ne.s32.totalorder %s306, %s308
    %p312 = scmp.eq.s32.totalorder %s20, 0
    %p313 = por %p311, %p312
    %p314 = scmp.ne.s32.totalorder %s306, %s308
    %p315 = scmp.eq.s32.totalorder %s25, 1
    %p316 = por %p314, %p315
    %p317 = scmp.ne.s32.totalorder %s308, %s309
    %p318 = scmp.eq.s32.totalorder %s25, 0
    %p319 = por %p317, %p318
    %p320 = scmp.ne.s32.totalorder %s308, %s309
    %p321 = scmp.eq.s32.totalorder %s26, 1
    %p322 = por %p320, %p321
    %p324 = scmp.ne.s32.totalorder %s309, %s323
    %p325 = scmp.eq.s32.totalorder %s26, 0
    %p326 = por %p324, %p325
    %s327 = ssub.s32 %s20, %s27
    %p328 = scmp.eq.s32.totalorder %s327, 0
    %s330 = sadd.s32 %s329, 1
    %s331 = scalar_select %p328, %s329, %s330
    %p334 = pneg %p328
    %p335 = scmp.eq.s32.totalorder %s20, 1
    %p336 = por %p334, %p335
    %p337 = scmp.ne.s32.totalorder %s329, %s332
    %p338 = scmp.eq.s32.totalorder %s20, 0
    %p339 = por %p337, %p338
    %p340 = scmp.ne.s32.totalorder %s329, %s332
    %p341 = scmp.eq.s32.totalorder %s25, 1
    %p342 = por %p340, %p341
    %p343 = scmp.ne.s32.totalorder %s332, %s333
    %p344 = scmp.eq.s32.totalorder %s25, 0
    %p345 = por %p343, %p344
    %p346 = scmp.ne.s32.totalorder %s332, %s333
    %p347 = scmp.eq.s32.totalorder %s26, 1
    %p348 = por %p346, %p347
    %p350 = scmp.ne.s32.totalorder %s333, %s349
    %p351 = scmp.eq.s32.totalorder %s26, 0
    %p352 = por %p350, %p351
    %p353 = scmp.le.s32.totalorder 1, %s20
    %p354 = scmp.lt.s32.totalorder %s20, 3
    %p355 = pnand %p353, %p354
    %p356 = pneg %p355
    // Predicated region
    $region9: #{transformer_encoder_forward.1} parent=5 // pred_check
      _
    $region10: #{transformer_encoder_forward.1} parent=5 // pred_check_branch
      %358 = sbr.rel (%p355) target = $region12
    $region11: #{transformer_encoder_forward.1} parent=5 // pred_region
      %s359 = ssub.s32 %s20, 1
      // Predicated region
      $region13: #{transformer_encoder_forward.1} parent=11 // pred_check
        %p360 = pneg %p67
      $region14: #{transformer_encoder_forward.1} parent=11 // pred_check_branch
        %362 = sbr.rel (%p360) target = $region16
      $region15: #{transformer_encoder_forward.1} parent=11 // pred_region
        _
      $region16: #{transformer_encoder_forward.1} parent=11 // pred_fallthru
        _
      // Predicated region
      $region17: #{transformer_encoder_forward.1} parent=11 // pred_check
        %p363 = pneg %p88
      $region18: #{transformer_encoder_forward.1} parent=11 // pred_check_branch
        %365 = sbr.rel (%p363) target = $region20
      $region19: #{transformer_encoder_forward.1} parent=11 // pred_region
        _
      $region20: #{transformer_encoder_forward.1} parent=11 // pred_fallthru
        _
      // Predicated region
      $region21: #{transformer_encoder_forward.1} parent=11 // pred_check
        %p366 = pneg %p109
      $region22: #{transformer_encoder_forward.1} parent=11 // pred_check_branch
        %368 = sbr.rel (%p366) target = $region24
      $region23: #{transformer_encoder_forward.1} parent=11 // pred_region
        _
      $region24: #{transformer_encoder_forward.1} parent=11 // pred_fallthru
        _
      // Predicated region
      $region25: #{transformer_encoder_forward.1} parent=11 // pred_check
        %p369 = pneg %p130
      $region26: #{transformer_encoder_forward.1} parent=11 // pred_check_branch
        %371 = sbr.rel (%p369) target = $region28
      $region27: #{transformer_encoder_forward.1} parent=11 // pred_region
        _
      $region28: #{transformer_encoder_forward.1} parent=11 // pred_fallthru
        _
      // Predicated region
      $region29: #{transformer_encoder_forward.1} parent=11 // pred_check
        %p372 = pneg %p151
      $region30: #{transformer_encoder_forward.1} parent=11 // pred_check_branch
        %374 = sbr.rel (%p372) target = $region32
      $region31: #{transformer_encoder_forward.1} parent=11 // pred_region
        _
      $region32: #{transformer_encoder_forward.1} parent=11 // pred_fallthru
        _
      // Predicated region
      $region33: #{transformer_encoder_forward.1} parent=11 // pred_check
        %p375 = pneg %p172
      $region34: #{transformer_encoder_forward.1} parent=11 // pred_check_branch
        %377 = sbr.rel (%p375) target = $region36
      $region35: #{transformer_encoder_forward.1} parent=11 // pred_region
        _
      $region36: #{transformer_encoder_forward.1} parent=11 // pred_fallthru
        _
      // Predicated region
      $region37: #{transformer_encoder_forward.1} parent=11 // pred_check
        %p378 = pneg %p193
      $region38: #{transformer_encoder_forward.1} parent=11 // pred_check_branch
        %380 = sbr.rel (%p378) target = $region40
      $region39: #{transformer_encoder_forward.1} parent=11 // pred_region
        _
      $region40: #{transformer_encoder_forward.1} parent=11 // pred_fallthru
        _
      // Predicated region
      $region41: #{transformer_encoder_forward.1} parent=11 // pred_check
        %p381 = pneg %p214
      $region42: #{transformer_encoder_forward.1} parent=11 // pred_check_branch
        %383 = sbr.rel (%p381) target = $region44
      $region43: #{transformer_encoder_forward.1} parent=11 // pred_region
        _
      $region44: #{transformer_encoder_forward.1} parent=11 // pred_fallthru
        _
      // Predicated region
      $region45: #{transformer_encoder_forward.1} parent=11 // pred_check
        %p384 = pneg %p235
      $region46: #{transformer_encoder_forward.1} parent=11 // pred_check_branch
        %386 = sbr.rel (%p384) target = $region48
      $region47: #{transformer_encoder_forward.1} parent=11 // pred_region
        _
      $region48: #{transformer_encoder_forward.1} parent=11 // pred_fallthru
        _
      // Predicated region
      $region49: #{transformer_encoder_forward.1} parent=11 // pred_check
        %p387 = pneg %p256
      $region50: #{transformer_encoder_forward.1} parent=11 // pred_check_branch
        %389 = sbr.rel (%p387) target = $region52
      $region51: #{transformer_encoder_forward.1} parent=11 // pred_region
        _
      $region52: #{transformer_encoder_forward.1} parent=11 // pred_fallthru
        _
      // Predicated region
      $region53: #{transformer_encoder_forward.1} parent=11 // pred_check
        %p390 = pneg %p277
      $region54: #{transformer_encoder_forward.1} parent=11 // pred_check_branch
        %392 = sbr.rel (%p390) target = $region56
      $region55: #{transformer_encoder_forward.1} parent=11 // pred_region
        _
      $region56: #{transformer_encoder_forward.1} parent=11 // pred_fallthru
        _
      // Predicated region
      $region57: #{transformer_encoder_forward.1} parent=11 // pred_check
        %p393 = pneg %p298
      $region58: #{transformer_encoder_forward.1} parent=11 // pred_check_branch
        %395 = sbr.rel (%p393) target = $region60
      $region59: #{transformer_encoder_forward.1} parent=11 // pred_region
        _
      $region60: #{transformer_encoder_forward.1} parent=11 // pred_fallthru
        _
      // Predicated region
      $region61: #{transformer_encoder_forward.1} parent=11 // pred_check
        %p396 = pneg %p319
      $region62: #{transformer_encoder_forward.1} parent=11 // pred_check_branch
        %398 = sbr.rel (%p396) target = $region64
      $region63: #{transformer_encoder_forward.1} parent=11 // pred_region
        _
      $region64: #{transformer_encoder_forward.1} parent=11 // pred_fallthru
        _
    $region12: #{transformer_encoder_forward.1} parent=5 // pred_fallthru
      _
    %p399 = scmp.lt.s32.totalorder %s20, 2
    // Predicated region
    $region65: #{transformer_encoder_forward.1} parent=5 // pred_check
      %p400 = pneg %p399
    $region66: #{transformer_encoder_forward.1} parent=5 // pred_check_branch
      %402 = sbr.rel (%p400) target = $region68
    $region67: #{transformer_encoder_forward.1} parent=5 // pred_region
      // Predicated region
      $region69: #{transformer_encoder_forward.1} parent=67 // pred_check
        %p403 = pneg %p40
      $region70: #{transformer_encoder_forward.1} parent=67 // pred_check_branch
        %405 = sbr.rel (%p403) target = $region72
      $region71: #{transformer_encoder_forward.1} parent=67 // pred_region
        %s406 = smul.u32 2, %s20
        %p407 = scmp.lt.s32.totalorder %s406, 3
        %s408 = scalar_select %p407, %s406, 3
        %s409 = smul.addr %s408, 4
        %s410 = scalar_lea.vmem %s0, %s409
        %s411 = smul.u32 2, %s20
      $region72: #{transformer_encoder_forward.1} parent=67 // pred_fallthru
        _
    $region68: #{transformer_encoder_forward.1} parent=5 // pred_fallthru
      _
    %p412 = scmp.le.s32.totalorder 1, %s20
    %p413 = scmp.lt.s32.totalorder %s20, 3
    %p414 = pnand %p412, %p413
    %p415 = pneg %p414
    // Predicated region
    $region73: #{transformer_encoder_forward.1} parent=5 // pred_check
      _
    $region74: #{transformer_encoder_forward.1} parent=5 // pred_check_branch
      %417 = sbr.rel (%p414) target = $region76
    $region75: #{transformer_encoder_forward.1} parent=5 // pred_region
      %s418 = ssub.s32 %s20, 1
      %s419 = smul.u32 2, %s25
      %p420 = scmp.lt.s32.totalorder %s419, 3
      %s421 = scalar_select %p420, %s419, 3
      %s422 = smul.addr %s421, 4
      %s423 = scalar_lea.vmem %s0, %s422
      %p424 = pneg %p46
      %p425 = pneg %p43
      %p426 = pneg %p67
      %p427 = pneg %p64
      %p428 = pneg %p88
      %p429 = pneg %p85
      %p430 = pneg %p109
      %p431 = pneg %p106
      %p432 = pneg %p130
      %p433 = pneg %p127
      %p434 = pneg %p151
      %p435 = pneg %p148
      %p436 = pneg %p172
      %p437 = pneg %p169
      %p438 = pneg %p193
      %p439 = pneg %p190
      %p440 = pneg %p214
      %p441 = pneg %p211
      %p442 = pneg %p235
      %p443 = pneg %p232
      %p444 = pneg %p256
      %p445 = pneg %p253
      %p446 = pneg %p277
      %p447 = pneg %p274
      %p448 = pneg %p298
      %p449 = pneg %p295
      %p450 = pneg %p319
      %p451 = pneg %p316
      %p452 = pneg %p345
      %p453 = pneg %p342
      %s454 = smul.u32 2, %s25
      %p455 = scmp.lt.s32.totalorder %s454, 3
      %s456 = scalar_select %p455, %s454, 3
      %s457 = smul.addr %s456, 8
      %s458 = scalar_lea.vmem %s14, %s457
      %s459 = smul.u32 2, %s25
      %p460 = scmp.lt.s32.totalorder %s459, 3
      %s461 = scalar_select %p460, %s459, 3
      %s462 = smul.addr %s461, 4
      %s463 = scalar_lea.vmem %s0, %s462
      %s464 = smul.u32 2, %s25
      %s465 = smul.u32 2, %s25
      %p466 = scmp.lt.s32.totalorder %s465, 3
      %s467 = scalar_select %p466, %s465, 3
      %s468 = smul.addr %s467, 8
      %s469 = scalar_lea.vmem %s14, %s468
      %s470 = smul.u32 2, %s25
      %v472 = vld [vmem:[%s463] sm:$0xf]
      %v473 = vld [vmem:[%s463 + $0x4] sm:$0xf]
      %v474 = vld [vmem:[%s2] sm:$0xf]
      %v475 = vld [vmem:[%s2 + $0x4] sm:$0xf]
      %v476 = vld [vmem:[%s2 + $0x8] sm:$0xf]
      %v477 = vld [vmem:[%s2 + $0xc] sm:$0xf]
      %v478 = vld [vmem:[%s2 + $0x10] sm:$0xf]
      %v479 = vld [vmem:[%s2 + $0x14] sm:$0xf]
      %v480 = vld [vmem:[%s2 + $0x18] sm:$0xf]
      %v481 = vld [vmem:[%s2 + $0x1c] sm:$0xf]
      %v482 = vld [vmem:[%s2 + $0x20] sm:$0xf]
      %v483 = vld [vmem:[%s2 + $0x24] sm:$0xf]
      %v484 = vld [vmem:[%s2 + $0x28] sm:$0xf]
      %v485 = vld [vmem:[%s2 + $0x2c] sm:$0xf]
      %v486 = vld [vmem:[%s2 + $0x30] sm:$0xf]
      %v487 = vld [vmem:[%s2 + $0x34] sm:$0xf]
      %v488 = vld [vmem:[%s2 + $0x38] sm:$0xf]
      %v489 = vld [vmem:[%s2 + $0x3c] sm:$0xf]
      %v490 = vld [vmem:[%s7] sm:$0x1]
      %v491 = vlaneseq
      %v492 = vshrl.u32 %v491, 7
      %v493 = vsub.s32 0, %v492
      %v494 = vrot.slane %v490, %v493
      %v497 = vunpack.c.l.b16 %v472
      %v498 = vunpack.c.l.b16 %v473
      %v499 = vpack.c.b16 %v498, %v497
      %v517 = vunpack.c.l.b16 %v474
      %v518 = vunpack.c.l.b16 %v475
      %v519 = vunpack.c.l.b16 %v476
      %v520 = vunpack.c.l.b16 %v477
      %v521 = vunpack.c.l.b16 %v478
      %v522 = vunpack.c.l.b16 %v479
      %v523 = vunpack.c.l.b16 %v480
      %v524 = vunpack.c.l.b16 %v481
      %v525 = vunpack.c.l.b16 %v482
      %v526 = vunpack.c.l.b16 %v483
      %v527 = vunpack.c.l.b16 %v484
      %v528 = vunpack.c.l.b16 %v485
      %v529 = vunpack.c.l.b16 %v486
      %v530 = vunpack.c.l.b16 %v487
      %v531 = vunpack.c.l.b16 %v488
      %v532 = vunpack.c.l.b16 %v489
      %v533 = vpack.c.b16 %v518, %v517
      %v534 = vpack.c.b16 %v520, %v519
      %v535 = vpack.c.b16 %v522, %v521
      %v536 = vpack.c.b16 %v524, %v523
      %v537 = vpack.c.b16 %v526, %v525
      %v538 = vpack.c.b16 %v528, %v527
      %v539 = vpack.c.b16 %v530, %v529
      %v540 = vpack.c.b16 %v532, %v531
      %549 = vmatprep.subr.bf16.mxu0 0
      %550 = vmatpush1.bf16.msra.mxu0 %v540
      %551 = vmatprep.subr.bf16.mxu0 0
      %552 = vmatpush1.bf16.msra.mxu0 %v539
      %553 = vmatprep.subr.bf16.mxu0 0
      %554 = vmatpush1.bf16.msra.mxu0 %v538
      %555 = vmatprep.subr.bf16.mxu0 0
      %556 = vmatpush1.bf16.msra.mxu0 %v537
      %557 = vmatprep.subr.bf16.mxu0 0
      %558 = vmatpush1.bf16.msra.mxu0 %v536
      %559 = vmatprep.subr.bf16.mxu0 0
      %560 = vmatpush1.bf16.msra.mxu0 %v535
      %561 = vmatprep.subr.bf16.mxu0 0
      %562 = vmatpush1.bf16.msra.mxu0 %v534
      %563 = vmatprep.subr.bf16.mxu0 0
      %564 = vmatpush1.bf16.msra.mxu0 %v533
      %565 = vmatprep.subr.bf16.mxu0 0
      %566 = vmatpush2.bf16.msra.mxu0 0
      %567 = vmatprep.subr.bf16.mxu0 0
      %568 = vmatpush2.bf16.msra.mxu0 0
      %569 = vmatprep.subr.bf16.mxu0 0
      %570 = vmatpush2.bf16.msra.mxu0 0
      %571 = vmatprep.subr.bf16.mxu0 0
      %572 = vmatpush2.bf16.msra.mxu0 0
      %573 = vmatprep.subr.bf16.mxu0 0
      %574 = vmatpush2.bf16.msra.mxu0 0
      %575 = vmatprep.subr.bf16.mxu0 0
      %576 = vmatpush2.bf16.msra.mxu0 0
      %577 = vmatprep.subr.bf16.mxu0 0
      %578 = vmatpush2.bf16.msra.mxu0 0
      %579 = vmatprep.subr.bf16.mxu0 0
      %580 = vmatpush2.bf16.msra.mxu0 0
      %581 = vmatprep.mubr.bf16.mxu0 0
      %582 = vmatmul.mubr.bf16.gmra.mxu0 %v499
      %v583 = vpop.f32.mrf.mxu0
      %v584 = vadd.f32 %v494, %v583
      %v585 = vpop.f32.mrf.mxu0
      %v586 = vpop.f32.mrf.mxu0
      %v587 = vadd.f32 %v494, %v586
      %v588 = vpop.f32.mrf.mxu0
      %589 = vdwg.mxu0
      %v590 = vld [vmem:[%s1] sm:$0xff]
      %v591 = vld [vmem:[%s1 + $0x8] sm:$0xff]
      %v592 = vadd.f32 %v584, %v590
      %v593 = vadd.f32 %v587, %v591
      %v594 = vld [vmem:[%s7 + $0x1] sm:$0x1]
      %v595 = vld [vmem:[%s7 + $0x2] sm:$0x1]
      %vm596 = vcmask 523264
      %v597 = vsel %vm596, %v592, 0.0
      %598 = vadd.xlane.f32.xlu0 %v597
      %v599 = vpop.xlane.xlu0 %598
      %v600 = vsel %vm596, %v593, 0.0
      %601 = vadd.xlane.f32.xlu0 %v600
      %v602 = vpop.xlane.xlu0 %601
      %v603 = vrcp.pop 64.0
      %v604 = vmul.f32 %v599, %v603
      %v605 = vmul.f32 %v602, %v603
      %v606 = vsub.f32 %v592, %v604
      %v607 = vsub.f32 %v593, %v605
      %v608 = vmul.f32 %v606, %v606
      %v609 = vmul.f32 %v607, %v607
      %v610 = vsel %vm596, %v608, 0.0
      %611 = vadd.xlane.f32.xlu0 %v610
      %v612 = vpop.xlane.xlu0 %611
      %v613 = vsel %vm596, %v609, 0.0
      %614 = vadd.xlane.f32.xlu0 %v613
      %v615 = vpop.xlane.xlu0 %614
      %v616 = vmul.f32 %v612, %v603
      %v617 = vmul.f32 %v615, %v603
      %v618 = vadd.f32 %v616, 1e-06
      %v619 = vadd.f32 %v617, 1e-06
      %v620 = vrsqrt.pop %v618
      %v621 = vrsqrt.pop %v619
      %v622 = vmul.f32 %v606, %v620
      %v623 = vmul.f32 %v607, %v621
      %v624 = vlaneseq
      %v625 = vshrl.u32 %v624, 7
      %v626 = vsub.s32 0, %v625
      %v627 = vrot.slane %v594, %v626
      %v628 = vmul.f32 %v622, %v627
      %v629 = vmul.f32 %v623, %v627
      %v630 = vlaneseq
      %v631 = vshrl.u32 %v630, 7
      %v632 = vsub.s32 0, %v631
      %v633 = vrot.slane %v595, %v632
      %v634 = vadd.f32 %v628, %v633
      %v635 = vadd.f32 %v629, %v633
      %v636 = vpack.c.bf16 %v635, %v634
      %v637 = vld [vmem:[%s3] sm:$0xf]
      %v638 = vld [vmem:[%s3 + $0x4] sm:$0xf]
      %v639 = vld [vmem:[%s3 + $0x8] sm:$0xf]
      %v640 = vld [vmem:[%s3 + $0xc] sm:$0xf]
      %v641 = vld [vmem:[%s3 + $0x10] sm:$0xf]
      %v642 = vld [vmem:[%s3 + $0x14] sm:$0xf]
      %v643 = vld [vmem:[%s3 + $0x18] sm:$0xf]
      %v644 = vld [vmem:[%s3 + $0x1c] sm:$0xf]
      %v653 = vunpack.c.l.b16 %v637
      %v654 = vunpack.c.l.b16 %v638
      %v655 = vunpack.c.l.b16 %v639
      %v656 = vunpack.c.l.b16 %v640
      %v657 = vunpack.c.l.b16 %v641
      %v658 = vunpack.c.l.b16 %v642
      %v659 = vunpack.c.l.b16 %v643
      %v660 = vunpack.c.l.b16 %v644
      %v661 = vpack.c.b16 %v654, %v653
      %v662 = vpack.c.b16 %v656, %v655
      %v663 = vpack.c.b16 %v658, %v657
      %v664 = vpack.c.b16 %v660, %v659
      %v670 = vsel %vm596, %v636, 0
      %672 = vmatprep.subr.bf16.mxu0 0
      %673 = vmatpush1.bf16.msra.mxu0 0
      %674 = vmatprep.subr.bf16.mxu0 0
      %675 = vmatpush1.bf16.msra.mxu0 0
      %676 = vmatprep.subr.bf16.mxu0 0
      %677 = vmatpush1.bf16.msra.mxu0 0
      %678 = vmatprep.subr.bf16.mxu0 0
      %679 = vmatpush1.bf16.msra.mxu0 0
      %680 = vmatprep.subr.bf16.mxu0 0
      %681 = vmatpush1.bf16.msra.mxu0 %v664
      %682 = vmatprep.subr.bf16.mxu0 0
      %683 = vmatpush1.bf16.msra.mxu0 %v663
      %684 = vmatprep.subr.bf16.mxu0 0
      %685 = vmatpush1.bf16.msra.mxu0 %v662
      %686 = vmatprep.subr.bf16.mxu0 0
      %687 = vmatpush1.bf16.msra.mxu0 %v661
      %688 = vmatprep.subr.bf16.mxu0 0
      %689 = vmatpush2.bf16.msra.mxu0 0
      %690 = vmatprep.subr.bf16.mxu0 0
      %691 = vmatpush2.bf16.msra.mxu0 0
      %692 = vmatprep.subr.bf16.mxu0 0
      %693 = vmatpush2.bf16.msra.mxu0 0
      %694 = vmatprep.subr.bf16.mxu0 0
      %695 = vmatpush2.bf16.msra.mxu0 0
      %696 = vmatprep.subr.bf16.mxu0 0
      %697 = vmatpush2.bf16.msra.mxu0 0
      %698 = vmatprep.subr.bf16.mxu0 0
      %699 = vmatpush2.bf16.msra.mxu0 0
      %700 = vmatprep.subr.bf16.mxu0 0
      %701 = vmatpush2.bf16.msra.mxu0 0
      %702 = vmatprep.subr.bf16.mxu0 0
      %703 = vmatpush2.bf16.msra.mxu0 0
      %704 = vmatprep.mubr.bf16.mxu0 0
      %705 = vmatmul.mubr.bf16.gmra.mxu0 %v670
      %v706 = vpop.f32.mrf.mxu0
      %v707 = vadd.f32 0.0, %v706
      %v708 = vpop.f32.mrf.mxu0
      %v709 = vpop.f32.mrf.mxu0
      %v710 = vadd.f32 0.0, %v709
      %v711 = vpop.f32.mrf.mxu0
      %712 = vdwg.mxu0
      %v713 = vpack.c.bf16 %v710, %v707
      %s714 = scalar_lea.vmem %s3, 32
      %v715 = vld [vmem:[%s714] sm:$0xf]
      %v716 = vld [vmem:[%s714 + $0x4] sm:$0xf]
      %v717 = vld [vmem:[%s714 + $0x8] sm:$0xf]
      %v718 = vld [vmem:[%s714 + $0xc] sm:$0xf]
      %v719 = vld [vmem:[%s714 + $0x10] sm:$0xf]
      %v720 = vld [vmem:[%s714 + $0x14] sm:$0xf]
      %v721 = vld [vmem:[%s714 + $0x18] sm:$0xf]
      %v722 = vld [vmem:[%s714 + $0x1c] sm:$0xf]
      %v731 = vunpack.c.l.b16 %v715
      %v732 = vunpack.c.l.b16 %v716
      %v733 = vunpack.c.l.b16 %v717
      %v734 = vunpack.c.l.b16 %v718
      %v735 = vunpack.c.l.b16 %v719
      %v736 = vunpack.c.l.b16 %v720
      %v737 = vunpack.c.l.b16 %v721
      %v738 = vunpack.c.l.b16 %v722
      %v739 = vpack.c.b16 %v732, %v731
      %v740 = vpack.c.b16 %v734, %v733
      %v741 = vpack.c.b16 %v736, %v735
      %v742 = vpack.c.b16 %v738, %v737
      %747 = vmatprep.subr.bf16.mxu0 0
      %748 = vmatpush1.bf16.msra.mxu0 0
      %749 = vmatprep.subr.bf16.mxu0 0
      %750 = vmatpush1.bf16.msra.mxu0 0
      %751 = vmatprep.subr.bf16.mxu0 0
      %752 = vmatpush1.bf16.msra.mxu0 0
      %753 = vmatprep.subr.bf16.mxu0 0
      %754 = vmatpush1.bf16.msra.mxu0 0
      %755 = vmatprep.subr.bf16.mxu0 0
      %756 = vmatpush1.bf16.msra.mxu0 %v742
      %757 = vmatprep.subr.bf16.mxu0 0
      %758 = vmatpush1.bf16.msra.mxu0 %v741
      %759 = vmatprep.subr.bf16.mxu0 0
      %760 = vmatpush1.bf16.msra.mxu0 %v740
      %761 = vmatprep.subr.bf16.mxu0 0
      %762 = vmatpush1.bf16.msra.mxu0 %v739
      %763 = vmatprep.subr.bf16.mxu0 0
      %764 = vmatpush2.bf16.msra.mxu0 0
      %765 = vmatprep.subr.bf16.mxu0 0
      %766 = vmatpush2.bf16.msra.mxu0 0
      %767 = vmatprep.subr.bf16.mxu0 0
      %768 = vmatpush2.bf16.msra.mxu0 0
      %769 = vmatprep.subr.bf16.mxu0 0
      %770 = vmatpush2.bf16.msra.mxu0 0
      %771 = vmatprep.subr.bf16.mxu0 0
      %772 = vmatpush2.bf16.msra.mxu0 0
      %773 = vmatprep.subr.bf16.mxu0 0
      %774 = vmatpush2.bf16.msra.mxu0 0
      %775 = vmatprep.subr.bf16.mxu0 0
      %776 = vmatpush2.bf16.msra.mxu0 0
      %777 = vmatprep.subr.bf16.mxu0 0
      %778 = vmatpush2.bf16.msra.mxu0 0
      %779 = vmatprep.mubr.bf16.mxu0 0
      %780 = vmatmul.mubr.bf16.gmra.mxu0 %v670
      %v781 = vpop.f32.mrf.mxu0
      %v782 = vadd.f32 0.0, %v781
      %v783 = vpop.f32.mrf.mxu0
      %v784 = vpop.f32.mrf.mxu0
      %v785 = vadd.f32 0.0, %v784
      %v786 = vpop.f32.mrf.mxu0
      %787 = vdwg.mxu0
      %v788 = vpack.c.bf16 %v785, %v782
      %s789 = scalar_lea.vmem %s3, 64
      %v790 = vld [vmem:[%s789] sm:$0xf]
      %v791 = vld [vmem:[%s789 + $0x4] sm:$0xf]
      %v792 = vld [vmem:[%s789 + $0x8] sm:$0xf]
      %v793 = vld [vmem:[%s789 + $0xc] sm:$0xf]
      %v794 = vld [vmem:[%s789 + $0x10] sm:$0xf]
      %v795 = vld [vmem:[%s789 + $0x14] sm:$0xf]
      %v796 = vld [vmem:[%s789 + $0x18] sm:$0xf]
      %v797 = vld [vmem:[%s789 + $0x1c] sm:$0xf]
      %v806 = vunpack.c.l.b16 %v790
      %v807 = vunpack.c.l.b16 %v791
      %v808 = vunpack.c.l.b16 %v792
      %v809 = vunpack.c.l.b16 %v793
      %v810 = vunpack.c.l.b16 %v794
      %v811 = vunpack.c.l.b16 %v795
      %v812 = vunpack.c.l.b16 %v796
      %v813 = vunpack.c.l.b16 %v797
      %v814 = vpack.c.b16 %v807, %v806
      %v815 = vpack.c.b16 %v809, %v808
      %v816 = vpack.c.b16 %v811, %v810
      %v817 = vpack.c.b16 %v813, %v812
      %822 = vmatprep.subr.bf16.mxu0 0
      %823 = vmatpush1.bf16.msra.mxu0 0
      %824 = vmatprep.subr.bf16.mxu0 0
      %825 = vmatpush1.bf16.msra.mxu0 0
      %826 = vmatprep.subr.bf16.mxu0 0
      %827 = vmatpush1.bf16.msra.mxu0 0
      %828 = vmatprep.subr.bf16.mxu0 0
      %829 = vmatpush1.bf16.msra.mxu0 0
      %830 = vmatprep.subr.bf16.mxu0 0
      %831 = vmatpush1.bf16.msra.mxu0 %v817
      %832 = vmatprep.subr.bf16.mxu0 0
      %833 = vmatpush1.bf16.msra.mxu0 %v816
      %834 = vmatprep.subr.bf16.mxu0 0
      %835 = vmatpush1.bf16.msra.mxu0 %v815
      %836 = vmatprep.subr.bf16.mxu0 0
      %837 = vmatpush1.bf16.msra.mxu0 %v814
      %838 = vmatprep.subr.bf16.mxu0 0
      %839 = vmatpush2.bf16.msra.mxu0 0
      %840 = vmatprep.subr.bf16.mxu0 0
      %841 = vmatpush2.bf16.msra.mxu0 0
      %842 = vmatprep.subr.bf16.mxu0 0
      %843 = vmatpush2.bf16.msra.mxu0 0
      %844 = vmatprep.subr.bf16.mxu0 0
      %845 = vmatpush2.bf16.msra.mxu0 0
      %846 = vmatprep.subr.bf16.mxu0 0
      %847 = vmatpush2.bf16.msra.mxu0 0
      %848 = vmatprep.subr.bf16.mxu0 0
      %849 = vmatpush2.bf16.msra.mxu0 0
      %850 = vmatprep.subr.bf16.mxu0 0
      %851 = vmatpush2.bf16.msra.mxu0 0
      %852 = vmatprep.subr.bf16.mxu0 0
      %853 = vmatpush2.bf16.msra.mxu0 0
      %854 = vmatprep.mubr.bf16.mxu0 0
      %855 = vmatmul.mubr.bf16.gmra.mxu0 %v670
      %v856 = vpop.f32.mrf.mxu0
      %v857 = vadd.f32 0.0, %v856
      %v858 = vpop.f32.mrf.mxu0
      %v859 = vpop.f32.mrf.mxu0
      %v860 = vadd.f32 0.0, %v859
      %v861 = vpop.f32.mrf.mxu0
      %862 = vdwg.mxu0
      %v863 = vpack.c.bf16 %v860, %v857
      %s864 = scalar_lea.vmem %s3, 96
      %v865 = vld [vmem:[%s864] sm:$0xf]
      %v866 = vld [vmem:[%s864 + $0x4] sm:$0xf]
      %v867 = vld [vmem:[%s864 + $0x8] sm:$0xf]
      %v868 = vld [vmem:[%s864 + $0xc] sm:$0xf]
      %v869 = vld [vmem:[%s864 + $0x10] sm:$0xf]
      %v870 = vld [vmem:[%s864 + $0x14] sm:$0xf]
      %v871 = vld [vmem:[%s864 + $0x18] sm:$0xf]
      %v872 = vld [vmem:[%s864 + $0x1c] sm:$0xf]
      %v881 = vunpack.c.l.b16 %v865
      %v882 = vunpack.c.l.b16 %v866
      %v883 = vunpack.c.l.b16 %v867
      %v884 = vunpack.c.l.b16 %v868
      %v885 = vunpack.c.l.b16 %v869
      %v886 = vunpack.c.l.b16 %v870
      %v887 = vunpack.c.l.b16 %v871
      %v888 = vunpack.c.l.b16 %v872
      %v889 = vpack.c.b16 %v882, %v881
      %v890 = vpack.c.b16 %v884, %v883
      %v891 = vpack.c.b16 %v886, %v885
      %v892 = vpack.c.b16 %v888, %v887
      %897 = vmatprep.subr.bf16.mxu0 0
      %898 = vmatpush1.bf16.msra.mxu0 0
      %899 = vmatprep.subr.bf16.mxu0 0
      %900 = vmatpush1.bf16.msra.mxu0 0
      %901 = vmatprep.subr.bf16.mxu0 0
      %902 = vmatpush1.bf16.msra.mxu0 0
      %903 = vmatprep.subr.bf16.mxu0 0
      %904 = vmatpush1.bf16.msra.mxu0 0
      %905 = vmatprep.subr.bf16.mxu0 0
      %906 = vmatpush1.bf16.msra.mxu0 %v892
      %907 = vmatprep.subr.bf16.mxu0 0
      %908 = vmatpush1.bf16.msra.mxu0 %v891
      %909 = vmatprep.subr.bf16.mxu0 0
      %910 = vmatpush1.bf16.msra.mxu0 %v890
      %911 = vmatprep.subr.bf16.mxu0 0
      %912 = vmatpush1.bf16.msra.mxu0 %v889
      %913 = vmatprep.subr.bf16.mxu0 0
      %914 = vmatpush2.bf16.msra.mxu0 0
      %915 = vmatprep.subr.bf16.mxu0 0
      %916 = vmatpush2.bf16.msra.mxu0 0
      %917 = vmatprep.subr.bf16.mxu0 0
      %918 = vmatpush2.bf16.msra.mxu0 0
      %919 = vmatprep.subr.bf16.mxu0 0
      %920 = vmatpush2.bf16.msra.mxu0 0
      %921 = vmatprep.subr.bf16.mxu0 0
      %922 = vmatpush2.bf16.msra.mxu0 0
      %923 = vmatprep.subr.bf16.mxu0 0
      %924 = vmatpush2.bf16.msra.mxu0 0
      %925 = vmatprep.subr.bf16.mxu0 0
      %926 = vmatpush2.bf16.msra.mxu0 0
      %927 = vmatprep.subr.bf16.mxu0 0
      %928 = vmatpush2.bf16.msra.mxu0 0
      %929 = vmatprep.mubr.bf16.mxu0 0
      %930 = vmatmul.mubr.bf16.gmra.mxu0 %v670
      %v931 = vpop.f32.mrf.mxu0
      %v932 = vadd.f32 0.0, %v931
      %v933 = vpop.f32.mrf.mxu0
      %v934 = vpop.f32.mrf.mxu0
      %v935 = vadd.f32 0.0, %v934
      %v936 = vpop.f32.mrf.mxu0
      %937 = vdwg.mxu0
      %v938 = vpack.c.bf16 %v935, %v932
      %s939 = scalar_lea.vmem %s3, 128
      %v940 = vld [vmem:[%s939] sm:$0xf]
      %v941 = vld [vmem:[%s939 + $0x4] sm:$0xf]
      %v942 = vld [vmem:[%s939 + $0x8] sm:$0xf]
      %v943 = vld [vmem:[%s939 + $0xc] sm:$0xf]
      %v944 = vld [vmem:[%s939 + $0x10] sm:$0xf]
      %v945 = vld [vmem:[%s939 + $0x14] sm:$0xf]
      %v946 = vld [vmem:[%s939 + $0x18] sm:$0xf]
      %v947 = vld [vmem:[%s939 + $0x1c] sm:$0xf]
      %v956 = vunpack.c.l.b16 %v940
      %v957 = vunpack.c.l.b16 %v941
      %v958 = vunpack.c.l.b16 %v942
      %v959 = vunpack.c.l.b16 %v943
      %v960 = vunpack.c.l.b16 %v944
      %v961 = vunpack.c.l.b16 %v945
      %v962 = vunpack.c.l.b16 %v946
      %v963 = vunpack.c.l.b16 %v947
      %v964 = vpack.c.b16 %v957, %v956
      %v965 = vpack.c.b16 %v959, %v958
      %v966 = vpack.c.b16 %v961, %v960
      %v967 = vpack.c.b16 %v963, %v962
      %972 = vmatprep.subr.bf16.mxu0 0
      %973 = vmatpush1.bf16.msra.mxu0 0
      %974 = vmatprep.subr.bf16.mxu0 0
      %975 = vmatpush1.bf16.msra.mxu0 0
      %976 = vmatprep.subr.bf16.mxu0 0
      %977 = vmatpush1.bf16.msra.mxu0 0
      %978 = vmatprep.subr.bf16.mxu0 0
      %979 = vmatpush1.bf16.msra.mxu0 0
      %980 = vmatprep.subr.bf16.mxu0 0
      %981 = vmatpush1.bf16.msra.mxu0 %v967
      %982 = vmatprep.subr.bf16.mxu0 0
      %983 = vmatpush1.bf16.msra.mxu0 %v966
      %984 = vmatprep.subr.bf16.mxu0 0
      %985 = vmatpush1.bf16.msra.mxu0 %v965
      %986 = vmatprep.subr.bf16.mxu0 0
      %987 = vmatpush1.bf16.msra.mxu0 %v964
      %988 = vmatprep.subr.bf16.mxu0 0
      %989 = vmatpush2.bf16.msra.mxu0 0
      %990 = vmatprep.subr.bf16.mxu0 0
      %991 = vmatpush2.bf16.msra.mxu0 0
      %992 = vmatprep.subr.bf16.mxu0 0
      %993 = vmatpush2.bf16.msra.mxu0 0
      %994 = vmatprep.subr.bf16.mxu0 0
      %995 = vmatpush2.bf16.msra.mxu0 0
      %996 = vmatprep.subr.bf16.mxu0 0
      %997 = vmatpush2.bf16.msra.mxu0 0
      %998 = vmatprep.subr.bf16.mxu0 0
      %999 = vmatpush2.bf16.msra.mxu0 0
      %1000 = vmatprep.subr.bf16.mxu0 0
      %1001 = vmatpush2.bf16.msra.mxu0 0
      %1002 = vmatprep.subr.bf16.mxu0 0
      %1003 = vmatpush2.bf16.msra.mxu0 0
      %1004 = vmatprep.mubr.bf16.mxu0 0
      %1005 = vmatmul.mubr.bf16.gmra.mxu0 %v670
      %v1006 = vpop.f32.mrf.mxu0
      %v1007 = vadd.f32 0.0, %v1006
      %v1008 = vpop.f32.mrf.mxu0
      %v1009 = vpop.f32.mrf.mxu0
      %v1010 = vadd.f32 0.0, %v1009
      %v1011 = vpop.f32.mrf.mxu0
      %1012 = vdwg.mxu0
      %v1013 = vpack.c.bf16 %v1010, %v1007
      %s1014 = scalar_lea.vmem %s3, 160
      %v1015 = vld [vmem:[%s1014] sm:$0xf]
      %v1016 = vld [vmem:[%s1014 + $0x4] sm:$0xf]
      %v1017 = vld [vmem:[%s1014 + $0x8] sm:$0xf]
      %v1018 = vld [vmem:[%s1014 + $0xc] sm:$0xf]
      %v1019 = vld [vmem:[%s1014 + $0x10] sm:$0xf]
      %v1020 = vld [vmem:[%s1014 + $0x14] sm:$0xf]
      %v1021 = vld [vmem:[%s1014 + $0x18] sm:$0xf]
      %v1022 = vld [vmem:[%s1014 + $0x1c] sm:$0xf]
      %v1031 = vunpack.c.l.b16 %v1015
      %v1032 = vunpack.c.l.b16 %v1016
      %v1033 = vunpack.c.l.b16 %v1017
      %v1034 = vunpack.c.l.b16 %v1018
      %v1035 = vunpack.c.l.b16 %v1019
      %v1036 = vunpack.c.l.b16 %v1020
      %v1037 = vunpack.c.l.b16 %v1021
      %v1038 = vunpack.c.l.b16 %v1022
      %v1039 = vpack.c.b16 %v1032, %v1031
      %v1040 = vpack.c.b16 %v1034, %v1033
      %v1041 = vpack.c.b16 %v1036, %v1035
      %v1042 = vpack.c.b16 %v1038, %v1037
      %1047 = vmatprep.subr.bf16.mxu0 0
      %1048 = vmatpush1.bf16.msra.mxu0 0
      %1049 = vmatprep.subr.bf16.mxu0 0
      %1050 = vmatpush1.bf16.msra.mxu0 0
      %1051 = vmatprep.subr.bf16.mxu0 0
      %1052 = vmatpush1.bf16.msra.mxu0 0
      %1053 = vmatprep.subr.bf16.mxu0 0
      %1054 = vmatpush1.bf16.msra.mxu0 0
      %1055 = vmatprep.subr.bf16.mxu0 0
      %1056 = vmatpush1.bf16.msra.mxu0 %v1042
      %1057 = vmatprep.subr.bf16.mxu0 0
      %1058 = vmatpush1.bf16.msra.mxu0 %v1041
      %1059 = vmatprep.subr.bf16.mxu0 0
      %1060 = vmatpush1.bf16.msra.mxu0 %v1040
      %1061 = vmatprep.subr.bf16.mxu0 0
      %1062 = vmatpush1.bf16.msra.mxu0 %v1039
      %1063 = vmatprep.subr.bf16.mxu0 0
      %1064 = vmatpush2.bf16.msra.mxu0 0
      %1065 = vmatprep.subr.bf16.mxu0 0
      %1066 = vmatpush2.bf16.msra.mxu0 0
      %1067 = vmatprep.subr.bf16.mxu0 0
      %1068 = vmatpush2.bf16.msra.mxu0 0
      %1069 = vmatprep.subr.bf16.mxu0 0
      %1070 = vmatpush2.bf16.msra.mxu0 0
      %1071 = vmatprep.subr.bf16.mxu0 0
      %1072 = vmatpush2.bf16.msra.mxu0 0
      %1073 = vmatprep.subr.bf16.mxu0 0
      %1074 = vmatpush2.bf16.msra.mxu0 0
      %1075 = vmatprep.subr.bf16.mxu0 0
      %1076 = vmatpush2.bf16.msra.mxu0 0
      %1077 = vmatprep.subr.bf16.mxu0 0
      %1078 = vmatpush2.bf16.msra.mxu0 0
      %1079 = vmatprep.mubr.bf16.mxu0 0
      %1080 = vmatmul.mubr.bf16.gmra.mxu0 %v670
      %v1081 = vpop.f32.mrf.mxu0
      %v1082 = vadd.f32 0.0, %v1081
      %v1083 = vpop.f32.mrf.mxu0
      %v1084 = vpop.f32.mrf.mxu0
      %v1085 = vadd.f32 0.0, %v1084
      %v1086 = vpop.f32.mrf.mxu0
      %1087 = vdwg.mxu0
      %v1088 = vpack.c.bf16 %v1085, %v1082
      %s1089 = scalar_lea.vmem %s3, 192
      %v1090 = vld [vmem:[%s1089] sm:$0xf]
      %v1091 = vld [vmem:[%s1089 + $0x4] sm:$0xf]
      %v1092 = vld [vmem:[%s1089 + $0x8] sm:$0xf]
      %v1093 = vld [vmem:[%s1089 + $0xc] sm:$0xf]
      %v1094 = vld [vmem:[%s1089 + $0x10] sm:$0xf]
      %v1095 = vld [vmem:[%s1089 + $0x14] sm:$0xf]
      %v1096 = vld [vmem:[%s1089 + $0x18] sm:$0xf]
      %v1097 = vld [vmem:[%s1089 + $0x1c] sm:$0xf]
      %v1106 = vunpack.c.l.b16 %v1090
      %v1107 = vunpack.c.l.b16 %v1091
      %v1108 = vunpack.c.l.b16 %v1092
      %v1109 = vunpack.c.l.b16 %v1093
      %v1110 = vunpack.c.l.b16 %v1094
      %v1111 = vunpack.c.l.b16 %v1095
      %v1112 = vunpack.c.l.b16 %v1096
      %v1113 = vunpack.c.l.b16 %v1097
      %v1114 = vpack.c.b16 %v1107, %v1106
      %v1115 = vpack.c.b16 %v1109, %v1108
      %v1116 = vpack.c.b16 %v1111, %v1110
      %v1117 = vpack.c.b16 %v1113, %v1112
      %1122 = vmatprep.subr.bf16.mxu0 0
      %1123 = vmatpush1.bf16.msra.mxu0 0
      %1124 = vmatprep.subr.bf16.mxu0 0
      %1125 = vmatpush1.bf16.msra.mxu0 0
      %1126 = vmatprep.subr.bf16.mxu0 0
      %1127 = vmatpush1.bf16.msra.mxu0 0
      %1128 = vmatprep.subr.bf16.mxu0 0
      %1129 = vmatpush1.bf16.msra.mxu0 0
      %1130 = vmatprep.subr.bf16.mxu0 0
      %1131 = vmatpush1.bf16.msra.mxu0 %v1117
      %1132 = vmatprep.subr.bf16.mxu0 0
      %1133 = vmatpush1.bf16.msra.mxu0 %v1116
      %1134 = vmatprep.subr.bf16.mxu0 0
      %1135 = vmatpush1.bf16.msra.mxu0 %v1115
      %1136 = vmatprep.subr.bf16.mxu0 0
      %1137 = vmatpush1.bf16.msra.mxu0 %v1114
      %1138 = vmatprep.subr.bf16.mxu0 0
      %1139 = vmatpush2.bf16.msra.mxu0 0
      %1140 = vmatprep.subr.bf16.mxu0 0
      %1141 = vmatpush2.bf16.msra.mxu0 0
      %1142 = vmatprep.subr.bf16.mxu0 0
      %1143 = vmatpush2.bf16.msra.mxu0 0
      %1144 = vmatprep.subr.bf16.mxu0 0
      %1145 = vmatpush2.bf16.msra.mxu0 0
      %1146 = vmatprep.subr.bf16.mxu0 0
      %1147 = vmatpush2.bf16.msra.mxu0 0
      %1148 = vmatprep.subr.bf16.mxu0 0
      %1149 = vmatpush2.bf16.msra.mxu0 0
      %1150 = vmatprep.subr.bf16.mxu0 0
      %1151 = vmatpush2.bf16.msra.mxu0 0
      %1152 = vmatprep.subr.bf16.mxu0 0
      %1153 = vmatpush2.bf16.msra.mxu0 0
      %1154 = vmatprep.mubr.bf16.mxu0 0
      %1155 = vmatmul.mubr.bf16.gmra.mxu0 %v670
      %v1156 = vpop.f32.mrf.mxu0
      %v1157 = vadd.f32 0.0, %v1156
      %v1158 = vpop.f32.mrf.mxu0
      %v1159 = vpop.f32.mrf.mxu0
      %v1160 = vadd.f32 0.0, %v1159
      %v1161 = vpop.f32.mrf.mxu0
      %1162 = vdwg.mxu0
      %v1163 = vpack.c.bf16 %v1160, %v1157
      %s1164 = scalar_lea.vmem %s3, 224
      %v1165 = vld [vmem:[%s1164] sm:$0xf]
      %v1166 = vld [vmem:[%s1164 + $0x4] sm:$0xf]
      %v1167 = vld [vmem:[%s1164 + $0x8] sm:$0xf]
      %v1168 = vld [vmem:[%s1164 + $0xc] sm:$0xf]
      %v1169 = vld [vmem:[%s1164 + $0x10] sm:$0xf]
      %v1170 = vld [vmem:[%s1164 + $0x14] sm:$0xf]
      %v1171 = vld [vmem:[%s1164 + $0x18] sm:$0xf]
      %v1172 = vld [vmem:[%s1164 + $0x1c] sm:$0xf]
      %v1181 = vunpack.c.l.b16 %v1165
      %v1182 = vunpack.c.l.b16 %v1166
      %v1183 = vunpack.c.l.b16 %v1167
      %v1184 = vunpack.c.l.b16 %v1168
      %v1185 = vunpack.c.l.b16 %v1169
      %v1186 = vunpack.c.l.b16 %v1170
      %v1187 = vunpack.c.l.b16 %v1171
      %v1188 = vunpack.c.l.b16 %v1172
      %v1189 = vpack.c.b16 %v1182, %v1181
      %v1190 = vpack.c.b16 %v1184, %v1183
      %v1191 = vpack.c.b16 %v1186, %v1185
      %v1192 = vpack.c.b16 %v1188, %v1187
      %1197 = vmatprep.subr.bf16.mxu0 0
      %1198 = vmatpush1.bf16.msra.mxu0 0
      %1199 = vmatprep.subr.bf16.mxu0 0
      %1200 = vmatpush1.bf16.msra.mxu0 0
      %1201 = vmatprep.subr.bf16.mxu0 0
      %1202 = vmatpush1.bf16.msra.mxu0 0
      %1203 = vmatprep.subr.bf16.mxu0 0
      %1204 = vmatpush1.bf16.msra.mxu0 0
      %1205 = vmatprep.subr.bf16.mxu0 0
      %1206 = vmatpush1.bf16.msra.mxu0 %v1192
      %1207 = vmatprep.subr.bf16.mxu0 0
      %1208 = vmatpush1.bf16.msra.mxu0 %v1191
      %1209 = vmatprep.subr.bf16.mxu0 0
      %1210 = vmatpush1.bf16.msra.mxu0 %v1190
      %1211 = vmatprep.subr.bf16.mxu0 0
      %1212 = vmatpush1.bf16.msra.mxu0 %v1189
      %1213 = vmatprep.subr.bf16.mxu0 0
      %1214 = vmatpush2.bf16.msra.mxu0 0
      %1215 = vmatprep.subr.bf16.mxu0 0
      %1216 = vmatpush2.bf16.msra.mxu0 0
      %1217 = vmatprep.subr.bf16.mxu0 0
      %1218 = vmatpush2.bf16.msra.mxu0 0
      %1219 = vmatprep.subr.bf16.mxu0 0
      %1220 = vmatpush2.bf16.msra.mxu0 0
      %1221 = vmatprep.subr.bf16.mxu0 0
      %1222 = vmatpush2.bf16.msra.mxu0 0
      %1223 = vmatprep.subr.bf16.mxu0 0
      %1224 = vmatpush2.bf16.msra.mxu0 0
      %1225 = vmatprep.subr.bf16.mxu0 0
      %1226 = vmatpush2.bf16.msra.mxu0 0
      %1227 = vmatprep.subr.bf16.mxu0 0
      %1228 = vmatpush2.bf16.msra.mxu0 0
      %1229 = vmatprep.mubr.bf16.mxu0 0
      %1230 = vmatmul.mubr.bf16.gmra.mxu0 %v670
      %v1231 = vpop.f32.mrf.mxu0
      %v1232 = vadd.f32 0.0, %v1231
      %v1233 = vpop.f32.mrf.mxu0
      %v1234 = vpop.f32.mrf.mxu0
      %v1235 = vadd.f32 0.0, %v1234
      %v1236 = vpop.f32.mrf.mxu0
      %1237 = vdwg.mxu0
      %v1238 = vpack.c.bf16 %v1235, %v1232
      %v1240 = vsel %vm596, %v713, 0
      %1242 = vmatprep.subr.bf16.mxu0 0
      %1243 = vmatpush1.bf16.xpose.msra.mxu0 0
      %1244 = vmatprep.subr.bf16.mxu0 0
      %1245 = vmatpush1.bf16.xpose.msra.mxu0 0
      %1246 = vmatprep.subr.bf16.mxu0 0
      %1247 = vmatpush1.bf16.xpose.msra.mxu0 0
      %1248 = vmatprep.subr.bf16.mxu0 0
      %1249 = vmatpush1.bf16.xpose.msra.mxu0 0
      %1250 = vmatprep.subr.bf16.mxu0 0
      %1251 = vmatpush1.bf16.xpose.msra.mxu0 0
      %1252 = vmatprep.subr.bf16.mxu0 0
      %1253 = vmatpush1.bf16.xpose.msra.mxu0 0
      %1254 = vmatprep.subr.bf16.mxu0 0
      %1255 = vmatpush1.bf16.xpose.msra.mxu0 0
      %1256 = vmatprep.subr.bf16.mxu0 0
      %1257 = vmatpush1.bf16.xpose.msra.mxu0 %v670
      %1258 = vmatprep.subr.bf16.mxu0 0
      %1259 = vmatpush2.bf16.xpose.msra.mxu0 0
      %1260 = vmatprep.subr.bf16.mxu0 0
      %1261 = vmatpush2.bf16.xpose.msra.mxu0 0
      %1262 = vmatprep.subr.bf16.mxu0 0
      %1263 = vmatpush2.bf16.xpose.msra.mxu0 0
      %1264 = vmatprep.subr.bf16.mxu0 0
      %1265 = vmatpush2.bf16.xpose.msra.mxu0 0
      %1266 = vmatprep.subr.bf16.mxu0 0
      %1267 = vmatpush2.bf16.xpose.msra.mxu0 0
      %1268 = vmatprep.subr.bf16.mxu0 0
      %1269 = vmatpush2.bf16.xpose.msra.mxu0 0
      %1270 = vmatprep.subr.bf16.mxu0 0
      %1271 = vmatpush2.bf16.xpose.msra.mxu0 0
      %1272 = vmatprep.subr.bf16.mxu0 0
      %1273 = vmatpush2.bf16.xpose.msra.mxu0 0
      %1274 = vmatprep.mubr.bf16.mxu0 0
      %1275 = vmatmul.mubr.bf16.gmra.mxu0 %v1240
      %v1276 = vpop.f32.mrf.mxu0
      %v1277 = vadd.f32 0.0, %v1276
      %v1278 = vpop.f32.mrf.mxu0
      %v1279 = vpop.f32.mrf.mxu0
      %v1280 = vpop.f32.mrf.mxu0
      %1281 = vdwg.mxu0
      %vm1282 = vcmask 64512
      %v1283 = vsel %vm1282, %v1277, -inf
      %1284 = vmax.xlane.f32.xlu0 %v1283
      %v1285 = vpop.xlane.xlu0 %1284
      %v1286 = vsub.f32 %v1277, %v1285
      %v1287 = vmul.f32 %v1286, 1.442695
      %v1288 = vpow.pop %v1287
      %v1289 = vsel %vm1282, %v1288, 0.0
      %1290 = vadd.xlane.f32.xlu0 %v1289
      %v1291 = vpop.xlane.xlu0 %1290
      %v1292 = vrcp.pop %v1291
      %v1293 = vmul.f32 %v1288, %v1292
      %v1294 = vpack.c.bf16 %v1293, %v1293
      %v1296 = vsel %vm596, %v788, 0
      %1298 = vmatprep.subr.bf16.mxu0 0
      %1299 = vmatpush1.bf16.xpose.msra.mxu0 0
      %1300 = vmatprep.subr.bf16.mxu0 0
      %1301 = vmatpush1.bf16.xpose.msra.mxu0 0
      %1302 = vmatprep.subr.bf16.mxu0 0
      %1303 = vmatpush1.bf16.xpose.msra.mxu0 0
      %1304 = vmatprep.subr.bf16.mxu0 0
      %1305 = vmatpush1.bf16.xpose.msra.mxu0 0
      %1306 = vmatprep.subr.bf16.mxu0 0
      %1307 = vmatpush1.bf16.xpose.msra.mxu0 0
      %1308 = vmatprep.subr.bf16.mxu0 0
      %1309 = vmatpush1.bf16.xpose.msra.mxu0 0
      %1310 = vmatprep.subr.bf16.mxu0 0
      %1311 = vmatpush1.bf16.xpose.msra.mxu0 0
      %1312 = vmatprep.subr.bf16.mxu0 0
      %1313 = vmatpush1.bf16.xpose.msra.mxu0 %v670
      %1314 = vmatprep.subr.bf16.mxu0 0
      %1315 = vmatpush2.bf16.xpose.msra.mxu0 0
      %1316 = vmatprep.subr.bf16.mxu0 0
      %1317 = vmatpush2.bf16.xpose.msra.mxu0 0
      %1318 = vmatprep.subr.bf16.mxu0 0
      %1319 = vmatpush2.bf16.xpose.msra.mxu0 0
      %1320 = vmatprep.subr.bf16.mxu0 0
      %1321 = vmatpush2.bf16.xpose.msra.mxu0 0
      %1322 = vmatprep.subr.bf16.mxu0 0
      %1323 = vmatpush2.bf16.xpose.msra.mxu0 0
      %1324 = vmatprep.subr.bf16.mxu0 0
      %1325 = vmatpush2.bf16.xpose.msra.mxu0 0
      %1326 = vmatprep.subr.bf16.mxu0 0
      %1327 = vmatpush2.bf16.xpose.msra.mxu0 0
      %1328 = vmatprep.subr.bf16.mxu0 0
      %1329 = vmatpush2.bf16.xpose.msra.mxu0 0
      %1330 = vmatprep.mubr.bf16.mxu0 0
      %1331 = vmatmul.mubr.bf16.gmra.mxu0 %v1296
      %v1332 = vpop.f32.mrf.mxu0
      %v1333 = vadd.f32 0.0, %v1332
      %v1334 = vpop.f32.mrf.mxu0
      %v1335 = vpop.f32.mrf.mxu0
      %v1336 = vpop.f32.mrf.mxu0
      %1337 = vdwg.mxu0
      %v1338 = vsel %vm1282, %v1333, -inf
      %1339 = vmax.xlane.f32.xlu0 %v1338
      %v1340 = vpop.xlane.xlu0 %1339
      %v1341 = vsub.f32 %v1333, %v1340
      %v1342 = vmul.f32 %v1341, 1.442695
      %v1343 = vpow.pop %v1342
      %v1344 = vsel %vm1282, %v1343, 0.0
      %1345 = vadd.xlane.f32.xlu0 %v1344
      %v1346 = vpop.xlane.xlu0 %1345
      %v1347 = vrcp.pop %v1346
      %v1348 = vmul.f32 %v1343, %v1347
      %v1349 = vpack.c.bf16 %v1348, %v1348
      %v1351 = vsel %vm1282, %v1349, 0
      %vm1353 = vcmask 1043456
      %v1355 = vsel %vm1353, %v1088, 0
      %1357 = vmatprep.subr.bf16.mxu0 0
      %1358 = vmatpush1.bf16.msra.mxu0 0
      %1359 = vmatprep.subr.bf16.mxu0 0
      %1360 = vmatpush1.bf16.msra.mxu0 0
      %1361 = vmatprep.subr.bf16.mxu0 0
      %1362 = vmatpush1.bf16.msra.mxu0 0
      %1363 = vmatprep.subr.bf16.mxu0 0
      %1364 = vmatpush1.bf16.msra.mxu0 0
      %1365 = vmatprep.subr.bf16.mxu0 0
      %1366 = vmatpush1.bf16.msra.mxu0 0
      %1367 = vmatprep.subr.bf16.mxu0 0
      %1368 = vmatpush1.bf16.msra.mxu0 0
      %1369 = vmatprep.subr.bf16.mxu0 0
      %1370 = vmatpush1.bf16.msra.mxu0 0
      %1371 = vmatprep.subr.bf16.mxu0 0
      %1372 = vmatpush1.bf16.msra.mxu0 %v1355
      %1373 = vmatprep.subr.bf16.mxu0 0
      %1374 = vmatpush2.bf16.msra.mxu0 0
      %1375 = vmatprep.subr.bf16.mxu0 0
      %1376 = vmatpush2.bf16.msra.mxu0 0
      %1377 = vmatprep.subr.bf16.mxu0 0
      %1378 = vmatpush2.bf16.msra.mxu0 0
      %1379 = vmatprep.subr.bf16.mxu0 0
      %1380 = vmatpush2.bf16.msra.mxu0 0
      %1381 = vmatprep.subr.bf16.mxu0 0
      %1382 = vmatpush2.bf16.msra.mxu0 0
      %1383 = vmatprep.subr.bf16.mxu0 0
      %1384 = vmatpush2.bf16.msra.mxu0 0
      %1385 = vmatprep.subr.bf16.mxu0 0
      %1386 = vmatpush2.bf16.msra.mxu0 0
      %1387 = vmatprep.subr.bf16.mxu0 0
      %1388 = vmatpush2.bf16.msra.mxu0 0
      %1389 = vmatprep.mubr.bf16.mxu0 0
      %1390 = vmatmul.mubr.bf16.gmra.mxu0 %v1351
      %v1391 = vpop.f32.mrf.mxu0
      %v1392 = vadd.f32 0.0, %v1391
      %v1393 = vpop.f32.mrf.mxu0
      %v1394 = vpop.f32.mrf.mxu0
      %v1395 = vpop.f32.mrf.mxu0
      %1396 = vdwg.mxu0
      %v1398 = vsel %vm1282, %v1294, 0
      %v1401 = vsel %vm1353, %v1013, 0
      %1403 = vmatprep.subr.bf16.mxu0 0
      %1404 = vmatpush1.bf16.msra.mxu0 0
      %1405 = vmatprep.subr.bf16.mxu0 0
      %1406 = vmatpush1.bf16.msra.mxu0 0
      %1407 = vmatprep.subr.bf16.mxu0 0
      %1408 = vmatpush1.bf16.msra.mxu0 0
      %1409 = vmatprep.subr.bf16.mxu0 0
      %1410 = vmatpush1.bf16.msra.mxu0 0
      %1411 = vmatprep.subr.bf16.mxu0 0
      %1412 = vmatpush1.bf16.msra.mxu0 0
      %1413 = vmatprep.subr.bf16.mxu0 0
      %1414 = vmatpush1.bf16.msra.mxu0 0
      %1415 = vmatprep.subr.bf16.mxu0 0
      %1416 = vmatpush1.bf16.msra.mxu0 0
      %1417 = vmatprep.subr.bf16.mxu0 0
      %1418 = vmatpush1.bf16.msra.mxu0 %v1401
      %1419 = vmatprep.subr.bf16.mxu0 0
      %1420 = vmatpush2.bf16.msra.mxu0 0
      %1421 = vmatprep.subr.bf16.mxu0 0
      %1422 = vmatpush2.bf16.msra.mxu0 0
      %1423 = vmatprep.subr.bf16.mxu0 0
      %1424 = vmatpush2.bf16.msra.mxu0 0
      %1425 = vmatprep.subr.bf16.mxu0 0
      %1426 = vmatpush2.bf16.msra.mxu0 0
      %1427 = vmatprep.subr.bf16.mxu0 0
      %1428 = vmatpush2.bf16.msra.mxu0 0
      %1429 = vmatprep.subr.bf16.mxu0 0
      %1430 = vmatpush2.bf16.msra.mxu0 0
      %1431 = vmatprep.subr.bf16.mxu0 0
      %1432 = vmatpush2.bf16.msra.mxu0 0
      %1433 = vmatprep.subr.bf16.mxu0 0
      %1434 = vmatpush2.bf16.msra.mxu0 0
      %1435 = vmatprep.mubr.bf16.mxu0 0
      %1436 = vmatmul.mubr.bf16.gmra.mxu0 %v1398
      %v1437 = vpop.f32.mrf.mxu0
      %v1438 = vadd.f32 %v1392, %v1437
      %v1439 = vpop.f32.mrf.mxu0
      %v1440 = vpop.f32.mrf.mxu0
      %v1441 = vpop.f32.mrf.mxu0
      %1442 = vdwg.mxu0
      %v1444 = vsel %vm596, %v863, 0
      %1446 = vmatprep.subr.bf16.mxu0 0
      %1447 = vmatpush1.bf16.xpose.msra.mxu0 0
      %1448 = vmatprep.subr.bf16.mxu0 0
      %1449 = vmatpush1.bf16.xpose.msra.mxu0 0
      %1450 = vmatprep.subr.bf16.mxu0 0
      %1451 = vmatpush1.bf16.xpose.msra.mxu0 0
      %1452 = vmatprep.subr.bf16.mxu0 0
      %1453 = vmatpush1.bf16.xpose.msra.mxu0 0
      %1454 = vmatprep.subr.bf16.mxu0 0
      %1455 = vmatpush1.bf16.xpose.msra.mxu0 0
      %1456 = vmatprep.subr.bf16.mxu0 0
      %1457 = vmatpush1.bf16.xpose.msra.mxu0 0
      %1458 = vmatprep.subr.bf16.mxu0 0
      %1459 = vmatpush1.bf16.xpose.msra.mxu0 0
      %1460 = vmatprep.subr.bf16.mxu0 0
      %1461 = vmatpush1.bf16.xpose.msra.mxu0 %v670
      %1462 = vmatprep.subr.bf16.mxu0 0
      %1463 = vmatpush2.bf16.xpose.msra.mxu0 0
      %1464 = vmatprep.subr.bf16.mxu0 0
      %1465 = vmatpush2.bf16.xpose.msra.mxu0 0
      %1466 = vmatprep.subr.bf16.mxu0 0
      %1467 = vmatpush2.bf16.xpose.msra.mxu0 0
      %1468 = vmatprep.subr.bf16.mxu0 0
      %1469 = vmatpush2.bf16.xpose.msra.mxu0 0
      %1470 = vmatprep.subr.bf16.mxu0 0
      %1471 = vmatpush2.bf16.xpose.msra.mxu0 0
      %1472 = vmatprep.subr.bf16.mxu0 0
      %1473 = vmatpush2.bf16.xpose.msra.mxu0 0
      %1474 = vmatprep.subr.bf16.mxu0 0
      %1475 = vmatpush2.bf16.xpose.msra.mxu0 0
      %1476 = vmatprep.subr.bf16.mxu0 0
      %1477 = vmatpush2.bf16.xpose.msra.mxu0 0
      %1478 = vmatprep.mubr.bf16.mxu0 0
      %1479 = vmatmul.mubr.bf16.gmra.mxu0 %v1444
      %v1480 = vpop.f32.mrf.mxu0
      %v1481 = vadd.f32 0.0, %v1480
      %v1482 = vpop.f32.mrf.mxu0
      %v1483 = vpop.f32.mrf.mxu0
      %v1484 = vpop.f32.mrf.mxu0
      %1485 = vdwg.mxu0
      %v1486 = vsel %vm1282, %v1481, -inf
      %1487 = vmax.xlane.f32.xlu0 %v1486
      %v1488 = vpop.xlane.xlu0 %1487
      %v1489 = vsub.f32 %v1481, %v1488
      %v1490 = vmul.f32 %v1489, 1.442695
      %v1491 = vpow.pop %v1490
      %v1492 = vsel %vm1282, %v1491, 0.0
      %1493 = vadd.xlane.f32.xlu0 %v1492
      %v1494 = vpop.xlane.xlu0 %1493
      %v1495 = vrcp.pop %v1494
      %v1496 = vmul.f32 %v1491, %v1495
      %v1497 = vpack.c.bf16 %v1496, %v1496
      %v1499 = vsel %vm1282, %v1497, 0
      %v1502 = vsel %vm1353, %v1163, 0
      %1504 = vmatprep.subr.bf16.mxu0 0
      %1505 = vmatpush1.bf16.msra.mxu0 0
      %1506 = vmatprep.subr.bf16.mxu0 0
      %1507 = vmatpush1.bf16.msra.mxu0 0
      %1508 = vmatprep.subr.bf16.mxu0 0
      %1509 = vmatpush1.bf16.msra.mxu0 0
      %1510 = vmatprep.subr.bf16.mxu0 0
      %1511 = vmatpush1.bf16.msra.mxu0 0
      %1512 = vmatprep.subr.bf16.mxu0 0
      %1513 = vmatpush1.bf16.msra.mxu0 0
      %1514 = vmatprep.subr.bf16.mxu0 0
      %1515 = vmatpush1.bf16.msra.mxu0 0
      %1516 = vmatprep.subr.bf16.mxu0 0
      %1517 = vmatpush1.bf16.msra.mxu0 0
      %1518 = vmatprep.subr.bf16.mxu0 0
      %1519 = vmatpush1.bf16.msra.mxu0 %v1502
      %1520 = vmatprep.subr.bf16.mxu0 0
      %1521 = vmatpush2.bf16.msra.mxu0 0
      %1522 = vmatprep.subr.bf16.mxu0 0
      %1523 = vmatpush2.bf16.msra.mxu0 0
      %1524 = vmatprep.subr.bf16.mxu0 0
      %1525 = vmatpush2.bf16.msra.mxu0 0
      %1526 = vmatprep.subr.bf16.mxu0 0
      %1527 = vmatpush2.bf16.msra.mxu0 0
      %1528 = vmatprep.subr.bf16.mxu0 0
      %1529 = vmatpush2.bf16.msra.mxu0 0
      %1530 = vmatprep.subr.bf16.mxu0 0
      %1531 = vmatpush2.bf16.msra.mxu0 0
      %1532 = vmatprep.subr.bf16.mxu0 0
      %1533 = vmatpush2.bf16.msra.mxu0 0
      %1534 = vmatprep.subr.bf16.mxu0 0
      %1535 = vmatpush2.bf16.msra.mxu0 0
      %1536 = vmatprep.mubr.bf16.mxu0 0
      %1537 = vmatmul.mubr.bf16.gmra.mxu0 %v1499
      %v1538 = vpop.f32.mrf.mxu0
      %v1539 = vadd.f32 0.0, %v1538
      %v1540 = vpop.f32.mrf.mxu0
      %v1541 = vpop.f32.mrf.mxu0
      %v1542 = vpop.f32.mrf.mxu0
      %1543 = vdwg.mxu0
      %v1544 = vadd.f32 %v1438, %v1539
      %v1546 = vsel %vm596, %v938, 0
      %1548 = vmatprep.subr.bf16.mxu0 0
      %1549 = vmatpush1.bf16.xpose.msra.mxu0 0
      %1550 = vmatprep.subr.bf16.mxu0 0
      %1551 = vmatpush1.bf16.xpose.msra.mxu0 0
      %1552 = vmatprep.subr.bf16.mxu0 0
      %1553 = vmatpush1.bf16.xpose.msra.mxu0 0
      %1554 = vmatprep.subr.bf16.mxu0 0
      %1555 = vmatpush1.bf16.xpose.msra.mxu0 0
      %1556 = vmatprep.subr.bf16.mxu0 0
      %1557 = vmatpush1.bf16.xpose.msra.mxu0 0
      %1558 = vmatprep.subr.bf16.mxu0 0
      %1559 = vmatpush1.bf16.xpose.msra.mxu0 0
      %1560 = vmatprep.subr.bf16.mxu0 0
      %1561 = vmatpush1.bf16.xpose.msra.mxu0 0
      %1562 = vmatprep.subr.bf16.mxu0 0
      %1563 = vmatpush1.bf16.xpose.msra.mxu0 %v670
      %1564 = vmatprep.subr.bf16.mxu0 0
      %1565 = vmatpush2.bf16.xpose.msra.mxu0 0
      %1566 = vmatprep.subr.bf16.mxu0 0
      %1567 = vmatpush2.bf16.xpose.msra.mxu0 0
      %1568 = vmatprep.subr.bf16.mxu0 0
      %1569 = vmatpush2.bf16.xpose.msra.mxu0 0
      %1570 = vmatprep.subr.bf16.mxu0 0
      %1571 = vmatpush2.bf16.xpose.msra.mxu0 0
      %1572 = vmatprep.subr.bf16.mxu0 0
      %1573 = vmatpush2.bf16.xpose.msra.mxu0 0
      %1574 = vmatprep.subr.bf16.mxu0 0
      %1575 = vmatpush2.bf16.xpose.msra.mxu0 0
      %1576 = vmatprep.subr.bf16.mxu0 0
      %1577 = vmatpush2.bf16.xpose.msra.mxu0 0
      %1578 = vmatprep.subr.bf16.mxu0 0
      %1579 = vmatpush2.bf16.xpose.msra.mxu0 0
      %1580 = vmatprep.mubr.bf16.mxu0 0
      %1581 = vmatmul.mubr.bf16.gmra.mxu0 %v1546
      %v1582 = vpop.f32.mrf.mxu0
      %v1583 = vadd.f32 0.0, %v1582
      %v1584 = vpop.f32.mrf.mxu0
      %v1585 = vpop.f32.mrf.mxu0
      %v1586 = vpop.f32.mrf.mxu0
      %1587 = vdwg.mxu0
      %v1588 = vsel %vm1282, %v1583, -inf
      %1589 = vmax.xlane.f32.xlu0 %v1588
      %v1590 = vpop.xlane.xlu0 %1589
      %v1591 = vsub.f32 %v1583, %v1590
      %v1592 = vmul.f32 %v1591, 1.442695
      %v1593 = vpow.pop %v1592
      %v1594 = vsel %vm1282, %v1593, 0.0
      %1595 = vadd.xlane.f32.xlu0 %v1594
      %v1596 = vpop.xlane.xlu0 %1595
      %v1597 = vrcp.pop %v1596
      %v1598 = vmul.f32 %v1593, %v1597
      %v1599 = vpack.c.bf16 %v1598, %v1598
      %v1601 = vsel %vm1282, %v1599, 0
      %v1604 = vsel %vm1353, %v1238, 0
      %1606 = vmatprep.subr.bf16.mxu0 0
      %1607 = vmatpush1.bf16.msra.mxu0 0
      %1608 = vmatprep.subr.bf16.mxu0 0
      %1609 = vmatpush1.bf16.msra.mxu0 0
      %1610 = vmatprep.subr.bf16.mxu0 0
      %1611 = vmatpush1.bf16.msra.mxu0 0
      %1612 = vmatprep.subr.bf16.mxu0 0
      %1613 = vmatpush1.bf16.msra.mxu0 0
      %1614 = vmatprep.subr.bf16.mxu0 0
      %1615 = vmatpush1.bf16.msra.mxu0 0
      %1616 = vmatprep.subr.bf16.mxu0 0
      %1617 = vmatpush1.bf16.msra.mxu0 0
      %1618 = vmatprep.subr.bf16.mxu0 0
      %1619 = vmatpush1.bf16.msra.mxu0 0
      %1620 = vmatprep.subr.bf16.mxu0 0
      %1621 = vmatpush1.bf16.msra.mxu0 %v1604
      %1622 = vmatprep.subr.bf16.mxu0 0
      %1623 = vmatpush2.bf16.msra.mxu0 0
      %1624 = vmatprep.subr.bf16.mxu0 0
      %1625 = vmatpush2.bf16.msra.mxu0 0
      %1626 = vmatprep.subr.bf16.mxu0 0
      %1627 = vmatpush2.bf16.msra.mxu0 0
      %1628 = vmatprep.subr.bf16.mxu0 0
      %1629 = vmatpush2.bf16.msra.mxu0 0
      %1630 = vmatprep.subr.bf16.mxu0 0
      %1631 = vmatpush2.bf16.msra.mxu0 0
      %1632 = vmatprep.subr.bf16.mxu0 0
      %1633 = vmatpush2.bf16.msra.mxu0 0
      %1634 = vmatprep.subr.bf16.mxu0 0
      %1635 = vmatpush2.bf16.msra.mxu0 0
      %1636 = vmatprep.subr.bf16.mxu0 0
      %1637 = vmatpush2.bf16.msra.mxu0 0
      %1638 = vmatprep.mubr.bf16.mxu0 0
      %1639 = vmatmul.mubr.bf16.gmra.mxu0 %v1601
      %v1640 = vpop.f32.mrf.mxu0
      %v1641 = vadd.f32 0.0, %v1640
      %v1642 = vpop.f32.mrf.mxu0
      %v1643 = vpop.f32.mrf.mxu0
      %v1644 = vpop.f32.mrf.mxu0
      %1645 = vdwg.mxu0
      %v1646 = vadd.f32 %v1544, %v1641
      %1647 = vst.msk [vmem:[#allocation2] sm:$0xff] %vm596, %v1646
      %v1649 = vrot.slane %v713, 4
      %v1651 = vrot.slane %v636, 4
      %v1653 = vsel %vm596, %v1649, 0
      %v1656 = vsel %vm596, %v1651, 0
      %1658 = vmatprep.subr.bf16.mxu0 0
      %1659 = vmatpush1.bf16.xpose.msra.mxu0 0
      %1660 = vmatprep.subr.bf16.mxu0 0
      %1661 = vmatpush1.bf16.xpose.msra.mxu0 0
      %1662 = vmatprep.subr.bf16.mxu0 0
      %1663 = vmatpush1.bf16.xpose.msra.mxu0 0
      %1664 = vmatprep.subr.bf16.mxu0 0
      %1665 = vmatpush1.bf16.xpose.msra.mxu0 0
      %1666 = vmatprep.subr.bf16.mxu0 0
      %1667 = vmatpush1.bf16.xpose.msra.mxu0 0
      %1668 = vmatprep.subr.bf16.mxu0 0
      %1669 = vmatpush1.bf16.xpose.msra.mxu0 0
      %1670 = vmatprep.subr.bf16.mxu0 0
      %1671 = vmatpush1.bf16.xpose.msra.mxu0 0
      %1672 = vmatprep.subr.bf16.mxu0 0
      %1673 = vmatpush1.bf16.xpose.msra.mxu0 %v1656
      %1674 = vmatprep.subr.bf16.mxu0 0
      %1675 = vmatpush2.bf16.xpose.msra.mxu0 0
      %1676 = vmatprep.subr.bf16.mxu0 0
      %1677 = vmatpush2.bf16.xpose.msra.mxu0 0
      %1678 = vmatprep.subr.bf16.mxu0 0
      %1679 = vmatpush2.bf16.xpose.msra.mxu0 0
      %1680 = vmatprep.subr.bf16.mxu0 0
      %1681 = vmatpush2.bf16.xpose.msra.mxu0 0
      %1682 = vmatprep.subr.bf16.mxu0 0
      %1683 = vmatpush2.bf16.xpose.msra.mxu0 0
      %1684 = vmatprep.subr.bf16.mxu0 0
      %1685 = vmatpush2.bf16.xpose.msra.mxu0 0
      %1686 = vmatprep.subr.bf16.mxu0 0
      %1687 = vmatpush2.bf16.xpose.msra.mxu0 0
      %1688 = vmatprep.subr.bf16.mxu0 0
      %1689 = vmatpush2.bf16.xpose.msra.mxu0 0
      %1690 = vmatprep.mubr.bf16.mxu0 0
      %1691 = vmatmul.mubr.bf16.gmra.mxu0 %v1653
      %v1692 = vpop.f32.mrf.mxu0
      %v1693 = vadd.f32 0.0, %v1692
      %v1694 = vpop.f32.mrf.mxu0
      %v1695 = vpop.f32.mrf.mxu0
      %v1696 = vpop.f32.mrf.mxu0
      %1697 = vdwg.mxu0
      %v1698 = vsel %vm1282, %v1693, -inf
      %1699 = vmax.xlane.f32.xlu0 %v1698
      %v1700 = vpop.xlane.xlu0 %1699
      %v1701 = vsub.f32 %v1693, %v1700
      %v1702 = vmul.f32 %v1701, 1.442695
      %v1703 = vpow.pop %v1702
      %v1704 = vsel %vm1282, %v1703, 0.0
      %1705 = vadd.xlane.f32.xlu0 %v1704
      %v1706 = vpop.xlane.xlu0 %1705
      %v1707 = vrcp.pop %v1706
      %v1708 = vmul.f32 %v1703, %v1707
      %v1709 = vpack.c.bf16 %v1708, %v1708
      %v1711 = vrot.slane %v788, 4
      %v1713 = vsel %vm596, %v1711, 0
      %1715 = vmatprep.subr.bf16.mxu0 0
      %1716 = vmatpush1.bf16.xpose.msra.mxu0 0
      %1717 = vmatprep.subr.bf16.mxu0 0
      %1718 = vmatpush1.bf16.xpose.msra.mxu0 0
      %1719 = vmatprep.subr.bf16.mxu0 0
      %1720 = vmatpush1.bf16.xpose.msra.mxu0 0
      %1721 = vmatprep.subr.bf16.mxu0 0
      %1722 = vmatpush1.bf16.xpose.msra.mxu0 0
      %1723 = vmatprep.subr.bf16.mxu0 0
      %1724 = vmatpush1.bf16.xpose.msra.mxu0 0
      %1725 = vmatprep.subr.bf16.mxu0 0
      %1726 = vmatpush1.bf16.xpose.msra.mxu0 0
      %1727 = vmatprep.subr.bf16.mxu0 0
      %1728 = vmatpush1.bf16.xpose.msra.mxu0 0
      %1729 = vmatprep.subr.bf16.mxu0 0
      %1730 = vmatpush1.bf16.xpose.msra.mxu0 %v1656
      %1731 = vmatprep.subr.bf16.mxu0 0
      %1732 = vmatpush2.bf16.xpose.msra.mxu0 0
      %1733 = vmatprep.subr.bf16.mxu0 0
      %1734 = vmatpush2.bf16.xpose.msra.mxu0 0
      %1735 = vmatprep.subr.bf16.mxu0 0
      %1736 = vmatpush2.bf16.xpose.msra.mxu0 0
      %1737 = vmatprep.subr.bf16.mxu0 0
      %1738 = vmatpush2.bf16.xpose.msra.mxu0 0
      %1739 = vmatprep.subr.bf16.mxu0 0
      %1740 = vmatpush2.bf16.xpose.msra.mxu0 0
      %1741 = vmatprep.subr.bf16.mxu0 0
      %1742 = vmatpush2.bf16.xpose.msra.mxu0 0
      %1743 = vmatprep.subr.bf16.mxu0 0
      %1744 = vmatpush2.bf16.xpose.msra.mxu0 0
      %1745 = vmatprep.subr.bf16.mxu0 0
      %1746 = vmatpush2.bf16.xpose.msra.mxu0 0
      %1747 = vmatprep.mubr.bf16.mxu0 0
      %1748 = vmatmul.mubr.bf16.gmra.mxu0 %v1713
      %v1749 = vpop.f32.mrf.mxu0
      %v1750 = vadd.f32 0.0, %v1749
      %v1751 = vpop.f32.mrf.mxu0
      %v1752 = vpop.f32.mrf.mxu0
      %v1753 = vpop.f32.mrf.mxu0
      %1754 = vdwg.mxu0
      %v1755 = vsel %vm1282, %v1750, -inf
      %1756 = vmax.xlane.f32.xlu0 %v1755
      %v1757 = vpop.xlane.xlu0 %1756
      %v1758 = vsub.f32 %v1750, %v1757
      %v1759 = vmul.f32 %v1758, 1.442695
      %v1760 = vpow.pop %v1759
      %v1761 = vsel %vm1282, %v1760, 0.0
      %1762 = vadd.xlane.f32.xlu0 %v1761
      %v1763 = vpop.xlane.xlu0 %1762
      %v1764 = vrcp.pop %v1763
      %v1765 = vmul.f32 %v1760, %v1764
      %v1766 = vpack.c.bf16 %v1765, %v1765
      %v1768 = vrot.slane %v1088, 4
      %v1770 = vsel %vm1282, %v1766, 0
      %v1773 = vsel %vm1353, %v1768, 0
      %1775 = vmatprep.subr.bf16.mxu0 0
      %1776 = vmatpush1.bf16.msra.mxu0 0
      %1777 = vmatprep.subr.bf16.mxu0 0
      %1778 = vmatpush1.bf16.msra.mxu0 0
      %1779 = vmatprep.subr.bf16.mxu0 0
      %1780 = vmatpush1.bf16.msra.mxu0 0
      %1781 = vmatprep.subr.bf16.mxu0 0
      %1782 = vmatpush1.bf16.msra.mxu0 0
      %1783 = vmatprep.subr.bf16.mxu0 0
      %1784 = vmatpush1.bf16.msra.mxu0 0
      %1785 = vmatprep.subr.bf16.mxu0 0
      %1786 = vmatpush1.bf16.msra.mxu0 0
      %1787 = vmatprep.subr.bf16.mxu0 0
      %1788 = vmatpush1.bf16.msra.mxu0 0
      %1789 = vmatprep.subr.bf16.mxu0 0
      %1790 = vmatpush1.bf16.msra.mxu0 %v1773
      %1791 = vmatprep.subr.bf16.mxu0 0
      %1792 = vmatpush2.bf16.msra.mxu0 0
      %1793 = vmatprep.subr.bf16.mxu0 0
      %1794 = vmatpush2.bf16.msra.mxu0 0
      %1795 = vmatprep.subr.bf16.mxu0 0
      %1796 = vmatpush2.bf16.msra.mxu0 0
      %1797 = vmatprep.subr.bf16.mxu0 0
      %1798 = vmatpush2.bf16.msra.mxu0 0
      %1799 = vmatprep.subr.bf16.mxu0 0
      %1800 = vmatpush2.bf16.msra.mxu0 0
      %1801 = vmatprep.subr.bf16.mxu0 0
      %1802 = vmatpush2.bf16.msra.mxu0 0
      %1803 = vmatprep.subr.bf16.mxu0 0
      %1804 = vmatpush2.bf16.msra.mxu0 0
      %1805 = vmatprep.subr.bf16.mxu0 0
      %1806 = vmatpush2.bf16.msra.mxu0 0
      %1807 = vmatprep.mubr.bf16.mxu0 0
      %1808 = vmatmul.mubr.bf16.gmra.mxu0 %v1770
      %v1809 = vpop.f32.mrf.mxu0
      %v1810 = vadd.f32 0.0, %v1809
      %v1811 = vpop.f32.mrf.mxu0
      %v1812 = vpop.f32.mrf.mxu0
      %v1813 = vpop.f32.mrf.mxu0
      %1814 = vdwg.mxu0
      %v1816 = vrot.slane %v1013, 4
      %v1818 = vsel %vm1282, %v1709, 0
      %v1821 = vsel %vm1353, %v1816, 0
      %1823 = vmatprep.subr.bf16.mxu0 0
      %1824 = vmatpush1.bf16.msra.mxu0 0
      %1825 = vmatprep.subr.bf16.mxu0 0
      %1826 = vmatpush1.bf16.msra.mxu0 0
      %1827 = vmatprep.subr.bf16.mxu0 0
      %1828 = vmatpush1.bf16.msra.mxu0 0
      %1829 = vmatprep.subr.bf16.mxu0 0
      %1830 = vmatpush1.bf16.msra.mxu0 0
      %1831 = vmatprep.subr.bf16.mxu0 0
      %1832 = vmatpush1.bf16.msra.mxu0 0
      %1833 = vmatprep.subr.bf16.mxu0 0
      %1834 = vmatpush1.bf16.msra.mxu0 0
      %1835 = vmatprep.subr.bf16.mxu0 0
      %1836 = vmatpush1.bf16.msra.mxu0 0
      %1837 = vmatprep.subr.bf16.mxu0 0
      %1838 = vmatpush1.bf16.msra.mxu0 %v1821
      %1839 = vmatprep.subr.bf16.mxu0 0
      %1840 = vmatpush2.bf16.msra.mxu0 0
      %1841 = vmatprep.subr.bf16.mxu0 0
      %1842 = vmatpush2.bf16.msra.mxu0 0
      %1843 = vmatprep.subr.bf16.mxu0 0
      %1844 = vmatpush2.bf16.msra.mxu0 0
      %1845 = vmatprep.subr.bf16.mxu0 0
      %1846 = vmatpush2.bf16.msra.mxu0 0
      %1847 = vmatprep.subr.bf16.mxu0 0
      %1848 = vmatpush2.bf16.msra.mxu0 0
      %1849 = vmatprep.subr.bf16.mxu0 0
      %1850 = vmatpush2.bf16.msra.mxu0 0
      %1851 = vmatprep.subr.bf16.mxu0 0
      %1852 = vmatpush2.bf16.msra.mxu0 0
      %1853 = vmatprep.subr.bf16.mxu0 0
      %1854 = vmatpush2.bf16.msra.mxu0 0
      %1855 = vmatprep.mubr.bf16.mxu0 0
      %1856 = vmatmul.mubr.bf16.gmra.mxu0 %v1818
      %v1857 = vpop.f32.mrf.mxu0
      %v1858 = vadd.f32 %v1810, %v1857
      %v1859 = vpop.f32.mrf.mxu0
      %v1860 = vpop.f32.mrf.mxu0
      %v1861 = vpop.f32.mrf.mxu0
      %1862 = vdwg.mxu0
      %v1864 = vrot.slane %v863, 4
      %v1866 = vsel %vm596, %v1864, 0
      %1868 = vmatprep.subr.bf16.mxu0 0
      %1869 = vmatpush1.bf16.xpose.msra.mxu0 0
      %1870 = vmatprep.subr.bf16.mxu0 0
      %1871 = vmatpush1.bf16.xpose.msra.mxu0 0
      %1872 = vmatprep.subr.bf16.mxu0 0
      %1873 = vmatpush1.bf16.xpose.msra.mxu0 0
      %1874 = vmatprep.subr.bf16.mxu0 0
      %1875 = vmatpush1.bf16.xpose.msra.mxu0 0
      %1876 = vmatprep.subr.bf16.mxu0 0
      %1877 = vmatpush1.bf16.xpose.msra.mxu0 0
      %1878 = vmatprep.subr.bf16.mxu0 0
      %1879 = vmatpush1.bf16.xpose.msra.mxu0 0
      %1880 = vmatprep.subr.bf16.mxu0 0
      %1881 = vmatpush1.bf16.xpose.msra.mxu0 0
      %1882 = vmatprep.subr.bf16.mxu0 0
      %1883 = vmatpush1.bf16.xpose.msra.mxu0 %v1656
      %1884 = vmatprep.subr.bf16.mxu0 0
      %1885 = vmatpush2.bf16.xpose.msra.mxu0 0
      %1886 = vmatprep.subr.bf16.mxu0 0
      %1887 = vmatpush2.bf16.xpose.msra.mxu0 0
      %1888 = vmatprep.subr.bf16.mxu0 0
      %1889 = vmatpush2.bf16.xpose.msra.mxu0 0
      %1890 = vmatprep.subr.bf16.mxu0 0
      %1891 = vmatpush2.bf16.xpose.msra.mxu0 0
      %1892 = vmatprep.subr.bf16.mxu0 0
      %1893 = vmatpush2.bf16.xpose.msra.mxu0 0
      %1894 = vmatprep.subr.bf16.mxu0 0
      %1895 = vmatpush2.bf16.xpose.msra.mxu0 0
      %1896 = vmatprep.subr.bf16.mxu0 0
      %1897 = vmatpush2.bf16.xpose.msra.mxu0 0
      %1898 = vmatprep.subr.bf16.mxu0 0
      %1899 = vmatpush2.bf16.xpose.msra.mxu0 0
      %1900 = vmatprep.mubr.bf16.mxu0 0
      %1901 = vmatmul.mubr.bf16.gmra.mxu0 %v1866
      %v1902 = vpop.f32.mrf.mxu0
      %v1903 = vadd.f32 0.0, %v1902
      %v1904 = vpop.f32.mrf.mxu0
      %v1905 = vpop.f32.mrf.mxu0
      %v1906 = vpop.f32.mrf.mxu0
      %1907 = vdwg.mxu0
      %v1908 = vsel %vm1282, %v1903, -inf
      %1909 = vmax.xlane.f32.xlu0 %v1908
      %v1910 = vpop.xlane.xlu0 %1909
      %v1911 = vsub.f32 %v1903, %v1910
      %v1912 = vmul.f32 %v1911, 1.442695
      %v1913 = vpow.pop %v1912
      %v1914 = vsel %vm1282, %v1913, 0.0
      %1915 = vadd.xlane.f32.xlu0 %v1914
      %v1916 = vpop.xlane.xlu0 %1915
      %v1917 = vrcp.pop %v1916
      %v1918 = vmul.f32 %v1913, %v1917
      %v1919 = vpack.c.bf16 %v1918, %v1918
      %v1921 = vrot.slane %v1163, 4
      %v1923 = vsel %vm1282, %v1919, 0
      %v1926 = vsel %vm1353, %v1921, 0
      %1928 = vmatprep.subr.bf16.mxu0 0
      %1929 = vmatpush1.bf16.msra.mxu0 0
      %1930 = vmatprep.subr.bf16.mxu0 0
      %1931 = vmatpush1.bf16.msra.mxu0 0
      %1932 = vmatprep.subr.bf16.mxu0 0
      %1933 = vmatpush1.bf16.msra.mxu0 0
      %1934 = vmatprep.subr.bf16.mxu0 0
      %1935 = vmatpush1.bf16.msra.mxu0 0
      %1936 = vmatprep.subr.bf16.mxu0 0
      %1937 = vmatpush1.bf16.msra.mxu0 0
      %1938 = vmatprep.subr.bf16.mxu0 0
      %1939 = vmatpush1.bf16.msra.mxu0 0
      %1940 = vmatprep.subr.bf16.mxu0 0
      %1941 = vmatpush1.bf16.msra.mxu0 0
      %1942 = vmatprep.subr.bf16.mxu0 0
      %1943 = vmatpush1.bf16.msra.mxu0 %v1926
      %1944 = vmatprep.subr.bf16.mxu0 0
      %1945 = vmatpush2.bf16.msra.mxu0 0
      %1946 = vmatprep.subr.bf16.mxu0 0
      %1947 = vmatpush2.bf16.msra.mxu0 0
      %1948 = vmatprep.subr.bf16.mxu0 0
      %1949 = vmatpush2.bf16.msra.mxu0 0
      %1950 = vmatprep.subr.bf16.mxu0 0
      %1951 = vmatpush2.bf16.msra.mxu0 0
      %1952 = vmatprep.subr.bf16.mxu0 0
      %1953 = vmatpush2.bf16.msra.mxu0 0
      %1954 = vmatprep.subr.bf16.mxu0 0
      %1955 = vmatpush2.bf16.msra.mxu0 0
      %1956 = vmatprep.subr.bf16.mxu0 0
      %1957 = vmatpush2.bf16.msra.mxu0 0
      %1958 = vmatprep.subr.bf16.mxu0 0
      %1959 = vmatpush2.bf16.msra.mxu0 0
      %1960 = vmatprep.mubr.bf16.mxu0 0
      %1961 = vmatmul.mubr.bf16.gmra.mxu0 %v1923
      %v1962 = vpop.f32.mrf.mxu0
      %v1963 = vadd.f32 0.0, %v1962
      %v1964 = vpop.f32.mrf.mxu0
      %v1965 = vpop.f32.mrf.mxu0
      %v1966 = vpop.f32.mrf.mxu0
      %1967 = vdwg.mxu0
      %v1968 = vadd.f32 %v1858, %v1963
      %v1970 = vrot.slane %v938, 4
      %v1972 = vsel %vm596, %v1970, 0
      %1974 = vmatprep.subr.bf16.mxu0 0
      %1975 = vmatpush1.bf16.xpose.msra.mxu0 0
      %1976 = vmatprep.subr.bf16.mxu0 0
      %1977 = vmatpush1.bf16.xpose.msra.mxu0 0
      %1978 = vmatprep.subr.bf16.mxu0 0
      %1979 = vmatpush1.bf16.xpose.msra.mxu0 0
      %1980 = vmatprep.subr.bf16.mxu0 0
      %1981 = vmatpush1.bf16.xpose.msra.mxu0 0
      %1982 = vmatprep.subr.bf16.mxu0 0
      %1983 = vmatpush1.bf16.xpose.msra.mxu0 0
      %1984 = vmatprep.subr.bf16.mxu0 0
      %1985 = vmatpush1.bf16.xpose.msra.mxu0 0
      %1986 = vmatprep.subr.bf16.mxu0 0
      %1987 = vmatpush1.bf16.xpose.msra.mxu0 0
      %1988 = vmatprep.subr.bf16.mxu0 0
      %1989 = vmatpush1.bf16.xpose.msra.mxu0 %v1656
      %1990 = vmatprep.subr.bf16.mxu0 0
      %1991 = vmatpush2.bf16.xpose.msra.mxu0 0
      %1992 = vmatprep.subr.bf16.mxu0 0
      %1993 = vmatpush2.bf16.xpose.msra.mxu0 0
      %1994 = vmatprep.subr.bf16.mxu0 0
      %1995 = vmatpush2.bf16.xpose.msra.mxu0 0
      %1996 = vmatprep.subr.bf16.mxu0 0
      %1997 = vmatpush2.bf16.xpose.msra.mxu0 0
      %1998 = vmatprep.subr.bf16.mxu0 0
      %1999 = vmatpush2.bf16.xpose.msra.mxu0 0
      %2000 = vmatprep.subr.bf16.mxu0 0
      %2001 = vmatpush2.bf16.xpose.msra.mxu0 0
      %2002 = vmatprep.subr.bf16.mxu0 0
      %2003 = vmatpush2.bf16.xpose.msra.mxu0 0
      %2004 = vmatprep.subr.bf16.mxu0 0
      %2005 = vmatpush2.bf16.xpose.msra.mxu0 0
      %2006 = vmatprep.mubr.bf16.mxu0 0
      %2007 = vmatmul.mubr.bf16.gmra.mxu0 %v1972
      %v2008 = vpop.f32.mrf.mxu0
      %v2009 = vadd.f32 0.0, %v2008
      %v2010 = vpop.f32.mrf.mxu0
      %v2011 = vpop.f32.mrf.mxu0
      %v2012 = vpop.f32.mrf.mxu0
      %2013 = vdwg.mxu0
      %v2014 = vsel %vm1282, %v2009, -inf
      %2015 = vmax.xlane.f32.xlu0 %v2014
      %v2016 = vpop.xlane.xlu0 %2015
      %v2017 = vsub.f32 %v2009, %v2016
      %v2018 = vmul.f32 %v2017, 1.442695
      %v2019 = vpow.pop %v2018
      %v2020 = vsel %vm1282, %v2019, 0.0
      %2021 = vadd.xlane.f32.xlu0 %v2020
      %v2022 = vpop.xlane.xlu0 %2021
      %v2023 = vrcp.pop %v2022
      %v2024 = vmul.f32 %v2019, %v2023
      %v2025 = vpack.c.bf16 %v2024, %v2024
      %v2027 = vrot.slane %v1238, 4
      %v2029 = vsel %vm1282, %v2025, 0
      %v2032 = vsel %vm1353, %v2027, 0
      %2034 = vmatprep.subr.bf16.mxu0 0
      %2035 = vmatpush1.bf16.msra.mxu0 0
      %2036 = vmatprep.subr.bf16.mxu0 0
      %2037 = vmatpush1.bf16.msra.mxu0 0
      %2038 = vmatprep.subr.bf16.mxu0 0
      %2039 = vmatpush1.bf16.msra.mxu0 0
      %2040 = vmatprep.subr.bf16.mxu0 0
      %2041 = vmatpush1.bf16.msra.mxu0 0
      %2042 = vmatprep.subr.bf16.mxu0 0
      %2043 = vmatpush1.bf16.msra.mxu0 0
      %2044 = vmatprep.subr.bf16.mxu0 0
      %2045 = vmatpush1.bf16.msra.mxu0 0
      %2046 = vmatprep.subr.bf16.mxu0 0
      %2047 = vmatpush1.bf16.msra.mxu0 0
      %2048 = vmatprep.subr.bf16.mxu0 0
      %2049 = vmatpush1.bf16.msra.mxu0 %v2032
      %2050 = vmatprep.subr.bf16.mxu0 0
      %2051 = vmatpush2.bf16.msra.mxu0 0
      %2052 = vmatprep.subr.bf16.mxu0 0
      %2053 = vmatpush2.bf16.msra.mxu0 0
      %2054 = vmatprep.subr.bf16.mxu0 0
      %2055 = vmatpush2.bf16.msra.mxu0 0
      %2056 = vmatprep.subr.bf16.mxu0 0
      %2057 = vmatpush2.bf16.msra.mxu0 0
      %2058 = vmatprep.subr.bf16.mxu0 0
      %2059 = vmatpush2.bf16.msra.mxu0 0
      %2060 = vmatprep.subr.bf16.mxu0 0
      %2061 = vmatpush2.bf16.msra.mxu0 0
      %2062 = vmatprep.subr.bf16.mxu0 0
      %2063 = vmatpush2.bf16.msra.mxu0 0
      %2064 = vmatprep.subr.bf16.mxu0 0
      %2065 = vmatpush2.bf16.msra.mxu0 0
      %2066 = vmatprep.mubr.bf16.mxu0 0
      %2067 = vmatmul.mubr.bf16.gmra.mxu0 %v2029
      %v2068 = vpop.f32.mrf.mxu0
      %v2069 = vadd.f32 0.0, %v2068
      %v2070 = vpop.f32.mrf.mxu0
      %v2071 = vpop.f32.mrf.mxu0
      %v2072 = vpop.f32.mrf.mxu0
      %2073 = vdwg.mxu0
      %v2074 = vadd.f32 %v1968, %v2069
      %2075 = vst.msk [vmem:[#allocation2 + $0x8] sm:$0xff] %vm596, %v2074
      %v2076 = vld [vmem:[#allocation2] sm:$0xff]
      %v2077 = vld [vmem:[#allocation2 + $0x8] sm:$0xff]
      %v2078 = vadd.f32 %v2076, %v634
      %v2079 = vadd.f32 %v2077, %v635
      %v2080 = vld [vmem:[%s7 + $0x3] sm:$0x1]
      %v2081 = vld [vmem:[%s7 + $0x4] sm:$0x1]
      %v2082 = vsel %vm596, %v2078, 0.0
      %2083 = vadd.xlane.f32.xlu0 %v2082
      %v2084 = vpop.xlane.xlu0 %2083
      %v2085 = vsel %vm596, %v2079, 0.0
      %2086 = vadd.xlane.f32.xlu0 %v2085
      %v2087 = vpop.xlane.xlu0 %2086
      %v2088 = vmul.f32 %v2084, %v603
      %v2089 = vmul.f32 %v2087, %v603
      %v2090 = vsub.f32 %v2078, %v2088
      %v2091 = vsub.f32 %v2079, %v2089
      %v2092 = vmul.f32 %v2090, %v2090
      %v2093 = vmul.f32 %v2091, %v2091
      %v2094 = vsel %vm596, %v2092, 0.0
      %2095 = vadd.xlane.f32.xlu0 %v2094
      %v2096 = vpop.xlane.xlu0 %2095
      %v2097 = vsel %vm596, %v2093, 0.0
      %2098 = vadd.xlane.f32.xlu0 %v2097
      %v2099 = vpop.xlane.xlu0 %2098
      %v2100 = vmul.f32 %v2096, %v603
      %v2101 = vmul.f32 %v2099, %v603
      %v2102 = vadd.f32 %v2100, 1e-06
      %v2103 = vadd.f32 %v2101, 1e-06
      %v2104 = vrsqrt.pop %v2102
      %v2105 = vrsqrt.pop %v2103
      %v2106 = vmul.f32 %v2090, %v2104
      %v2107 = vmul.f32 %v2091, %v2105
      %v2108 = vlaneseq
      %v2109 = vshrl.u32 %v2108, 7
      %v2110 = vsub.s32 0, %v2109
      %v2111 = vrot.slane %v2080, %v2110
      %v2112 = vmul.f32 %v2106, %v2111
      %v2113 = vmul.f32 %v2107, %v2111
      %v2114 = vlaneseq
      %v2115 = vshrl.u32 %v2114, 7
      %v2116 = vsub.s32 0, %v2115
      %v2117 = vrot.slane %v2081, %v2116
      %v2118 = vadd.f32 %v2112, %v2117
      %v2119 = vadd.f32 %v2113, %v2117
      %v2120 = vpack.c.bf16 %v2119, %v2118
      %v2121 = vld [vmem:[%s4] sm:$0xff]
      %v2122 = vld [vmem:[%s4 + $0x8] sm:$0xff]
      %v2123 = vld [vmem:[%s4 + $0x10] sm:$0xff]
      %v2124 = vld [vmem:[%s4 + $0x18] sm:$0xff]
      %v2125 = vld [vmem:[%s4 + $0x20] sm:$0xff]
      %v2126 = vld [vmem:[%s4 + $0x28] sm:$0xff]
      %v2127 = vld [vmem:[%s4 + $0x30] sm:$0xff]
      %v2128 = vld [vmem:[%s4 + $0x38] sm:$0xff]
      %v2129 = vld [vmem:[%s5] sm:$0x3]
      %v2131 = vlaneseq
      %v2132 = vshrl.u32 %v2131, 7
      %v2133 = vsub.s32 0, %v2132
      %v2134 = vrot.slane %v2129, %v2133
      %v2135 = vlaneseq
      %v2136 = vshrl.u32 %v2135, 7
      %v2137 = vsub.s32 1, %v2136
      %v2138 = vrot.slane %v2129, %v2137
      %v2149 = vunpack.c.l.b16 %v2121
      %v2150 = vunpack.c.h.b16 %v2121
      %v2151 = vunpack.c.l.b16 %v2122
      %v2152 = vunpack.c.h.b16 %v2122
      %v2153 = vunpack.c.l.b16 %v2123
      %v2154 = vunpack.c.h.b16 %v2123
      %v2155 = vunpack.c.l.b16 %v2124
      %v2156 = vunpack.c.h.b16 %v2124
      %v2157 = vunpack.c.l.b16 %v2125
      %v2158 = vunpack.c.h.b16 %v2125
      %v2159 = vunpack.c.l.b16 %v2126
      %v2160 = vunpack.c.h.b16 %v2126
      %v2161 = vunpack.c.l.b16 %v2127
      %v2162 = vunpack.c.h.b16 %v2127
      %v2163 = vunpack.c.l.b16 %v2128
      %v2164 = vunpack.c.h.b16 %v2128
      %v2165 = vpack.c.b16 %v2151, %v2149
      %v2166 = vpack.c.b16 %v2152, %v2150
      %v2167 = vpack.c.b16 %v2155, %v2153
      %v2168 = vpack.c.b16 %v2156, %v2154
      %v2169 = vpack.c.b16 %v2159, %v2157
      %v2170 = vpack.c.b16 %v2160, %v2158
      %v2171 = vpack.c.b16 %v2163, %v2161
      %v2172 = vpack.c.b16 %v2164, %v2162
      %v2182 = vsel %vm596, %v2120, 0
      %2184 = vmatprep.subr.bf16.mxu0 0
      %2185 = vmatpush1.bf16.msra.mxu0 0
      %2186 = vmatprep.subr.bf16.mxu0 0
      %2187 = vmatpush1.bf16.msra.mxu0 0
      %2188 = vmatprep.subr.bf16.mxu0 0
      %2189 = vmatpush1.bf16.msra.mxu0 0
      %2190 = vmatprep.subr.bf16.mxu0 0
      %2191 = vmatpush1.bf16.msra.mxu0 0
      %2192 = vmatprep.subr.bf16.mxu0 %v2172
      %2193 = vmatpush1.bf16.msra.mxu0 %v2171
      %2194 = vmatprep.subr.bf16.mxu0 %v2170
      %2195 = vmatpush1.bf16.msra.mxu0 %v2169
      %2196 = vmatprep.subr.bf16.mxu0 %v2168
      %2197 = vmatpush1.bf16.msra.mxu0 %v2167
      %2198 = vmatprep.subr.bf16.mxu0 %v2166
      %2199 = vmatpush1.bf16.msra.mxu0 %v2165
      %2200 = vmatprep.subr.bf16.mxu0 0
      %2201 = vmatpush2.bf16.msra.mxu0 0
      %2202 = vmatprep.subr.bf16.mxu0 0
      %2203 = vmatpush2.bf16.msra.mxu0 0
      %2204 = vmatprep.subr.bf16.mxu0 0
      %2205 = vmatpush2.bf16.msra.mxu0 0
      %2206 = vmatprep.subr.bf16.mxu0 0
      %2207 = vmatpush2.bf16.msra.mxu0 0
      %2208 = vmatprep.subr.bf16.mxu0 0
      %2209 = vmatpush2.bf16.msra.mxu0 0
      %2210 = vmatprep.subr.bf16.mxu0 0
      %2211 = vmatpush2.bf16.msra.mxu0 0
      %2212 = vmatprep.subr.bf16.mxu0 0
      %2213 = vmatpush2.bf16.msra.mxu0 0
      %2214 = vmatprep.subr.bf16.mxu0 0
      %2215 = vmatpush2.bf16.msra.mxu0 0
      %2216 = vmatprep.mubr.bf16.mxu0 0
      %2217 = vmatmul.mubr.bf16.gmra.mxu0 %v2182
      %v2218 = vpop.f32.mrf.mxu0
      %v2219 = vadd.f32 %v2134, %v2218
      %v2220 = vpop.f32.mrf.mxu0
      %v2221 = vadd.f32 %v2138, %v2220
      %v2222 = vpop.f32.mrf.mxu0
      %v2223 = vadd.f32 %v2134, %v2222
      %v2224 = vpop.f32.mrf.mxu0
      %v2225 = vadd.f32 %v2138, %v2224
      %2226 = vdwg.mxu0
      %v2227 = vmax.f32 %v2219, 0.0
      %v2228 = vmax.f32 %v2221, 0.0
      %v2229 = vmax.f32 %v2223, 0.0
      %v2230 = vmax.f32 %v2225, 0.0
      %v2231 = vpack.c.bf16 %v2229, %v2227
      %v2232 = vpack.c.bf16 %v2230, %v2228
      %v2233 = vld [vmem:[%s6] sm:$0xf]
      %v2234 = vld [vmem:[%s6 + $0x4] sm:$0xf]
      %v2235 = vld [vmem:[%s6 + $0x8] sm:$0xf]
      %v2236 = vld [vmem:[%s6 + $0xc] sm:$0xf]
      %v2237 = vld [vmem:[%s6 + $0x10] sm:$0xf]
      %v2238 = vld [vmem:[%s6 + $0x14] sm:$0xf]
      %v2239 = vld [vmem:[%s6 + $0x18] sm:$0xf]
      %v2240 = vld [vmem:[%s6 + $0x1c] sm:$0xf]
      %v2241 = vld [vmem:[%s6 + $0x20] sm:$0xf]
      %v2242 = vld [vmem:[%s6 + $0x24] sm:$0xf]
      %v2243 = vld [vmem:[%s6 + $0x28] sm:$0xf]
      %v2244 = vld [vmem:[%s6 + $0x2c] sm:$0xf]
      %v2245 = vld [vmem:[%s6 + $0x30] sm:$0xf]
      %v2246 = vld [vmem:[%s6 + $0x34] sm:$0xf]
      %v2247 = vld [vmem:[%s6 + $0x38] sm:$0xf]
      %v2248 = vld [vmem:[%s6 + $0x3c] sm:$0xf]
      %v2249 = vld [vmem:[%s6 + $0x40] sm:$0xf]
      %v2250 = vld [vmem:[%s6 + $0x44] sm:$0xf]
      %v2251 = vld [vmem:[%s6 + $0x48] sm:$0xf]
      %v2252 = vld [vmem:[%s6 + $0x4c] sm:$0xf]
      %v2253 = vld [vmem:[%s6 + $0x50] sm:$0xf]
      %v2254 = vld [vmem:[%s6 + $0x54] sm:$0xf]
      %v2255 = vld [vmem:[%s6 + $0x58] sm:$0xf]
      %v2256 = vld [vmem:[%s6 + $0x5c] sm:$0xf]
      %v2257 = vld [vmem:[%s6 + $0x60] sm:$0xf]
      %v2258 = vld [vmem:[%s6 + $0x64] sm:$0xf]
      %v2259 = vld [vmem:[%s6 + $0x68] sm:$0xf]
      %v2260 = vld [vmem:[%s6 + $0x6c] sm:$0xf]
      %v2261 = vld [vmem:[%s6 + $0x70] sm:$0xf]
      %v2262 = vld [vmem:[%s6 + $0x74] sm:$0xf]
      %v2263 = vld [vmem:[%s6 + $0x78] sm:$0xf]
      %v2264 = vld [vmem:[%s6 + $0x7c] sm:$0xf]
      %v2265 = vld [vmem:[%s7 + $0x5] sm:$0x1]
      %v2266 = vlaneseq
      %v2267 = vshrl.u32 %v2266, 7
      %v2268 = vsub.s32 0, %v2267
      %v2269 = vrot.slane %v2265, %v2268
      %v2302 = vunpack.c.l.b16 %v2233
      %v2303 = vunpack.c.l.b16 %v2234
      %v2304 = vunpack.c.l.b16 %v2235
      %v2305 = vunpack.c.l.b16 %v2236
      %v2306 = vunpack.c.l.b16 %v2237
      %v2307 = vunpack.c.l.b16 %v2238
      %v2308 = vunpack.c.l.b16 %v2239
      %v2309 = vunpack.c.l.b16 %v2240
      %v2310 = vunpack.c.l.b16 %v2241
      %v2311 = vunpack.c.l.b16 %v2242
      %v2312 = vunpack.c.l.b16 %v2243
      %v2313 = vunpack.c.l.b16 %v2244
      %v2314 = vunpack.c.l.b16 %v2245
      %v2315 = vunpack.c.l.b16 %v2246
      %v2316 = vunpack.c.l.b16 %v2247
      %v2317 = vunpack.c.l.b16 %v2248
      %v2318 = vunpack.c.l.b16 %v2249
      %v2319 = vunpack.c.l.b16 %v2250
      %v2320 = vunpack.c.l.b16 %v2251
      %v2321 = vunpack.c.l.b16 %v2252
      %v2322 = vunpack.c.l.b16 %v2253
      %v2323 = vunpack.c.l.b16 %v2254
      %v2324 = vunpack.c.l.b16 %v2255
      %v2325 = vunpack.c.l.b16 %v2256
      %v2326 = vunpack.c.l.b16 %v2257
      %v2327 = vunpack.c.l.b16 %v2258
      %v2328 = vunpack.c.l.b16 %v2259
      %v2329 = vunpack.c.l.b16 %v2260
      %v2330 = vunpack.c.l.b16 %v2261
      %v2331 = vunpack.c.l.b16 %v2262
      %v2332 = vunpack.c.l.b16 %v2263
      %v2333 = vunpack.c.l.b16 %v2264
      %v2334 = vpack.c.b16 %v2303, %v2302
      %v2335 = vpack.c.b16 %v2305, %v2304
      %v2336 = vpack.c.b16 %v2307, %v2306
      %v2337 = vpack.c.b16 %v2309, %v2308
      %v2338 = vpack.c.b16 %v2311, %v2310
      %v2339 = vpack.c.b16 %v2313, %v2312
      %v2340 = vpack.c.b16 %v2315, %v2314
      %v2341 = vpack.c.b16 %v2317, %v2316
      %v2342 = vpack.c.b16 %v2319, %v2318
      %v2343 = vpack.c.b16 %v2321, %v2320
      %v2344 = vpack.c.b16 %v2323, %v2322
      %v2345 = vpack.c.b16 %v2325, %v2324
      %v2346 = vpack.c.b16 %v2327, %v2326
      %v2347 = vpack.c.b16 %v2329, %v2328
      %v2348 = vpack.c.b16 %v2331, %v2330
      %v2349 = vpack.c.b16 %v2333, %v2332
      %2366 = vmatprep.subr.bf16.mxu0 0
      %2367 = vmatpush1.bf16.msra.mxu0 %v2341
      %2368 = vmatprep.subr.bf16.mxu0 0
      %2369 = vmatpush1.bf16.msra.mxu0 %v2340
      %2370 = vmatprep.subr.bf16.mxu0 0
      %2371 = vmatpush1.bf16.msra.mxu0 %v2339
      %2372 = vmatprep.subr.bf16.mxu0 0
      %2373 = vmatpush1.bf16.msra.mxu0 %v2338
      %2374 = vmatprep.subr.bf16.mxu0 0
      %2375 = vmatpush1.bf16.msra.mxu0 %v2337
      %2376 = vmatprep.subr.bf16.mxu0 0
      %2377 = vmatpush1.bf16.msra.mxu0 %v2336
      %2378 = vmatprep.subr.bf16.mxu0 0
      %2379 = vmatpush1.bf16.msra.mxu0 %v2335
      %2380 = vmatprep.subr.bf16.mxu0 0
      %2381 = vmatpush1.bf16.msra.mxu0 %v2334
      %2382 = vmatprep.subr.bf16.mxu0 0
      %2383 = vmatpush2.bf16.msra.mxu0 %v2349
      %2384 = vmatprep.subr.bf16.mxu0 0
      %2385 = vmatpush2.bf16.msra.mxu0 %v2348
      %2386 = vmatprep.subr.bf16.mxu0 0
      %2387 = vmatpush2.bf16.msra.mxu0 %v2347
      %2388 = vmatprep.subr.bf16.mxu0 0
      %2389 = vmatpush2.bf16.msra.mxu0 %v2346
      %2390 = vmatprep.subr.bf16.mxu0 0
      %2391 = vmatpush2.bf16.msra.mxu0 %v2345
      %2392 = vmatprep.subr.bf16.mxu0 0
      %2393 = vmatpush2.bf16.msra.mxu0 %v2344
      %2394 = vmatprep.subr.bf16.mxu0 0
      %2395 = vmatpush2.bf16.msra.mxu0 %v2343
      %2396 = vmatprep.subr.bf16.mxu0 0
      %2397 = vmatpush2.bf16.msra.mxu0 %v2342
      %2398 = vmatprep.mubr.bf16.mxu0 %v2232
      %2399 = vmatmul.mubr.bf16.gmra.mxu0 %v2231
      %v2400 = vpop.f32.mrf.mxu0
      %v2401 = vadd.f32 %v2269, %v2400
      %v2402 = vpop.f32.mrf.mxu0
      %v2403 = vpop.f32.mrf.mxu0
      %v2404 = vadd.f32 %v2269, %v2403
      %v2405 = vpop.f32.mrf.mxu0
      %2406 = vdwg.mxu0
      %v2407 = vadd.f32 %v2401, %v2118
      %v2408 = vadd.f32 %v2404, %v2119
      %v2409 = vld [vmem:[%s7 + $0x6] sm:$0x1]
      %v2410 = vld [vmem:[%s7 + $0x7] sm:$0x1]
      %v2411 = vsel %vm596, %v2407, 0.0
      %2412 = vadd.xlane.f32.xlu0 %v2411
      %v2413 = vpop.xlane.xlu0 %2412
      %v2414 = vsel %vm596, %v2408, 0.0
      %2415 = vadd.xlane.f32.xlu0 %v2414
      %v2416 = vpop.xlane.xlu0 %2415
      %v2417 = vmul.f32 %v2413, %v603
      %v2418 = vmul.f32 %v2416, %v603
      %v2419 = vsub.f32 %v2407, %v2417
      %v2420 = vsub.f32 %v2408, %v2418
      %v2421 = vmul.f32 %v2419, %v2419
      %v2422 = vmul.f32 %v2420, %v2420
      %v2423 = vsel %vm596, %v2421, 0.0
      %2424 = vadd.xlane.f32.xlu0 %v2423
      %v2425 = vpop.xlane.xlu0 %2424
      %v2426 = vsel %vm596, %v2422, 0.0
      %2427 = vadd.xlane.f32.xlu0 %v2426
      %v2428 = vpop.xlane.xlu0 %2427
      %v2429 = vmul.f32 %v2425, %v603
      %v2430 = vmul.f32 %v2428, %v603
      %v2431 = vadd.f32 %v2429, 1e-06
      %v2432 = vadd.f32 %v2430, 1e-06
      %v2433 = vrsqrt.pop %v2431
      %v2434 = vrsqrt.pop %v2432
      %v2435 = vmul.f32 %v2419, %v2433
      %v2436 = vmul.f32 %v2420, %v2434
      %v2437 = vlaneseq
      %v2438 = vshrl.u32 %v2437, 7
      %v2439 = vsub.s32 0, %v2438
      %v2440 = vrot.slane %v2409, %v2439
      %v2441 = vmul.f32 %v2435, %v2440
      %v2442 = vmul.f32 %v2436, %v2440
      %v2443 = vlaneseq
      %v2444 = vshrl.u32 %v2443, 7
      %v2445 = vsub.s32 0, %v2444
      %v2446 = vrot.slane %v2410, %v2445
      %v2447 = vadd.f32 %v2441, %v2446
      %v2448 = vadd.f32 %v2442, %v2446
      %v2449 = vpack.c.bf16 %v2448, %v2447
      %s2450 = scalar_lea.vmem %s3, 256
      %v2451 = vld [vmem:[%s2450] sm:$0xf]
      %v2452 = vld [vmem:[%s2450 + $0x4] sm:$0xf]
      %v2453 = vld [vmem:[%s2450 + $0x8] sm:$0xf]
      %v2454 = vld [vmem:[%s2450 + $0xc] sm:$0xf]
      %v2455 = vld [vmem:[%s2450 + $0x10] sm:$0xf]
      %v2456 = vld [vmem:[%s2450 + $0x14] sm:$0xf]
      %v2457 = vld [vmem:[%s2450 + $0x18] sm:$0xf]
      %v2458 = vld [vmem:[%s2450 + $0x1c] sm:$0xf]
      %v2467 = vunpack.c.l.b16 %v2451
      %v2468 = vunpack.c.l.b16 %v2452
      %v2469 = vunpack.c.l.b16 %v2453
      %v2470 = vunpack.c.l.b16 %v2454
      %v2471 = vunpack.c.l.b16 %v2455
      %v2472 = vunpack.c.l.b16 %v2456
      %v2473 = vunpack.c.l.b16 %v2457
      %v2474 = vunpack.c.l.b16 %v2458
      %v2475 = vpack.c.b16 %v2468, %v2467
      %v2476 = vpack.c.b16 %v2470, %v2469
      %v2477 = vpack.c.b16 %v2472, %v2471
      %v2478 = vpack.c.b16 %v2474, %v2473
      %v2484 = vsel %vm596, %v2449, 0
      %2486 = vmatprep.subr.bf16.mxu0 0
      %2487 = vmatpush1.bf16.msra.mxu0 0
      %2488 = vmatprep.subr.bf16.mxu0 0
      %2489 = vmatpush1.bf16.msra.mxu0 0
      %2490 = vmatprep.subr.bf16.mxu0 0
      %2491 = vmatpush1.bf16.msra.mxu0 0
      %2492 = vmatprep.subr.bf16.mxu0 0
      %2493 = vmatpush1.bf16.msra.mxu0 0
      %2494 = vmatprep.subr.bf16.mxu0 0
      %2495 = vmatpush1.bf16.msra.mxu0 %v2478
      %2496 = vmatprep.subr.bf16.mxu0 0
      %2497 = vmatpush1.bf16.msra.mxu0 %v2477
      %2498 = vmatprep.subr.bf16.mxu0 0
      %2499 = vmatpush1.bf16.msra.mxu0 %v2476
      %2500 = vmatprep.subr.bf16.mxu0 0
      %2501 = vmatpush1.bf16.msra.mxu0 %v2475
      %2502 = vmatprep.subr.bf16.mxu0 0
      %2503 = vmatpush2.bf16.msra.mxu0 0
      %2504 = vmatprep.subr.bf16.mxu0 0
      %2505 = vmatpush2.bf16.msra.mxu0 0
      %2506 = vmatprep.subr.bf16.mxu0 0
      %2507 = vmatpush2.bf16.msra.mxu0 0
      %2508 = vmatprep.subr.bf16.mxu0 0
      %2509 = vmatpush2.bf16.msra.mxu0 0
      %2510 = vmatprep.subr.bf16.mxu0 0
      %2511 = vmatpush2.bf16.msra.mxu0 0
      %2512 = vmatprep.subr.bf16.mxu0 0
      %2513 = vmatpush2.bf16.msra.mxu0 0
      %2514 = vmatprep.subr.bf16.mxu0 0
      %2515 = vmatpush2.bf16.msra.mxu0 0
      %2516 = vmatprep.subr.bf16.mxu0 0
      %2517 = vmatpush2.bf16.msra.mxu0 0
      %2518 = vmatprep.mubr.bf16.mxu0 0
      %2519 = vmatmul.mubr.bf16.gmra.mxu0 %v2484
      %v2520 = vpop.f32.mrf.mxu0
      %v2521 = vadd.f32 0.0, %v2520
      %v2522 = vpop.f32.mrf.mxu0
      %v2523 = vpop.f32.mrf.mxu0
      %v2524 = vadd.f32 0.0, %v2523
      %v2525 = vpop.f32.mrf.mxu0
      %2526 = vdwg.mxu0
      %v2527 = vpack.c.bf16 %v2524, %v2521
      %s2528 = scalar_lea.vmem %s3, 288
      %v2529 = vld [vmem:[%s2528] sm:$0xf]
      %v2530 = vld [vmem:[%s2528 + $0x4] sm:$0xf]
      %v2531 = vld [vmem:[%s2528 + $0x8] sm:$0xf]
      %v2532 = vld [vmem:[%s2528 + $0xc] sm:$0xf]
      %v2533 = vld [vmem:[%s2528 + $0x10] sm:$0xf]
      %v2534 = vld [vmem:[%s2528 + $0x14] sm:$0xf]
      %v2535 = vld [vmem:[%s2528 + $0x18] sm:$0xf]
      %v2536 = vld [vmem:[%s2528 + $0x1c] sm:$0xf]
      %v2545 = vunpack.c.l.b16 %v2529
      %v2546 = vunpack.c.l.b16 %v2530
      %v2547 = vunpack.c.l.b16 %v2531
      %v2548 = vunpack.c.l.b16 %v2532
      %v2549 = vunpack.c.l.b16 %v2533
      %v2550 = vunpack.c.l.b16 %v2534
      %v2551 = vunpack.c.l.b16 %v2535
      %v2552 = vunpack.c.l.b16 %v2536
      %v2553 = vpack.c.b16 %v2546, %v2545
      %v2554 = vpack.c.b16 %v2548, %v2547
      %v2555 = vpack.c.b16 %v2550, %v2549
      %v2556 = vpack.c.b16 %v2552, %v2551
      %2561 = vmatprep.subr.bf16.mxu0 0
      %2562 = vmatpush1.bf16.msra.mxu0 0
      %2563 = vmatprep.subr.bf16.mxu0 0
      %2564 = vmatpush1.bf16.msra.mxu0 0
      %2565 = vmatprep.subr.bf16.mxu0 0
      %2566 = vmatpush1.bf16.msra.mxu0 0
      %2567 = vmatprep.subr.bf16.mxu0 0
      %2568 = vmatpush1.bf16.msra.mxu0 0
      %2569 = vmatprep.subr.bf16.mxu0 0
      %2570 = vmatpush1.bf16.msra.mxu0 %v2556
      %2571 = vmatprep.subr.bf16.mxu0 0
      %2572 = vmatpush1.bf16.msra.mxu0 %v2555
      %2573 = vmatprep.subr.bf16.mxu0 0
      %2574 = vmatpush1.bf16.msra.mxu0 %v2554
      %2575 = vmatprep.subr.bf16.mxu0 0
      %2576 = vmatpush1.bf16.msra.mxu0 %v2553
      %2577 = vmatprep.subr.bf16.mxu0 0
      %2578 = vmatpush2.bf16.msra.mxu0 0
      %2579 = vmatprep.subr.bf16.mxu0 0
      %2580 = vmatpush2.bf16.msra.mxu0 0
      %2581 = vmatprep.subr.bf16.mxu0 0
      %2582 = vmatpush2.bf16.msra.mxu0 0
      %2583 = vmatprep.subr.bf16.mxu0 0
      %2584 = vmatpush2.bf16.msra.mxu0 0
      %2585 = vmatprep.subr.bf16.mxu0 0
      %2586 = vmatpush2.bf16.msra.mxu0 0
      %2587 = vmatprep.subr.bf16.mxu0 0
      %2588 = vmatpush2.bf16.msra.mxu0 0
      %2589 = vmatprep.subr.bf16.mxu0 0
      %2590 = vmatpush2.bf16.msra.mxu0 0
      %2591 = vmatprep.subr.bf16.mxu0 0
      %2592 = vmatpush2.bf16.msra.mxu0 0
      %2593 = vmatprep.mubr.bf16.mxu0 0
      %2594 = vmatmul.mubr.bf16.gmra.mxu0 %v2484
      %v2595 = vpop.f32.mrf.mxu0
      %v2596 = vadd.f32 0.0, %v2595
      %v2597 = vpop.f32.mrf.mxu0
      %v2598 = vpop.f32.mrf.mxu0
      %v2599 = vadd.f32 0.0, %v2598
      %v2600 = vpop.f32.mrf.mxu0
      %2601 = vdwg.mxu0
      %v2602 = vpack.c.bf16 %v2599, %v2596
      %s2603 = scalar_lea.vmem %s3, 320
      %v2604 = vld [vmem:[%s2603] sm:$0xf]
      %v2605 = vld [vmem:[%s2603 + $0x4] sm:$0xf]
      %v2606 = vld [vmem:[%s2603 + $0x8] sm:$0xf]
      %v2607 = vld [vmem:[%s2603 + $0xc] sm:$0xf]
      %v2608 = vld [vmem:[%s2603 + $0x10] sm:$0xf]
      %v2609 = vld [vmem:[%s2603 + $0x14] sm:$0xf]
      %v2610 = vld [vmem:[%s2603 + $0x18] sm:$0xf]
      %v2611 = vld [vmem:[%s2603 + $0x1c] sm:$0xf]
      %v2620 = vunpack.c.l.b16 %v2604
      %v2621 = vunpack.c.l.b16 %v2605
      %v2622 = vunpack.c.l.b16 %v2606
      %v2623 = vunpack.c.l.b16 %v2607
      %v2624 = vunpack.c.l.b16 %v2608
      %v2625 = vunpack.c.l.b16 %v2609
      %v2626 = vunpack.c.l.b16 %v2610
      %v2627 = vunpack.c.l.b16 %v2611
      %v2628 = vpack.c.b16 %v2621, %v2620
      %v2629 = vpack.c.b16 %v2623, %v2622
      %v2630 = vpack.c.b16 %v2625, %v2624
      %v2631 = vpack.c.b16 %v2627, %v2626
      %2636 = vmatprep.subr.bf16.mxu0 0
      %2637 = vmatpush1.bf16.msra.mxu0 0
      %2638 = vmatprep.subr.bf16.mxu0 0
      %2639 = vmatpush1.bf16.msra.mxu0 0
      %2640 = vmatprep.subr.bf16.mxu0 0
      %2641 = vmatpush1.bf16.msra.mxu0 0
      %2642 = vmatprep.subr.bf16.mxu0 0
      %2643 = vmatpush1.bf16.msra.mxu0 0
      %2644 = vmatprep.subr.bf16.mxu0 0
      %2645 = vmatpush1.bf16.msra.mxu0 %v2631
      %2646 = vmatprep.subr.bf16.mxu0 0
      %2647 = vmatpush1.bf16.msra.mxu0 %v2630
      %2648 = vmatprep.subr.bf16.mxu0 0
      %2649 = vmatpush1.bf16.msra.mxu0 %v2629
      %2650 = vmatprep.subr.bf16.mxu0 0
      %2651 = vmatpush1.bf16.msra.mxu0 %v2628
      %2652 = vmatprep.subr.bf16.mxu0 0
      %2653 = vmatpush2.bf16.msra.mxu0 0
      %2654 = vmatprep.subr.bf16.mxu0 0
      %2655 = vmatpush2.bf16.msra.mxu0 0
      %2656 = vmatprep.subr.bf16.mxu0 0
      %2657 = vmatpush2.bf16.msra.mxu0 0
      %2658 = vmatprep.subr.bf16.mxu0 0
      %2659 = vmatpush2.bf16.msra.mxu0 0
      %2660 = vmatprep.subr.bf16.mxu0 0
      %2661 = vmatpush2.bf16.msra.mxu0 0
      %2662 = vmatprep.subr.bf16.mxu0 0
      %2663 = vmatpush2.bf16.msra.mxu0 0
      %2664 = vmatprep.subr.bf16.mxu0 0
      %2665 = vmatpush2.bf16.msra.mxu0 0
      %2666 = vmatprep.subr.bf16.mxu0 0
      %2667 = vmatpush2.bf16.msra.mxu0 0
      %2668 = vmatprep.mubr.bf16.mxu0 0
      %2669 = vmatmul.mubr.bf16.gmra.mxu0 %v2484
      %v2670 = vpop.f32.mrf.mxu0
      %v2671 = vadd.f32 0.0, %v2670
      %v2672 = vpop.f32.mrf.mxu0
      %v2673 = vpop.f32.mrf.mxu0
      %v2674 = vadd.f32 0.0, %v2673
      %v2675 = vpop.f32.mrf.mxu0
      %2676 = vdwg.mxu0
      %v2677 = vpack.c.bf16 %v2674, %v2671
      %s2678 = scalar_lea.vmem %s3, 352
      %v2679 = vld [vmem:[%s2678] sm:$0xf]
      %v2680 = vld [vmem:[%s2678 + $0x4] sm:$0xf]
      %v2681 = vld [vmem:[%s2678 + $0x8] sm:$0xf]
      %v2682 = vld [vmem:[%s2678 + $0xc] sm:$0xf]
      %v2683 = vld [vmem:[%s2678 + $0x10] sm:$0xf]
      %v2684 = vld [vmem:[%s2678 + $0x14] sm:$0xf]
      %v2685 = vld [vmem:[%s2678 + $0x18] sm:$0xf]
      %v2686 = vld [vmem:[%s2678 + $0x1c] sm:$0xf]
      %v2695 = vunpack.c.l.b16 %v2679
      %v2696 = vunpack.c.l.b16 %v2680
      %v2697 = vunpack.c.l.b16 %v2681
      %v2698 = vunpack.c.l.b16 %v2682
      %v2699 = vunpack.c.l.b16 %v2683
      %v2700 = vunpack.c.l.b16 %v2684
      %v2701 = vunpack.c.l.b16 %v2685
      %v2702 = vunpack.c.l.b16 %v2686
      %v2703 = vpack.c.b16 %v2696, %v2695
      %v2704 = vpack.c.b16 %v2698, %v2697
      %v2705 = vpack.c.b16 %v2700, %v2699
      %v2706 = vpack.c.b16 %v2702, %v2701
      %2711 = vmatprep.subr.bf16.mxu0 0
      %2712 = vmatpush1.bf16.msra.mxu0 0
      %2713 = vmatprep.subr.bf16.mxu0 0
      %2714 = vmatpush1.bf16.msra.mxu0 0
      %2715 = vmatprep.subr.bf16.mxu0 0
      %2716 = vmatpush1.bf16.msra.mxu0 0
      %2717 = vmatprep.subr.bf16.mxu0 0
      %2718 = vmatpush1.bf16.msra.mxu0 0
      %2719 = vmatprep.subr.bf16.mxu0 0
      %2720 = vmatpush1.bf16.msra.mxu0 %v2706
      %2721 = vmatprep.subr.bf16.mxu0 0
      %2722 = vmatpush1.bf16.msra.mxu0 %v2705
      %2723 = vmatprep.subr.bf16.mxu0 0
      %2724 = vmatpush1.bf16.msra.mxu0 %v2704
      %2725 = vmatprep.subr.bf16.mxu0 0
      %2726 = vmatpush1.bf16.msra.mxu0 %v2703
      %2727 = vmatprep.subr.bf16.mxu0 0
      %2728 = vmatpush2.bf16.msra.mxu0 0
      %2729 = vmatprep.subr.bf16.mxu0 0
      %2730 = vmatpush2.bf16.msra.mxu0 0
      %2731 = vmatprep.subr.bf16.mxu0 0
      %2732 = vmatpush2.bf16.msra.mxu0 0
      %2733 = vmatprep.subr.bf16.mxu0 0
      %2734 = vmatpush2.bf16.msra.mxu0 0
      %2735 = vmatprep.subr.bf16.mxu0 0
      %2736 = vmatpush2.bf16.msra.mxu0 0
      %2737 = vmatprep.subr.bf16.mxu0 0
      %2738 = vmatpush2.bf16.msra.mxu0 0
      %2739 = vmatprep.subr.bf16.mxu0 0
      %2740 = vmatpush2.bf16.msra.mxu0 0
      %2741 = vmatprep.subr.bf16.mxu0 0
      %2742 = vmatpush2.bf16.msra.mxu0 0
      %2743 = vmatprep.mubr.bf16.mxu0 0
      %2744 = vmatmul.mubr.bf16.gmra.mxu0 %v2484
      %v2745 = vpop.f32.mrf.mxu0
      %v2746 = vadd.f32 0.0, %v2745
      %v2747 = vpop.f32.mrf.mxu0
      %v2748 = vpop.f32.mrf.mxu0
      %v2749 = vadd.f32 0.0, %v2748
      %v2750 = vpop.f32.mrf.mxu0
      %2751 = vdwg.mxu0
      %v2752 = vpack.c.bf16 %v2749, %v2746
      %s2753 = scalar_lea.vmem %s3, 384
      %v2754 = vld [vmem:[%s2753] sm:$0xf]
      %v2755 = vld [vmem:[%s2753 + $0x4] sm:$0xf]
      %v2756 = vld [vmem:[%s2753 + $0x8] sm:$0xf]
      %v2757 = vld [vmem:[%s2753 + $0xc] sm:$0xf]
      %v2758 = vld [vmem:[%s2753 + $0x10] sm:$0xf]
      %v2759 = vld [vmem:[%s2753 + $0x14] sm:$0xf]
      %v2760 = vld [vmem:[%s2753 + $0x18] sm:$0xf]
      %v2761 = vld [vmem:[%s2753 + $0x1c] sm:$0xf]
      %v2770 = vunpack.c.l.b16 %v2754
      %v2771 = vunpack.c.l.b16 %v2755
      %v2772 = vunpack.c.l.b16 %v2756
      %v2773 = vunpack.c.l.b16 %v2757
      %v2774 = vunpack.c.l.b16 %v2758
      %v2775 = vunpack.c.l.b16 %v2759
      %v2776 = vunpack.c.l.b16 %v2760
      %v2777 = vunpack.c.l.b16 %v2761
      %v2778 = vpack.c.b16 %v2771, %v2770
      %v2779 = vpack.c.b16 %v2773, %v2772
      %v2780 = vpack.c.b16 %v2775, %v2774
      %v2781 = vpack.c.b16 %v2777, %v2776
      %2786 = vmatprep.subr.bf16.mxu0 0
      %2787 = vmatpush1.bf16.msra.mxu0 0
      %2788 = vmatprep.subr.bf16.mxu0 0
      %2789 = vmatpush1.bf16.msra.mxu0 0
      %2790 = vmatprep.subr.bf16.mxu0 0
      %2791 = vmatpush1.bf16.msra.mxu0 0
      %2792 = vmatprep.subr.bf16.mxu0 0
      %2793 = vmatpush1.bf16.msra.mxu0 0
      %2794 = vmatprep.subr.bf16.mxu0 0
      %2795 = vmatpush1.bf16.msra.mxu0 %v2781
      %2796 = vmatprep.subr.bf16.mxu0 0
      %2797 = vmatpush1.bf16.msra.mxu0 %v2780
      %2798 = vmatprep.subr.bf16.mxu0 0
      %2799 = vmatpush1.bf16.msra.mxu0 %v2779
      %2800 = vmatprep.subr.bf16.mxu0 0
      %2801 = vmatpush1.bf16.msra.mxu0 %v2778
      %2802 = vmatprep.subr.bf16.mxu0 0
      %2803 = vmatpush2.bf16.msra.mxu0 0
      %2804 = vmatprep.subr.bf16.mxu0 0
      %2805 = vmatpush2.bf16.msra.mxu0 0
      %2806 = vmatprep.subr.bf16.mxu0 0
      %2807 = vmatpush2.bf16.msra.mxu0 0
      %2808 = vmatprep.subr.bf16.mxu0 0
      %2809 = vmatpush2.bf16.msra.mxu0 0
      %2810 = vmatprep.subr.bf16.mxu0 0
      %2811 = vmatpush2.bf16.msra.mxu0 0
      %2812 = vmatprep.subr.bf16.mxu0 0
      %2813 = vmatpush2.bf16.msra.mxu0 0
      %2814 = vmatprep.subr.bf16.mxu0 0
      %2815 = vmatpush2.bf16.msra.mxu0 0
      %2816 = vmatprep.subr.bf16.mxu0 0
      %2817 = vmatpush2.bf16.msra.mxu0 0
      %2818 = vmatprep.mubr.bf16.mxu0 0
      %2819 = vmatmul.mubr.bf16.gmra.mxu0 %v2484
      %v2820 = vpop.f32.mrf.mxu0
      %v2821 = vadd.f32 0.0, %v2820
      %v2822 = vpop.f32.mrf.mxu0
      %v2823 = vpop.f32.mrf.mxu0
      %v2824 = vadd.f32 0.0, %v2823
      %v2825 = vpop.f32.mrf.mxu0
      %2826 = vdwg.mxu0
      %v2827 = vpack.c.bf16 %v2824, %v2821
      %s2828 = scalar_lea.vmem %s3, 416
      %v2829 = vld [vmem:[%s2828] sm:$0xf]
      %v2830 = vld [vmem:[%s2828 + $0x4] sm:$0xf]
      %v2831 = vld [vmem:[%s2828 + $0x8] sm:$0xf]
      %v2832 = vld [vmem:[%s2828 + $0xc] sm:$0xf]
      %v2833 = vld [vmem:[%s2828 + $0x10] sm:$0xf]
      %v2834 = vld [vmem:[%s2828 + $0x14] sm:$0xf]
      %v2835 = vld [vmem:[%s2828 + $0x18] sm:$0xf]
      %v2836 = vld [vmem:[%s2828 + $0x1c] sm:$0xf]
      %v2845 = vunpack.c.l.b16 %v2829
      %v2846 = vunpack.c.l.b16 %v2830
      %v2847 = vunpack.c.l.b16 %v2831
      %v2848 = vunpack.c.l.b16 %v2832
      %v2849 = vunpack.c.l.b16 %v2833
      %v2850 = vunpack.c.l.b16 %v2834
      %v2851 = vunpack.c.l.b16 %v2835
      %v2852 = vunpack.c.l.b16 %v2836
      %v2853 = vpack.c.b16 %v2846, %v2845
      %v2854 = vpack.c.b16 %v2848, %v2847
      %v2855 = vpack.c.b16 %v2850, %v2849
      %v2856 = vpack.c.b16 %v2852, %v2851
      %2861 = vmatprep.subr.bf16.mxu0 0
      %2862 = vmatpush1.bf16.msra.mxu0 0
      %2863 = vmatprep.subr.bf16.mxu0 0
      %2864 = vmatpush1.bf16.msra.mxu0 0
      %2865 = vmatprep.subr.bf16.mxu0 0
      %2866 = vmatpush1.bf16.msra.mxu0 0
      %2867 = vmatprep.subr.bf16.mxu0 0
      %2868 = vmatpush1.bf16.msra.mxu0 0
      %2869 = vmatprep.subr.bf16.mxu0 0
      %2870 = vmatpush1.bf16.msra.mxu0 %v2856
      %2871 = vmatprep.subr.bf16.mxu0 0
      %2872 = vmatpush1.bf16.msra.mxu0 %v2855
      %2873 = vmatprep.subr.bf16.mxu0 0
      %2874 = vmatpush1.bf16.msra.mxu0 %v2854
      %2875 = vmatprep.subr.bf16.mxu0 0
      %2876 = vmatpush1.bf16.msra.mxu0 %v2853
      %2877 = vmatprep.subr.bf16.mxu0 0
      %2878 = vmatpush2.bf16.msra.mxu0 0
      %2879 = vmatprep.subr.bf16.mxu0 0
      %2880 = vmatpush2.bf16.msra.mxu0 0
      %2881 = vmatprep.subr.bf16.mxu0 0
      %2882 = vmatpush2.bf16.msra.mxu0 0
      %2883 = vmatprep.subr.bf16.mxu0 0
      %2884 = vmatpush2.bf16.msra.mxu0 0
      %2885 = vmatprep.subr.bf16.mxu0 0
      %2886 = vmatpush2.bf16.msra.mxu0 0
      %2887 = vmatprep.subr.bf16.mxu0 0
      %2888 = vmatpush2.bf16.msra.mxu0 0
      %2889 = vmatprep.subr.bf16.mxu0 0
      %2890 = vmatpush2.bf16.msra.mxu0 0
      %2891 = vmatprep.subr.bf16.mxu0 0
      %2892 = vmatpush2.bf16.msra.mxu0 0
      %2893 = vmatprep.mubr.bf16.mxu0 0
      %2894 = vmatmul.mubr.bf16.gmra.mxu0 %v2484
      %v2895 = vpop.f32.mrf.mxu0
      %v2896 = vadd.f32 0.0, %v2895
      %v2897 = vpop.f32.mrf.mxu0
      %v2898 = vpop.f32.mrf.mxu0
      %v2899 = vadd.f32 0.0, %v2898
      %v2900 = vpop.f32.mrf.mxu0
      %2901 = vdwg.mxu0
      %v2902 = vpack.c.bf16 %v2899, %v2896
      %s2903 = scalar_lea.vmem %s3, 448
      %v2904 = vld [vmem:[%s2903] sm:$0xf]
      %v2905 = vld [vmem:[%s2903 + $0x4] sm:$0xf]
      %v2906 = vld [vmem:[%s2903 + $0x8] sm:$0xf]
      %v2907 = vld [vmem:[%s2903 + $0xc] sm:$0xf]
      %v2908 = vld [vmem:[%s2903 + $0x10] sm:$0xf]
      %v2909 = vld [vmem:[%s2903 + $0x14] sm:$0xf]
      %v2910 = vld [vmem:[%s2903 + $0x18] sm:$0xf]
      %v2911 = vld [vmem:[%s2903 + $0x1c] sm:$0xf]
      %v2920 = vunpack.c.l.b16 %v2904
      %v2921 = vunpack.c.l.b16 %v2905
      %v2922 = vunpack.c.l.b16 %v2906
      %v2923 = vunpack.c.l.b16 %v2907
      %v2924 = vunpack.c.l.b16 %v2908
      %v2925 = vunpack.c.l.b16 %v2909
      %v2926 = vunpack.c.l.b16 %v2910
      %v2927 = vunpack.c.l.b16 %v2911
      %v2928 = vpack.c.b16 %v2921, %v2920
      %v2929 = vpack.c.b16 %v2923, %v2922
      %v2930 = vpack.c.b16 %v2925, %v2924
      %v2931 = vpack.c.b16 %v2927, %v2926
      %2936 = vmatprep.subr.bf16.mxu0 0
      %2937 = vmatpush1.bf16.msra.mxu0 0
      %2938 = vmatprep.subr.bf16.mxu0 0
      %2939 = vmatpush1.bf16.msra.mxu0 0
      %2940 = vmatprep.subr.bf16.mxu0 0
      %2941 = vmatpush1.bf16.msra.mxu0 0
      %2942 = vmatprep.subr.bf16.mxu0 0
      %2943 = vmatpush1.bf16.msra.mxu0 0
      %2944 = vmatprep.subr.bf16.mxu0 0
      %2945 = vmatpush1.bf16.msra.mxu0 %v2931
      %2946 = vmatprep.subr.bf16.mxu0 0
      %2947 = vmatpush1.bf16.msra.mxu0 %v2930
      %2948 = vmatprep.subr.bf16.mxu0 0
      %2949 = vmatpush1.bf16.msra.mxu0 %v2929
      %2950 = vmatprep.subr.bf16.mxu0 0
      %2951 = vmatpush1.bf16.msra.mxu0 %v2928
      %2952 = vmatprep.subr.bf16.mxu0 0
      %2953 = vmatpush2.bf16.msra.mxu0 0
      %2954 = vmatprep.subr.bf16.mxu0 0
      %2955 = vmatpush2.bf16.msra.mxu0 0
      %2956 = vmatprep.subr.bf16.mxu0 0
      %2957 = vmatpush2.bf16.msra.mxu0 0
      %2958 = vmatprep.subr.bf16.mxu0 0
      %2959 = vmatpush2.bf16.msra.mxu0 0
      %2960 = vmatprep.subr.bf16.mxu0 0
      %2961 = vmatpush2.bf16.msra.mxu0 0
      %2962 = vmatprep.subr.bf16.mxu0 0
      %2963 = vmatpush2.bf16.msra.mxu0 0
      %2964 = vmatprep.subr.bf16.mxu0 0
      %2965 = vmatpush2.bf16.msra.mxu0 0
      %2966 = vmatprep.subr.bf16.mxu0 0
      %2967 = vmatpush2.bf16.msra.mxu0 0
      %2968 = vmatprep.mubr.bf16.mxu0 0
      %2969 = vmatmul.mubr.bf16.gmra.mxu0 %v2484
      %v2970 = vpop.f32.mrf.mxu0
      %v2971 = vadd.f32 0.0, %v2970
      %v2972 = vpop.f32.mrf.mxu0
      %v2973 = vpop.f32.mrf.mxu0
      %v2974 = vadd.f32 0.0, %v2973
      %v2975 = vpop.f32.mrf.mxu0
      %2976 = vdwg.mxu0
      %v2977 = vpack.c.bf16 %v2974, %v2971
      %s2978 = scalar_lea.vmem %s3, 480
      %v2979 = vld [vmem:[%s2978] sm:$0xf]
      %v2980 = vld [vmem:[%s2978 + $0x4] sm:$0xf]
      %v2981 = vld [vmem:[%s2978 + $0x8] sm:$0xf]
      %v2982 = vld [vmem:[%s2978 + $0xc] sm:$0xf]
      %v2983 = vld [vmem:[%s2978 + $0x10] sm:$0xf]
      %v2984 = vld [vmem:[%s2978 + $0x14] sm:$0xf]
      %v2985 = vld [vmem:[%s2978 + $0x18] sm:$0xf]
      %v2986 = vld [vmem:[%s2978 + $0x1c] sm:$0xf]
      %v2995 = vunpack.c.l.b16 %v2979
      %v2996 = vunpack.c.l.b16 %v2980
      %v2997 = vunpack.c.l.b16 %v2981
      %v2998 = vunpack.c.l.b16 %v2982
      %v2999 = vunpack.c.l.b16 %v2983
      %v3000 = vunpack.c.l.b16 %v2984
      %v3001 = vunpack.c.l.b16 %v2985
      %v3002 = vunpack.c.l.b16 %v2986
      %v3003 = vpack.c.b16 %v2996, %v2995
      %v3004 = vpack.c.b16 %v2998, %v2997
      %v3005 = vpack.c.b16 %v3000, %v2999
      %v3006 = vpack.c.b16 %v3002, %v3001
      %3011 = vmatprep.subr.bf16.mxu0 0
      %3012 = vmatpush1.bf16.msra.mxu0 0
      %3013 = vmatprep.subr.bf16.mxu0 0
      %3014 = vmatpush1.bf16.msra.mxu0 0
      %3015 = vmatprep.subr.bf16.mxu0 0
      %3016 = vmatpush1.bf16.msra.mxu0 0
      %3017 = vmatprep.subr.bf16.mxu0 0
      %3018 = vmatpush1.bf16.msra.mxu0 0
      %3019 = vmatprep.subr.bf16.mxu0 0
      %3020 = vmatpush1.bf16.msra.mxu0 %v3006
      %3021 = vmatprep.subr.bf16.mxu0 0
      %3022 = vmatpush1.bf16.msra.mxu0 %v3005
      %3023 = vmatprep.subr.bf16.mxu0 0
      %3024 = vmatpush1.bf16.msra.mxu0 %v3004
      %3025 = vmatprep.subr.bf16.mxu0 0
      %3026 = vmatpush1.bf16.msra.mxu0 %v3003
      %3027 = vmatprep.subr.bf16.mxu0 0
      %3028 = vmatpush2.bf16.msra.mxu0 0
      %3029 = vmatprep.subr.bf16.mxu0 0
      %3030 = vmatpush2.bf16.msra.mxu0 0
      %3031 = vmatprep.subr.bf16.mxu0 0
      %3032 = vmatpush2.bf16.msra.mxu0 0
      %3033 = vmatprep.subr.bf16.mxu0 0
      %3034 = vmatpush2.bf16.msra.mxu0 0
      %3035 = vmatprep.subr.bf16.mxu0 0
      %3036 = vmatpush2.bf16.msra.mxu0 0
      %3037 = vmatprep.subr.bf16.mxu0 0
      %3038 = vmatpush2.bf16.msra.mxu0 0
      %3039 = vmatprep.subr.bf16.mxu0 0
      %3040 = vmatpush2.bf16.msra.mxu0 0
      %3041 = vmatprep.subr.bf16.mxu0 0
      %3042 = vmatpush2.bf16.msra.mxu0 0
      %3043 = vmatprep.mubr.bf16.mxu0 0
      %3044 = vmatmul.mubr.bf16.gmra.mxu0 %v2484
      %v3045 = vpop.f32.mrf.mxu0
      %v3046 = vadd.f32 0.0, %v3045
      %v3047 = vpop.f32.mrf.mxu0
      %v3048 = vpop.f32.mrf.mxu0
      %v3049 = vadd.f32 0.0, %v3048
      %v3050 = vpop.f32.mrf.mxu0
      %3051 = vdwg.mxu0
      %v3052 = vpack.c.bf16 %v3049, %v3046
      %v3054 = vsel %vm596, %v2527, 0
      %3056 = vmatprep.subr.bf16.mxu0 0
      %3057 = vmatpush1.bf16.xpose.msra.mxu0 0
      %3058 = vmatprep.subr.bf16.mxu0 0
      %3059 = vmatpush1.bf16.xpose.msra.mxu0 0
      %3060 = vmatprep.subr.bf16.mxu0 0
      %3061 = vmatpush1.bf16.xpose.msra.mxu0 0
      %3062 = vmatprep.subr.bf16.mxu0 0
      %3063 = vmatpush1.bf16.xpose.msra.mxu0 0
      %3064 = vmatprep.subr.bf16.mxu0 0
      %3065 = vmatpush1.bf16.xpose.msra.mxu0 0
      %3066 = vmatprep.subr.bf16.mxu0 0
      %3067 = vmatpush1.bf16.xpose.msra.mxu0 0
      %3068 = vmatprep.subr.bf16.mxu0 0
      %3069 = vmatpush1.bf16.xpose.msra.mxu0 0
      %3070 = vmatprep.subr.bf16.mxu0 0
      %3071 = vmatpush1.bf16.xpose.msra.mxu0 %v2484
      %3072 = vmatprep.subr.bf16.mxu0 0
      %3073 = vmatpush2.bf16.xpose.msra.mxu0 0
      %3074 = vmatprep.subr.bf16.mxu0 0
      %3075 = vmatpush2.bf16.xpose.msra.mxu0 0
      %3076 = vmatprep.subr.bf16.mxu0 0
      %3077 = vmatpush2.bf16.xpose.msra.mxu0 0
      %3078 = vmatprep.subr.bf16.mxu0 0
      %3079 = vmatpush2.bf16.xpose.msra.mxu0 0
      %3080 = vmatprep.subr.bf16.mxu0 0
      %3081 = vmatpush2.bf16.xpose.msra.mxu0 0
      %3082 = vmatprep.subr.bf16.mxu0 0
      %3083 = vmatpush2.bf16.xpose.msra.mxu0 0
      %3084 = vmatprep.subr.bf16.mxu0 0
      %3085 = vmatpush2.bf16.xpose.msra.mxu0 0
      %3086 = vmatprep.subr.bf16.mxu0 0
      %3087 = vmatpush2.bf16.xpose.msra.mxu0 0
      %3088 = vmatprep.mubr.bf16.mxu0 0
      %3089 = vmatmul.mubr.bf16.gmra.mxu0 %v3054
      %v3090 = vpop.f32.mrf.mxu0
      %v3091 = vadd.f32 0.0, %v3090
      %v3092 = vpop.f32.mrf.mxu0
      %v3093 = vpop.f32.mrf.mxu0
      %v3094 = vpop.f32.mrf.mxu0
      %3095 = vdwg.mxu0
      %v3096 = vsel %vm1282, %v3091, -inf
      %3097 = vmax.xlane.f32.xlu0 %v3096
      %v3098 = vpop.xlane.xlu0 %3097
      %v3099 = vsub.f32 %v3091, %v3098
      %v3100 = vmul.f32 %v3099, 1.442695
      %v3101 = vpow.pop %v3100
      %v3102 = vsel %vm1282, %v3101, 0.0
      %3103 = vadd.xlane.f32.xlu0 %v3102
      %v3104 = vpop.xlane.xlu0 %3103
      %v3105 = vrcp.pop %v3104
      %v3106 = vmul.f32 %v3101, %v3105
      %v3107 = vpack.c.bf16 %v3106, %v3106
      %v3109 = vsel %vm596, %v2602, 0
      %3111 = vmatprep.subr.bf16.mxu0 0
      %3112 = vmatpush1.bf16.xpose.msra.mxu0 0
      %3113 = vmatprep.subr.bf16.mxu0 0
      %3114 = vmatpush1.bf16.xpose.msra.mxu0 0
      %3115 = vmatprep.subr.bf16.mxu0 0
      %3116 = vmatpush1.bf16.xpose.msra.mxu0 0
      %3117 = vmatprep.subr.bf16.mxu0 0
      %3118 = vmatpush1.bf16.xpose.msra.mxu0 0
      %3119 = vmatprep.subr.bf16.mxu0 0
      %3120 = vmatpush1.bf16.xpose.msra.mxu0 0
      %3121 = vmatprep.subr.bf16.mxu0 0
      %3122 = vmatpush1.bf16.xpose.msra.mxu0 0
      %3123 = vmatprep.subr.bf16.mxu0 0
      %3124 = vmatpush1.bf16.xpose.msra.mxu0 0
      %3125 = vmatprep.subr.bf16.mxu0 0
      %3126 = vmatpush1.bf16.xpose.msra.mxu0 %v2484
      %3127 = vmatprep.subr.bf16.mxu0 0
      %3128 = vmatpush2.bf16.xpose.msra.mxu0 0
      %3129 = vmatprep.subr.bf16.mxu0 0
      %3130 = vmatpush2.bf16.xpose.msra.mxu0 0
      %3131 = vmatprep.subr.bf16.mxu0 0
      %3132 = vmatpush2.bf16.xpose.msra.mxu0 0
      %3133 = vmatprep.subr.bf16.mxu0 0
      %3134 = vmatpush2.bf16.xpose.msra.mxu0 0
      %3135 = vmatprep.subr.bf16.mxu0 0
      %3136 = vmatpush2.bf16.xpose.msra.mxu0 0
      %3137 = vmatprep.subr.bf16.mxu0 0
      %3138 = vmatpush2.bf16.xpose.msra.mxu0 0
      %3139 = vmatprep.subr.bf16.mxu0 0
      %3140 = vmatpush2.bf16.xpose.msra.mxu0 0
      %3141 = vmatprep.subr.bf16.mxu0 0
      %3142 = vmatpush2.bf16.xpose.msra.mxu0 0
      %3143 = vmatprep.mubr.bf16.mxu0 0
      %3144 = vmatmul.mubr.bf16.gmra.mxu0 %v3109
      %v3145 = vpop.f32.mrf.mxu0
      %v3146 = vadd.f32 0.0, %v3145
      %v3147 = vpop.f32.mrf.mxu0
      %v3148 = vpop.f32.mrf.mxu0
      %v3149 = vpop.f32.mrf.mxu0
      %3150 = vdwg.mxu0
      %v3151 = vsel %vm1282, %v3146, -inf
      %3152 = vmax.xlane.f32.xlu0 %v3151
      %v3153 = vpop.xlane.xlu0 %3152
      %v3154 = vsub.f32 %v3146, %v3153
      %v3155 = vmul.f32 %v3154, 1.442695
      %v3156 = vpow.pop %v3155
      %v3157 = vsel %vm1282, %v3156, 0.0
      %3158 = vadd.xlane.f32.xlu0 %v3157
      %v3159 = vpop.xlane.xlu0 %3158
      %v3160 = vrcp.pop %v3159
      %v3161 = vmul.f32 %v3156, %v3160
      %v3162 = vpack.c.bf16 %v3161, %v3161
      %v3164 = vsel %vm1282, %v3162, 0
      %v3167 = vsel %vm1353, %v2902, 0
      %3169 = vmatprep.subr.bf16.mxu0 0
      %3170 = vmatpush1.bf16.msra.mxu0 0
      %3171 = vmatprep.subr.bf16.mxu0 0
      %3172 = vmatpush1.bf16.msra.mxu0 0
      %3173 = vmatprep.subr.bf16.mxu0 0
      %3174 = vmatpush1.bf16.msra.mxu0 0
      %3175 = vmatprep.subr.bf16.mxu0 0
      %3176 = vmatpush1.bf16.msra.mxu0 0
      %3177 = vmatprep.subr.bf16.mxu0 0
      %3178 = vmatpush1.bf16.msra.mxu0 0
      %3179 = vmatprep.subr.bf16.mxu0 0
      %3180 = vmatpush1.bf16.msra.mxu0 0
      %3181 = vmatprep.subr.bf16.mxu0 0
      %3182 = vmatpush1.bf16.msra.mxu0 0
      %3183 = vmatprep.subr.bf16.mxu0 0
      %3184 = vmatpush1.bf16.msra.mxu0 %v3167
      %3185 = vmatprep.subr.bf16.mxu0 0
      %3186 = vmatpush2.bf16.msra.mxu0 0
      %3187 = vmatprep.subr.bf16.mxu0 0
      %3188 = vmatpush2.bf16.msra.mxu0 0
      %3189 = vmatprep.subr.bf16.mxu0 0
      %3190 = vmatpush2.bf16.msra.mxu0 0
      %3191 = vmatprep.subr.bf16.mxu0 0
      %3192 = vmatpush2.bf16.msra.mxu0 0
      %3193 = vmatprep.subr.bf16.mxu0 0
      %3194 = vmatpush2.bf16.msra.mxu0 0
      %3195 = vmatprep.subr.bf16.mxu0 0
      %3196 = vmatpush2.bf16.msra.mxu0 0
      %3197 = vmatprep.subr.bf16.mxu0 0
      %3198 = vmatpush2.bf16.msra.mxu0 0
      %3199 = vmatprep.subr.bf16.mxu0 0
      %3200 = vmatpush2.bf16.msra.mxu0 0
      %3201 = vmatprep.mubr.bf16.mxu0 0
      %3202 = vmatmul.mubr.bf16.gmra.mxu0 %v3164
      %v3203 = vpop.f32.mrf.mxu0
      %v3204 = vadd.f32 0.0, %v3203
      %v3205 = vpop.f32.mrf.mxu0
      %v3206 = vpop.f32.mrf.mxu0
      %v3207 = vpop.f32.mrf.mxu0
      %3208 = vdwg.mxu0
      %v3210 = vsel %vm1282, %v3107, 0
      %v3213 = vsel %vm1353, %v2827, 0
      %3215 = vmatprep.subr.bf16.mxu0 0
      %3216 = vmatpush1.bf16.msra.mxu0 0
      %3217 = vmatprep.subr.bf16.mxu0 0
      %3218 = vmatpush1.bf16.msra.mxu0 0
      %3219 = vmatprep.subr.bf16.mxu0 0
      %3220 = vmatpush1.bf16.msra.mxu0 0
      %3221 = vmatprep.subr.bf16.mxu0 0
      %3222 = vmatpush1.bf16.msra.mxu0 0
      %3223 = vmatprep.subr.bf16.mxu0 0
      %3224 = vmatpush1.bf16.msra.mxu0 0
      %3225 = vmatprep.subr.bf16.mxu0 0
      %3226 = vmatpush1.bf16.msra.mxu0 0
      %3227 = vmatprep.subr.bf16.mxu0 0
      %3228 = vmatpush1.bf16.msra.mxu0 0
      %3229 = vmatprep.subr.bf16.mxu0 0
      %3230 = vmatpush1.bf16.msra.mxu0 %v3213
      %3231 = vmatprep.subr.bf16.mxu0 0
      %3232 = vmatpush2.bf16.msra.mxu0 0
      %3233 = vmatprep.subr.bf16.mxu0 0
      %3234 = vmatpush2.bf16.msra.mxu0 0
      %3235 = vmatprep.subr.bf16.mxu0 0
      %3236 = vmatpush2.bf16.msra.mxu0 0
      %3237 = vmatprep.subr.bf16.mxu0 0
      %3238 = vmatpush2.bf16.msra.mxu0 0
      %3239 = vmatprep.subr.bf16.mxu0 0
      %3240 = vmatpush2.bf16.msra.mxu0 0
      %3241 = vmatprep.subr.bf16.mxu0 0
      %3242 = vmatpush2.bf16.msra.mxu0 0
      %3243 = vmatprep.subr.bf16.mxu0 0
      %3244 = vmatpush2.bf16.msra.mxu0 0
      %3245 = vmatprep.subr.bf16.mxu0 0
      %3246 = vmatpush2.bf16.msra.mxu0 0
      %3247 = vmatprep.mubr.bf16.mxu0 0
      %3248 = vmatmul.mubr.bf16.gmra.mxu0 %v3210
      %v3249 = vpop.f32.mrf.mxu0
      %v3250 = vadd.f32 %v3204, %v3249
      %v3251 = vpop.f32.mrf.mxu0
      %v3252 = vpop.f32.mrf.mxu0
      %v3253 = vpop.f32.mrf.mxu0
      %3254 = vdwg.mxu0
      %v3256 = vsel %vm596, %v2677, 0
      %3258 = vmatprep.subr.bf16.mxu0 0
      %3259 = vmatpush1.bf16.xpose.msra.mxu0 0
      %3260 = vmatprep.subr.bf16.mxu0 0
      %3261 = vmatpush1.bf16.xpose.msra.mxu0 0
      %3262 = vmatprep.subr.bf16.mxu0 0
      %3263 = vmatpush1.bf16.xpose.msra.mxu0 0
      %3264 = vmatprep.subr.bf16.mxu0 0
      %3265 = vmatpush1.bf16.xpose.msra.mxu0 0
      %3266 = vmatprep.subr.bf16.mxu0 0
      %3267 = vmatpush1.bf16.xpose.msra.mxu0 0
      %3268 = vmatprep.subr.bf16.mxu0 0
      %3269 = vmatpush1.bf16.xpose.msra.mxu0 0
      %3270 = vmatprep.subr.bf16.mxu0 0
      %3271 = vmatpush1.bf16.xpose.msra.mxu0 0
      %3272 = vmatprep.subr.bf16.mxu0 0
      %3273 = vmatpush1.bf16.xpose.msra.mxu0 %v2484
      %3274 = vmatprep.subr.bf16.mxu0 0
      %3275 = vmatpush2.bf16.xpose.msra.mxu0 0
      %3276 = vmatprep.subr.bf16.mxu0 0
      %3277 = vmatpush2.bf16.xpose.msra.mxu0 0
      %3278 = vmatprep.subr.bf16.mxu0 0
      %3279 = vmatpush2.bf16.xpose.msra.mxu0 0
      %3280 = vmatprep.subr.bf16.mxu0 0
      %3281 = vmatpush2.bf16.xpose.msra.mxu0 0
      %3282 = vmatprep.subr.bf16.mxu0 0
      %3283 = vmatpush2.bf16.xpose.msra.mxu0 0
      %3284 = vmatprep.subr.bf16.mxu0 0
      %3285 = vmatpush2.bf16.xpose.msra.mxu0 0
      %3286 = vmatprep.subr.bf16.mxu0 0
      %3287 = vmatpush2.bf16.xpose.msra.mxu0 0
      %3288 = vmatprep.subr.bf16.mxu0 0
      %3289 = vmatpush2.bf16.xpose.msra.mxu0 0
      %3290 = vmatprep.mubr.bf16.mxu0 0
      %3291 = vmatmul.mubr.bf16.gmra.mxu0 %v3256
      %v3292 = vpop.f32.mrf.mxu0
      %v3293 = vadd.f32 0.0, %v3292
      %v3294 = vpop.f32.mrf.mxu0
      %v3295 = vpop.f32.mrf.mxu0
      %v3296 = vpop.f32.mrf.mxu0
      %3297 = vdwg.mxu0
      %v3298 = vsel %vm1282, %v3293, -inf
      %3299 = vmax.xlane.f32.xlu0 %v3298
      %v3300 = vpop.xlane.xlu0 %3299
      %v3301 = vsub.f32 %v3293, %v3300
      %v3302 = vmul.f32 %v3301, 1.442695
      %v3303 = vpow.pop %v3302
      %v3304 = vsel %vm1282, %v3303, 0.0
      %3305 = vadd.xlane.f32.xlu0 %v3304
      %v3306 = vpop.xlane.xlu0 %3305
      %v3307 = vrcp.pop %v3306
      %v3308 = vmul.f32 %v3303, %v3307
      %v3309 = vpack.c.bf16 %v3308, %v3308
      %v3311 = vsel %vm1282, %v3309, 0
      %v3314 = vsel %vm1353, %v2977, 0
      %3316 = vmatprep.subr.bf16.mxu0 0
      %3317 = vmatpush1.bf16.msra.mxu0 0
      %3318 = vmatprep.subr.bf16.mxu0 0
      %3319 = vmatpush1.bf16.msra.mxu0 0
      %3320 = vmatprep.subr.bf16.mxu0 0
      %3321 = vmatpush1.bf16.msra.mxu0 0
      %3322 = vmatprep.subr.bf16.mxu0 0
      %3323 = vmatpush1.bf16.msra.mxu0 0
      %3324 = vmatprep.subr.bf16.mxu0 0
      %3325 = vmatpush1.bf16.msra.mxu0 0
      %3326 = vmatprep.subr.bf16.mxu0 0
      %3327 = vmatpush1.bf16.msra.mxu0 0
      %3328 = vmatprep.subr.bf16.mxu0 0
      %3329 = vmatpush1.bf16.msra.mxu0 0
      %3330 = vmatprep.subr.bf16.mxu0 0
      %3331 = vmatpush1.bf16.msra.mxu0 %v3314
      %3332 = vmatprep.subr.bf16.mxu0 0
      %3333 = vmatpush2.bf16.msra.mxu0 0
      %3334 = vmatprep.subr.bf16.mxu0 0
      %3335 = vmatpush2.bf16.msra.mxu0 0
      %3336 = vmatprep.subr.bf16.mxu0 0
      %3337 = vmatpush2.bf16.msra.mxu0 0
      %3338 = vmatprep.subr.bf16.mxu0 0
      %3339 = vmatpush2.bf16.msra.mxu0 0
      %3340 = vmatprep.subr.bf16.mxu0 0
      %3341 = vmatpush2.bf16.msra.mxu0 0
      %3342 = vmatprep.subr.bf16.mxu0 0
      %3343 = vmatpush2.bf16.msra.mxu0 0
      %3344 = vmatprep.subr.bf16.mxu0 0
      %3345 = vmatpush2.bf16.msra.mxu0 0
      %3346 = vmatprep.subr.bf16.mxu0 0
      %3347 = vmatpush2.bf16.msra.mxu0 0
      %3348 = vmatprep.mubr.bf16.mxu0 0
      %3349 = vmatmul.mubr.bf16.gmra.mxu0 %v3311
      %v3350 = vpop.f32.mrf.mxu0
      %v3351 = vadd.f32 0.0, %v3350
      %v3352 = vpop.f32.mrf.mxu0
      %v3353 = vpop.f32.mrf.mxu0
      %v3354 = vpop.f32.mrf.mxu0
      %3355 = vdwg.mxu0
      %v3356 = vadd.f32 %v3250, %v3351
      %v3358 = vsel %vm596, %v2752, 0
      %3360 = vmatprep.subr.bf16.mxu0 0
      %3361 = vmatpush1.bf16.xpose.msra.mxu0 0
      %3362 = vmatprep.subr.bf16.mxu0 0
      %3363 = vmatpush1.bf16.xpose.msra.mxu0 0
      %3364 = vmatprep.subr.bf16.mxu0 0
      %3365 = vmatpush1.bf16.xpose.msra.mxu0 0
      %3366 = vmatprep.subr.bf16.mxu0 0
      %3367 = vmatpush1.bf16.xpose.msra.mxu0 0
      %3368 = vmatprep.subr.bf16.mxu0 0
      %3369 = vmatpush1.bf16.xpose.msra.mxu0 0
      %3370 = vmatprep.subr.bf16.mxu0 0
      %3371 = vmatpush1.bf16.xpose.msra.mxu0 0
      %3372 = vmatprep.subr.bf16.mxu0 0
      %3373 = vmatpush1.bf16.xpose.msra.mxu0 0
      %3374 = vmatprep.subr.bf16.mxu0 0
      %3375 = vmatpush1.bf16.xpose.msra.mxu0 %v2484
      %3376 = vmatprep.subr.bf16.mxu0 0
      %3377 = vmatpush2.bf16.xpose.msra.mxu0 0
      %3378 = vmatprep.subr.bf16.mxu0 0
      %3379 = vmatpush2.bf16.xpose.msra.mxu0 0
      %3380 = vmatprep.subr.bf16.mxu0 0
      %3381 = vmatpush2.bf16.xpose.msra.mxu0 0
      %3382 = vmatprep.subr.bf16.mxu0 0
      %3383 = vmatpush2.bf16.xpose.msra.mxu0 0
      %3384 = vmatprep.subr.bf16.mxu0 0
      %3385 = vmatpush2.bf16.xpose.msra.mxu0 0
      %3386 = vmatprep.subr.bf16.mxu0 0
      %3387 = vmatpush2.bf16.xpose.msra.mxu0 0
      %3388 = vmatprep.subr.bf16.mxu0 0
      %3389 = vmatpush2.bf16.xpose.msra.mxu0 0
      %3390 = vmatprep.subr.bf16.mxu0 0
      %3391 = vmatpush2.bf16.xpose.msra.mxu0 0
      %3392 = vmatprep.mubr.bf16.mxu0 0
      %3393 = vmatmul.mubr.bf16.gmra.mxu0 %v3358
      %v3394 = vpop.f32.mrf.mxu0
      %v3395 = vadd.f32 0.0, %v3394
      %v3396 = vpop.f32.mrf.mxu0
      %v3397 = vpop.f32.mrf.mxu0
      %v3398 = vpop.f32.mrf.mxu0
      %3399 = vdwg.mxu0
      %v3400 = vsel %vm1282, %v3395, -inf
      %3401 = vmax.xlane.f32.xlu0 %v3400
      %v3402 = vpop.xlane.xlu0 %3401
      %v3403 = vsub.f32 %v3395, %v3402
      %v3404 = vmul.f32 %v3403, 1.442695
      %v3405 = vpow.pop %v3404
      %v3406 = vsel %vm1282, %v3405, 0.0
      %3407 = vadd.xlane.f32.xlu0 %v3406
      %v3408 = vpop.xlane.xlu0 %3407
      %v3409 = vrcp.pop %v3408
      %v3410 = vmul.f32 %v3405, %v3409
      %v3411 = vpack.c.bf16 %v3410, %v3410
      %v3413 = vsel %vm1282, %v3411, 0
      %v3416 = vsel %vm1353, %v3052, 0
      %3418 = vmatprep.subr.bf16.mxu0 0
      %3419 = vmatpush1.bf16.msra.mxu0 0
      %3420 = vmatprep.subr.bf16.mxu0 0
      %3421 = vmatpush1.bf16.msra.mxu0 0
      %3422 = vmatprep.subr.bf16.mxu0 0
      %3423 = vmatpush1.bf16.msra.mxu0 0
      %3424 = vmatprep.subr.bf16.mxu0 0
      %3425 = vmatpush1.bf16.msra.mxu0 0
      %3426 = vmatprep.subr.bf16.mxu0 0
      %3427 = vmatpush1.bf16.msra.mxu0 0
      %3428 = vmatprep.subr.bf16.mxu0 0
      %3429 = vmatpush1.bf16.msra.mxu0 0
      %3430 = vmatprep.subr.bf16.mxu0 0
      %3431 = vmatpush1.bf16.msra.mxu0 0
      %3432 = vmatprep.subr.bf16.mxu0 0
      %3433 = vmatpush1.bf16.msra.mxu0 %v3416
      %3434 = vmatprep.subr.bf16.mxu0 0
      %3435 = vmatpush2.bf16.msra.mxu0 0
      %3436 = vmatprep.subr.bf16.mxu0 0
      %3437 = vmatpush2.bf16.msra.mxu0 0
      %3438 = vmatprep.subr.bf16.mxu0 0
      %3439 = vmatpush2.bf16.msra.mxu0 0
      %3440 = vmatprep.subr.bf16.mxu0 0
      %3441 = vmatpush2.bf16.msra.mxu0 0
      %3442 = vmatprep.subr.bf16.mxu0 0
      %3443 = vmatpush2.bf16.msra.mxu0 0
      %3444 = vmatprep.subr.bf16.mxu0 0
      %3445 = vmatpush2.bf16.msra.mxu0 0
      %3446 = vmatprep.subr.bf16.mxu0 0
      %3447 = vmatpush2.bf16.msra.mxu0 0
      %3448 = vmatprep.subr.bf16.mxu0 0
      %3449 = vmatpush2.bf16.msra.mxu0 0
      %3450 = vmatprep.mubr.bf16.mxu0 0
      %3451 = vmatmul.mubr.bf16.gmra.mxu0 %v3413
      %v3452 = vpop.f32.mrf.mxu0
      %v3453 = vadd.f32 0.0, %v3452
      %v3454 = vpop.f32.mrf.mxu0
      %v3455 = vpop.f32.mrf.mxu0
      %v3456 = vpop.f32.mrf.mxu0
      %3457 = vdwg.mxu0
      %v3458 = vadd.f32 %v3356, %v3453
      %3459 = vst.msk [vmem:[#allocation2] sm:$0xff] %vm596, %v3458
      %v3461 = vrot.slane %v2527, 4
      %v3463 = vrot.slane %v2449, 4
      %v3465 = vsel %vm596, %v3461, 0
      %v3468 = vsel %vm596, %v3463, 0
      %3470 = vmatprep.subr.bf16.mxu0 0
      %3471 = vmatpush1.bf16.xpose.msra.mxu0 0
      %3472 = vmatprep.subr.bf16.mxu0 0
      %3473 = vmatpush1.bf16.xpose.msra.mxu0 0
      %3474 = vmatprep.subr.bf16.mxu0 0
      %3475 = vmatpush1.bf16.xpose.msra.mxu0 0
      %3476 = vmatprep.subr.bf16.mxu0 0
      %3477 = vmatpush1.bf16.xpose.msra.mxu0 0
      %3478 = vmatprep.subr.bf16.mxu0 0
      %3479 = vmatpush1.bf16.xpose.msra.mxu0 0
      %3480 = vmatprep.subr.bf16.mxu0 0
      %3481 = vmatpush1.bf16.xpose.msra.mxu0 0
      %3482 = vmatprep.subr.bf16.mxu0 0
      %3483 = vmatpush1.bf16.xpose.msra.mxu0 0
      %3484 = vmatprep.subr.bf16.mxu0 0
      %3485 = vmatpush1.bf16.xpose.msra.mxu0 %v3468
      %3486 = vmatprep.subr.bf16.mxu0 0
      %3487 = vmatpush2.bf16.xpose.msra.mxu0 0
      %3488 = vmatprep.subr.bf16.mxu0 0
      %3489 = vmatpush2.bf16.xpose.msra.mxu0 0
      %3490 = vmatprep.subr.bf16.mxu0 0
      %3491 = vmatpush2.bf16.xpose.msra.mxu0 0
      %3492 = vmatprep.subr.bf16.mxu0 0
      %3493 = vmatpush2.bf16.xpose.msra.mxu0 0
      %3494 = vmatprep.subr.bf16.mxu0 0
      %3495 = vmatpush2.bf16.xpose.msra.mxu0 0
      %3496 = vmatprep.subr.bf16.mxu0 0
      %3497 = vmatpush2.bf16.xpose.msra.mxu0 0
      %3498 = vmatprep.subr.bf16.mxu0 0
      %3499 = vmatpush2.bf16.xpose.msra.mxu0 0
      %3500 = vmatprep.subr.bf16.mxu0 0
      %3501 = vmatpush2.bf16.xpose.msra.mxu0 0
      %3502 = vmatprep.mubr.bf16.mxu0 0
      %3503 = vmatmul.mubr.bf16.gmra.mxu0 %v3465
      %v3504 = vpop.f32.mrf.mxu0
      %v3505 = vadd.f32 0.0, %v3504
      %v3506 = vpop.f32.mrf.mxu0
      %v3507 = vpop.f32.mrf.mxu0
      %v3508 = vpop.f32.mrf.mxu0
      %3509 = vdwg.mxu0
      %v3510 = vsel %vm1282, %v3505, -inf
      %3511 = vmax.xlane.f32.xlu0 %v3510
      %v3512 = vpop.xlane.xlu0 %3511
      %v3513 = vsub.f32 %v3505, %v3512
      %v3514 = vmul.f32 %v3513, 1.442695
      %v3515 = vpow.pop %v3514
      %v3516 = vsel %vm1282, %v3515, 0.0
      %3517 = vadd.xlane.f32.xlu0 %v3516
      %v3518 = vpop.xlane.xlu0 %3517
      %v3519 = vrcp.pop %v3518
      %v3520 = vmul.f32 %v3515, %v3519
      %v3521 = vpack.c.bf16 %v3520, %v3520
      %v3523 = vrot.slane %v2602, 4
      %v3525 = vsel %vm596, %v3523, 0
      %3527 = vmatprep.subr.bf16.mxu0 0
      %3528 = vmatpush1.bf16.xpose.msra.mxu0 0
      %3529 = vmatprep.subr.bf16.mxu0 0
      %3530 = vmatpush1.bf16.xpose.msra.mxu0 0
      %3531 = vmatprep.subr.bf16.mxu0 0
      %3532 = vmatpush1.bf16.xpose.msra.mxu0 0
      %3533 = vmatprep.subr.bf16.mxu0 0
      %3534 = vmatpush1.bf16.xpose.msra.mxu0 0
      %3535 = vmatprep.subr.bf16.mxu0 0
      %3536 = vmatpush1.bf16.xpose.msra.mxu0 0
      %3537 = vmatprep.subr.bf16.mxu0 0
      %3538 = vmatpush1.bf16.xpose.msra.mxu0 0
      %3539 = vmatprep.subr.bf16.mxu0 0
      %3540 = vmatpush1.bf16.xpose.msra.mxu0 0
      %3541 = vmatprep.subr.bf16.mxu0 0
      %3542 = vmatpush1.bf16.xpose.msra.mxu0 %v3468
      %3543 = vmatprep.subr.bf16.mxu0 0
      %3544 = vmatpush2.bf16.xpose.msra.mxu0 0
      %3545 = vmatprep.subr.bf16.mxu0 0
      %3546 = vmatpush2.bf16.xpose.msra.mxu0 0
      %3547 = vmatprep.subr.bf16.mxu0 0
      %3548 = vmatpush2.bf16.xpose.msra.mxu0 0
      %3549 = vmatprep.subr.bf16.mxu0 0
      %3550 = vmatpush2.bf16.xpose.msra.mxu0 0
      %3551 = vmatprep.subr.bf16.mxu0 0
      %3552 = vmatpush2.bf16.xpose.msra.mxu0 0
      %3553 = vmatprep.subr.bf16.mxu0 0
      %3554 = vmatpush2.bf16.xpose.msra.mxu0 0
      %3555 = vmatprep.subr.bf16.mxu0 0
      %3556 = vmatpush2.bf16.xpose.msra.mxu0 0
      %3557 = vmatprep.subr.bf16.mxu0 0
      %3558 = vmatpush2.bf16.xpose.msra.mxu0 0
      %3559 = vmatprep.mubr.bf16.mxu0 0
      %3560 = vmatmul.mubr.bf16.gmra.mxu0 %v3525
      %v3561 = vpop.f32.mrf.mxu0
      %v3562 = vadd.f32 0.0, %v3561
      %v3563 = vpop.f32.mrf.mxu0
      %v3564 = vpop.f32.mrf.mxu0
      %v3565 = vpop.f32.mrf.mxu0
      %3566 = vdwg.mxu0
      %v3567 = vsel %vm1282, %v3562, -inf
      %3568 = vmax.xlane.f32.xlu0 %v3567
      %v3569 = vpop.xlane.xlu0 %3568
      %v3570 = vsub.f32 %v3562, %v3569
      %v3571 = vmul.f32 %v3570, 1.442695
      %v3572 = vpow.pop %v3571
      %v3573 = vsel %vm1282, %v3572, 0.0
      %3574 = vadd.xlane.f32.xlu0 %v3573
      %v3575 = vpop.xlane.xlu0 %3574
      %v3576 = vrcp.pop %v3575
      %v3577 = vmul.f32 %v3572, %v3576
      %v3578 = vpack.c.bf16 %v3577, %v3577
      %v3580 = vrot.slane %v2902, 4
      %v3582 = vsel %vm1282, %v3578, 0
      %v3585 = vsel %vm1353, %v3580, 0
      %3587 = vmatprep.subr.bf16.mxu0 0
      %3588 = vmatpush1.bf16.msra.mxu0 0
      %3589 = vmatprep.subr.bf16.mxu0 0
      %3590 = vmatpush1.bf16.msra.mxu0 0
      %3591 = vmatprep.subr.bf16.mxu0 0
      %3592 = vmatpush1.bf16.msra.mxu0 0
      %3593 = vmatprep.subr.bf16.mxu0 0
      %3594 = vmatpush1.bf16.msra.mxu0 0
      %3595 = vmatprep.subr.bf16.mxu0 0
      %3596 = vmatpush1.bf16.msra.mxu0 0
      %3597 = vmatprep.subr.bf16.mxu0 0
      %3598 = vmatpush1.bf16.msra.mxu0 0
      %3599 = vmatprep.subr.bf16.mxu0 0
      %3600 = vmatpush1.bf16.msra.mxu0 0
      %3601 = vmatprep.subr.bf16.mxu0 0
      %3602 = vmatpush1.bf16.msra.mxu0 %v3585
      %3603 = vmatprep.subr.bf16.mxu0 0
      %3604 = vmatpush2.bf16.msra.mxu0 0
      %3605 = vmatprep.subr.bf16.mxu0 0
      %3606 = vmatpush2.bf16.msra.mxu0 0
      %3607 = vmatprep.subr.bf16.mxu0 0
      %3608 = vmatpush2.bf16.msra.mxu0 0
      %3609 = vmatprep.subr.bf16.mxu0 0
      %3610 = vmatpush2.bf16.msra.mxu0 0
      %3611 = vmatprep.subr.bf16.mxu0 0
      %3612 = vmatpush2.bf16.msra.mxu0 0
      %3613 = vmatprep.subr.bf16.mxu0 0
      %3614 = vmatpush2.bf16.msra.mxu0 0
      %3615 = vmatprep.subr.bf16.mxu0 0
      %3616 = vmatpush2.bf16.msra.mxu0 0
      %3617 = vmatprep.subr.bf16.mxu0 0
      %3618 = vmatpush2.bf16.msra.mxu0 0
      %3619 = vmatprep.mubr.bf16.mxu0 0
      %3620 = vmatmul.mubr.bf16.gmra.mxu0 %v3582
      %v3621 = vpop.f32.mrf.mxu0
      %v3622 = vadd.f32 0.0, %v3621
      %v3623 = vpop.f32.mrf.mxu0
      %v3624 = vpop.f32.mrf.mxu0
      %v3625 = vpop.f32.mrf.mxu0
      %3626 = vdwg.mxu0
      %v3628 = vrot.slane %v2827, 4
      %v3630 = vsel %vm1282, %v3521, 0
      %v3633 = vsel %vm1353, %v3628, 0
      %3635 = vmatprep.subr.bf16.mxu0 0
      %3636 = vmatpush1.bf16.msra.mxu0 0
      %3637 = vmatprep.subr.bf16.mxu0 0
      %3638 = vmatpush1.bf16.msra.mxu0 0
      %3639 = vmatprep.subr.bf16.mxu0 0
      %3640 = vmatpush1.bf16.msra.mxu0 0
      %3641 = vmatprep.subr.bf16.mxu0 0
      %3642 = vmatpush1.bf16.msra.mxu0 0
      %3643 = vmatprep.subr.bf16.mxu0 0
      %3644 = vmatpush1.bf16.msra.mxu0 0
      %3645 = vmatprep.subr.bf16.mxu0 0
      %3646 = vmatpush1.bf16.msra.mxu0 0
      %3647 = vmatprep.subr.bf16.mxu0 0
      %3648 = vmatpush1.bf16.msra.mxu0 0
      %3649 = vmatprep.subr.bf16.mxu0 0
      %3650 = vmatpush1.bf16.msra.mxu0 %v3633
      %3651 = vmatprep.subr.bf16.mxu0 0
      %3652 = vmatpush2.bf16.msra.mxu0 0
      %3653 = vmatprep.subr.bf16.mxu0 0
      %3654 = vmatpush2.bf16.msra.mxu0 0
      %3655 = vmatprep.subr.bf16.mxu0 0
      %3656 = vmatpush2.bf16.msra.mxu0 0
      %3657 = vmatprep.subr.bf16.mxu0 0
      %3658 = vmatpush2.bf16.msra.mxu0 0
      %3659 = vmatprep.subr.bf16.mxu0 0
      %3660 = vmatpush2.bf16.msra.mxu0 0
      %3661 = vmatprep.subr.bf16.mxu0 0
      %3662 = vmatpush2.bf16.msra.mxu0 0
      %3663 = vmatprep.subr.bf16.mxu0 0
      %3664 = vmatpush2.bf16.msra.mxu0 0
      %3665 = vmatprep.subr.bf16.mxu0 0
      %3666 = vmatpush2.bf16.msra.mxu0 0
      %3667 = vmatprep.mubr.bf16.mxu0 0
      %3668 = vmatmul.mubr.bf16.gmra.mxu0 %v3630
      %v3669 = vpop.f32.mrf.mxu0
      %v3670 = vadd.f32 %v3622, %v3669
      %v3671 = vpop.f32.mrf.mxu0
      %v3672 = vpop.f32.mrf.mxu0
      %v3673 = vpop.f32.mrf.mxu0
      %3674 = vdwg.mxu0
      %v3676 = vrot.slane %v2677, 4
      %v3678 = vsel %vm596, %v3676, 0
      %3680 = vmatprep.subr.bf16.mxu0 0
      %3681 = vmatpush1.bf16.xpose.msra.mxu0 0
      %3682 = vmatprep.subr.bf16.mxu0 0
      %3683 = vmatpush1.bf16.xpose.msra.mxu0 0
      %3684 = vmatprep.subr.bf16.mxu0 0
      %3685 = vmatpush1.bf16.xpose.msra.mxu0 0
      %3686 = vmatprep.subr.bf16.mxu0 0
      %3687 = vmatpush1.bf16.xpose.msra.mxu0 0
      %3688 = vmatprep.subr.bf16.mxu0 0
      %3689 = vmatpush1.bf16.xpose.msra.mxu0 0
      %3690 = vmatprep.subr.bf16.mxu0 0
      %3691 = vmatpush1.bf16.xpose.msra.mxu0 0
      %3692 = vmatprep.subr.bf16.mxu0 0
      %3693 = vmatpush1.bf16.xpose.msra.mxu0 0
      %3694 = vmatprep.subr.bf16.mxu0 0
      %3695 = vmatpush1.bf16.xpose.msra.mxu0 %v3468
      %3696 = vmatprep.subr.bf16.mxu0 0
      %3697 = vmatpush2.bf16.xpose.msra.mxu0 0
      %3698 = vmatprep.subr.bf16.mxu0 0
      %3699 = vmatpush2.bf16.xpose.msra.mxu0 0
      %3700 = vmatprep.subr.bf16.mxu0 0
      %3701 = vmatpush2.bf16.xpose.msra.mxu0 0
      %3702 = vmatprep.subr.bf16.mxu0 0
      %3703 = vmatpush2.bf16.xpose.msra.mxu0 0
      %3704 = vmatprep.subr.bf16.mxu0 0
      %3705 = vmatpush2.bf16.xpose.msra.mxu0 0
      %3706 = vmatprep.subr.bf16.mxu0 0
      %3707 = vmatpush2.bf16.xpose.msra.mxu0 0
      %3708 = vmatprep.subr.bf16.mxu0 0
      %3709 = vmatpush2.bf16.xpose.msra.mxu0 0
      %3710 = vmatprep.subr.bf16.mxu0 0
      %3711 = vmatpush2.bf16.xpose.msra.mxu0 0
      %3712 = vmatprep.mubr.bf16.mxu0 0
      %3713 = vmatmul.mubr.bf16.gmra.mxu0 %v3678
      %v3714 = vpop.f32.mrf.mxu0
      %v3715 = vadd.f32 0.0, %v3714
      %v3716 = vpop.f32.mrf.mxu0
      %v3717 = vpop.f32.mrf.mxu0
      %v3718 = vpop.f32.mrf.mxu0
      %3719 = vdwg.mxu0
      %v3720 = vsel %vm1282, %v3715, -inf
      %3721 = vmax.xlane.f32.xlu0 %v3720
      %v3722 = vpop.xlane.xlu0 %3721
      %v3723 = vsub.f32 %v3715, %v3722
      %v3724 = vmul.f32 %v3723, 1.442695
      %v3725 = vpow.pop %v3724
      %v3726 = vsel %vm1282, %v3725, 0.0
      %3727 = vadd.xlane.f32.xlu0 %v3726
      %v3728 = vpop.xlane.xlu0 %3727
      %v3729 = vrcp.pop %v3728
      %v3730 = vmul.f32 %v3725, %v3729
      %v3731 = vpack.c.bf16 %v3730, %v3730
      %v3733 = vrot.slane %v2977, 4
      %v3735 = vsel %vm1282, %v3731, 0
      %v3738 = vsel %vm1353, %v3733, 0
      %3740 = vmatprep.subr.bf16.mxu0 0
      %3741 = vmatpush1.bf16.msra.mxu0 0
      %3742 = vmatprep.subr.bf16.mxu0 0
      %3743 = vmatpush1.bf16.msra.mxu0 0
      %3744 = vmatprep.subr.bf16.mxu0 0
      %3745 = vmatpush1.bf16.msra.mxu0 0
      %3746 = vmatprep.subr.bf16.mxu0 0
      %3747 = vmatpush1.bf16.msra.mxu0 0
      %3748 = vmatprep.subr.bf16.mxu0 0
      %3749 = vmatpush1.bf16.msra.mxu0 0
      %3750 = vmatprep.subr.bf16.mxu0 0
      %3751 = vmatpush1.bf16.msra.mxu0 0
      %3752 = vmatprep.subr.bf16.mxu0 0
      %3753 = vmatpush1.bf16.msra.mxu0 0
      %3754 = vmatprep.subr.bf16.mxu0 0
      %3755 = vmatpush1.bf16.msra.mxu0 %v3738
      %3756 = vmatprep.subr.bf16.mxu0 0
      %3757 = vmatpush2.bf16.msra.mxu0 0
      %3758 = vmatprep.subr.bf16.mxu0 0
      %3759 = vmatpush2.bf16.msra.mxu0 0
      %3760 = vmatprep.subr.bf16.mxu0 0
      %3761 = vmatpush2.bf16.msra.mxu0 0
      %3762 = vmatprep.subr.bf16.mxu0 0
      %3763 = vmatpush2.bf16.msra.mxu0 0
      %3764 = vmatprep.subr.bf16.mxu0 0
      %3765 = vmatpush2.bf16.msra.mxu0 0
      %3766 = vmatprep.subr.bf16.mxu0 0
      %3767 = vmatpush2.bf16.msra.mxu0 0
      %3768 = vmatprep.subr.bf16.mxu0 0
      %3769 = vmatpush2.bf16.msra.mxu0 0
      %3770 = vmatprep.subr.bf16.mxu0 0
      %3771 = vmatpush2.bf16.msra.mxu0 0
      %3772 = vmatprep.mubr.bf16.mxu0 0
      %3773 = vmatmul.mubr.bf16.gmra.mxu0 %v3735
      %v3774 = vpop.f32.mrf.mxu0
      %v3775 = vadd.f32 0.0, %v3774
      %v3776 = vpop.f32.mrf.mxu0
      %v3777 = vpop.f32.mrf.mxu0
      %v3778 = vpop.f32.mrf.mxu0
      %3779 = vdwg.mxu0
      %v3780 = vadd.f32 %v3670, %v3775
      %v3782 = vrot.slane %v2752, 4
      %v3784 = vsel %vm596, %v3782, 0
      %3786 = vmatprep.subr.bf16.mxu0 0
      %3787 = vmatpush1.bf16.xpose.msra.mxu0 0
      %3788 = vmatprep.subr.bf16.mxu0 0
      %3789 = vmatpush1.bf16.xpose.msra.mxu0 0
      %3790 = vmatprep.subr.bf16.mxu0 0
      %3791 = vmatpush1.bf16.xpose.msra.mxu0 0
      %3792 = vmatprep.subr.bf16.mxu0 0
      %3793 = vmatpush1.bf16.xpose.msra.mxu0 0
      %3794 = vmatprep.subr.bf16.mxu0 0
      %3795 = vmatpush1.bf16.xpose.msra.mxu0 0
      %3796 = vmatprep.subr.bf16.mxu0 0
      %3797 = vmatpush1.bf16.xpose.msra.mxu0 0
      %3798 = vmatprep.subr.bf16.mxu0 0
      %3799 = vmatpush1.bf16.xpose.msra.mxu0 0
      %3800 = vmatprep.subr.bf16.mxu0 0
      %3801 = vmatpush1.bf16.xpose.msra.mxu0 %v3468
      %3802 = vmatprep.subr.bf16.mxu0 0
      %3803 = vmatpush2.bf16.xpose.msra.mxu0 0
      %3804 = vmatprep.subr.bf16.mxu0 0
      %3805 = vmatpush2.bf16.xpose.msra.mxu0 0
      %3806 = vmatprep.subr.bf16.mxu0 0
      %3807 = vmatpush2.bf16.xpose.msra.mxu0 0
      %3808 = vmatprep.subr.bf16.mxu0 0
      %3809 = vmatpush2.bf16.xpose.msra.mxu0 0
      %3810 = vmatprep.subr.bf16.mxu0 0
      %3811 = vmatpush2.bf16.xpose.msra.mxu0 0
      %3812 = vmatprep.subr.bf16.mxu0 0
      %3813 = vmatpush2.bf16.xpose.msra.mxu0 0
      %3814 = vmatprep.subr.bf16.mxu0 0
      %3815 = vmatpush2.bf16.xpose.msra.mxu0 0
      %3816 = vmatprep.subr.bf16.mxu0 0
      %3817 = vmatpush2.bf16.xpose.msra.mxu0 0
      %3818 = vmatprep.mubr.bf16.mxu0 0
      %3819 = vmatmul.mubr.bf16.gmra.mxu0 %v3784
      %v3820 = vpop.f32.mrf.mxu0
      %v3821 = vadd.f32 0.0, %v3820
      %v3822 = vpop.f32.mrf.mxu0
      %v3823 = vpop.f32.mrf.mxu0
      %v3824 = vpop.f32.mrf.mxu0
      %3825 = vdwg.mxu0
      %v3826 = vsel %vm1282, %v3821, -inf
      %3827 = vmax.xlane.f32.xlu0 %v3826
      %v3828 = vpop.xlane.xlu0 %3827
      %v3829 = vsub.f32 %v3821, %v3828
      %v3830 = vmul.f32 %v3829, 1.442695
      %v3831 = vpow.pop %v3830
      %v3832 = vsel %vm1282, %v3831, 0.0
      %3833 = vadd.xlane.f32.xlu0 %v3832
      %v3834 = vpop.xlane.xlu0 %3833
      %v3835 = vrcp.pop %v3834
      %v3836 = vmul.f32 %v3831, %v3835
      %v3837 = vpack.c.bf16 %v3836, %v3836
      %v3839 = vrot.slane %v3052, 4
      %v3841 = vsel %vm1282, %v3837, 0
      %v3844 = vsel %vm1353, %v3839, 0
      %3846 = vmatprep.subr.bf16.mxu0 0
      %3847 = vmatpush1.bf16.msra.mxu0 0
      %3848 = vmatprep.subr.bf16.mxu0 0
      %3849 = vmatpush1.bf16.msra.mxu0 0
      %3850 = vmatprep.subr.bf16.mxu0 0
      %3851 = vmatpush1.bf16.msra.mxu0 0
      %3852 = vmatprep.subr.bf16.mxu0 0
      %3853 = vmatpush1.bf16.msra.mxu0 0
      %3854 = vmatprep.subr.bf16.mxu0 0
      %3855 = vmatpush1.bf16.msra.mxu0 0
      %3856 = vmatprep.subr.bf16.mxu0 0
      %3857 = vmatpush1.bf16.msra.mxu0 0
      %3858 = vmatprep.subr.bf16.mxu0 0
      %3859 = vmatpush1.bf16.msra.mxu0 0
      %3860 = vmatprep.subr.bf16.mxu0 0
      %3861 = vmatpush1.bf16.msra.mxu0 %v3844
      %3862 = vmatprep.subr.bf16.mxu0 0
      %3863 = vmatpush2.bf16.msra.mxu0 0
      %3864 = vmatprep.subr.bf16.mxu0 0
      %3865 = vmatpush2.bf16.msra.mxu0 0
      %3866 = vmatprep.subr.bf16.mxu0 0
      %3867 = vmatpush2.bf16.msra.mxu0 0
      %3868 = vmatprep.subr.bf16.mxu0 0
      %3869 = vmatpush2.bf16.msra.mxu0 0
      %3870 = vmatprep.subr.bf16.mxu0 0
      %3871 = vmatpush2.bf16.msra.mxu0 0
      %3872 = vmatprep.subr.bf16.mxu0 0
      %3873 = vmatpush2.bf16.msra.mxu0 0
      %3874 = vmatprep.subr.bf16.mxu0 0
      %3875 = vmatpush2.bf16.msra.mxu0 0
      %3876 = vmatprep.subr.bf16.mxu0 0
      %3877 = vmatpush2.bf16.msra.mxu0 0
      %3878 = vmatprep.mubr.bf16.mxu0 0
      %3879 = vmatmul.mubr.bf16.gmra.mxu0 %v3841
      %v3880 = vpop.f32.mrf.mxu0
      %v3881 = vadd.f32 0.0, %v3880
      %v3882 = vpop.f32.mrf.mxu0
      %v3883 = vpop.f32.mrf.mxu0
      %v3884 = vpop.f32.mrf.mxu0
      %3885 = vdwg.mxu0
      %v3886 = vadd.f32 %v3780, %v3881
      %3887 = vst.msk [vmem:[#allocation2 + $0x8] sm:$0xff] %vm596, %v3886
      %v3888 = vld [vmem:[#allocation2] sm:$0xff]
      %v3889 = vld [vmem:[#allocation2 + $0x8] sm:$0xff]
      %v3890 = vadd.f32 %v3888, %v2447
      %v3891 = vadd.f32 %v3889, %v2448
      %v3892 = vld [vmem:[%s7 + $0x8] sm:$0x1]
      %v3893 = vld [vmem:[%s7 + $0x9] sm:$0x1]
      %v3894 = vsel %vm596, %v3890, 0.0
      %3895 = vadd.xlane.f32.xlu0 %v3894
      %v3896 = vpop.xlane.xlu0 %3895
      %v3897 = vsel %vm596, %v3891, 0.0
      %3898 = vadd.xlane.f32.xlu0 %v3897
      %v3899 = vpop.xlane.xlu0 %3898
      %v3900 = vmul.f32 %v3896, %v603
      %v3901 = vmul.f32 %v3899, %v603
      %v3902 = vsub.f32 %v3890, %v3900
      %v3903 = vsub.f32 %v3891, %v3901
      %v3904 = vmul.f32 %v3902, %v3902
      %v3905 = vmul.f32 %v3903, %v3903
      %v3906 = vsel %vm596, %v3904, 0.0
      %3907 = vadd.xlane.f32.xlu0 %v3906
      %v3908 = vpop.xlane.xlu0 %3907
      %v3909 = vsel %vm596, %v3905, 0.0
      %3910 = vadd.xlane.f32.xlu0 %v3909
      %v3911 = vpop.xlane.xlu0 %3910
      %v3912 = vmul.f32 %v3908, %v603
      %v3913 = vmul.f32 %v3911, %v603
      %v3914 = vadd.f32 %v3912, 1e-06
      %v3915 = vadd.f32 %v3913, 1e-06
      %v3916 = vrsqrt.pop %v3914
      %v3917 = vrsqrt.pop %v3915
      %v3918 = vmul.f32 %v3902, %v3916
      %v3919 = vmul.f32 %v3903, %v3917
      %v3920 = vlaneseq
      %v3921 = vshrl.u32 %v3920, 7
      %v3922 = vsub.s32 0, %v3921
      %v3923 = vrot.slane %v3892, %v3922
      %v3924 = vmul.f32 %v3918, %v3923
      %v3925 = vmul.f32 %v3919, %v3923
      %v3926 = vlaneseq
      %v3927 = vshrl.u32 %v3926, 7
      %v3928 = vsub.s32 0, %v3927
      %v3929 = vrot.slane %v3893, %v3928
      %v3930 = vadd.f32 %v3924, %v3929
      %v3931 = vadd.f32 %v3925, %v3929
      %v3932 = vpack.c.bf16 %v3931, %v3930
      %s3933 = scalar_lea.vmem %s4, 64
      %v3934 = vld [vmem:[%s3933] sm:$0xff]
      %v3935 = vld [vmem:[%s3933 + $0x8] sm:$0xff]
      %v3936 = vld [vmem:[%s3933 + $0x10] sm:$0xff]
      %v3937 = vld [vmem:[%s3933 + $0x18] sm:$0xff]
      %v3938 = vld [vmem:[%s3933 + $0x20] sm:$0xff]
      %v3939 = vld [vmem:[%s3933 + $0x28] sm:$0xff]
      %v3940 = vld [vmem:[%s3933 + $0x30] sm:$0xff]
      %v3941 = vld [vmem:[%s3933 + $0x38] sm:$0xff]
      %s3942 = scalar_lea.vmem %s5, 2
      %v3943 = vld [vmem:[%s3942] sm:$0x3]
      %v3945 = vlaneseq
      %v3946 = vshrl.u32 %v3945, 7
      %v3947 = vsub.s32 0, %v3946
      %v3948 = vrot.slane %v3943, %v3947
      %v3949 = vlaneseq
      %v3950 = vshrl.u32 %v3949, 7
      %v3951 = vsub.s32 1, %v3950
      %v3952 = vrot.slane %v3943, %v3951
      %v3963 = vunpack.c.l.b16 %v3934
      %v3964 = vunpack.c.h.b16 %v3934
      %v3965 = vunpack.c.l.b16 %v3935
      %v3966 = vunpack.c.h.b16 %v3935
      %v3967 = vunpack.c.l.b16 %v3936
      %v3968 = vunpack.c.h.b16 %v3936
      %v3969 = vunpack.c.l.b16 %v3937
      %v3970 = vunpack.c.h.b16 %v3937
      %v3971 = vunpack.c.l.b16 %v3938
      %v3972 = vunpack.c.h.b16 %v3938
      %v3973 = vunpack.c.l.b16 %v3939
      %v3974 = vunpack.c.h.b16 %v3939
      %v3975 = vunpack.c.l.b16 %v3940
      %v3976 = vunpack.c.h.b16 %v3940
      %v3977 = vunpack.c.l.b16 %v3941
      %v3978 = vunpack.c.h.b16 %v3941
      %v3979 = vpack.c.b16 %v3965, %v3963
      %v3980 = vpack.c.b16 %v3966, %v3964
      %v3981 = vpack.c.b16 %v3969, %v3967
      %v3982 = vpack.c.b16 %v3970, %v3968
      %v3983 = vpack.c.b16 %v3973, %v3971
      %v3984 = vpack.c.b16 %v3974, %v3972
      %v3985 = vpack.c.b16 %v3977, %v3975
      %v3986 = vpack.c.b16 %v3978, %v3976
      %v3996 = vsel %vm596, %v3932, 0
      %3998 = vmatprep.subr.bf16.mxu0 0
      %3999 = vmatpush1.bf16.msra.mxu0 0
      %4000 = vmatprep.subr.bf16.mxu0 0
      %4001 = vmatpush1.bf16.msra.mxu0 0
      %4002 = vmatprep.subr.bf16.mxu0 0
      %4003 = vmatpush1.bf16.msra.mxu0 0
      %4004 = vmatprep.subr.bf16.mxu0 0
      %4005 = vmatpush1.bf16.msra.mxu0 0
      %4006 = vmatprep.subr.bf16.mxu0 %v3986
      %4007 = vmatpush1.bf16.msra.mxu0 %v3985
      %4008 = vmatprep.subr.bf16.mxu0 %v3984
      %4009 = vmatpush1.bf16.msra.mxu0 %v3983
      %4010 = vmatprep.subr.bf16.mxu0 %v3982
      %4011 = vmatpush1.bf16.msra.mxu0 %v3981
      %4012 = vmatprep.subr.bf16.mxu0 %v3980
      %4013 = vmatpush1.bf16.msra.mxu0 %v3979
      %4014 = vmatprep.subr.bf16.mxu0 0
      %4015 = vmatpush2.bf16.msra.mxu0 0
      %4016 = vmatprep.subr.bf16.mxu0 0
      %4017 = vmatpush2.bf16.msra.mxu0 0
      %4018 = vmatprep.subr.bf16.mxu0 0
      %4019 = vmatpush2.bf16.msra.mxu0 0
      %4020 = vmatprep.subr.bf16.mxu0 0
      %4021 = vmatpush2.bf16.msra.mxu0 0
      %4022 = vmatprep.subr.bf16.mxu0 0
      %4023 = vmatpush2.bf16.msra.mxu0 0
      %4024 = vmatprep.subr.bf16.mxu0 0
      %4025 = vmatpush2.bf16.msra.mxu0 0
      %4026 = vmatprep.subr.bf16.mxu0 0
      %4027 = vmatpush2.bf16.msra.mxu0 0
      %4028 = vmatprep.subr.bf16.mxu0 0
      %4029 = vmatpush2.bf16.msra.mxu0 0
      %4030 = vmatprep.mubr.bf16.mxu0 0
      %4031 = vmatmul.mubr.bf16.gmra.mxu0 %v3996
      %v4032 = vpop.f32.mrf.mxu0
      %v4033 = vadd.f32 %v3948, %v4032
      %v4034 = vpop.f32.mrf.mxu0
      %v4035 = vadd.f32 %v3952, %v4034
      %v4036 = vpop.f32.mrf.mxu0
      %v4037 = vadd.f32 %v3948, %v4036
      %v4038 = vpop.f32.mrf.mxu0
      %v4039 = vadd.f32 %v3952, %v4038
      %4040 = vdwg.mxu0
      %v4041 = vmax.f32 %v4033, 0.0
      %v4042 = vmax.f32 %v4035, 0.0
      %v4043 = vmax.f32 %v4037, 0.0
      %v4044 = vmax.f32 %v4039, 0.0
      %v4045 = vpack.c.bf16 %v4043, %v4041
      %v4046 = vpack.c.bf16 %v4044, %v4042
      %s4047 = scalar_lea.vmem %s6, 128
      %v4048 = vld [vmem:[%s4047] sm:$0xf]
      %v4049 = vld [vmem:[%s4047 + $0x4] sm:$0xf]
      %v4050 = vld [vmem:[%s4047 + $0x8] sm:$0xf]
      %v4051 = vld [vmem:[%s4047 + $0xc] sm:$0xf]
      %v4052 = vld [vmem:[%s4047 + $0x10] sm:$0xf]
      %v4053 = vld [vmem:[%s4047 + $0x14] sm:$0xf]
      %v4054 = vld [vmem:[%s4047 + $0x18] sm:$0xf]
      %v4055 = vld [vmem:[%s4047 + $0x1c] sm:$0xf]
      %v4056 = vld [vmem:[%s4047 + $0x20] sm:$0xf]
      %v4057 = vld [vmem:[%s4047 + $0x24] sm:$0xf]
      %v4058 = vld [vmem:[%s4047 + $0x28] sm:$0xf]
      %v4059 = vld [vmem:[%s4047 + $0x2c] sm:$0xf]
      %v4060 = vld [vmem:[%s4047 + $0x30] sm:$0xf]
      %v4061 = vld [vmem:[%s4047 + $0x34] sm:$0xf]
      %v4062 = vld [vmem:[%s4047 + $0x38] sm:$0xf]
      %v4063 = vld [vmem:[%s4047 + $0x3c] sm:$0xf]
      %v4064 = vld [vmem:[%s4047 + $0x40] sm:$0xf]
      %v4065 = vld [vmem:[%s4047 + $0x44] sm:$0xf]
      %v4066 = vld [vmem:[%s4047 + $0x48] sm:$0xf]
      %v4067 = vld [vmem:[%s4047 + $0x4c] sm:$0xf]
      %v4068 = vld [vmem:[%s4047 + $0x50] sm:$0xf]
      %v4069 = vld [vmem:[%s4047 + $0x54] sm:$0xf]
      %v4070 = vld [vmem:[%s4047 + $0x58] sm:$0xf]
      %v4071 = vld [vmem:[%s4047 + $0x5c] sm:$0xf]
      %v4072 = vld [vmem:[%s4047 + $0x60] sm:$0xf]
      %v4073 = vld [vmem:[%s4047 + $0x64] sm:$0xf]
      %v4074 = vld [vmem:[%s4047 + $0x68] sm:$0xf]
      %v4075 = vld [vmem:[%s4047 + $0x6c] sm:$0xf]
      %v4076 = vld [vmem:[%s4047 + $0x70] sm:$0xf]
      %v4077 = vld [vmem:[%s4047 + $0x74] sm:$0xf]
      %v4078 = vld [vmem:[%s4047 + $0x78] sm:$0xf]
      %v4079 = vld [vmem:[%s4047 + $0x7c] sm:$0xf]
      %v4080 = vld [vmem:[%s7 + $0xa] sm:$0x1]
      %v4081 = vlaneseq
      %v4082 = vshrl.u32 %v4081, 7
      %v4083 = vsub.s32 0, %v4082
      %v4084 = vrot.slane %v4080, %v4083
      %v4117 = vunpack.c.l.b16 %v4048
      %v4118 = vunpack.c.l.b16 %v4049
      %v4119 = vunpack.c.l.b16 %v4050
      %v4120 = vunpack.c.l.b16 %v4051
      %v4121 = vunpack.c.l.b16 %v4052
      %v4122 = vunpack.c.l.b16 %v4053
      %v4123 = vunpack.c.l.b16 %v4054
      %v4124 = vunpack.c.l.b16 %v4055
      %v4125 = vunpack.c.l.b16 %v4056
      %v4126 = vunpack.c.l.b16 %v4057
      %v4127 = vunpack.c.l.b16 %v4058
      %v4128 = vunpack.c.l.b16 %v4059
      %v4129 = vunpack.c.l.b16 %v4060
      %v4130 = vunpack.c.l.b16 %v4061
      %v4131 = vunpack.c.l.b16 %v4062
      %v4132 = vunpack.c.l.b16 %v4063
      %v4133 = vunpack.c.l.b16 %v4064
      %v4134 = vunpack.c.l.b16 %v4065
      %v4135 = vunpack.c.l.b16 %v4066
      %v4136 = vunpack.c.l.b16 %v4067
      %v4137 = vunpack.c.l.b16 %v4068
      %v4138 = vunpack.c.l.b16 %v4069
      %v4139 = vunpack.c.l.b16 %v4070
      %v4140 = vunpack.c.l.b16 %v4071
      %v4141 = vunpack.c.l.b16 %v4072
      %v4142 = vunpack.c.l.b16 %v4073
      %v4143 = vunpack.c.l.b16 %v4074
      %v4144 = vunpack.c.l.b16 %v4075
      %v4145 = vunpack.c.l.b16 %v4076
      %v4146 = vunpack.c.l.b16 %v4077
      %v4147 = vunpack.c.l.b16 %v4078
      %v4148 = vunpack.c.l.b16 %v4079
      %v4149 = vpack.c.b16 %v4118, %v4117
      %v4150 = vpack.c.b16 %v4120, %v4119
      %v4151 = vpack.c.b16 %v4122, %v4121
      %v4152 = vpack.c.b16 %v4124, %v4123
      %v4153 = vpack.c.b16 %v4126, %v4125
      %v4154 = vpack.c.b16 %v4128, %v4127
      %v4155 = vpack.c.b16 %v4130, %v4129
      %v4156 = vpack.c.b16 %v4132, %v4131
      %v4157 = vpack.c.b16 %v4134, %v4133
      %v4158 = vpack.c.b16 %v4136, %v4135
      %v4159 = vpack.c.b16 %v4138, %v4137
      %v4160 = vpack.c.b16 %v4140, %v4139
      %v4161 = vpack.c.b16 %v4142, %v4141
      %v4162 = vpack.c.b16 %v4144, %v4143
      %v4163 = vpack.c.b16 %v4146, %v4145
      %v4164 = vpack.c.b16 %v4148, %v4147
      %4181 = vmatprep.subr.bf16.mxu0 0
      %4182 = vmatpush1.bf16.msra.mxu0 %v4156
      %4183 = vmatprep.subr.bf16.mxu0 0
      %4184 = vmatpush1.bf16.msra.mxu0 %v4155
      %4185 = vmatprep.subr.bf16.mxu0 0
      %4186 = vmatpush1.bf16.msra.mxu0 %v4154
      %4187 = vmatprep.subr.bf16.mxu0 0
      %4188 = vmatpush1.bf16.msra.mxu0 %v4153
      %4189 = vmatprep.subr.bf16.mxu0 0
      %4190 = vmatpush1.bf16.msra.mxu0 %v4152
      %4191 = vmatprep.subr.bf16.mxu0 0
      %4192 = vmatpush1.bf16.msra.mxu0 %v4151
      %4193 = vmatprep.subr.bf16.mxu0 0
      %4194 = vmatpush1.bf16.msra.mxu0 %v4150
      %4195 = vmatprep.subr.bf16.mxu0 0
      %4196 = vmatpush1.bf16.msra.mxu0 %v4149
      %4197 = vmatprep.subr.bf16.mxu0 0
      %4198 = vmatpush2.bf16.msra.mxu0 %v4164
      %4199 = vmatprep.subr.bf16.mxu0 0
      %4200 = vmatpush2.bf16.msra.mxu0 %v4163
      %4201 = vmatprep.subr.bf16.mxu0 0
      %4202 = vmatpush2.bf16.msra.mxu0 %v4162
      %4203 = vmatprep.subr.bf16.mxu0 0
      %4204 = vmatpush2.bf16.msra.mxu0 %v4161
      %4205 = vmatprep.subr.bf16.mxu0 0
      %4206 = vmatpush2.bf16.msra.mxu0 %v4160
      %4207 = vmatprep.subr.bf16.mxu0 0
      %4208 = vmatpush2.bf16.msra.mxu0 %v4159
      %4209 = vmatprep.subr.bf16.mxu0 0
      %4210 = vmatpush2.bf16.msra.mxu0 %v4158
      %4211 = vmatprep.subr.bf16.mxu0 0
      %4212 = vmatpush2.bf16.msra.mxu0 %v4157
      %4213 = vmatprep.mubr.bf16.mxu0 %v4046
      %4214 = vmatmul.mubr.bf16.gmra.mxu0 %v4045
      %v4215 = vpop.f32.mrf.mxu0
      %v4216 = vadd.f32 %v4084, %v4215
      %v4217 = vpop.f32.mrf.mxu0
      %v4218 = vpop.f32.mrf.mxu0
      %v4219 = vadd.f32 %v4084, %v4218
      %v4220 = vpop.f32.mrf.mxu0
      %4221 = vdwg.mxu0
      %v4222 = vadd.f32 %v4216, %v3930
      %v4223 = vadd.f32 %v4219, %v3931
      %v4224 = vld [vmem:[%s7 + $0xb] sm:$0x1]
      %v4225 = vld [vmem:[%s7 + $0xc] sm:$0x1]
      %v4226 = vsel %vm596, %v4222, 0.0
      %4227 = vadd.xlane.f32.xlu0 %v4226
      %v4228 = vpop.xlane.xlu0 %4227
      %v4229 = vsel %vm596, %v4223, 0.0
      %4230 = vadd.xlane.f32.xlu0 %v4229
      %v4231 = vpop.xlane.xlu0 %4230
      %v4232 = vmul.f32 %v4228, %v603
      %v4233 = vmul.f32 %v4231, %v603
      %v4234 = vsub.f32 %v4222, %v4232
      %v4235 = vsub.f32 %v4223, %v4233
      %v4236 = vmul.f32 %v4234, %v4234
      %v4237 = vmul.f32 %v4235, %v4235
      %v4238 = vsel %vm596, %v4236, 0.0
      %4239 = vadd.xlane.f32.xlu0 %v4238
      %v4240 = vpop.xlane.xlu0 %4239
      %v4241 = vsel %vm596, %v4237, 0.0
      %4242 = vadd.xlane.f32.xlu0 %v4241
      %v4243 = vpop.xlane.xlu0 %4242
      %v4244 = vmul.f32 %v4240, %v603
      %v4245 = vmul.f32 %v4243, %v603
      %v4246 = vadd.f32 %v4244, 1e-06
      %v4247 = vadd.f32 %v4245, 1e-06
      %v4248 = vrsqrt.pop %v4246
      %v4249 = vrsqrt.pop %v4247
      %v4250 = vmul.f32 %v4234, %v4248
      %v4251 = vmul.f32 %v4235, %v4249
      %v4252 = vlaneseq
      %v4253 = vshrl.u32 %v4252, 7
      %v4254 = vsub.s32 0, %v4253
      %v4255 = vrot.slane %v4224, %v4254
      %v4256 = vmul.f32 %v4250, %v4255
      %v4257 = vmul.f32 %v4251, %v4255
      %v4258 = vlaneseq
      %v4259 = vshrl.u32 %v4258, 7
      %v4260 = vsub.s32 0, %v4259
      %v4261 = vrot.slane %v4225, %v4260
      %v4262 = vadd.f32 %v4256, %v4261
      %v4263 = vadd.f32 %v4257, %v4261
      %v4264 = vpack.c.bf16 %v4263, %v4262
      %s4265 = scalar_lea.vmem %s3, 512
      %v4266 = vld [vmem:[%s4265] sm:$0xf]
      %v4267 = vld [vmem:[%s4265 + $0x4] sm:$0xf]
      %v4268 = vld [vmem:[%s4265 + $0x8] sm:$0xf]
      %v4269 = vld [vmem:[%s4265 + $0xc] sm:$0xf]
      %v4270 = vld [vmem:[%s4265 + $0x10] sm:$0xf]
      %v4271 = vld [vmem:[%s4265 + $0x14] sm:$0xf]
      %v4272 = vld [vmem:[%s4265 + $0x18] sm:$0xf]
      %v4273 = vld [vmem:[%s4265 + $0x1c] sm:$0xf]
      %v4282 = vunpack.c.l.b16 %v4266
      %v4283 = vunpack.c.l.b16 %v4267
      %v4284 = vunpack.c.l.b16 %v4268
      %v4285 = vunpack.c.l.b16 %v4269
      %v4286 = vunpack.c.l.b16 %v4270
      %v4287 = vunpack.c.l.b16 %v4271
      %v4288 = vunpack.c.l.b16 %v4272
      %v4289 = vunpack.c.l.b16 %v4273
      %v4290 = vpack.c.b16 %v4283, %v4282
      %v4291 = vpack.c.b16 %v4285, %v4284
      %v4292 = vpack.c.b16 %v4287, %v4286
      %v4293 = vpack.c.b16 %v4289, %v4288
      %v4299 = vsel %vm596, %v4264, 0
      %4301 = vmatprep.subr.bf16.mxu0 0
      %4302 = vmatpush1.bf16.msra.mxu0 0
      %4303 = vmatprep.subr.bf16.mxu0 0
      %4304 = vmatpush1.bf16.msra.mxu0 0
      %4305 = vmatprep.subr.bf16.mxu0 0
      %4306 = vmatpush1.bf16.msra.mxu0 0
      %4307 = vmatprep.subr.bf16.mxu0 0
      %4308 = vmatpush1.bf16.msra.mxu0 0
      %4309 = vmatprep.subr.bf16.mxu0 0
      %4310 = vmatpush1.bf16.msra.mxu0 %v4293
      %4311 = vmatprep.subr.bf16.mxu0 0
      %4312 = vmatpush1.bf16.msra.mxu0 %v4292
      %4313 = vmatprep.subr.bf16.mxu0 0
      %4314 = vmatpush1.bf16.msra.mxu0 %v4291
      %4315 = vmatprep.subr.bf16.mxu0 0
      %4316 = vmatpush1.bf16.msra.mxu0 %v4290
      %4317 = vmatprep.subr.bf16.mxu0 0
      %4318 = vmatpush2.bf16.msra.mxu0 0
      %4319 = vmatprep.subr.bf16.mxu0 0
      %4320 = vmatpush2.bf16.msra.mxu0 0
      %4321 = vmatprep.subr.bf16.mxu0 0
      %4322 = vmatpush2.bf16.msra.mxu0 0
      %4323 = vmatprep.subr.bf16.mxu0 0
      %4324 = vmatpush2.bf16.msra.mxu0 0
      %4325 = vmatprep.subr.bf16.mxu0 0
      %4326 = vmatpush2.bf16.msra.mxu0 0
      %4327 = vmatprep.subr.bf16.mxu0 0
      %4328 = vmatpush2.bf16.msra.mxu0 0
      %4329 = vmatprep.subr.bf16.mxu0 0
      %4330 = vmatpush2.bf16.msra.mxu0 0
      %4331 = vmatprep.subr.bf16.mxu0 0
      %4332 = vmatpush2.bf16.msra.mxu0 0
      %4333 = vmatprep.mubr.bf16.mxu0 0
      %4334 = vmatmul.mubr.bf16.gmra.mxu0 %v4299
      %v4335 = vpop.f32.mrf.mxu0
      %v4336 = vadd.f32 0.0, %v4335
      %v4337 = vpop.f32.mrf.mxu0
      %v4338 = vpop.f32.mrf.mxu0
      %v4339 = vadd.f32 0.0, %v4338
      %v4340 = vpop.f32.mrf.mxu0
      %4341 = vdwg.mxu0
      %v4342 = vpack.c.bf16 %v4339, %v4336
      %s4343 = scalar_lea.vmem %s3, 544
      %v4344 = vld [vmem:[%s4343] sm:$0xf]
      %v4345 = vld [vmem:[%s4343 + $0x4] sm:$0xf]
      %v4346 = vld [vmem:[%s4343 + $0x8] sm:$0xf]
      %v4347 = vld [vmem:[%s4343 + $0xc] sm:$0xf]
      %v4348 = vld [vmem:[%s4343 + $0x10] sm:$0xf]
      %v4349 = vld [vmem:[%s4343 + $0x14] sm:$0xf]
      %v4350 = vld [vmem:[%s4343 + $0x18] sm:$0xf]
      %v4351 = vld [vmem:[%s4343 + $0x1c] sm:$0xf]
      %v4360 = vunpack.c.l.b16 %v4344
      %v4361 = vunpack.c.l.b16 %v4345
      %v4362 = vunpack.c.l.b16 %v4346
      %v4363 = vunpack.c.l.b16 %v4347
      %v4364 = vunpack.c.l.b16 %v4348
      %v4365 = vunpack.c.l.b16 %v4349
      %v4366 = vunpack.c.l.b16 %v4350
      %v4367 = vunpack.c.l.b16 %v4351
      %v4368 = vpack.c.b16 %v4361, %v4360
      %v4369 = vpack.c.b16 %v4363, %v4362
      %v4370 = vpack.c.b16 %v4365, %v4364
      %v4371 = vpack.c.b16 %v4367, %v4366
      %4376 = vmatprep.subr.bf16.mxu0 0
      %4377 = vmatpush1.bf16.msra.mxu0 0
      %4378 = vmatprep.subr.bf16.mxu0 0
      %4379 = vmatpush1.bf16.msra.mxu0 0
      %4380 = vmatprep.subr.bf16.mxu0 0
      %4381 = vmatpush1.bf16.msra.mxu0 0
      %4382 = vmatprep.subr.bf16.mxu0 0
      %4383 = vmatpush1.bf16.msra.mxu0 0
      %4384 = vmatprep.subr.bf16.mxu0 0
      %4385 = vmatpush1.bf16.msra.mxu0 %v4371
      %4386 = vmatprep.subr.bf16.mxu0 0
      %4387 = vmatpush1.bf16.msra.mxu0 %v4370
      %4388 = vmatprep.subr.bf16.mxu0 0
      %4389 = vmatpush1.bf16.msra.mxu0 %v4369
      %4390 = vmatprep.subr.bf16.mxu0 0
      %4391 = vmatpush1.bf16.msra.mxu0 %v4368
      %4392 = vmatprep.subr.bf16.mxu0 0
      %4393 = vmatpush2.bf16.msra.mxu0 0
      %4394 = vmatprep.subr.bf16.mxu0 0
      %4395 = vmatpush2.bf16.msra.mxu0 0
      %4396 = vmatprep.subr.bf16.mxu0 0
      %4397 = vmatpush2.bf16.msra.mxu0 0
      %4398 = vmatprep.subr.bf16.mxu0 0
      %4399 = vmatpush2.bf16.msra.mxu0 0
      %4400 = vmatprep.subr.bf16.mxu0 0
      %4401 = vmatpush2.bf16.msra.mxu0 0
      %4402 = vmatprep.subr.bf16.mxu0 0
      %4403 = vmatpush2.bf16.msra.mxu0 0
      %4404 = vmatprep.subr.bf16.mxu0 0
      %4405 = vmatpush2.bf16.msra.mxu0 0
      %4406 = vmatprep.subr.bf16.mxu0 0
      %4407 = vmatpush2.bf16.msra.mxu0 0
      %4408 = vmatprep.mubr.bf16.mxu0 0
      %4409 = vmatmul.mubr.bf16.gmra.mxu0 %v4299
      %v4410 = vpop.f32.mrf.mxu0
      %v4411 = vadd.f32 0.0, %v4410
      %v4412 = vpop.f32.mrf.mxu0
      %v4413 = vpop.f32.mrf.mxu0
      %v4414 = vadd.f32 0.0, %v4413
      %v4415 = vpop.f32.mrf.mxu0
      %4416 = vdwg.mxu0
      %v4417 = vpack.c.bf16 %v4414, %v4411
      %s4418 = scalar_lea.vmem %s3, 576
      %v4419 = vld [vmem:[%s4418] sm:$0xf]
      %v4420 = vld [vmem:[%s4418 + $0x4] sm:$0xf]
      %v4421 = vld [vmem:[%s4418 + $0x8] sm:$0xf]
      %v4422 = vld [vmem:[%s4418 + $0xc] sm:$0xf]
      %v4423 = vld [vmem:[%s4418 + $0x10] sm:$0xf]
      %v4424 = vld [vmem:[%s4418 + $0x14] sm:$0xf]
      %v4425 = vld [vmem:[%s4418 + $0x18] sm:$0xf]
      %v4426 = vld [vmem:[%s4418 + $0x1c] sm:$0xf]
      %v4435 = vunpack.c.l.b16 %v4419
      %v4436 = vunpack.c.l.b16 %v4420
      %v4437 = vunpack.c.l.b16 %v4421
      %v4438 = vunpack.c.l.b16 %v4422
      %v4439 = vunpack.c.l.b16 %v4423
      %v4440 = vunpack.c.l.b16 %v4424
      %v4441 = vunpack.c.l.b16 %v4425
      %v4442 = vunpack.c.l.b16 %v4426
      %v4443 = vpack.c.b16 %v4436, %v4435
      %v4444 = vpack.c.b16 %v4438, %v4437
      %v4445 = vpack.c.b16 %v4440, %v4439
      %v4446 = vpack.c.b16 %v4442, %v4441
      %4451 = vmatprep.subr.bf16.mxu0 0
      %4452 = vmatpush1.bf16.msra.mxu0 0
      %4453 = vmatprep.subr.bf16.mxu0 0
      %4454 = vmatpush1.bf16.msra.mxu0 0
      %4455 = vmatprep.subr.bf16.mxu0 0
      %4456 = vmatpush1.bf16.msra.mxu0 0
      %4457 = vmatprep.subr.bf16.mxu0 0
      %4458 = vmatpush1.bf16.msra.mxu0 0
      %4459 = vmatprep.subr.bf16.mxu0 0
      %4460 = vmatpush1.bf16.msra.mxu0 %v4446
      %4461 = vmatprep.subr.bf16.mxu0 0
      %4462 = vmatpush1.bf16.msra.mxu0 %v4445
      %4463 = vmatprep.subr.bf16.mxu0 0
      %4464 = vmatpush1.bf16.msra.mxu0 %v4444
      %4465 = vmatprep.subr.bf16.mxu0 0
      %4466 = vmatpush1.bf16.msra.mxu0 %v4443
      %4467 = vmatprep.subr.bf16.mxu0 0
      %4468 = vmatpush2.bf16.msra.mxu0 0
      %4469 = vmatprep.subr.bf16.mxu0 0
      %4470 = vmatpush2.bf16.msra.mxu0 0
      %4471 = vmatprep.subr.bf16.mxu0 0
      %4472 = vmatpush2.bf16.msra.mxu0 0
      %4473 = vmatprep.subr.bf16.mxu0 0
      %4474 = vmatpush2.bf16.msra.mxu0 0
      %4475 = vmatprep.subr.bf16.mxu0 0
      %4476 = vmatpush2.bf16.msra.mxu0 0
      %4477 = vmatprep.subr.bf16.mxu0 0
      %4478 = vmatpush2.bf16.msra.mxu0 0
      %4479 = vmatprep.subr.bf16.mxu0 0
      %4480 = vmatpush2.bf16.msra.mxu0 0
      %4481 = vmatprep.subr.bf16.mxu0 0
      %4482 = vmatpush2.bf16.msra.mxu0 0
      %4483 = vmatprep.mubr.bf16.mxu0 0
      %4484 = vmatmul.mubr.bf16.gmra.mxu0 %v4299
      %v4485 = vpop.f32.mrf.mxu0
      %v4486 = vadd.f32 0.0, %v4485
      %v4487 = vpop.f32.mrf.mxu0
      %v4488 = vpop.f32.mrf.mxu0
      %v4489 = vadd.f32 0.0, %v4488
      %v4490 = vpop.f32.mrf.mxu0
      %4491 = vdwg.mxu0
      %v4492 = vpack.c.bf16 %v4489, %v4486
      %s4493 = scalar_lea.vmem %s3, 608
      %v4494 = vld [vmem:[%s4493] sm:$0xf]
      %v4495 = vld [vmem:[%s4493 + $0x4] sm:$0xf]
      %v4496 = vld [vmem:[%s4493 + $0x8] sm:$0xf]
      %v4497 = vld [vmem:[%s4493 + $0xc] sm:$0xf]
      %v4498 = vld [vmem:[%s4493 + $0x10] sm:$0xf]
      %v4499 = vld [vmem:[%s4493 + $0x14] sm:$0xf]
      %v4500 = vld [vmem:[%s4493 + $0x18] sm:$0xf]
      %v4501 = vld [vmem:[%s4493 + $0x1c] sm:$0xf]
      %v4510 = vunpack.c.l.b16 %v4494
      %v4511 = vunpack.c.l.b16 %v4495
      %v4512 = vunpack.c.l.b16 %v4496
      %v4513 = vunpack.c.l.b16 %v4497
      %v4514 = vunpack.c.l.b16 %v4498
      %v4515 = vunpack.c.l.b16 %v4499
      %v4516 = vunpack.c.l.b16 %v4500
      %v4517 = vunpack.c.l.b16 %v4501
      %v4518 = vpack.c.b16 %v4511, %v4510
      %v4519 = vpack.c.b16 %v4513, %v4512
      %v4520 = vpack.c.b16 %v4515, %v4514
      %v4521 = vpack.c.b16 %v4517, %v4516
      %4526 = vmatprep.subr.bf16.mxu0 0
      %4527 = vmatpush1.bf16.msra.mxu0 0
      %4528 = vmatprep.subr.bf16.mxu0 0
      %4529 = vmatpush1.bf16.msra.mxu0 0
      %4530 = vmatprep.subr.bf16.mxu0 0
      %4531 = vmatpush1.bf16.msra.mxu0 0
      %4532 = vmatprep.subr.bf16.mxu0 0
      %4533 = vmatpush1.bf16.msra.mxu0 0
      %4534 = vmatprep.subr.bf16.mxu0 0
      %4535 = vmatpush1.bf16.msra.mxu0 %v4521
      %4536 = vmatprep.subr.bf16.mxu0 0
      %4537 = vmatpush1.bf16.msra.mxu0 %v4520
      %4538 = vmatprep.subr.bf16.mxu0 0
      %4539 = vmatpush1.bf16.msra.mxu0 %v4519
      %4540 = vmatprep.subr.bf16.mxu0 0
      %4541 = vmatpush1.bf16.msra.mxu0 %v4518
      %4542 = vmatprep.subr.bf16.mxu0 0
      %4543 = vmatpush2.bf16.msra.mxu0 0
      %4544 = vmatprep.subr.bf16.mxu0 0
      %4545 = vmatpush2.bf16.msra.mxu0 0
      %4546 = vmatprep.subr.bf16.mxu0 0
      %4547 = vmatpush2.bf16.msra.mxu0 0
      %4548 = vmatprep.subr.bf16.mxu0 0
      %4549 = vmatpush2.bf16.msra.mxu0 0
      %4550 = vmatprep.subr.bf16.mxu0 0
      %4551 = vmatpush2.bf16.msra.mxu0 0
      %4552 = vmatprep.subr.bf16.mxu0 0
      %4553 = vmatpush2.bf16.msra.mxu0 0
      %4554 = vmatprep.subr.bf16.mxu0 0
      %4555 = vmatpush2.bf16.msra.mxu0 0
      %4556 = vmatprep.subr.bf16.mxu0 0
      %4557 = vmatpush2.bf16.msra.mxu0 0
      %4558 = vmatprep.mubr.bf16.mxu0 0
      %4559 = vmatmul.mubr.bf16.gmra.mxu0 %v4299
      %v4560 = vpop.f32.mrf.mxu0
      %v4561 = vadd.f32 0.0, %v4560
      %v4562 = vpop.f32.mrf.mxu0
      %v4563 = vpop.f32.mrf.mxu0
      %v4564 = vadd.f32 0.0, %v4563
      %v4565 = vpop.f32.mrf.mxu0
      %4566 = vdwg.mxu0
      %v4567 = vpack.c.bf16 %v4564, %v4561
      %s4568 = scalar_lea.vmem %s3, 640
      %v4569 = vld [vmem:[%s4568] sm:$0xf]
      %v4570 = vld [vmem:[%s4568 + $0x4] sm:$0xf]
      %v4571 = vld [vmem:[%s4568 + $0x8] sm:$0xf]
      %v4572 = vld [vmem:[%s4568 + $0xc] sm:$0xf]
      %v4573 = vld [vmem:[%s4568 + $0x10] sm:$0xf]
      %v4574 = vld [vmem:[%s4568 + $0x14] sm:$0xf]
      %v4575 = vld [vmem:[%s4568 + $0x18] sm:$0xf]
      %v4576 = vld [vmem:[%s4568 + $0x1c] sm:$0xf]
      %v4585 = vunpack.c.l.b16 %v4569
      %v4586 = vunpack.c.l.b16 %v4570
      %v4587 = vunpack.c.l.b16 %v4571
      %v4588 = vunpack.c.l.b16 %v4572
      %v4589 = vunpack.c.l.b16 %v4573
      %v4590 = vunpack.c.l.b16 %v4574
      %v4591 = vunpack.c.l.b16 %v4575
      %v4592 = vunpack.c.l.b16 %v4576
      %v4593 = vpack.c.b16 %v4586, %v4585
      %v4594 = vpack.c.b16 %v4588, %v4587
      %v4595 = vpack.c.b16 %v4590, %v4589
      %v4596 = vpack.c.b16 %v4592, %v4591
      %4601 = vmatprep.subr.bf16.mxu0 0
      %4602 = vmatpush1.bf16.msra.mxu0 0
      %4603 = vmatprep.subr.bf16.mxu0 0
      %4604 = vmatpush1.bf16.msra.mxu0 0
      %4605 = vmatprep.subr.bf16.mxu0 0
      %4606 = vmatpush1.bf16.msra.mxu0 0
      %4607 = vmatprep.subr.bf16.mxu0 0
      %4608 = vmatpush1.bf16.msra.mxu0 0
      %4609 = vmatprep.subr.bf16.mxu0 0
      %4610 = vmatpush1.bf16.msra.mxu0 %v4596
      %4611 = vmatprep.subr.bf16.mxu0 0
      %4612 = vmatpush1.bf16.msra.mxu0 %v4595
      %4613 = vmatprep.subr.bf16.mxu0 0
      %4614 = vmatpush1.bf16.msra.mxu0 %v4594
      %4615 = vmatprep.subr.bf16.mxu0 0
      %4616 = vmatpush1.bf16.msra.mxu0 %v4593
      %4617 = vmatprep.subr.bf16.mxu0 0
      %4618 = vmatpush2.bf16.msra.mxu0 0
      %4619 = vmatprep.subr.bf16.mxu0 0
      %4620 = vmatpush2.bf16.msra.mxu0 0
      %4621 = vmatprep.subr.bf16.mxu0 0
      %4622 = vmatpush2.bf16.msra.mxu0 0
      %4623 = vmatprep.subr.bf16.mxu0 0
      %4624 = vmatpush2.bf16.msra.mxu0 0
      %4625 = vmatprep.subr.bf16.mxu0 0
      %4626 = vmatpush2.bf16.msra.mxu0 0
      %4627 = vmatprep.subr.bf16.mxu0 0
      %4628 = vmatpush2.bf16.msra.mxu0 0
      %4629 = vmatprep.subr.bf16.mxu0 0
      %4630 = vmatpush2.bf16.msra.mxu0 0
      %4631 = vmatprep.subr.bf16.mxu0 0
      %4632 = vmatpush2.bf16.msra.mxu0 0
      %4633 = vmatprep.mubr.bf16.mxu0 0
      %4634 = vmatmul.mubr.bf16.gmra.mxu0 %v4299
      %v4635 = vpop.f32.mrf.mxu0
      %v4636 = vadd.f32 0.0, %v4635
      %v4637 = vpop.f32.mrf.mxu0
      %v4638 = vpop.f32.mrf.mxu0
      %v4639 = vadd.f32 0.0, %v4638
      %v4640 = vpop.f32.mrf.mxu0
      %4641 = vdwg.mxu0
      %v4642 = vpack.c.bf16 %v4639, %v4636
      %s4643 = scalar_lea.vmem %s3, 672
      %v4644 = vld [vmem:[%s4643] sm:$0xf]
      %v4645 = vld [vmem:[%s4643 + $0x4] sm:$0xf]
      %v4646 = vld [vmem:[%s4643 + $0x8] sm:$0xf]
      %v4647 = vld [vmem:[%s4643 + $0xc] sm:$0xf]
      %v4648 = vld [vmem:[%s4643 + $0x10] sm:$0xf]
      %v4649 = vld [vmem:[%s4643 + $0x14] sm:$0xf]
      %v4650 = vld [vmem:[%s4643 + $0x18] sm:$0xf]
      %v4651 = vld [vmem:[%s4643 + $0x1c] sm:$0xf]
      %v4660 = vunpack.c.l.b16 %v4644
      %v4661 = vunpack.c.l.b16 %v4645
      %v4662 = vunpack.c.l.b16 %v4646
      %v4663 = vunpack.c.l.b16 %v4647
      %v4664 = vunpack.c.l.b16 %v4648
      %v4665 = vunpack.c.l.b16 %v4649
      %v4666 = vunpack.c.l.b16 %v4650
      %v4667 = vunpack.c.l.b16 %v4651
      %v4668 = vpack.c.b16 %v4661, %v4660
      %v4669 = vpack.c.b16 %v4663, %v4662
      %v4670 = vpack.c.b16 %v4665, %v4664
      %v4671 = vpack.c.b16 %v4667, %v4666
      %4676 = vmatprep.subr.bf16.mxu0 0
      %4677 = vmatpush1.bf16.msra.mxu0 0
      %4678 = vmatprep.subr.bf16.mxu0 0
      %4679 = vmatpush1.bf16.msra.mxu0 0
      %4680 = vmatprep.subr.bf16.mxu0 0
      %4681 = vmatpush1.bf16.msra.mxu0 0
      %4682 = vmatprep.subr.bf16.mxu0 0
      %4683 = vmatpush1.bf16.msra.mxu0 0
      %4684 = vmatprep.subr.bf16.mxu0 0
      %4685 = vmatpush1.bf16.msra.mxu0 %v4671
      %4686 = vmatprep.subr.bf16.mxu0 0
      %4687 = vmatpush1.bf16.msra.mxu0 %v4670
      %4688 = vmatprep.subr.bf16.mxu0 0
      %4689 = vmatpush1.bf16.msra.mxu0 %v4669
      %4690 = vmatprep.subr.bf16.mxu0 0
      %4691 = vmatpush1.bf16.msra.mxu0 %v4668
      %4692 = vmatprep.subr.bf16.mxu0 0
      %4693 = vmatpush2.bf16.msra.mxu0 0
      %4694 = vmatprep.subr.bf16.mxu0 0
      %4695 = vmatpush2.bf16.msra.mxu0 0
      %4696 = vmatprep.subr.bf16.mxu0 0
      %4697 = vmatpush2.bf16.msra.mxu0 0
      %4698 = vmatprep.subr.bf16.mxu0 0
      %4699 = vmatpush2.bf16.msra.mxu0 0
      %4700 = vmatprep.subr.bf16.mxu0 0
      %4701 = vmatpush2.bf16.msra.mxu0 0
      %4702 = vmatprep.subr.bf16.mxu0 0
      %4703 = vmatpush2.bf16.msra.mxu0 0
      %4704 = vmatprep.subr.bf16.mxu0 0
      %4705 = vmatpush2.bf16.msra.mxu0 0
      %4706 = vmatprep.subr.bf16.mxu0 0
      %4707 = vmatpush2.bf16.msra.mxu0 0
      %4708 = vmatprep.mubr.bf16.mxu0 0
      %4709 = vmatmul.mubr.bf16.gmra.mxu0 %v4299
      %v4710 = vpop.f32.mrf.mxu0
      %v4711 = vadd.f32 0.0, %v4710
      %v4712 = vpop.f32.mrf.mxu0
      %v4713 = vpop.f32.mrf.mxu0
      %v4714 = vadd.f32 0.0, %v4713
      %v4715 = vpop.f32.mrf.mxu0
      %4716 = vdwg.mxu0
      %v4717 = vpack.c.bf16 %v4714, %v4711
      %s4718 = scalar_lea.vmem %s3, 704
      %v4719 = vld [vmem:[%s4718] sm:$0xf]
      %v4720 = vld [vmem:[%s4718 + $0x4] sm:$0xf]
      %v4721 = vld [vmem:[%s4718 + $0x8] sm:$0xf]
      %v4722 = vld [vmem:[%s4718 + $0xc] sm:$0xf]
      %v4723 = vld [vmem:[%s4718 + $0x10] sm:$0xf]
      %v4724 = vld [vmem:[%s4718 + $0x14] sm:$0xf]
      %v4725 = vld [vmem:[%s4718 + $0x18] sm:$0xf]
      %v4726 = vld [vmem:[%s4718 + $0x1c] sm:$0xf]
      %v4735 = vunpack.c.l.b16 %v4719
      %v4736 = vunpack.c.l.b16 %v4720
      %v4737 = vunpack.c.l.b16 %v4721
      %v4738 = vunpack.c.l.b16 %v4722
      %v4739 = vunpack.c.l.b16 %v4723
      %v4740 = vunpack.c.l.b16 %v4724
      %v4741 = vunpack.c.l.b16 %v4725
      %v4742 = vunpack.c.l.b16 %v4726
      %v4743 = vpack.c.b16 %v4736, %v4735
      %v4744 = vpack.c.b16 %v4738, %v4737
      %v4745 = vpack.c.b16 %v4740, %v4739
      %v4746 = vpack.c.b16 %v4742, %v4741
      %4751 = vmatprep.subr.bf16.mxu0 0
      %4752 = vmatpush1.bf16.msra.mxu0 0
      %4753 = vmatprep.subr.bf16.mxu0 0
      %4754 = vmatpush1.bf16.msra.mxu0 0
      %4755 = vmatprep.subr.bf16.mxu0 0
      %4756 = vmatpush1.bf16.msra.mxu0 0
      %4757 = vmatprep.subr.bf16.mxu0 0
      %4758 = vmatpush1.bf16.msra.mxu0 0
      %4759 = vmatprep.subr.bf16.mxu0 0
      %4760 = vmatpush1.bf16.msra.mxu0 %v4746
      %4761 = vmatprep.subr.bf16.mxu0 0
      %4762 = vmatpush1.bf16.msra.mxu0 %v4745
      %4763 = vmatprep.subr.bf16.mxu0 0
      %4764 = vmatpush1.bf16.msra.mxu0 %v4744
      %4765 = vmatprep.subr.bf16.mxu0 0
      %4766 = vmatpush1.bf16.msra.mxu0 %v4743
      %4767 = vmatprep.subr.bf16.mxu0 0
      %4768 = vmatpush2.bf16.msra.mxu0 0
      %4769 = vmatprep.subr.bf16.mxu0 0
      %4770 = vmatpush2.bf16.msra.mxu0 0
      %4771 = vmatprep.subr.bf16.mxu0 0
      %4772 = vmatpush2.bf16.msra.mxu0 0
      %4773 = vmatprep.subr.bf16.mxu0 0
      %4774 = vmatpush2.bf16.msra.mxu0 0
      %4775 = vmatprep.subr.bf16.mxu0 0
      %4776 = vmatpush2.bf16.msra.mxu0 0
      %4777 = vmatprep.subr.bf16.mxu0 0
      %4778 = vmatpush2.bf16.msra.mxu0 0
      %4779 = vmatprep.subr.bf16.mxu0 0
      %4780 = vmatpush2.bf16.msra.mxu0 0
      %4781 = vmatprep.subr.bf16.mxu0 0
      %4782 = vmatpush2.bf16.msra.mxu0 0
      %4783 = vmatprep.mubr.bf16.mxu0 0
      %4784 = vmatmul.mubr.bf16.gmra.mxu0 %v4299
      %v4785 = vpop.f32.mrf.mxu0
      %v4786 = vadd.f32 0.0, %v4785
      %v4787 = vpop.f32.mrf.mxu0
      %v4788 = vpop.f32.mrf.mxu0
      %v4789 = vadd.f32 0.0, %v4788
      %v4790 = vpop.f32.mrf.mxu0
      %4791 = vdwg.mxu0
      %v4792 = vpack.c.bf16 %v4789, %v4786
      %s4793 = scalar_lea.vmem %s3, 736
      %v4794 = vld [vmem:[%s4793] sm:$0xf]
      %v4795 = vld [vmem:[%s4793 + $0x4] sm:$0xf]
      %v4796 = vld [vmem:[%s4793 + $0x8] sm:$0xf]
      %v4797 = vld [vmem:[%s4793 + $0xc] sm:$0xf]
      %v4798 = vld [vmem:[%s4793 + $0x10] sm:$0xf]
      %v4799 = vld [vmem:[%s4793 + $0x14] sm:$0xf]
      %v4800 = vld [vmem:[%s4793 + $0x18] sm:$0xf]
      %v4801 = vld [vmem:[%s4793 + $0x1c] sm:$0xf]
      %v4810 = vunpack.c.l.b16 %v4794
      %v4811 = vunpack.c.l.b16 %v4795
      %v4812 = vunpack.c.l.b16 %v4796
      %v4813 = vunpack.c.l.b16 %v4797
      %v4814 = vunpack.c.l.b16 %v4798
      %v4815 = vunpack.c.l.b16 %v4799
      %v4816 = vunpack.c.l.b16 %v4800
      %v4817 = vunpack.c.l.b16 %v4801
      %v4818 = vpack.c.b16 %v4811, %v4810
      %v4819 = vpack.c.b16 %v4813, %v4812
      %v4820 = vpack.c.b16 %v4815, %v4814
      %v4821 = vpack.c.b16 %v4817, %v4816
      %4826 = vmatprep.subr.bf16.mxu0 0
      %4827 = vmatpush1.bf16.msra.mxu0 0
      %4828 = vmatprep.subr.bf16.mxu0 0
      %4829 = vmatpush1.bf16.msra.mxu0 0
      %4830 = vmatprep.subr.bf16.mxu0 0
      %4831 = vmatpush1.bf16.msra.mxu0 0
      %4832 = vmatprep.subr.bf16.mxu0 0
      %4833 = vmatpush1.bf16.msra.mxu0 0
      %4834 = vmatprep.subr.bf16.mxu0 0
      %4835 = vmatpush1.bf16.msra.mxu0 %v4821
      %4836 = vmatprep.subr.bf16.mxu0 0
      %4837 = vmatpush1.bf16.msra.mxu0 %v4820
      %4838 = vmatprep.subr.bf16.mxu0 0
      %4839 = vmatpush1.bf16.msra.mxu0 %v4819
      %4840 = vmatprep.subr.bf16.mxu0 0
      %4841 = vmatpush1.bf16.msra.mxu0 %v4818
      %4842 = vmatprep.subr.bf16.mxu0 0
      %4843 = vmatpush2.bf16.msra.mxu0 0
      %4844 = vmatprep.subr.bf16.mxu0 0
      %4845 = vmatpush2.bf16.msra.mxu0 0
      %4846 = vmatprep.subr.bf16.mxu0 0
      %4847 = vmatpush2.bf16.msra.mxu0 0
      %4848 = vmatprep.subr.bf16.mxu0 0
      %4849 = vmatpush2.bf16.msra.mxu0 0
      %4850 = vmatprep.subr.bf16.mxu0 0
      %4851 = vmatpush2.bf16.msra.mxu0 0
      %4852 = vmatprep.subr.bf16.mxu0 0
      %4853 = vmatpush2.bf16.msra.mxu0 0
      %4854 = vmatprep.subr.bf16.mxu0 0
      %4855 = vmatpush2.bf16.msra.mxu0 0
      %4856 = vmatprep.subr.bf16.mxu0 0
      %4857 = vmatpush2.bf16.msra.mxu0 0
      %4858 = vmatprep.mubr.bf16.mxu0 0
      %4859 = vmatmul.mubr.bf16.gmra.mxu0 %v4299
      %v4860 = vpop.f32.mrf.mxu0
      %v4861 = vadd.f32 0.0, %v4860
      %v4862 = vpop.f32.mrf.mxu0
      %v4863 = vpop.f32.mrf.mxu0
      %v4864 = vadd.f32 0.0, %v4863
      %v4865 = vpop.f32.mrf.mxu0
      %4866 = vdwg.mxu0
      %v4867 = vpack.c.bf16 %v4864, %v4861
      %v4869 = vsel %vm596, %v4342, 0
      %4871 = vmatprep.subr.bf16.mxu0 0
      %4872 = vmatpush1.bf16.xpose.msra.mxu0 0
      %4873 = vmatprep.subr.bf16.mxu0 0
      %4874 = vmatpush1.bf16.xpose.msra.mxu0 0
      %4875 = vmatprep.subr.bf16.mxu0 0
      %4876 = vmatpush1.bf16.xpose.msra.mxu0 0
      %4877 = vmatprep.subr.bf16.mxu0 0
      %4878 = vmatpush1.bf16.xpose.msra.mxu0 0
      %4879 = vmatprep.subr.bf16.mxu0 0
      %4880 = vmatpush1.bf16.xpose.msra.mxu0 0
      %4881 = vmatprep.subr.bf16.mxu0 0
      %4882 = vmatpush1.bf16.xpose.msra.mxu0 0
      %4883 = vmatprep.subr.bf16.mxu0 0
      %4884 = vmatpush1.bf16.xpose.msra.mxu0 0
      %4885 = vmatprep.subr.bf16.mxu0 0
      %4886 = vmatpush1.bf16.xpose.msra.mxu0 %v4299
      %4887 = vmatprep.subr.bf16.mxu0 0
      %4888 = vmatpush2.bf16.xpose.msra.mxu0 0
      %4889 = vmatprep.subr.bf16.mxu0 0
      %4890 = vmatpush2.bf16.xpose.msra.mxu0 0
      %4891 = vmatprep.subr.bf16.mxu0 0
      %4892 = vmatpush2.bf16.xpose.msra.mxu0 0
      %4893 = vmatprep.subr.bf16.mxu0 0
      %4894 = vmatpush2.bf16.xpose.msra.mxu0 0
      %4895 = vmatprep.subr.bf16.mxu0 0
      %4896 = vmatpush2.bf16.xpose.msra.mxu0 0
      %4897 = vmatprep.subr.bf16.mxu0 0
      %4898 = vmatpush2.bf16.xpose.msra.mxu0 0
      %4899 = vmatprep.subr.bf16.mxu0 0
      %4900 = vmatpush2.bf16.xpose.msra.mxu0 0
      %4901 = vmatprep.subr.bf16.mxu0 0
      %4902 = vmatpush2.bf16.xpose.msra.mxu0 0
      %4903 = vmatprep.mubr.bf16.mxu0 0
      %4904 = vmatmul.mubr.bf16.gmra.mxu0 %v4869
      %v4905 = vpop.f32.mrf.mxu0
      %v4906 = vadd.f32 0.0, %v4905
      %v4907 = vpop.f32.mrf.mxu0
      %v4908 = vpop.f32.mrf.mxu0
      %v4909 = vpop.f32.mrf.mxu0
      %4910 = vdwg.mxu0
      %v4911 = vsel %vm1282, %v4906, -inf
      %4912 = vmax.xlane.f32.xlu0 %v4911
      %v4913 = vpop.xlane.xlu0 %4912
      %v4914 = vsub.f32 %v4906, %v4913
      %v4915 = vmul.f32 %v4914, 1.442695
      %v4916 = vpow.pop %v4915
      %v4917 = vsel %vm1282, %v4916, 0.0
      %4918 = vadd.xlane.f32.xlu0 %v4917
      %v4919 = vpop.xlane.xlu0 %4918
      %v4920 = vrcp.pop %v4919
      %v4921 = vmul.f32 %v4916, %v4920
      %v4922 = vpack.c.bf16 %v4921, %v4921
      %v4924 = vsel %vm596, %v4417, 0
      %4926 = vmatprep.subr.bf16.mxu0 0
      %4927 = vmatpush1.bf16.xpose.msra.mxu0 0
      %4928 = vmatprep.subr.bf16.mxu0 0
      %4929 = vmatpush1.bf16.xpose.msra.mxu0 0
      %4930 = vmatprep.subr.bf16.mxu0 0
      %4931 = vmatpush1.bf16.xpose.msra.mxu0 0
      %4932 = vmatprep.subr.bf16.mxu0 0
      %4933 = vmatpush1.bf16.xpose.msra.mxu0 0
      %4934 = vmatprep.subr.bf16.mxu0 0
      %4935 = vmatpush1.bf16.xpose.msra.mxu0 0
      %4936 = vmatprep.subr.bf16.mxu0 0
      %4937 = vmatpush1.bf16.xpose.msra.mxu0 0
      %4938 = vmatprep.subr.bf16.mxu0 0
      %4939 = vmatpush1.bf16.xpose.msra.mxu0 0
      %4940 = vmatprep.subr.bf16.mxu0 0
      %4941 = vmatpush1.bf16.xpose.msra.mxu0 %v4299
      %4942 = vmatprep.subr.bf16.mxu0 0
      %4943 = vmatpush2.bf16.xpose.msra.mxu0 0
      %4944 = vmatprep.subr.bf16.mxu0 0
      %4945 = vmatpush2.bf16.xpose.msra.mxu0 0
      %4946 = vmatprep.subr.bf16.mxu0 0
      %4947 = vmatpush2.bf16.xpose.msra.mxu0 0
      %4948 = vmatprep.subr.bf16.mxu0 0
      %4949 = vmatpush2.bf16.xpose.msra.mxu0 0
      %4950 = vmatprep.subr.bf16.mxu0 0
      %4951 = vmatpush2.bf16.xpose.msra.mxu0 0
      %4952 = vmatprep.subr.bf16.mxu0 0
      %4953 = vmatpush2.bf16.xpose.msra.mxu0 0
      %4954 = vmatprep.subr.bf16.mxu0 0
      %4955 = vmatpush2.bf16.xpose.msra.mxu0 0
      %4956 = vmatprep.subr.bf16.mxu0 0
      %4957 = vmatpush2.bf16.xpose.msra.mxu0 0
      %4958 = vmatprep.mubr.bf16.mxu0 0
      %4959 = vmatmul.mubr.bf16.gmra.mxu0 %v4924
      %v4960 = vpop.f32.mrf.mxu0
      %v4961 = vadd.f32 0.0, %v4960
      %v4962 = vpop.f32.mrf.mxu0
      %v4963 = vpop.f32.mrf.mxu0
      %v4964 = vpop.f32.mrf.mxu0
      %4965 = vdwg.mxu0
      %v4966 = vsel %vm1282, %v4961, -inf
      %4967 = vmax.xlane.f32.xlu0 %v4966
      %v4968 = vpop.xlane.xlu0 %4967
      %v4969 = vsub.f32 %v4961, %v4968
      %v4970 = vmul.f32 %v4969, 1.442695
      %v4971 = vpow.pop %v4970
      %v4972 = vsel %vm1282, %v4971, 0.0
      %4973 = vadd.xlane.f32.xlu0 %v4972
      %v4974 = vpop.xlane.xlu0 %4973
      %v4975 = vrcp.pop %v4974
      %v4976 = vmul.f32 %v4971, %v4975
      %v4977 = vpack.c.bf16 %v4976, %v4976
      %v4979 = vsel %vm1282, %v4977, 0
      %v4982 = vsel %vm1353, %v4717, 0
      %4984 = vmatprep.subr.bf16.mxu0 0
      %4985 = vmatpush1.bf16.msra.mxu0 0
      %4986 = vmatprep.subr.bf16.mxu0 0
      %4987 = vmatpush1.bf16.msra.mxu0 0
      %4988 = vmatprep.subr.bf16.mxu0 0
      %4989 = vmatpush1.bf16.msra.mxu0 0
      %4990 = vmatprep.subr.bf16.mxu0 0
      %4991 = vmatpush1.bf16.msra.mxu0 0
      %4992 = vmatprep.subr.bf16.mxu0 0
      %4993 = vmatpush1.bf16.msra.mxu0 0
      %4994 = vmatprep.subr.bf16.mxu0 0
      %4995 = vmatpush1.bf16.msra.mxu0 0
      %4996 = vmatprep.subr.bf16.mxu0 0
      %4997 = vmatpush1.bf16.msra.mxu0 0
      %4998 = vmatprep.subr.bf16.mxu0 0
      %4999 = vmatpush1.bf16.msra.mxu0 %v4982
      %5000 = vmatprep.subr.bf16.mxu0 0
      %5001 = vmatpush2.bf16.msra.mxu0 0
      %5002 = vmatprep.subr.bf16.mxu0 0
      %5003 = vmatpush2.bf16.msra.mxu0 0
      %5004 = vmatprep.subr.bf16.mxu0 0
      %5005 = vmatpush2.bf16.msra.mxu0 0
      %5006 = vmatprep.subr.bf16.mxu0 0
      %5007 = vmatpush2.bf16.msra.mxu0 0
      %5008 = vmatprep.subr.bf16.mxu0 0
      %5009 = vmatpush2.bf16.msra.mxu0 0
      %5010 = vmatprep.subr.bf16.mxu0 0
      %5011 = vmatpush2.bf16.msra.mxu0 0
      %5012 = vmatprep.subr.bf16.mxu0 0
      %5013 = vmatpush2.bf16.msra.mxu0 0
      %5014 = vmatprep.subr.bf16.mxu0 0
      %5015 = vmatpush2.bf16.msra.mxu0 0
      %5016 = vmatprep.mubr.bf16.mxu0 0
      %5017 = vmatmul.mubr.bf16.gmra.mxu0 %v4979
      %v5018 = vpop.f32.mrf.mxu0
      %v5019 = vadd.f32 0.0, %v5018
      %v5020 = vpop.f32.mrf.mxu0
      %v5021 = vpop.f32.mrf.mxu0
      %v5022 = vpop.f32.mrf.mxu0
      %5023 = vdwg.mxu0
      %v5025 = vsel %vm1282, %v4922, 0
      %v5028 = vsel %vm1353, %v4642, 0
      %5030 = vmatprep.subr.bf16.mxu0 0
      %5031 = vmatpush1.bf16.msra.mxu0 0
      %5032 = vmatprep.subr.bf16.mxu0 0
      %5033 = vmatpush1.bf16.msra.mxu0 0
      %5034 = vmatprep.subr.bf16.mxu0 0
      %5035 = vmatpush1.bf16.msra.mxu0 0
      %5036 = vmatprep.subr.bf16.mxu0 0
      %5037 = vmatpush1.bf16.msra.mxu0 0
      %5038 = vmatprep.subr.bf16.mxu0 0
      %5039 = vmatpush1.bf16.msra.mxu0 0
      %5040 = vmatprep.subr.bf16.mxu0 0
      %5041 = vmatpush1.bf16.msra.mxu0 0
      %5042 = vmatprep.subr.bf16.mxu0 0
      %5043 = vmatpush1.bf16.msra.mxu0 0
      %5044 = vmatprep.subr.bf16.mxu0 0
      %5045 = vmatpush1.bf16.msra.mxu0 %v5028
      %5046 = vmatprep.subr.bf16.mxu0 0
      %5047 = vmatpush2.bf16.msra.mxu0 0
      %5048 = vmatprep.subr.bf16.mxu0 0
      %5049 = vmatpush2.bf16.msra.mxu0 0
      %5050 = vmatprep.subr.bf16.mxu0 0
      %5051 = vmatpush2.bf16.msra.mxu0 0
      %5052 = vmatprep.subr.bf16.mxu0 0
      %5053 = vmatpush2.bf16.msra.mxu0 0
      %5054 = vmatprep.subr.bf16.mxu0 0
      %5055 = vmatpush2.bf16.msra.mxu0 0
      %5056 = vmatprep.subr.bf16.mxu0 0
      %5057 = vmatpush2.bf16.msra.mxu0 0
      %5058 = vmatprep.subr.bf16.mxu0 0
      %5059 = vmatpush2.bf16.msra.mxu0 0
      %5060 = vmatprep.subr.bf16.mxu0 0
      %5061 = vmatpush2.bf16.msra.mxu0 0
      %5062 = vmatprep.mubr.bf16.mxu0 0
      %5063 = vmatmul.mubr.bf16.gmra.mxu0 %v5025
      %v5064 = vpop.f32.mrf.mxu0
      %v5065 = vadd.f32 %v5019, %v5064
      %v5066 = vpop.f32.mrf.mxu0
      %v5067 = vpop.f32.mrf.mxu0
      %v5068 = vpop.f32.mrf.mxu0
      %5069 = vdwg.mxu0
      %v5071 = vsel %vm596, %v4492, 0
      %5073 = vmatprep.subr.bf16.mxu0 0
      %5074 = vmatpush1.bf16.xpose.msra.mxu0 0
      %5075 = vmatprep.subr.bf16.mxu0 0
      %5076 = vmatpush1.bf16.xpose.msra.mxu0 0
      %5077 = vmatprep.subr.bf16.mxu0 0
      %5078 = vmatpush1.bf16.xpose.msra.mxu0 0
      %5079 = vmatprep.subr.bf16.mxu0 0
      %5080 = vmatpush1.bf16.xpose.msra.mxu0 0
      %5081 = vmatprep.subr.bf16.mxu0 0
      %5082 = vmatpush1.bf16.xpose.msra.mxu0 0
      %5083 = vmatprep.subr.bf16.mxu0 0
      %5084 = vmatpush1.bf16.xpose.msra.mxu0 0
      %5085 = vmatprep.subr.bf16.mxu0 0
      %5086 = vmatpush1.bf16.xpose.msra.mxu0 0
      %5087 = vmatprep.subr.bf16.mxu0 0
      %5088 = vmatpush1.bf16.xpose.msra.mxu0 %v4299
      %5089 = vmatprep.subr.bf16.mxu0 0
      %5090 = vmatpush2.bf16.xpose.msra.mxu0 0
      %5091 = vmatprep.subr.bf16.mxu0 0
      %5092 = vmatpush2.bf16.xpose.msra.mxu0 0
      %5093 = vmatprep.subr.bf16.mxu0 0
      %5094 = vmatpush2.bf16.xpose.msra.mxu0 0
      %5095 = vmatprep.subr.bf16.mxu0 0
      %5096 = vmatpush2.bf16.xpose.msra.mxu0 0
      %5097 = vmatprep.subr.bf16.mxu0 0
      %5098 = vmatpush2.bf16.xpose.msra.mxu0 0
      %5099 = vmatprep.subr.bf16.mxu0 0
      %5100 = vmatpush2.bf16.xpose.msra.mxu0 0
      %5101 = vmatprep.subr.bf16.mxu0 0
      %5102 = vmatpush2.bf16.xpose.msra.mxu0 0
      %5103 = vmatprep.subr.bf16.mxu0 0
      %5104 = vmatpush2.bf16.xpose.msra.mxu0 0
      %5105 = vmatprep.mubr.bf16.mxu0 0
      %5106 = vmatmul.mubr.bf16.gmra.mxu0 %v5071
      %v5107 = vpop.f32.mrf.mxu0
      %v5108 = vadd.f32 0.0, %v5107
      %v5109 = vpop.f32.mrf.mxu0
      %v5110 = vpop.f32.mrf.mxu0
      %v5111 = vpop.f32.mrf.mxu0
      %5112 = vdwg.mxu0
      %v5113 = vsel %vm1282, %v5108, -inf
      %5114 = vmax.xlane.f32.xlu0 %v5113
      %v5115 = vpop.xlane.xlu0 %5114
      %v5116 = vsub.f32 %v5108, %v5115
      %v5117 = vmul.f32 %v5116, 1.442695
      %v5118 = vpow.pop %v5117
      %v5119 = vsel %vm1282, %v5118, 0.0
      %5120 = vadd.xlane.f32.xlu0 %v5119
      %v5121 = vpop.xlane.xlu0 %5120
      %v5122 = vrcp.pop %v5121
      %v5123 = vmul.f32 %v5118, %v5122
      %v5124 = vpack.c.bf16 %v5123, %v5123
      %v5126 = vsel %vm1282, %v5124, 0
      %v5129 = vsel %vm1353, %v4792, 0
      %5131 = vmatprep.subr.bf16.mxu0 0
      %5132 = vmatpush1.bf16.msra.mxu0 0
      %5133 = vmatprep.subr.bf16.mxu0 0
      %5134 = vmatpush1.bf16.msra.mxu0 0
      %5135 = vmatprep.subr.bf16.mxu0 0
      %5136 = vmatpush1.bf16.msra.mxu0 0
      %5137 = vmatprep.subr.bf16.mxu0 0
      %5138 = vmatpush1.bf16.msra.mxu0 0
      %5139 = vmatprep.subr.bf16.mxu0 0
      %5140 = vmatpush1.bf16.msra.mxu0 0
      %5141 = vmatprep.subr.bf16.mxu0 0
      %5142 = vmatpush1.bf16.msra.mxu0 0
      %5143 = vmatprep.subr.bf16.mxu0 0
      %5144 = vmatpush1.bf16.msra.mxu0 0
      %5145 = vmatprep.subr.bf16.mxu0 0
      %5146 = vmatpush1.bf16.msra.mxu0 %v5129
      %5147 = vmatprep.subr.bf16.mxu0 0
      %5148 = vmatpush2.bf16.msra.mxu0 0
      %5149 = vmatprep.subr.bf16.mxu0 0
      %5150 = vmatpush2.bf16.msra.mxu0 0
      %5151 = vmatprep.subr.bf16.mxu0 0
      %5152 = vmatpush2.bf16.msra.mxu0 0
      %5153 = vmatprep.subr.bf16.mxu0 0
      %5154 = vmatpush2.bf16.msra.mxu0 0
      %5155 = vmatprep.subr.bf16.mxu0 0
      %5156 = vmatpush2.bf16.msra.mxu0 0
      %5157 = vmatprep.subr.bf16.mxu0 0
      %5158 = vmatpush2.bf16.msra.mxu0 0
      %5159 = vmatprep.subr.bf16.mxu0 0
      %5160 = vmatpush2.bf16.msra.mxu0 0
      %5161 = vmatprep.subr.bf16.mxu0 0
      %5162 = vmatpush2.bf16.msra.mxu0 0
      %5163 = vmatprep.mubr.bf16.mxu0 0
      %5164 = vmatmul.mubr.bf16.gmra.mxu0 %v5126
      %v5165 = vpop.f32.mrf.mxu0
      %v5166 = vadd.f32 0.0, %v5165
      %v5167 = vpop.f32.mrf.mxu0
      %v5168 = vpop.f32.mrf.mxu0
      %v5169 = vpop.f32.mrf.mxu0
      %5170 = vdwg.mxu0
      %v5171 = vadd.f32 %v5065, %v5166
      %v5173 = vsel %vm596, %v4567, 0
      %5175 = vmatprep.subr.bf16.mxu0 0
      %5176 = vmatpush1.bf16.xpose.msra.mxu0 0
      %5177 = vmatprep.subr.bf16.mxu0 0
      %5178 = vmatpush1.bf16.xpose.msra.mxu0 0
      %5179 = vmatprep.subr.bf16.mxu0 0
      %5180 = vmatpush1.bf16.xpose.msra.mxu0 0
      %5181 = vmatprep.subr.bf16.mxu0 0
      %5182 = vmatpush1.bf16.xpose.msra.mxu0 0
      %5183 = vmatprep.subr.bf16.mxu0 0
      %5184 = vmatpush1.bf16.xpose.msra.mxu0 0
      %5185 = vmatprep.subr.bf16.mxu0 0
      %5186 = vmatpush1.bf16.xpose.msra.mxu0 0
      %5187 = vmatprep.subr.bf16.mxu0 0
      %5188 = vmatpush1.bf16.xpose.msra.mxu0 0
      %5189 = vmatprep.subr.bf16.mxu0 0
      %5190 = vmatpush1.bf16.xpose.msra.mxu0 %v4299
      %5191 = vmatprep.subr.bf16.mxu0 0
      %5192 = vmatpush2.bf16.xpose.msra.mxu0 0
      %5193 = vmatprep.subr.bf16.mxu0 0
      %5194 = vmatpush2.bf16.xpose.msra.mxu0 0
      %5195 = vmatprep.subr.bf16.mxu0 0
      %5196 = vmatpush2.bf16.xpose.msra.mxu0 0
      %5197 = vmatprep.subr.bf16.mxu0 0
      %5198 = vmatpush2.bf16.xpose.msra.mxu0 0
      %5199 = vmatprep.subr.bf16.mxu0 0
      %5200 = vmatpush2.bf16.xpose.msra.mxu0 0
      %5201 = vmatprep.subr.bf16.mxu0 0
      %5202 = vmatpush2.bf16.xpose.msra.mxu0 0
      %5203 = vmatprep.subr.bf16.mxu0 0
      %5204 = vmatpush2.bf16.xpose.msra.mxu0 0
      %5205 = vmatprep.subr.bf16.mxu0 0
      %5206 = vmatpush2.bf16.xpose.msra.mxu0 0
      %5207 = vmatprep.mubr.bf16.mxu0 0
      %5208 = vmatmul.mubr.bf16.gmra.mxu0 %v5173
      %v5209 = vpop.f32.mrf.mxu0
      %v5210 = vadd.f32 0.0, %v5209
      %v5211 = vpop.f32.mrf.mxu0
      %v5212 = vpop.f32.mrf.mxu0
      %v5213 = vpop.f32.mrf.mxu0
      %5214 = vdwg.mxu0
      %v5215 = vsel %vm1282, %v5210, -inf
      %5216 = vmax.xlane.f32.xlu0 %v5215
      %v5217 = vpop.xlane.xlu0 %5216
      %v5218 = vsub.f32 %v5210, %v5217
      %v5219 = vmul.f32 %v5218, 1.442695
      %v5220 = vpow.pop %v5219
      %v5221 = vsel %vm1282, %v5220, 0.0
      %5222 = vadd.xlane.f32.xlu0 %v5221
      %v5223 = vpop.xlane.xlu0 %5222
      %v5224 = vrcp.pop %v5223
      %v5225 = vmul.f32 %v5220, %v5224
      %v5226 = vpack.c.bf16 %v5225, %v5225
      %v5228 = vsel %vm1282, %v5226, 0
      %v5231 = vsel %vm1353, %v4867, 0
      %5233 = vmatprep.subr.bf16.mxu0 0
      %5234 = vmatpush1.bf16.msra.mxu0 0
      %5235 = vmatprep.subr.bf16.mxu0 0
      %5236 = vmatpush1.bf16.msra.mxu0 0
      %5237 = vmatprep.subr.bf16.mxu0 0
      %5238 = vmatpush1.bf16.msra.mxu0 0
      %5239 = vmatprep.subr.bf16.mxu0 0
      %5240 = vmatpush1.bf16.msra.mxu0 0
      %5241 = vmatprep.subr.bf16.mxu0 0
      %5242 = vmatpush1.bf16.msra.mxu0 0
      %5243 = vmatprep.subr.bf16.mxu0 0
      %5244 = vmatpush1.bf16.msra.mxu0 0
      %5245 = vmatprep.subr.bf16.mxu0 0
      %5246 = vmatpush1.bf16.msra.mxu0 0
      %5247 = vmatprep.subr.bf16.mxu0 0
      %5248 = vmatpush1.bf16.msra.mxu0 %v5231
      %5249 = vmatprep.subr.bf16.mxu0 0
      %5250 = vmatpush2.bf16.msra.mxu0 0
      %5251 = vmatprep.subr.bf16.mxu0 0
      %5252 = vmatpush2.bf16.msra.mxu0 0
      %5253 = vmatprep.subr.bf16.mxu0 0
      %5254 = vmatpush2.bf16.msra.mxu0 0
      %5255 = vmatprep.subr.bf16.mxu0 0
      %5256 = vmatpush2.bf16.msra.mxu0 0
      %5257 = vmatprep.subr.bf16.mxu0 0
      %5258 = vmatpush2.bf16.msra.mxu0 0
      %5259 = vmatprep.subr.bf16.mxu0 0
      %5260 = vmatpush2.bf16.msra.mxu0 0
      %5261 = vmatprep.subr.bf16.mxu0 0
      %5262 = vmatpush2.bf16.msra.mxu0 0
      %5263 = vmatprep.subr.bf16.mxu0 0
      %5264 = vmatpush2.bf16.msra.mxu0 0
      %5265 = vmatprep.mubr.bf16.mxu0 0
      %5266 = vmatmul.mubr.bf16.gmra.mxu0 %v5228
      %v5267 = vpop.f32.mrf.mxu0
      %v5268 = vadd.f32 0.0, %v5267
      %v5269 = vpop.f32.mrf.mxu0
      %v5270 = vpop.f32.mrf.mxu0
      %v5271 = vpop.f32.mrf.mxu0
      %5272 = vdwg.mxu0
      %v5273 = vadd.f32 %v5171, %v5268
      %5274 = vst.msk [vmem:[#allocation2] sm:$0xff] %vm596, %v5273
      %v5276 = vrot.slane %v4342, 4
      %v5278 = vrot.slane %v4264, 4
      %v5280 = vsel %vm596, %v5276, 0
      %v5283 = vsel %vm596, %v5278, 0
      %5285 = vmatprep.subr.bf16.mxu0 0
      %5286 = vmatpush1.bf16.xpose.msra.mxu0 0
      %5287 = vmatprep.subr.bf16.mxu0 0
      %5288 = vmatpush1.bf16.xpose.msra.mxu0 0
      %5289 = vmatprep.subr.bf16.mxu0 0
      %5290 = vmatpush1.bf16.xpose.msra.mxu0 0
      %5291 = vmatprep.subr.bf16.mxu0 0
      %5292 = vmatpush1.bf16.xpose.msra.mxu0 0
      %5293 = vmatprep.subr.bf16.mxu0 0
      %5294 = vmatpush1.bf16.xpose.msra.mxu0 0
      %5295 = vmatprep.subr.bf16.mxu0 0
      %5296 = vmatpush1.bf16.xpose.msra.mxu0 0
      %5297 = vmatprep.subr.bf16.mxu0 0
      %5298 = vmatpush1.bf16.xpose.msra.mxu0 0
      %5299 = vmatprep.subr.bf16.mxu0 0
      %5300 = vmatpush1.bf16.xpose.msra.mxu0 %v5283
      %5301 = vmatprep.subr.bf16.mxu0 0
      %5302 = vmatpush2.bf16.xpose.msra.mxu0 0
      %5303 = vmatprep.subr.bf16.mxu0 0
      %5304 = vmatpush2.bf16.xpose.msra.mxu0 0
      %5305 = vmatprep.subr.bf16.mxu0 0
      %5306 = vmatpush2.bf16.xpose.msra.mxu0 0
      %5307 = vmatprep.subr.bf16.mxu0 0
      %5308 = vmatpush2.bf16.xpose.msra.mxu0 0
      %5309 = vmatprep.subr.bf16.mxu0 0
      %5310 = vmatpush2.bf16.xpose.msra.mxu0 0
      %5311 = vmatprep.subr.bf16.mxu0 0
      %5312 = vmatpush2.bf16.xpose.msra.mxu0 0
      %5313 = vmatprep.subr.bf16.mxu0 0
      %5314 = vmatpush2.bf16.xpose.msra.mxu0 0
      %5315 = vmatprep.subr.bf16.mxu0 0
      %5316 = vmatpush2.bf16.xpose.msra.mxu0 0
      %5317 = vmatprep.mubr.bf16.mxu0 0
      %5318 = vmatmul.mubr.bf16.gmra.mxu0 %v5280
      %v5319 = vpop.f32.mrf.mxu0
      %v5320 = vadd.f32 0.0, %v5319
      %v5321 = vpop.f32.mrf.mxu0
      %v5322 = vpop.f32.mrf.mxu0
      %v5323 = vpop.f32.mrf.mxu0
      %5324 = vdwg.mxu0
      %v5325 = vsel %vm1282, %v5320, -inf
      %5326 = vmax.xlane.f32.xlu0 %v5325
      %v5327 = vpop.xlane.xlu0 %5326
      %v5328 = vsub.f32 %v5320, %v5327
      %v5329 = vmul.f32 %v5328, 1.442695
      %v5330 = vpow.pop %v5329
      %v5331 = vsel %vm1282, %v5330, 0.0
      %5332 = vadd.xlane.f32.xlu0 %v5331
      %v5333 = vpop.xlane.xlu0 %5332
      %v5334 = vrcp.pop %v5333
      %v5335 = vmul.f32 %v5330, %v5334
      %v5336 = vpack.c.bf16 %v5335, %v5335
      %v5338 = vrot.slane %v4417, 4
      %v5340 = vsel %vm596, %v5338, 0
      %5342 = vmatprep.subr.bf16.mxu0 0
      %5343 = vmatpush1.bf16.xpose.msra.mxu0 0
      %5344 = vmatprep.subr.bf16.mxu0 0
      %5345 = vmatpush1.bf16.xpose.msra.mxu0 0
      %5346 = vmatprep.subr.bf16.mxu0 0
      %5347 = vmatpush1.bf16.xpose.msra.mxu0 0
      %5348 = vmatprep.subr.bf16.mxu0 0
      %5349 = vmatpush1.bf16.xpose.msra.mxu0 0
      %5350 = vmatprep.subr.bf16.mxu0 0
      %5351 = vmatpush1.bf16.xpose.msra.mxu0 0
      %5352 = vmatprep.subr.bf16.mxu0 0
      %5353 = vmatpush1.bf16.xpose.msra.mxu0 0
      %5354 = vmatprep.subr.bf16.mxu0 0
      %5355 = vmatpush1.bf16.xpose.msra.mxu0 0
      %5356 = vmatprep.subr.bf16.mxu0 0
      %5357 = vmatpush1.bf16.xpose.msra.mxu0 %v5283
      %5358 = vmatprep.subr.bf16.mxu0 0
      %5359 = vmatpush2.bf16.xpose.msra.mxu0 0
      %5360 = vmatprep.subr.bf16.mxu0 0
      %5361 = vmatpush2.bf16.xpose.msra.mxu0 0
      %5362 = vmatprep.subr.bf16.mxu0 0
      %5363 = vmatpush2.bf16.xpose.msra.mxu0 0
      %5364 = vmatprep.subr.bf16.mxu0 0
      %5365 = vmatpush2.bf16.xpose.msra.mxu0 0
      %5366 = vmatprep.subr.bf16.mxu0 0
      %5367 = vmatpush2.bf16.xpose.msra.mxu0 0
      %5368 = vmatprep.subr.bf16.mxu0 0
      %5369 = vmatpush2.bf16.xpose.msra.mxu0 0
      %5370 = vmatprep.subr.bf16.mxu0 0
      %5371 = vmatpush2.bf16.xpose.msra.mxu0 0
      %5372 = vmatprep.subr.bf16.mxu0 0
      %5373 = vmatpush2.bf16.xpose.msra.mxu0 0
      %5374 = vmatprep.mubr.bf16.mxu0 0
      %5375 = vmatmul.mubr.bf16.gmra.mxu0 %v5340
      %v5376 = vpop.f32.mrf.mxu0
      %v5377 = vadd.f32 0.0, %v5376
      %v5378 = vpop.f32.mrf.mxu0
      %v5379 = vpop.f32.mrf.mxu0
      %v5380 = vpop.f32.mrf.mxu0
      %5381 = vdwg.mxu0
      %v5382 = vsel %vm1282, %v5377, -inf
      %5383 = vmax.xlane.f32.xlu0 %v5382
      %v5384 = vpop.xlane.xlu0 %5383
      %v5385 = vsub.f32 %v5377, %v5384
      %v5386 = vmul.f32 %v5385, 1.442695
      %v5387 = vpow.pop %v5386
      %v5388 = vsel %vm1282, %v5387, 0.0
      %5389 = vadd.xlane.f32.xlu0 %v5388
      %v5390 = vpop.xlane.xlu0 %5389
      %v5391 = vrcp.pop %v5390
      %v5392 = vmul.f32 %v5387, %v5391
      %v5393 = vpack.c.bf16 %v5392, %v5392
      %v5395 = vrot.slane %v4717, 4
      %v5397 = vsel %vm1282, %v5393, 0
      %v5400 = vsel %vm1353, %v5395, 0
      %5402 = vmatprep.subr.bf16.mxu0 0
      %5403 = vmatpush1.bf16.msra.mxu0 0
      %5404 = vmatprep.subr.bf16.mxu0 0
      %5405 = vmatpush1.bf16.msra.mxu0 0
      %5406 = vmatprep.subr.bf16.mxu0 0
      %5407 = vmatpush1.bf16.msra.mxu0 0
      %5408 = vmatprep.subr.bf16.mxu0 0
      %5409 = vmatpush1.bf16.msra.mxu0 0
      %5410 = vmatprep.subr.bf16.mxu0 0
      %5411 = vmatpush1.bf16.msra.mxu0 0
      %5412 = vmatprep.subr.bf16.mxu0 0
      %5413 = vmatpush1.bf16.msra.mxu0 0
      %5414 = vmatprep.subr.bf16.mxu0 0
      %5415 = vmatpush1.bf16.msra.mxu0 0
      %5416 = vmatprep.subr.bf16.mxu0 0
      %5417 = vmatpush1.bf16.msra.mxu0 %v5400
      %5418 = vmatprep.subr.bf16.mxu0 0
      %5419 = vmatpush2.bf16.msra.mxu0 0
      %5420 = vmatprep.subr.bf16.mxu0 0
      %5421 = vmatpush2.bf16.msra.mxu0 0
      %5422 = vmatprep.subr.bf16.mxu0 0
      %5423 = vmatpush2.bf16.msra.mxu0 0
      %5424 = vmatprep.subr.bf16.mxu0 0
      %5425 = vmatpush2.bf16.msra.mxu0 0
      %5426 = vmatprep.subr.bf16.mxu0 0
      %5427 = vmatpush2.bf16.msra.mxu0 0
      %5428 = vmatprep.subr.bf16.mxu0 0
      %5429 = vmatpush2.bf16.msra.mxu0 0
      %5430 = vmatprep.subr.bf16.mxu0 0
      %5431 = vmatpush2.bf16.msra.mxu0 0
      %5432 = vmatprep.subr.bf16.mxu0 0
      %5433 = vmatpush2.bf16.msra.mxu0 0
      %5434 = vmatprep.mubr.bf16.mxu0 0
      %5435 = vmatmul.mubr.bf16.gmra.mxu0 %v5397
      %v5436 = vpop.f32.mrf.mxu0
      %v5437 = vadd.f32 0.0, %v5436
      %v5438 = vpop.f32.mrf.mxu0
      %v5439 = vpop.f32.mrf.mxu0
      %v5440 = vpop.f32.mrf.mxu0
      %5441 = vdwg.mxu0
      %v5443 = vrot.slane %v4642, 4
      %v5445 = vsel %vm1282, %v5336, 0
      %v5448 = vsel %vm1353, %v5443, 0
      %5450 = vmatprep.subr.bf16.mxu0 0
      %5451 = vmatpush1.bf16.msra.mxu0 0
      %5452 = vmatprep.subr.bf16.mxu0 0
      %5453 = vmatpush1.bf16.msra.mxu0 0
      %5454 = vmatprep.subr.bf16.mxu0 0
      %5455 = vmatpush1.bf16.msra.mxu0 0
      %5456 = vmatprep.subr.bf16.mxu0 0
      %5457 = vmatpush1.bf16.msra.mxu0 0
      %5458 = vmatprep.subr.bf16.mxu0 0
      %5459 = vmatpush1.bf16.msra.mxu0 0
      %5460 = vmatprep.subr.bf16.mxu0 0
      %5461 = vmatpush1.bf16.msra.mxu0 0
      %5462 = vmatprep.subr.bf16.mxu0 0
      %5463 = vmatpush1.bf16.msra.mxu0 0
      %5464 = vmatprep.subr.bf16.mxu0 0
      %5465 = vmatpush1.bf16.msra.mxu0 %v5448
      %5466 = vmatprep.subr.bf16.mxu0 0
      %5467 = vmatpush2.bf16.msra.mxu0 0
      %5468 = vmatprep.subr.bf16.mxu0 0
      %5469 = vmatpush2.bf16.msra.mxu0 0
      %5470 = vmatprep.subr.bf16.mxu0 0
      %5471 = vmatpush2.bf16.msra.mxu0 0
      %5472 = vmatprep.subr.bf16.mxu0 0
      %5473 = vmatpush2.bf16.msra.mxu0 0
      %5474 = vmatprep.subr.bf16.mxu0 0
      %5475 = vmatpush2.bf16.msra.mxu0 0
      %5476 = vmatprep.subr.bf16.mxu0 0
      %5477 = vmatpush2.bf16.msra.mxu0 0
      %5478 = vmatprep.subr.bf16.mxu0 0
      %5479 = vmatpush2.bf16.msra.mxu0 0
      %5480 = vmatprep.subr.bf16.mxu0 0
      %5481 = vmatpush2.bf16.msra.mxu0 0
      %5482 = vmatprep.mubr.bf16.mxu0 0
      %5483 = vmatmul.mubr.bf16.gmra.mxu0 %v5445
      %v5484 = vpop.f32.mrf.mxu0
      %v5485 = vadd.f32 %v5437, %v5484
      %v5486 = vpop.f32.mrf.mxu0
      %v5487 = vpop.f32.mrf.mxu0
      %v5488 = vpop.f32.mrf.mxu0
      %5489 = vdwg.mxu0
      %v5491 = vrot.slane %v4492, 4
      %v5493 = vsel %vm596, %v5491, 0
      %5495 = vmatprep.subr.bf16.mxu0 0
      %5496 = vmatpush1.bf16.xpose.msra.mxu0 0
      %5497 = vmatprep.subr.bf16.mxu0 0
      %5498 = vmatpush1.bf16.xpose.msra.mxu0 0
      %5499 = vmatprep.subr.bf16.mxu0 0
      %5500 = vmatpush1.bf16.xpose.msra.mxu0 0
      %5501 = vmatprep.subr.bf16.mxu0 0
      %5502 = vmatpush1.bf16.xpose.msra.mxu0 0
      %5503 = vmatprep.subr.bf16.mxu0 0
      %5504 = vmatpush1.bf16.xpose.msra.mxu0 0
      %5505 = vmatprep.subr.bf16.mxu0 0
      %5506 = vmatpush1.bf16.xpose.msra.mxu0 0
      %5507 = vmatprep.subr.bf16.mxu0 0
      %5508 = vmatpush1.bf16.xpose.msra.mxu0 0
      %5509 = vmatprep.subr.bf16.mxu0 0
      %5510 = vmatpush1.bf16.xpose.msra.mxu0 %v5283
      %5511 = vmatprep.subr.bf16.mxu0 0
      %5512 = vmatpush2.bf16.xpose.msra.mxu0 0
      %5513 = vmatprep.subr.bf16.mxu0 0
      %5514 = vmatpush2.bf16.xpose.msra.mxu0 0
      %5515 = vmatprep.subr.bf16.mxu0 0
      %5516 = vmatpush2.bf16.xpose.msra.mxu0 0
      %5517 = vmatprep.subr.bf16.mxu0 0
      %5518 = vmatpush2.bf16.xpose.msra.mxu0 0
      %5519 = vmatprep.subr.bf16.mxu0 0
      %5520 = vmatpush2.bf16.xpose.msra.mxu0 0
      %5521 = vmatprep.subr.bf16.mxu0 0
      %5522 = vmatpush2.bf16.xpose.msra.mxu0 0
      %5523 = vmatprep.subr.bf16.mxu0 0
      %5524 = vmatpush2.bf16.xpose.msra.mxu0 0
      %5525 = vmatprep.subr.bf16.mxu0 0
      %5526 = vmatpush2.bf16.xpose.msra.mxu0 0
      %5527 = vmatprep.mubr.bf16.mxu0 0
      %5528 = vmatmul.mubr.bf16.gmra.mxu0 %v5493
      %v5529 = vpop.f32.mrf.mxu0
      %v5530 = vadd.f32 0.0, %v5529
      %v5531 = vpop.f32.mrf.mxu0
      %v5532 = vpop.f32.mrf.mxu0
      %v5533 = vpop.f32.mrf.mxu0
      %5534 = vdwg.mxu0
      %v5535 = vsel %vm1282, %v5530, -inf
      %5536 = vmax.xlane.f32.xlu0 %v5535
      %v5537 = vpop.xlane.xlu0 %5536
      %v5538 = vsub.f32 %v5530, %v5537
      %v5539 = vmul.f32 %v5538, 1.442695
      %v5540 = vpow.pop %v5539
      %v5541 = vsel %vm1282, %v5540, 0.0
      %5542 = vadd.xlane.f32.xlu0 %v5541
      %v5543 = vpop.xlane.xlu0 %5542
      %v5544 = vrcp.pop %v5543
      %v5545 = vmul.f32 %v5540, %v5544
      %v5546 = vpack.c.bf16 %v5545, %v5545
      %v5548 = vrot.slane %v4792, 4
      %v5550 = vsel %vm1282, %v5546, 0
      %v5553 = vsel %vm1353, %v5548, 0
      %5555 = vmatprep.subr.bf16.mxu0 0
      %5556 = vmatpush1.bf16.msra.mxu0 0
      %5557 = vmatprep.subr.bf16.mxu0 0
      %5558 = vmatpush1.bf16.msra.mxu0 0
      %5559 = vmatprep.subr.bf16.mxu0 0
      %5560 = vmatpush1.bf16.msra.mxu0 0
      %5561 = vmatprep.subr.bf16.mxu0 0
      %5562 = vmatpush1.bf16.msra.mxu0 0
      %5563 = vmatprep.subr.bf16.mxu0 0
      %5564 = vmatpush1.bf16.msra.mxu0 0
      %5565 = vmatprep.subr.bf16.mxu0 0
      %5566 = vmatpush1.bf16.msra.mxu0 0
      %5567 = vmatprep.subr.bf16.mxu0 0
      %5568 = vmatpush1.bf16.msra.mxu0 0
      %5569 = vmatprep.subr.bf16.mxu0 0
      %5570 = vmatpush1.bf16.msra.mxu0 %v5553
      %5571 = vmatprep.subr.bf16.mxu0 0
      %5572 = vmatpush2.bf16.msra.mxu0 0
      %5573 = vmatprep.subr.bf16.mxu0 0
      %5574 = vmatpush2.bf16.msra.mxu0 0
      %5575 = vmatprep.subr.bf16.mxu0 0
      %5576 = vmatpush2.bf16.msra.mxu0 0
      %5577 = vmatprep.subr.bf16.mxu0 0
      %5578 = vmatpush2.bf16.msra.mxu0 0
      %5579 = vmatprep.subr.bf16.mxu0 0
      %5580 = vmatpush2.bf16.msra.mxu0 0
      %5581 = vmatprep.subr.bf16.mxu0 0
      %5582 = vmatpush2.bf16.msra.mxu0 0
      %5583 = vmatprep.subr.bf16.mxu0 0
      %5584 = vmatpush2.bf16.msra.mxu0 0
      %5585 = vmatprep.subr.bf16.mxu0 0
      %5586 = vmatpush2.bf16.msra.mxu0 0
      %5587 = vmatprep.mubr.bf16.mxu0 0
      %5588 = vmatmul.mubr.bf16.gmra.mxu0 %v5550
      %v5589 = vpop.f32.mrf.mxu0
      %v5590 = vadd.f32 0.0, %v5589
      %v5591 = vpop.f32.mrf.mxu0
      %v5592 = vpop.f32.mrf.mxu0
      %v5593 = vpop.f32.mrf.mxu0
      %5594 = vdwg.mxu0
      %v5595 = vadd.f32 %v5485, %v5590
      %v5597 = vrot.slane %v4567, 4
      %v5599 = vsel %vm596, %v5597, 0
      %5601 = vmatprep.subr.bf16.mxu0 0
      %5602 = vmatpush1.bf16.xpose.msra.mxu0 0
      %5603 = vmatprep.subr.bf16.mxu0 0
      %5604 = vmatpush1.bf16.xpose.msra.mxu0 0
      %5605 = vmatprep.subr.bf16.mxu0 0
      %5606 = vmatpush1.bf16.xpose.msra.mxu0 0
      %5607 = vmatprep.subr.bf16.mxu0 0
      %5608 = vmatpush1.bf16.xpose.msra.mxu0 0
      %5609 = vmatprep.subr.bf16.mxu0 0
      %5610 = vmatpush1.bf16.xpose.msra.mxu0 0
      %5611 = vmatprep.subr.bf16.mxu0 0
      %5612 = vmatpush1.bf16.xpose.msra.mxu0 0
      %5613 = vmatprep.subr.bf16.mxu0 0
      %5614 = vmatpush1.bf16.xpose.msra.mxu0 0
      %5615 = vmatprep.subr.bf16.mxu0 0
      %5616 = vmatpush1.bf16.xpose.msra.mxu0 %v5283
      %5617 = vmatprep.subr.bf16.mxu0 0
      %5618 = vmatpush2.bf16.xpose.msra.mxu0 0
      %5619 = vmatprep.subr.bf16.mxu0 0
      %5620 = vmatpush2.bf16.xpose.msra.mxu0 0
      %5621 = vmatprep.subr.bf16.mxu0 0
      %5622 = vmatpush2.bf16.xpose.msra.mxu0 0
      %5623 = vmatprep.subr.bf16.mxu0 0
      %5624 = vmatpush2.bf16.xpose.msra.mxu0 0
      %5625 = vmatprep.subr.bf16.mxu0 0
      %5626 = vmatpush2.bf16.xpose.msra.mxu0 0
      %5627 = vmatprep.subr.bf16.mxu0 0
      %5628 = vmatpush2.bf16.xpose.msra.mxu0 0
      %5629 = vmatprep.subr.bf16.mxu0 0
      %5630 = vmatpush2.bf16.xpose.msra.mxu0 0
      %5631 = vmatprep.subr.bf16.mxu0 0
      %5632 = vmatpush2.bf16.xpose.msra.mxu0 0
      %5633 = vmatprep.mubr.bf16.mxu0 0
      %5634 = vmatmul.mubr.bf16.gmra.mxu0 %v5599
      %v5635 = vpop.f32.mrf.mxu0
      %v5636 = vadd.f32 0.0, %v5635
      %v5637 = vpop.f32.mrf.mxu0
      %v5638 = vpop.f32.mrf.mxu0
      %v5639 = vpop.f32.mrf.mxu0
      %5640 = vdwg.mxu0
      %v5641 = vsel %vm1282, %v5636, -inf
      %5642 = vmax.xlane.f32.xlu0 %v5641
      %v5643 = vpop.xlane.xlu0 %5642
      %v5644 = vsub.f32 %v5636, %v5643
      %v5645 = vmul.f32 %v5644, 1.442695
      %v5646 = vpow.pop %v5645
      %v5647 = vsel %vm1282, %v5646, 0.0
      %5648 = vadd.xlane.f32.xlu0 %v5647
      %v5649 = vpop.xlane.xlu0 %5648
      %v5650 = vrcp.pop %v5649
      %v5651 = vmul.f32 %v5646, %v5650
      %v5652 = vpack.c.bf16 %v5651, %v5651
      %v5654 = vrot.slane %v4867, 4
      %v5656 = vsel %vm1282, %v5652, 0
      %v5659 = vsel %vm1353, %v5654, 0
      %5661 = vmatprep.subr.bf16.mxu0 0
      %5662 = vmatpush1.bf16.msra.mxu0 0
      %5663 = vmatprep.subr.bf16.mxu0 0
      %5664 = vmatpush1.bf16.msra.mxu0 0
      %5665 = vmatprep.subr.bf16.mxu0 0
      %5666 = vmatpush1.bf16.msra.mxu0 0
      %5667 = vmatprep.subr.bf16.mxu0 0
      %5668 = vmatpush1.bf16.msra.mxu0 0
      %5669 = vmatprep.subr.bf16.mxu0 0
      %5670 = vmatpush1.bf16.msra.mxu0 0
      %5671 = vmatprep.subr.bf16.mxu0 0
      %5672 = vmatpush1.bf16.msra.mxu0 0
      %5673 = vmatprep.subr.bf16.mxu0 0
      %5674 = vmatpush1.bf16.msra.mxu0 0
      %5675 = vmatprep.subr.bf16.mxu0 0
      %5676 = vmatpush1.bf16.msra.mxu0 %v5659
      %5677 = vmatprep.subr.bf16.mxu0 0
      %5678 = vmatpush2.bf16.msra.mxu0 0
      %5679 = vmatprep.subr.bf16.mxu0 0
      %5680 = vmatpush2.bf16.msra.mxu0 0
      %5681 = vmatprep.subr.bf16.mxu0 0
      %5682 = vmatpush2.bf16.msra.mxu0 0
      %5683 = vmatprep.subr.bf16.mxu0 0
      %5684 = vmatpush2.bf16.msra.mxu0 0
      %5685 = vmatprep.subr.bf16.mxu0 0
      %5686 = vmatpush2.bf16.msra.mxu0 0
      %5687 = vmatprep.subr.bf16.mxu0 0
      %5688 = vmatpush2.bf16.msra.mxu0 0
      %5689 = vmatprep.subr.bf16.mxu0 0
      %5690 = vmatpush2.bf16.msra.mxu0 0
      %5691 = vmatprep.subr.bf16.mxu0 0
      %5692 = vmatpush2.bf16.msra.mxu0 0
      %5693 = vmatprep.mubr.bf16.mxu0 0
      %5694 = vmatmul.mubr.bf16.gmra.mxu0 %v5656
      %v5695 = vpop.f32.mrf.mxu0
      %v5696 = vadd.f32 0.0, %v5695
      %v5697 = vpop.f32.mrf.mxu0
      %v5698 = vpop.f32.mrf.mxu0
      %v5699 = vpop.f32.mrf.mxu0
      %5700 = vdwg.mxu0
      %v5701 = vadd.f32 %v5595, %v5696
      %5702 = vst.msk [vmem:[#allocation2 + $0x8] sm:$0xff] %vm596, %v5701
      %v5703 = vld [vmem:[#allocation2] sm:$0xff]
      %v5704 = vld [vmem:[#allocation2 + $0x8] sm:$0xff]
      %v5705 = vadd.f32 %v5703, %v4262
      %v5706 = vadd.f32 %v5704, %v4263
      %v5707 = vld [vmem:[%s7 + $0xd] sm:$0x1]
      %v5708 = vld [vmem:[%s7 + $0xe] sm:$0x1]
      %v5709 = vsel %vm596, %v5705, 0.0
      %5710 = vadd.xlane.f32.xlu0 %v5709
      %v5711 = vpop.xlane.xlu0 %5710
      %v5712 = vsel %vm596, %v5706, 0.0
      %5713 = vadd.xlane.f32.xlu0 %v5712
      %v5714 = vpop.xlane.xlu0 %5713
      %v5715 = vmul.f32 %v5711, %v603
      %v5716 = vmul.f32 %v5714, %v603
      %v5717 = vsub.f32 %v5705, %v5715
      %v5718 = vsub.f32 %v5706, %v5716
      %v5719 = vmul.f32 %v5717, %v5717
      %v5720 = vmul.f32 %v5718, %v5718
      %v5721 = vsel %vm596, %v5719, 0.0
      %5722 = vadd.xlane.f32.xlu0 %v5721
      %v5723 = vpop.xlane.xlu0 %5722
      %v5724 = vsel %vm596, %v5720, 0.0
      %5725 = vadd.xlane.f32.xlu0 %v5724
      %v5726 = vpop.xlane.xlu0 %5725
      %v5727 = vmul.f32 %v5723, %v603
      %v5728 = vmul.f32 %v5726, %v603
      %v5729 = vadd.f32 %v5727, 1e-06
      %v5730 = vadd.f32 %v5728, 1e-06
      %v5731 = vrsqrt.pop %v5729
      %v5732 = vrsqrt.pop %v5730
      %v5733 = vmul.f32 %v5717, %v5731
      %v5734 = vmul.f32 %v5718, %v5732
      %v5735 = vlaneseq
      %v5736 = vshrl.u32 %v5735, 7
      %v5737 = vsub.s32 0, %v5736
      %v5738 = vrot.slane %v5707, %v5737
      %v5739 = vmul.f32 %v5733, %v5738
      %v5740 = vmul.f32 %v5734, %v5738
      %v5741 = vlaneseq
      %v5742 = vshrl.u32 %v5741, 7
      %v5743 = vsub.s32 0, %v5742
      %v5744 = vrot.slane %v5708, %v5743
      %v5745 = vadd.f32 %v5739, %v5744
      %v5746 = vadd.f32 %v5740, %v5744
      %v5747 = vpack.c.bf16 %v5746, %v5745
      %s5748 = scalar_lea.vmem %s4, 128
      %v5749 = vld [vmem:[%s5748] sm:$0xff]
      %v5750 = vld [vmem:[%s5748 + $0x8] sm:$0xff]
      %v5751 = vld [vmem:[%s5748 + $0x10] sm:$0xff]
      %v5752 = vld [vmem:[%s5748 + $0x18] sm:$0xff]
      %v5753 = vld [vmem:[%s5748 + $0x20] sm:$0xff]
      %v5754 = vld [vmem:[%s5748 + $0x28] sm:$0xff]
      %v5755 = vld [vmem:[%s5748 + $0x30] sm:$0xff]
      %v5756 = vld [vmem:[%s5748 + $0x38] sm:$0xff]
      %s5757 = scalar_lea.vmem %s5, 4
      %v5758 = vld [vmem:[%s5757] sm:$0x3]
      %v5760 = vlaneseq
      %v5761 = vshrl.u32 %v5760, 7
      %v5762 = vsub.s32 0, %v5761
      %v5763 = vrot.slane %v5758, %v5762
      %v5764 = vlaneseq
      %v5765 = vshrl.u32 %v5764, 7
      %v5766 = vsub.s32 1, %v5765
      %v5767 = vrot.slane %v5758, %v5766
      %v5778 = vunpack.c.l.b16 %v5749
      %v5779 = vunpack.c.h.b16 %v5749
      %v5780 = vunpack.c.l.b16 %v5750
      %v5781 = vunpack.c.h.b16 %v5750
      %v5782 = vunpack.c.l.b16 %v5751
      %v5783 = vunpack.c.h.b16 %v5751
      %v5784 = vunpack.c.l.b16 %v5752
      %v5785 = vunpack.c.h.b16 %v5752
      %v5786 = vunpack.c.l.b16 %v5753
      %v5787 = vunpack.c.h.b16 %v5753
      %v5788 = vunpack.c.l.b16 %v5754
      %v5789 = vunpack.c.h.b16 %v5754
      %v5790 = vunpack.c.l.b16 %v5755
      %v5791 = vunpack.c.h.b16 %v5755
      %v5792 = vunpack.c.l.b16 %v5756
      %v5793 = vunpack.c.h.b16 %v5756
      %v5794 = vpack.c.b16 %v5780, %v5778
      %v5795 = vpack.c.b16 %v5781, %v5779
      %v5796 = vpack.c.b16 %v5784, %v5782
      %v5797 = vpack.c.b16 %v5785, %v5783
      %v5798 = vpack.c.b16 %v5788, %v5786
      %v5799 = vpack.c.b16 %v5789, %v5787
      %v5800 = vpack.c.b16 %v5792, %v5790
      %v5801 = vpack.c.b16 %v5793, %v5791
      %v5811 = vsel %vm596, %v5747, 0
      %5813 = vmatprep.subr.bf16.mxu0 0
      %5814 = vmatpush1.bf16.msra.mxu0 0
      %5815 = vmatprep.subr.bf16.mxu0 0
      %5816 = vmatpush1.bf16.msra.mxu0 0
      %5817 = vmatprep.subr.bf16.mxu0 0
      %5818 = vmatpush1.bf16.msra.mxu0 0
      %5819 = vmatprep.subr.bf16.mxu0 0
      %5820 = vmatpush1.bf16.msra.mxu0 0
      %5821 = vmatprep.subr.bf16.mxu0 %v5801
      %5822 = vmatpush1.bf16.msra.mxu0 %v5800
      %5823 = vmatprep.subr.bf16.mxu0 %v5799
      %5824 = vmatpush1.bf16.msra.mxu0 %v5798
      %5825 = vmatprep.subr.bf16.mxu0 %v5797
      %5826 = vmatpush1.bf16.msra.mxu0 %v5796
      %5827 = vmatprep.subr.bf16.mxu0 %v5795
      %5828 = vmatpush1.bf16.msra.mxu0 %v5794
      %5829 = vmatprep.subr.bf16.mxu0 0
      %5830 = vmatpush2.bf16.msra.mxu0 0
      %5831 = vmatprep.subr.bf16.mxu0 0
      %5832 = vmatpush2.bf16.msra.mxu0 0
      %5833 = vmatprep.subr.bf16.mxu0 0
      %5834 = vmatpush2.bf16.msra.mxu0 0
      %5835 = vmatprep.subr.bf16.mxu0 0
      %5836 = vmatpush2.bf16.msra.mxu0 0
      %5837 = vmatprep.subr.bf16.mxu0 0
      %5838 = vmatpush2.bf16.msra.mxu0 0
      %5839 = vmatprep.subr.bf16.mxu0 0
      %5840 = vmatpush2.bf16.msra.mxu0 0
      %5841 = vmatprep.subr.bf16.mxu0 0
      %5842 = vmatpush2.bf16.msra.mxu0 0
      %5843 = vmatprep.subr.bf16.mxu0 0
      %5844 = vmatpush2.bf16.msra.mxu0 0
      %5845 = vmatprep.mubr.bf16.mxu0 0
      %5846 = vmatmul.mubr.bf16.gmra.mxu0 %v5811
      %v5847 = vpop.f32.mrf.mxu0
      %v5848 = vadd.f32 %v5763, %v5847
      %v5849 = vpop.f32.mrf.mxu0
      %v5850 = vadd.f32 %v5767, %v5849
      %v5851 = vpop.f32.mrf.mxu0
      %v5852 = vadd.f32 %v5763, %v5851
      %v5853 = vpop.f32.mrf.mxu0
      %v5854 = vadd.f32 %v5767, %v5853
      %5855 = vdwg.mxu0
      %v5856 = vmax.f32 %v5848, 0.0
      %v5857 = vmax.f32 %v5850, 0.0
      %v5858 = vmax.f32 %v5852, 0.0
      %v5859 = vmax.f32 %v5854, 0.0
      %v5860 = vpack.c.bf16 %v5858, %v5856
      %v5861 = vpack.c.bf16 %v5859, %v5857
      %s5862 = scalar_lea.vmem %s6, 256
      %v5863 = vld [vmem:[%s5862] sm:$0xf]
      %v5864 = vld [vmem:[%s5862 + $0x4] sm:$0xf]
      %v5865 = vld [vmem:[%s5862 + $0x8] sm:$0xf]
      %v5866 = vld [vmem:[%s5862 + $0xc] sm:$0xf]
      %v5867 = vld [vmem:[%s5862 + $0x10] sm:$0xf]
      %v5868 = vld [vmem:[%s5862 + $0x14] sm:$0xf]
      %v5869 = vld [vmem:[%s5862 + $0x18] sm:$0xf]
      %v5870 = vld [vmem:[%s5862 + $0x1c] sm:$0xf]
      %v5871 = vld [vmem:[%s5862 + $0x20] sm:$0xf]
      %v5872 = vld [vmem:[%s5862 + $0x24] sm:$0xf]
      %v5873 = vld [vmem:[%s5862 + $0x28] sm:$0xf]
      %v5874 = vld [vmem:[%s5862 + $0x2c] sm:$0xf]
      %v5875 = vld [vmem:[%s5862 + $0x30] sm:$0xf]
      %v5876 = vld [vmem:[%s5862 + $0x34] sm:$0xf]
      %v5877 = vld [vmem:[%s5862 + $0x38] sm:$0xf]
      %v5878 = vld [vmem:[%s5862 + $0x3c] sm:$0xf]
      %v5879 = vld [vmem:[%s5862 + $0x40] sm:$0xf]
      %v5880 = vld [vmem:[%s5862 + $0x44] sm:$0xf]
      %v5881 = vld [vmem:[%s5862 + $0x48] sm:$0xf]
      %v5882 = vld [vmem:[%s5862 + $0x4c] sm:$0xf]
      %v5883 = vld [vmem:[%s5862 + $0x50] sm:$0xf]
      %v5884 = vld [vmem:[%s5862 + $0x54] sm:$0xf]
      %v5885 = vld [vmem:[%s5862 + $0x58] sm:$0xf]
      %v5886 = vld [vmem:[%s5862 + $0x5c] sm:$0xf]
      %v5887 = vld [vmem:[%s5862 + $0x60] sm:$0xf]
      %v5888 = vld [vmem:[%s5862 + $0x64] sm:$0xf]
      %v5889 = vld [vmem:[%s5862 + $0x68] sm:$0xf]
      %v5890 = vld [vmem:[%s5862 + $0x6c] sm:$0xf]
      %v5891 = vld [vmem:[%s5862 + $0x70] sm:$0xf]
      %v5892 = vld [vmem:[%s5862 + $0x74] sm:$0xf]
      %v5893 = vld [vmem:[%s5862 + $0x78] sm:$0xf]
      %v5894 = vld [vmem:[%s5862 + $0x7c] sm:$0xf]
      %v5895 = vld [vmem:[%s7 + $0xf] sm:$0x1]
      %v5896 = vlaneseq
      %v5897 = vshrl.u32 %v5896, 7
      %v5898 = vsub.s32 0, %v5897
      %v5899 = vrot.slane %v5895, %v5898
      %v5932 = vunpack.c.l.b16 %v5863
      %v5933 = vunpack.c.l.b16 %v5864
      %v5934 = vunpack.c.l.b16 %v5865
      %v5935 = vunpack.c.l.b16 %v5866
      %v5936 = vunpack.c.l.b16 %v5867
      %v5937 = vunpack.c.l.b16 %v5868
      %v5938 = vunpack.c.l.b16 %v5869
      %v5939 = vunpack.c.l.b16 %v5870
      %v5940 = vunpack.c.l.b16 %v5871
      %v5941 = vunpack.c.l.b16 %v5872
      %v5942 = vunpack.c.l.b16 %v5873
      %v5943 = vunpack.c.l.b16 %v5874
      %v5944 = vunpack.c.l.b16 %v5875
      %v5945 = vunpack.c.l.b16 %v5876
      %v5946 = vunpack.c.l.b16 %v5877
      %v5947 = vunpack.c.l.b16 %v5878
      %v5948 = vunpack.c.l.b16 %v5879
      %v5949 = vunpack.c.l.b16 %v5880
      %v5950 = vunpack.c.l.b16 %v5881
      %v5951 = vunpack.c.l.b16 %v5882
      %v5952 = vunpack.c.l.b16 %v5883
      %v5953 = vunpack.c.l.b16 %v5884
      %v5954 = vunpack.c.l.b16 %v5885
      %v5955 = vunpack.c.l.b16 %v5886
      %v5956 = vunpack.c.l.b16 %v5887
      %v5957 = vunpack.c.l.b16 %v5888
      %v5958 = vunpack.c.l.b16 %v5889
      %v5959 = vunpack.c.l.b16 %v5890
      %v5960 = vunpack.c.l.b16 %v5891
      %v5961 = vunpack.c.l.b16 %v5892
      %v5962 = vunpack.c.l.b16 %v5893
      %v5963 = vunpack.c.l.b16 %v5894
      %v5964 = vpack.c.b16 %v5933, %v5932
      %v5965 = vpack.c.b16 %v5935, %v5934
      %v5966 = vpack.c.b16 %v5937, %v5936
      %v5967 = vpack.c.b16 %v5939, %v5938
      %v5968 = vpack.c.b16 %v5941, %v5940
      %v5969 = vpack.c.b16 %v5943, %v5942
      %v5970 = vpack.c.b16 %v5945, %v5944
      %v5971 = vpack.c.b16 %v5947, %v5946
      %v5972 = vpack.c.b16 %v5949, %v5948
      %v5973 = vpack.c.b16 %v5951, %v5950
      %v5974 = vpack.c.b16 %v5953, %v5952
      %v5975 = vpack.c.b16 %v5955, %v5954
      %v5976 = vpack.c.b16 %v5957, %v5956
      %v5977 = vpack.c.b16 %v5959, %v5958
      %v5978 = vpack.c.b16 %v5961, %v5960
      %v5979 = vpack.c.b16 %v5963, %v5962
      %5996 = vmatprep.subr.bf16.mxu0 0
      %5997 = vmatpush1.bf16.msra.mxu0 %v5971
      %5998 = vmatprep.subr.bf16.mxu0 0
      %5999 = vmatpush1.bf16.msra.mxu0 %v5970
      %6000 = vmatprep.subr.bf16.mxu0 0
      %6001 = vmatpush1.bf16.msra.mxu0 %v5969
      %6002 = vmatprep.subr.bf16.mxu0 0
      %6003 = vmatpush1.bf16.msra.mxu0 %v5968
      %6004 = vmatprep.subr.bf16.mxu0 0
      %6005 = vmatpush1.bf16.msra.mxu0 %v5967
      %6006 = vmatprep.subr.bf16.mxu0 0
      %6007 = vmatpush1.bf16.msra.mxu0 %v5966
      %6008 = vmatprep.subr.bf16.mxu0 0
      %6009 = vmatpush1.bf16.msra.mxu0 %v5965
      %6010 = vmatprep.subr.bf16.mxu0 0
      %6011 = vmatpush1.bf16.msra.mxu0 %v5964
      %6012 = vmatprep.subr.bf16.mxu0 0
      %6013 = vmatpush2.bf16.msra.mxu0 %v5979
      %6014 = vmatprep.subr.bf16.mxu0 0
      %6015 = vmatpush2.bf16.msra.mxu0 %v5978
      %6016 = vmatprep.subr.bf16.mxu0 0
      %6017 = vmatpush2.bf16.msra.mxu0 %v5977
      %6018 = vmatprep.subr.bf16.mxu0 0
      %6019 = vmatpush2.bf16.msra.mxu0 %v5976
      %6020 = vmatprep.subr.bf16.mxu0 0
      %6021 = vmatpush2.bf16.msra.mxu0 %v5975
      %6022 = vmatprep.subr.bf16.mxu0 0
      %6023 = vmatpush2.bf16.msra.mxu0 %v5974
      %6024 = vmatprep.subr.bf16.mxu0 0
      %6025 = vmatpush2.bf16.msra.mxu0 %v5973
      %6026 = vmatprep.subr.bf16.mxu0 0
      %6027 = vmatpush2.bf16.msra.mxu0 %v5972
      %6028 = vmatprep.mubr.bf16.mxu0 %v5861
      %6029 = vmatmul.mubr.bf16.gmra.mxu0 %v5860
      %v6030 = vpop.f32.mrf.mxu0
      %v6031 = vadd.f32 %v5899, %v6030
      %v6032 = vpop.f32.mrf.mxu0
      %v6033 = vpop.f32.mrf.mxu0
      %v6034 = vadd.f32 %v5899, %v6033
      %v6035 = vpop.f32.mrf.mxu0
      %6036 = vdwg.mxu0
      %v6037 = vadd.f32 %v6031, %v5745
      %v6038 = vadd.f32 %v6034, %v5746
      %v6039 = vld [vmem:[%s7 + $0x10] sm:$0x1]
      %v6040 = vld [vmem:[%s7 + $0x11] sm:$0x1]
      %v6041 = vsel %vm596, %v6037, 0.0
      %6042 = vadd.xlane.f32.xlu0 %v6041
      %v6043 = vpop.xlane.xlu0 %6042
      %v6044 = vsel %vm596, %v6038, 0.0
      %6045 = vadd.xlane.f32.xlu0 %v6044
      %v6046 = vpop.xlane.xlu0 %6045
      %v6047 = vmul.f32 %v6043, %v603
      %v6048 = vmul.f32 %v6046, %v603
      %v6049 = vsub.f32 %v6037, %v6047
      %v6050 = vsub.f32 %v6038, %v6048
      %v6051 = vmul.f32 %v6049, %v6049
      %v6052 = vmul.f32 %v6050, %v6050
      %v6053 = vsel %vm596, %v6051, 0.0
      %6054 = vadd.xlane.f32.xlu0 %v6053
      %v6055 = vpop.xlane.xlu0 %6054
      %v6056 = vsel %vm596, %v6052, 0.0
      %6057 = vadd.xlane.f32.xlu0 %v6056
      %v6058 = vpop.xlane.xlu0 %6057
      %v6059 = vmul.f32 %v6055, %v603
      %v6060 = vmul.f32 %v6058, %v603
      %v6061 = vadd.f32 %v6059, 1e-06
      %v6062 = vadd.f32 %v6060, 1e-06
      %v6063 = vrsqrt.pop %v6061
      %v6064 = vrsqrt.pop %v6062
      %v6065 = vmul.f32 %v6049, %v6063
      %v6066 = vmul.f32 %v6050, %v6064
      %v6067 = vlaneseq
      %v6068 = vshrl.u32 %v6067, 7
      %v6069 = vsub.s32 0, %v6068
      %v6070 = vrot.slane %v6039, %v6069
      %v6071 = vmul.f32 %v6065, %v6070
      %v6072 = vmul.f32 %v6066, %v6070
      %v6073 = vlaneseq
      %v6074 = vshrl.u32 %v6073, 7
      %v6075 = vsub.s32 0, %v6074
      %v6076 = vrot.slane %v6040, %v6075
      %v6077 = vadd.f32 %v6071, %v6076
      %v6078 = vadd.f32 %v6072, %v6076
      %v6079 = vpack.c.bf16 %v6078, %v6077
      %v6080 = vld [vmem:[%s8] sm:$0xf]
      %v6081 = vld [vmem:[%s8 + $0x4] sm:$0xf]
      %v6082 = vld [vmem:[%s8 + $0x8] sm:$0xf]
      %v6083 = vld [vmem:[%s8 + $0xc] sm:$0xf]
      %v6084 = vld [vmem:[%s8 + $0x10] sm:$0xf]
      %v6085 = vld [vmem:[%s8 + $0x14] sm:$0xf]
      %v6086 = vld [vmem:[%s8 + $0x18] sm:$0xf]
      %v6087 = vld [vmem:[%s8 + $0x1c] sm:$0xf]
      %v6088 = vld [vmem:[%s9] sm:$0x1]
      %v6090 = vlaneseq
      %v6091 = vshrl.u32 %v6090, 7
      %v6092 = vsub.s32 0, %v6091
      %v6093 = vrot.slane %v6088, %v6092
      %v6103 = vunpack.c.l.b16 %v6080
      %v6104 = vunpack.c.l.b16 %v6081
      %v6105 = vunpack.c.l.b16 %v6082
      %v6106 = vunpack.c.l.b16 %v6083
      %v6107 = vunpack.c.l.b16 %v6084
      %v6108 = vunpack.c.l.b16 %v6085
      %v6109 = vunpack.c.l.b16 %v6086
      %v6110 = vunpack.c.l.b16 %v6087
      %v6111 = vpack.c.b16 %v6104, %v6103
      %v6112 = vpack.c.b16 %v6106, %v6105
      %v6113 = vpack.c.b16 %v6108, %v6107
      %v6114 = vpack.c.b16 %v6110, %v6109
      %v6120 = vsel %vm596, %v6079, 0
      %6122 = vmatprep.subr.bf16.mxu0 0
      %6123 = vmatpush1.bf16.msra.mxu0 0
      %6124 = vmatprep.subr.bf16.mxu0 0
      %6125 = vmatpush1.bf16.msra.mxu0 0
      %6126 = vmatprep.subr.bf16.mxu0 0
      %6127 = vmatpush1.bf16.msra.mxu0 0
      %6128 = vmatprep.subr.bf16.mxu0 0
      %6129 = vmatpush1.bf16.msra.mxu0 0
      %6130 = vmatprep.subr.bf16.mxu0 0
      %6131 = vmatpush1.bf16.msra.mxu0 %v6114
      %6132 = vmatprep.subr.bf16.mxu0 0
      %6133 = vmatpush1.bf16.msra.mxu0 %v6113
      %6134 = vmatprep.subr.bf16.mxu0 0
      %6135 = vmatpush1.bf16.msra.mxu0 %v6112
      %6136 = vmatprep.subr.bf16.mxu0 0
      %6137 = vmatpush1.bf16.msra.mxu0 %v6111
      %6138 = vmatprep.subr.bf16.mxu0 0
      %6139 = vmatpush2.bf16.msra.mxu0 0
      %6140 = vmatprep.subr.bf16.mxu0 0
      %6141 = vmatpush2.bf16.msra.mxu0 0
      %6142 = vmatprep.subr.bf16.mxu0 0
      %6143 = vmatpush2.bf16.msra.mxu0 0
      %6144 = vmatprep.subr.bf16.mxu0 0
      %6145 = vmatpush2.bf16.msra.mxu0 0
      %6146 = vmatprep.subr.bf16.mxu0 0
      %6147 = vmatpush2.bf16.msra.mxu0 0
      %6148 = vmatprep.subr.bf16.mxu0 0
      %6149 = vmatpush2.bf16.msra.mxu0 0
      %6150 = vmatprep.subr.bf16.mxu0 0
      %6151 = vmatpush2.bf16.msra.mxu0 0
      %6152 = vmatprep.subr.bf16.mxu0 0
      %6153 = vmatpush2.bf16.msra.mxu0 0
      %6154 = vmatprep.mubr.bf16.mxu0 0
      %6155 = vmatmul.mubr.bf16.gmra.mxu0 %v6120
      %v6156 = vpop.f32.mrf.mxu0
      %v6157 = vadd.f32 %v6093, %v6156
      %v6158 = vpop.f32.mrf.mxu0
      %v6159 = vpop.f32.mrf.mxu0
      %v6160 = vadd.f32 %v6093, %v6159
      %v6161 = vpop.f32.mrf.mxu0
      %6162 = vdwg.mxu0
      %v6163 = vxor.u32 %v6157, 2147483648
      %v6164 = vxor.u32 %v6160, 2147483648
      %v6165 = vmul.f32 %v6163, 1.442695
      %v6166 = vpow.pop %v6165
      %v6167 = vmul.f32 %v6164, 1.442695
      %v6168 = vpow.pop %v6167
      %v6169 = vadd.f32 %v6166, 1.0
      %v6170 = vadd.f32 %v6168, 1.0
      %v6171 = vrcp.pop %v6169
      %v6172 = vmul.f32 1.0, %v6171
      %v6173 = vrcp.pop %v6170
      %v6174 = vmul.f32 1.0, %v6173
      %v6175 = vmul.f32 %v6157, %v6172
      %v6176 = vmul.f32 %v6160, %v6174
      %v6177 = vpack.c.bf16 %v6176, %v6175
      %v6178 = vld [vmem:[%s10] sm:$0xf]
      %v6179 = vld [vmem:[%s10 + $0x4] sm:$0xf]
      %v6180 = vld [vmem:[%s10 + $0x8] sm:$0xf]
      %v6181 = vld [vmem:[%s10 + $0xc] sm:$0xf]
      %v6182 = vld [vmem:[%s10 + $0x10] sm:$0xf]
      %v6183 = vld [vmem:[%s10 + $0x14] sm:$0xf]
      %v6184 = vld [vmem:[%s10 + $0x18] sm:$0xf]
      %v6185 = vld [vmem:[%s10 + $0x1c] sm:$0xf]
      %v6186 = vld [vmem:[%s10 + $0x20] sm:$0xf]
      %v6187 = vld [vmem:[%s10 + $0x24] sm:$0xf]
      %v6188 = vld [vmem:[%s10 + $0x28] sm:$0xf]
      %v6189 = vld [vmem:[%s10 + $0x2c] sm:$0xf]
      %v6190 = vld [vmem:[%s10 + $0x30] sm:$0xf]
      %v6191 = vld [vmem:[%s10 + $0x34] sm:$0xf]
      %v6192 = vld [vmem:[%s10 + $0x38] sm:$0xf]
      %v6193 = vld [vmem:[%s10 + $0x3c] sm:$0xf]
      %v6194 = vld [vmem:[%s11] sm:$0x1]
      %v6196 = vlaneseq
      %v6197 = vshrl.u32 %v6196, 7
      %v6198 = vsub.s32 0, %v6197
      %v6199 = vrot.slane %v6194, %v6198
      %v6217 = vunpack.c.l.b16 %v6178
      %v6218 = vunpack.c.l.b16 %v6179
      %v6219 = vunpack.c.l.b16 %v6180
      %v6220 = vunpack.c.l.b16 %v6181
      %v6221 = vunpack.c.l.b16 %v6182
      %v6222 = vunpack.c.l.b16 %v6183
      %v6223 = vunpack.c.l.b16 %v6184
      %v6224 = vunpack.c.l.b16 %v6185
      %v6225 = vunpack.c.l.b16 %v6186
      %v6226 = vunpack.c.l.b16 %v6187
      %v6227 = vunpack.c.l.b16 %v6188
      %v6228 = vunpack.c.l.b16 %v6189
      %v6229 = vunpack.c.l.b16 %v6190
      %v6230 = vunpack.c.l.b16 %v6191
      %v6231 = vunpack.c.l.b16 %v6192
      %v6232 = vunpack.c.l.b16 %v6193
      %v6233 = vpack.c.b16 %v6218, %v6217
      %v6234 = vpack.c.b16 %v6220, %v6219
      %v6235 = vpack.c.b16 %v6222, %v6221
      %v6236 = vpack.c.b16 %v6224, %v6223
      %v6237 = vpack.c.b16 %v6226, %v6225
      %v6238 = vpack.c.b16 %v6228, %v6227
      %v6239 = vpack.c.b16 %v6230, %v6229
      %v6240 = vpack.c.b16 %v6232, %v6231
      %6249 = vmatprep.subr.bf16.mxu0 0
      %6250 = vmatpush1.bf16.msra.mxu0 %v6240
      %6251 = vmatprep.subr.bf16.mxu0 0
      %6252 = vmatpush1.bf16.msra.mxu0 %v6239
      %6253 = vmatprep.subr.bf16.mxu0 0
      %6254 = vmatpush1.bf16.msra.mxu0 %v6238
      %6255 = vmatprep.subr.bf16.mxu0 0
      %6256 = vmatpush1.bf16.msra.mxu0 %v6237
      %6257 = vmatprep.subr.bf16.mxu0 0
      %6258 = vmatpush1.bf16.msra.mxu0 %v6236
      %6259 = vmatprep.subr.bf16.mxu0 0
      %6260 = vmatpush1.bf16.msra.mxu0 %v6235
      %6261 = vmatprep.subr.bf16.mxu0 0
      %6262 = vmatpush1.bf16.msra.mxu0 %v6234
      %6263 = vmatprep.subr.bf16.mxu0 0
      %6264 = vmatpush1.bf16.msra.mxu0 %v6233
      %6265 = vmatprep.subr.bf16.mxu0 0
      %6266 = vmatpush2.bf16.msra.mxu0 0
      %6267 = vmatprep.subr.bf16.mxu0 0
      %6268 = vmatpush2.bf16.msra.mxu0 0
      %6269 = vmatprep.subr.bf16.mxu0 0
      %6270 = vmatpush2.bf16.msra.mxu0 0
      %6271 = vmatprep.subr.bf16.mxu0 0
      %6272 = vmatpush2.bf16.msra.mxu0 0
      %6273 = vmatprep.subr.bf16.mxu0 0
      %6274 = vmatpush2.bf16.msra.mxu0 0
      %6275 = vmatprep.subr.bf16.mxu0 0
      %6276 = vmatpush2.bf16.msra.mxu0 0
      %6277 = vmatprep.subr.bf16.mxu0 0
      %6278 = vmatpush2.bf16.msra.mxu0 0
      %6279 = vmatprep.subr.bf16.mxu0 0
      %6280 = vmatpush2.bf16.msra.mxu0 0
      %6281 = vmatprep.mubr.bf16.mxu0 0
      %6282 = vmatmul.mubr.bf16.gmra.mxu0 %v6177
      %v6283 = vpop.f32.mrf.mxu0
      %v6284 = vadd.f32 %v6199, %v6283
      %v6285 = vpop.f32.mrf.mxu0
      %v6286 = vpop.f32.mrf.mxu0
      %v6287 = vadd.f32 %v6199, %v6286
      %v6288 = vpop.f32.mrf.mxu0
      %6289 = vdwg.mxu0
      %v6290 = vxor.u32 %v6284, 2147483648
      %v6291 = vxor.u32 %v6287, 2147483648
      %v6292 = vmul.f32 %v6290, 1.442695
      %v6293 = vpow.pop %v6292
      %v6294 = vmul.f32 %v6291, 1.442695
      %v6295 = vpow.pop %v6294
      %v6296 = vadd.f32 %v6293, 1.0
      %v6297 = vadd.f32 %v6295, 1.0
      %v6298 = vrcp.pop %v6296
      %v6299 = vmul.f32 1.0, %v6298
      %v6300 = vrcp.pop %v6297
      %v6301 = vmul.f32 1.0, %v6300
      %v6302 = vmul.f32 %v6284, %v6299
      %v6303 = vmul.f32 %v6287, %v6301
      %v6304 = vpack.c.bf16 %v6303, %v6302
      %v6305 = vld [vmem:[%s12] sm:$0xf]
      %v6306 = vld [vmem:[%s12 + $0x4] sm:$0xf]
      %v6307 = vld [vmem:[%s12 + $0x8] sm:$0xf]
      %v6308 = vld [vmem:[%s12 + $0xc] sm:$0xf]
      %v6309 = vld [vmem:[%s12 + $0x10] sm:$0xf]
      %v6310 = vld [vmem:[%s12 + $0x14] sm:$0xf]
      %v6311 = vld [vmem:[%s12 + $0x18] sm:$0xf]
      %v6312 = vld [vmem:[%s12 + $0x1c] sm:$0xf]
      %v6313 = vld [vmem:[%s13] sm:$0x1]
      %v6315 = vlaneseq
      %v6316 = vshrl.u32 %v6315, 7
      %v6317 = vsub.s32 0, %v6316
      %v6318 = vrot.slane %v6313, %v6317
      %v6328 = vunpack.c.l.b16 %v6305
      %v6329 = vunpack.c.l.b16 %v6306
      %v6330 = vunpack.c.l.b16 %v6307
      %v6331 = vunpack.c.l.b16 %v6308
      %v6332 = vunpack.c.l.b16 %v6309
      %v6333 = vunpack.c.l.b16 %v6310
      %v6334 = vunpack.c.l.b16 %v6311
      %v6335 = vunpack.c.l.b16 %v6312
      %v6336 = vpack.c.b16 %v6329, %v6328
      %v6337 = vpack.c.b16 %v6331, %v6330
      %v6338 = vpack.c.b16 %v6333, %v6332
      %v6339 = vpack.c.b16 %v6335, %v6334
      %v6345 = vsel %vm596, %v6304, 0
      %6347 = vmatprep.subr.bf16.mxu0 0
      %6348 = vmatpush1.bf16.msra.mxu0 0
      %6349 = vmatprep.subr.bf16.mxu0 0
      %6350 = vmatpush1.bf16.msra.mxu0 0
      %6351 = vmatprep.subr.bf16.mxu0 0
      %6352 = vmatpush1.bf16.msra.mxu0 0
      %6353 = vmatprep.subr.bf16.mxu0 0
      %6354 = vmatpush1.bf16.msra.mxu0 0
      %6355 = vmatprep.subr.bf16.mxu0 0
      %6356 = vmatpush1.bf16.msra.mxu0 %v6339
      %6357 = vmatprep.subr.bf16.mxu0 0
      %6358 = vmatpush1.bf16.msra.mxu0 %v6338
      %6359 = vmatprep.subr.bf16.mxu0 0
      %6360 = vmatpush1.bf16.msra.mxu0 %v6337
      %6361 = vmatprep.subr.bf16.mxu0 0
      %6362 = vmatpush1.bf16.msra.mxu0 %v6336
      %6363 = vmatprep.subr.bf16.mxu0 0
      %6364 = vmatpush2.bf16.msra.mxu0 0
      %6365 = vmatprep.subr.bf16.mxu0 0
      %6366 = vmatpush2.bf16.msra.mxu0 0
      %6367 = vmatprep.subr.bf16.mxu0 0
      %6368 = vmatpush2.bf16.msra.mxu0 0
      %6369 = vmatprep.subr.bf16.mxu0 0
      %6370 = vmatpush2.bf16.msra.mxu0 0
      %6371 = vmatprep.subr.bf16.mxu0 0
      %6372 = vmatpush2.bf16.msra.mxu0 0
      %6373 = vmatprep.subr.bf16.mxu0 0
      %6374 = vmatpush2.bf16.msra.mxu0 0
      %6375 = vmatprep.subr.bf16.mxu0 0
      %6376 = vmatpush2.bf16.msra.mxu0 0
      %6377 = vmatprep.subr.bf16.mxu0 0
      %6378 = vmatpush2.bf16.msra.mxu0 0
      %6379 = vmatprep.mubr.bf16.mxu0 0
      %6380 = vmatmul.mubr.bf16.gmra.mxu0 %v6345
      %v6381 = vpop.f32.mrf.mxu0
      %v6382 = vadd.f32 %v6318, %v6381
      %v6383 = vpop.f32.mrf.mxu0
      %v6384 = vpop.f32.mrf.mxu0
      %v6385 = vadd.f32 %v6318, %v6384
      %v6386 = vpop.f32.mrf.mxu0
      %6387 = vdwg.mxu0
      %6388 = vst [vmem:[%s469] sm:$0xff] %v6382
      %6389 = vst [vmem:[%s469 + $0x8] sm:$0xff] %v6385
      %s6390 = smul.u32 2, %s25
      %p6391 = scmp.lt.s32.totalorder %s6390, 3
      %s6392 = scalar_select %p6391, %s6390, 3
      %s6393 = smul.addr %s6392, 8
      %s6394 = scalar_lea.vmem %s14, %s6393
      // Predicated region
      $region77: #{transformer_encoder_forward.1} parent=75 // pred_check
        %p6395 = pneg %p342
      $region78: #{transformer_encoder_forward.1} parent=75 // pred_check_branch
        %6397 = sbr.rel (%p6395) target = $region80
      $region79: #{transformer_encoder_forward.1} parent=75 // pred_region
        %s6398 = smul.u32 2, %s25
      $region80: #{transformer_encoder_forward.1} parent=75 // pred_fallthru
        _
    $region76: #{transformer_encoder_forward.1} parent=5 // pred_fallthru
      _
    %p6399 = scmp.le.s32.totalorder 2, %s20
    // Predicated region
    $region81: #{transformer_encoder_forward.1} parent=5 // pred_check
      %p6400 = pneg %p6399
    $region82: #{transformer_encoder_forward.1} parent=5 // pred_check_branch
      %6402 = sbr.rel (%p6400) target = $region84
    $region83: #{transformer_encoder_forward.1} parent=5 // pred_region
      %s6403 = ssub.s32 %s20, 2
      // Predicated region
      $region85: #{transformer_encoder_forward.1} parent=83 // pred_check
        %p6404 = pneg %p348
      $region86: #{transformer_encoder_forward.1} parent=83 // pred_check_branch
        %6406 = sbr.rel (%p6404) target = $region88
      $region87: #{transformer_encoder_forward.1} parent=83 // pred_region
        %s6407 = smul.u32 2, %s26
        %p6408 = scmp.lt.s32.totalorder %s6407, 3
        %s6409 = scalar_select %p6408, %s6407, 3
        %s6410 = smul.addr %s6409, 8
        %s6411 = scalar_lea.vmem %s14, %s6410
      $region88: #{transformer_encoder_forward.1} parent=83 // pred_fallthru
        _
    $region84: #{transformer_encoder_forward.1} parent=5 // pred_fallthru
      _
  $region6: #{transformer_encoder_forward.1} parent=0 // loop_footer
    %s24 = sadd.s32 1, %s20
  $region7: #{transformer_encoder_forward.1} parent=0 // loop_footer_branch
    %19 = sbr.rel target = $region3
  $region8: #{transformer_encoder_forward.1} parent=0 // loop_exit
    _

</llo_original>
